<compile_context>
chip_gen: v6e
topology: v6e:2x2x1
jax: 0.10.0
libtpu: 0.0.40
codegen_flags: <defaults>
</compile_context>

<pallas_src>
import math
import functools

import jax
import jax.numpy as jnp
from jax import lax
from jax.experimental import pallas as pl
from jax.experimental.pallas import tpu as pltpu

BN_EPS = 1e-5
LANE = 128            # channel padding unit (lane-dense, unmasked stores)
MAX_K_SINGLE = 2048   # K above this gets tiled on a grid axis
TN_MAX = 512          # max N tile


def _round_up(v, m):
    return ((v + m - 1) // m) * m


def _vmem_budget_bytes():
    try:
        cap = int(pltpu.get_tpu_info().vmem_capacity_bytes)
    except Exception:
        return 32 * 1024 * 1024
    # v5e/v6e: 128 MiB physical -> generous scoped limit; v7x (64 MiB) / unknown: safe 32 MiB.
    return 96 * 1024 * 1024 if cap >= 128 * 1024 * 1024 else 32 * 1024 * 1024


VMEM_LIMIT = _vmem_budget_bytes()
MAX_TM = 1024 if VMEM_LIMIT >= 96 * 1024 * 1024 else 512


def _k_tiling(k):
    """nk, tk, kp with kp = nk*tk, tk a multiple of 128, minimal zero padding."""
    nk = max(1, -(-k // MAX_K_SINGLE))
    tk = _round_up(-(-k // nk), LANE)
    return nk, tk, nk * tk


def _pick_n_tile(np_):
    """Largest multiple of 128 that divides np_ and is <= TN_MAX."""
    q = np_ // LANE
    best = LANE
    for d in range(1, q + 1):
        if q % d == 0 and d * LANE <= TN_MAX:
            best = d * LANE
    return best


def _pick_m_tile(m):
    """Row tile: multiple of 16 (bf16 sublane packing), divides round_up(m,16)."""
    m16 = _round_up(max(m, 1), 16)
    tm, t = 16, 16
    while t <= min(MAX_TM, m16):
        if m16 % t == 0:
            tm = t
        t += 16
    return tm, m16


# ----------------------------- Pallas kernels ------------------------------ #

def _mm_affine_kernel(x_ref, w_ref, s_ref, b_ref, o_ref, acc_ref, *, relu):
    """y = (x @ w) * scale + shift (optional ReLU); K tiled, f32 accumulator."""
    kk = pl.program_id(2)

    @pl.when(kk == 0)
    def _():
        acc_ref[...] = jnp.zeros_like(acc_ref)

    acc_ref[...] += jnp.dot(x_ref[...], w_ref[...],
                            preferred_element_type=jnp.float32)

    @pl.when(kk == pl.num_programs(2) - 1)
    def _():
        y = acc_ref[...] * s_ref[...] + b_ref[...]
        if relu:
            y = jnp.maximum(y, 0.0)
        o_ref[...] = y.astype(o_ref.dtype)


def _mm_mask_residual_kernel(x_ref, w_ref, s_ref, b_ref, m_ref, id_ref,
                             o_ref, acc_ref):
    """conv3 + folded bn3, fused with relu(out * mask + identity) epilogue."""
    kk = pl.program_id(2)

    @pl.when(kk == 0)
    def _():
        acc_ref[...] = jnp.zeros_like(acc_ref)

    acc_ref[...] += jnp.dot(x_ref[...], w_ref[...],
                            preferred_element_type=jnp.float32)

    @pl.when(kk == pl.num_programs(2) - 1)
    def _():
        y = acc_ref[...] * s_ref[...] + b_ref[...]              # folded BN3
        y = y * m_ref[...].astype(jnp.float32) + id_ref[...].astype(jnp.float32)
        o_ref[...] = jnp.maximum(y, 0.0).astype(o_ref.dtype)


def _conv_tap_kernel(x_ref, w_ref, s_ref, b_ref, o_ref, acc_ref,
                     *, taps, wp, rows, relu):
    """3x3 stride-1 conv by tap accumulation over statically shifted row slabs
    of the flattened padded activation (no im2col slab in HBM)."""
    acc_ref[...] = jnp.zeros_like(acc_ref)
    for t, (i, j) in enumerate(taps):
        off = i * wp + j
        acc_ref[...] += jnp.dot(x_ref[0, off:off + rows, :], w_ref[t],
                                preferred_element_type=jnp.float32)
    y = acc_ref[...] * s_ref[...] + b_ref[...]
    if relu:
        y = jnp.maximum(y, 0.0)
    o_ref[0] = y.astype(o_ref.dtype)


# ------------------------------ conv wrappers ------------------------------ #

def _fused_matmul(x2d, cp, *, relu, mask2d=None, ident2d=None):
    """x2d:(M,K).  cp holds pre-padded bf16 weight (Kp,Np) + f32 affine (1,Np).
    Returns (M, Np) bf16:  affine(x@w) [+ReLU], or relu(affine(x@w)*mask + id)."""
    m, k = x2d.shape
    w = cp["w"]
    kp, np_ = w.shape
    nk, tk = cp["nk"], cp["tk"]
    assert kp == nk * tk
    tn = _pick_n_tile(np_)
    tm, mp = _pick_m_tile(m)

    if x2d.dtype != jnp.bfloat16:
        x2d = x2d.astype(jnp.bfloat16)
    if mp != m or kp != k:
        x2d = jnp.pad(x2d, ((0, mp - m), (0, kp - k)))

    args = [x2d, w, cp["scale"], cp["shift"]]
    in_specs = [
        pl.BlockSpec((tm, tk), lambda i, j, kk: (i, kk)),
        pl.BlockSpec((tk, tn), lambda i, j, kk: (kk, j)),
        pl.BlockSpec((1, tn), lambda i, j, kk: (0, j)),
        pl.BlockSpec((1, tn), lambda i, j, kk: (0, j)),
    ]
    bytes_accessed = mp * kp * 2 + kp * np_ * 2 + mp * np_ * 2
    if mask2d is None:
        kernel = functools.partial(_mm_affine_kernel, relu=relu)
    else:
        gm = mask2d.shape[1]
        if mp != m:
            mask2d = jnp.pad(mask2d, ((0, mp - m), (0, 0)))
            ident2d = jnp.pad(ident2d, ((0, mp - m), (0, 0)))
        args += [mask2d, ident2d]
        if gm == 1:
            in_specs.append(pl.BlockSpec((tm, 1), lambda i, j, kk: (i, 0)))
        else:
            in_specs.append(pl.BlockSpec((tm, tn), lambda i, j, kk: (i, j)))
        in_specs.append(pl.BlockSpec((tm, tn), lambda i, j, kk: (i, j)))
        bytes_accessed += mp * gm * 2 + mp * np_ * 2
        kernel = _mm_mask_residual_kernel

    out = pl.pallas_call(
        kernel,
        out_shape=jax.ShapeDtypeStruct((mp, np_), jnp.bfloat16),
        grid=(mp // tm, np_ // tn, nk),
        in_specs=in_specs,
        out_specs=pl.BlockSpec((tm, tn), lambda i, j, kk: (i, j)),
        scratch_shapes=[pltpu.VMEM((tm, tn), jnp.float32)],
        compiler_params=pltpu.CompilerParams(
            dimension_semantics=("parallel", "parallel", "arbitrary"),
            vmem_limit_bytes=VMEM_LIMIT),
        cost_estimate=pl.CostEstimate(flops=2 * mp * kp * np_,
                                      transcendentals=0,
                                      bytes_accessed=int(bytes_accessed)),
    )(*args)
    return out[:m] if mp != m else out


def _conv_taps(x, cp, *, relu):
    """3x3 stride-1 conv without im2col: pad spatially once, flatten rows, and
    accumulate kh*kw shifted-row matmuls inside one Pallas kernel per (batch,
    N-tile).  Output is the 'wide' (Ho, Wp) grid; invalid columns are sliced
    off afterwards."""
    b, h, w, cin_p = x.shape
    kh, kw, pad = cp["kh"], cp["kw"], cp["pad"]
    hp, wp = h + 2 * pad, w + 2 * pad
    ho, wo = h, w
    rows = ho * wp                              # wide output rows per image
    rpad = (hp + 1) * wp                        # one extra padded row covers tap overrun
    np_ = cp["w"].shape[2]
    tn = _pick_n_tile(np_)
    taps = tuple((i, j) for i in range(kh) for j in range(kw))

    xp = jnp.pad(x, ((0, 0), (pad, pad + 1), (pad, pad), (0, 0)))
    xf = xp.reshape(b, rpad, cin_p)

    kernel = functools.partial(_conv_tap_kernel, taps=taps, wp=wp, rows=rows,
                               relu=relu)
    flops = 2 * b * rows * cin_p * np_ * kh * kw
    bytes_accessed = xf.size * 2 + cp["w"].size * 2 + b * rows * np_ * 2

    out_wide = pl.pallas_call(
        kernel,
        out_shape=jax.ShapeDtypeStruct((b, rows, np_), jnp.bfloat16),
        grid=(b, np_ // tn),
        in_specs=[
            pl.BlockSpec((1, rpad, cin_p), lambda bb, nn: (bb, 0, 0)),
            pl.BlockSpec((kh * kw, cin_p, tn), lambda bb, nn: (0, 0, nn)),
            pl.BlockSpec((1, tn), lambda bb, nn: (0, nn)),
            pl.BlockSpec((1, tn), lambda bb, nn: (0, nn)),
        ],
        out_specs=pl.BlockSpec((1, rows, tn), lambda bb, nn: (bb, 0, nn)),
        scratch_shapes=[pltpu.VMEM((rows, tn), jnp.float32)],
        compiler_params=pltpu.CompilerParams(
            dimension_semantics=("parallel", "parallel"),
            vmem_limit_bytes=VMEM_LIMIT),
        cost_estimate=pl.CostEstimate(flops=flops, transcendentals=0,
                                      bytes_accessed=int(bytes_accessed)),
    )(xf, cp["w"], cp["scale"], cp["shift"])

    out = out_wide.reshape(b, ho, wp, np_)[:, :, :wo, :]
    return out


def _im2col_nhwc(x, kh, kw, stride, pad):
    """NHWC im2col (bf16 source); tap-major K ordering ((i*kw+j)*Cin + c).
    Only used for the 7x7 stem and the few stride-2 3x3 convs."""
    b, h, w, c = x.shape
    ho = (h + 2 * pad - kh) // stride + 1
    wo = (w + 2 * pad - kw) // stride + 1
    if kh == 1 and kw == 1 and pad == 0:
        if stride > 1:
            x = x[:, ::stride, ::stride, :]
        return x.reshape(b * ho * wo, c), ho, wo
    xp = jnp.pad(x, ((0, 0), (pad, pad), (pad, pad), (0, 0))) if pad > 0 else x
    taps = []
    for i in range(kh):
        for j in range(kw):
            taps.append(xp[:, i:i + stride * (ho - 1) + 1:stride,
                           j:j + stride * (wo - 1) + 1:stride, :])
    p = jnp.concatenate(taps, axis=-1)                    # (b, ho, wo, kh*kw*c)
    return p.reshape(b * ho * wo, kh * kw * c), ho, wo


def conv2d_affine(x, cp, *, stride=1, pad=0, relu=False):
    """Conv (no bias) + per-channel affine (folded BN) + optional ReLU.
    x: NHWC with channels padded to cp['cin_p'].  Returns NHWC bf16 with cout
    padded to a multiple of 128 (padded channels are exactly zero)."""
    if cp["layout"] == "taps":
        assert stride == 1
        return _conv_taps(x, cp, relu=relu)
    b = x.shape[0]
    p2d, ho, wo = _im2col_nhwc(x, cp["kh"], cp["kw"], stride, pad)
    y = _fused_matmul(p2d, cp, relu=relu)
    return y.reshape(b, ho, wo, y.shape[-1])


def conv2d_1x1_mask_residual(x, cp, mask, identity):
    """1x1 conv (stride 1) + folded bn3, fused with relu(out*mask + identity)."""
    b, h, w, cin_p = x.shape
    c = cp["cout"]
    np_ = cp["w"].shape[1]
    m = b * h * w
    p2d = x.reshape(m, cin_p)
    g = mask.shape[-1]
    if g == 1:
        m2d = mask.reshape(m, 1).astype(jnp.bfloat16)     # lane-broadcast in kernel
    else:
        mfull = mask if g == c else jnp.repeat(mask, c // g, axis=-1)
        m2d = jnp.pad(mfull.reshape(m, c), ((0, 0), (0, np_ - c))).astype(jnp.bfloat16)
    id2d = identity.reshape(m, np_).astype(jnp.bfloat16)  # already channel-padded bf16
    y = _fused_matmul(p2d, cp, relu=False, mask2d=m2d, ident2d=id2d)
    return y.reshape(b, h, w, np_)


# --------------------------- pooling / mask glue ---------------------------- #

def adaptive_avg_pool_nhwc(x, out_size):
    b, h, w, c = x.shape
    assert h % out_size == 0 and w % out_size == 0
    x = x.reshape(b, out_size, h // out_size, out_size, w // out_size, c)
    return x.mean(axis=(2, 4))


def max_pool_3x3_s2_p1_nhwc(x):
    return lax.reduce_window(
        x, jnp.asarray(-jnp.inf, dtype=x.dtype), lax.max,
        window_dimensions=(1, 3, 3, 1),
        window_strides=(1, 2, 2, 1),
        padding=((0, 0), (1, 1), (1, 1), (0, 0)))


def nearest_resize_nhwc(m, size):
    b, h, w, g = m.shape
    if size % h == 0 and size % w == 0:
        return jnp.repeat(jnp.repeat(m, size // h, axis=1), size // w, axis=2)
    return jax.image.resize(m, (b, size, size, g), method="nearest")


def expand_mask_nhwc(mask, stride, padding=1):
    """ExpandMask.forward: zero-upsample (conv_transpose delta kernel) then
    dilate with the dense all-ones (2p+1)x(2p+1) kernel (each output channel is
    the window-sum over all groups), threshold > 0.5."""
    b, h, w, g = mask.shape
    x = mask.astype(jnp.float32)
    if stride > 1:
        up = jnp.zeros((b, h * stride, w * stride, g), jnp.float32)
        x = up.at[:, ::stride, ::stride, :].set(x)
    s = jnp.sum(x, axis=-1, keepdims=True)
    k = 1 + 2 * padding
    dil = lax.reduce_window(
        s, 0.0, lax.add,
        window_dimensions=(1, k, k, 1),
        window_strides=(1, 1, 1, 1),
        padding=((0, 0), (padding, padding), (padding, padding), (0, 0)))
    dil = jnp.broadcast_to(dil, (b, dil.shape[1], dil.shape[2], g))
    return dil > 0.5


# ------------------------------ model pieces ------------------------------- #

def masker_forward(mp_, x, temperature):
    # TODO(synk): training-mode Gumbel-softmax sampling not implemented; this is
    # the eval-mode hard-threshold path of Masker.forward.
    del temperature
    mask_size = mp_["mask_size"]
    m_in = adaptive_avg_pool_nhwc(x, mask_size) if mask_size < x.shape[1] else x
    flops = mp_["cin"] * m_in.shape[1] * m_in.shape[2]
    # Tiny 1x1 conv (cout = 2g): plain XLA dot in f32 — a Pallas matmul here
    # would be >94% dead padded lanes plus an extra kernel launch.
    logits_m = jnp.einsum("bhwc,cd->bhwd", m_in.astype(jnp.float32), mp_["w"]) + mp_["b"]
    flops += mp_["conv2_flops_pp"] * logits_m.shape[1] * logits_m.shape[2]
    b, h, w, c2 = logits_m.shape
    g = c2 // 2
    mask = (logits_m[..., :g] >= logits_m[..., g:]).astype(jnp.float32)
    sparsity = mask.sum() / mask.size
    if h < mp_["feature_size"]:
        mask = nearest_resize_nhwc(mask, mp_["feature_size"])
    mask_dil = expand_mask_nhwc(mask, mp_["dilate_stride"], padding=1)
    sparsity_dil = mask_dil.sum() / mask_dil.size
    return mask, mask_dil, sparsity, sparsity_dil, flops


def bottleneck_forward(p, carry, temperature):
    x, sp_list, spd_list, perc_list, flops = carry
    identity = x
    mask, mask_dil, sparsity, sparsity_dil, mask_flops = masker_forward(
        p["masker"], x, temperature)
    sparse_flops = jnp.asarray(mask_flops, jnp.float32)
    dense_flops = float(mask_flops)
    sp_list = sp_list + [sparsity]
    spd_list = spd_list + [sparsity_dil]

    # TODO(synk): the mask only scales the FLOP counters (as in the reference
    # math); tile-level compute skipping (scalar-prefetch active-tile lists +
    # pl.when) is not implemented — conv compute stays dense.
    out = conv2d_affine(x, p["conv1"], stride=1, pad=0, relu=True)
    hw = out.shape[1] * out.shape[2]
    dense_flops += p["conv1_fpp"] * hw
    sparse_flops = sparse_flops + p["conv1_fpp"] * hw * sparsity_dil

    out = conv2d_affine(out, p["conv2"], stride=p["stride"], pad=1, relu=True)
    hw = out.shape[1] * out.shape[2]
    dense_flops += p["conv2_fpp"] * hw
    sparse_flops = sparse_flops + p["conv2_fpp"] * hw * sparsity

    dense_flops += p["conv3_fpp"] * hw
    sparse_flops = sparse_flops + p["conv3_fpp"] * hw * sparsity

    if p["downsample"] is not None:
        # TODO(synk): for stride-1 blocks the masker conv / conv1 / downsample
        # all consume the same x and could be fused into one wider matmul.
        identity = conv2d_affine(x, p["downsample"], stride=p["stride"],
                                 pad=0, relu=False)
        hw_id = identity.shape[1] * identity.shape[2]
        dense_flops += p["ds_flops"] * hw_id
        sparse_flops = sparse_flops + p["ds_flops"] * hw_id

    # conv3 + bn3 + apply_mask + residual + relu, all fused in one Pallas kernel.
    out = conv2d_1x1_mask_residual(out, p["conv3"], mask, identity)

    flops = flops + sparse_flops
    perc = sparse_flops / dense_flops
    perc_list = perc_list + [perc]
    return (out, sp_list, spd_list, perc_list, flops)


def resnet_forward(params, x_nchw, temperature=1.0):
    c_in = x_nchw.shape[1]
    x = jnp.transpose(x_nchw, (0, 2, 3, 1)).astype(jnp.bfloat16)   # NHWC + bf16, once
    x = conv2d_affine(x, params["conv1"], stride=2, pad=3, relu=True)
    cout1 = params["conv1"]["cout"]
    flops = c_in * cout1 * x.shape[1] * x.shape[2] * 7 * 7
    x = max_pool_3x3_s2_p1_nhwc(x)
    flops += cout1 * x.shape[1] * x.shape[2] * 9

    carry = (x, [], [], [], float(flops))
    for bp in params["blocks"]:
        carry = bottleneck_forward(bp, carry, temperature)
    x, sp, spd, perc, flops = carry

    pooled = jnp.mean(x.astype(jnp.float32), axis=(1, 2))   # AdaptiveAvgPool2d((1,1))
    feat = pooled[:, :params["fc_in"]]                       # drop zero-padded channels
    flops = flops + params["fc_in"]
    # Final FC (tiny M, N): plain XLA dot — padding it to MXU tiles would be waste.
    logits = jnp.dot(feat, params["fc_w_t"]) + params["fc_b"]
    flops = flops + params["fc_in"] * logits.shape[1]
    return (logits, jnp.stack(sp), jnp.stack(spd), jnp.stack(perc), flops)


# ------------------------------- param init -------------------------------- #

def bn_fold(c):
    gamma = jnp.ones((c,), jnp.float32)
    beta = jnp.zeros((c,), jnp.float32)
    mean = jnp.zeros((c,), jnp.float32)
    var = jnp.ones((c,), jnp.float32)
    scale = gamma / jnp.sqrt(var + BN_EPS)
    shift = beta - mean * scale
    return scale, shift


def kaiming_conv(key, cout, cin, kh, kw):
    std = math.sqrt(2.0 / (cout * kh * kw))   # kaiming_normal_, fan_out, relu
    return std * jax.random.normal(key, (cout, cin, kh, kw), jnp.float32)


def _affine_pad(scale, shift, cout, np_):
    return (jnp.pad(scale, (0, np_ - cout)).reshape(1, np_),
            jnp.pad(shift, (0, np_ - cout)).reshape(1, np_))


def prep_conv_matmul(w_oihw, scale, shift, cin_p=None):
    """(Cout,Cin,kh,kw) weight + affine -> bf16 (Kp,Np) matmul layout.
    K ordering is tap-major over the *channel-padded* input (cin_p), Kp = nk*tk
    (tk multiple of 128), Np = round_up(cout, 128)."""
    cout, cin, kh, kw = w_oihw.shape
    cin_p = cin if cin_p is None else cin_p
    np_ = _round_up(cout, LANE)
    k = kh * kw * cin_p
    nk, tk, kp = _k_tiling(k)
    wt = jnp.transpose(w_oihw, (2, 3, 1, 0))                       # (kh,kw,cin,cout)
    wt = jnp.pad(wt, ((0, 0), (0, 0), (0, cin_p - cin), (0, np_ - cout)))
    wm = wt.reshape(k, np_)
    if kp != k:
        wm = jnp.pad(wm, ((0, kp - k), (0, 0)))
    s, b = _affine_pad(scale, shift, cout, np_)
    return {"layout": "matmul", "w": wm.astype(jnp.bfloat16),
            "scale": s, "shift": b,
            "cout": cout, "cin": cin, "cin_p": cin_p,
            "kh": kh, "kw": kw, "nk": nk, "tk": tk}


def prep_conv_taps(w_oihw, scale, shift, cin_p):
    """(Cout,Cin,kh,kw) weight + affine -> bf16 (kh*kw, cin_p, Np) tap layout
    for the stride-1 tap-accumulation kernel."""
    cout, cin, kh, kw = w_oihw.shape
    np_ = _round_up(cout, LANE)
    wt = jnp.transpose(w_oihw, (2, 3, 1, 0))
    wt = jnp.pad(wt, ((0, 0), (0, 0), (0, cin_p - cin), (0, np_ - cout)))
    s, b = _affine_pad(scale, shift, cout, np_)
    return {"layout": "taps", "w": wt.reshape(kh * kw, cin_p, np_).astype(jnp.bfloat16),
            "scale": s, "shift": b,
            "cout": cout, "cin": cin, "cin_p": cin_p,
            "kh": kh, "kw": kw, "pad": (kh - 1) // 2}


def make_bottleneck_params(key, inplanes, planes, stride, output_size,
                           mask_channel_group, mask_spatial_granularity, groups=1):
    expansion = 4
    base_width = 64
    width = int(planes * (base_width / 64.0)) * groups
    ks = jax.random.split(key, 6)
    has_downsample = (stride != 1) or (inplanes != planes * expansion)
    g = mask_channel_group
    cin_p = _round_up(inplanes, LANE)
    width_p = _round_up(width, LANE)

    bias = 0.1 * jax.random.normal(ks[5], (2 * g,), jnp.float32)
    bias = bias.at[:g].set(5.0)
    if 2 * g > g + 1:
        bias = bias.at[g + 1:].set(1.0)
    mask_size = output_size // mask_spatial_granularity

    conv2_w = kaiming_conv(ks[1], width, width, 3, 3)
    if stride == 1:
        conv2 = prep_conv_taps(conv2_w, *bn_fold(width), cin_p=width_p)
    else:
        conv2 = prep_conv_matmul(conv2_w, *bn_fold(width), cin_p=width_p)

    mw = 0.1 * jax.random.normal(ks[4], (2 * g, inplanes), jnp.float32)
    mw = jnp.pad(jnp.transpose(mw), ((0, cin_p - inplanes), (0, 0)))   # (cin_p, 2g)

    p = {
        "stride": stride,
        "conv1": prep_conv_matmul(kaiming_conv(ks[0], width, inplanes, 1, 1),
                                  *bn_fold(width), cin_p=cin_p),
        "conv2": conv2,
        "conv3": prep_conv_matmul(kaiming_conv(ks[2], planes * expansion, width, 1, 1),
                                  *bn_fold(planes * expansion), cin_p=width_p),
        "conv1_fpp": inplanes * width,
        "conv2_fpp": width * width * 9 // groups,
        "conv3_fpp": width * planes * expansion,
        "masker": {
            "w": mw, "b": bias, "cin": inplanes,
            "mask_size": mask_size,
            "feature_size": output_size,
            "dilate_stride": stride,
            "conv2_flops_pp": (2 * g) * inplanes + inplanes,
        },
        "downsample": None,
    }
    if has_downsample:
        p["downsample"] = prep_conv_matmul(
            kaiming_conv(ks[3], planes * expansion, inplanes, 1, 1),
            *bn_fold(planes * expansion), cin_p=cin_p)
        p["ds_flops"] = inplanes * planes * expansion
    return p, planes * expansion


def make_resnet_params(key, layers, num_classes, width_mult, input_size,
                       mask_channel_group, mask_spatial_granularity):
    inplanes = int(64 * width_mult)
    keys = jax.random.split(key, 2 + sum(layers))
    params = {
        "conv1": prep_conv_matmul(kaiming_conv(keys[0], inplanes, 3, 7, 7),
                                  *bn_fold(inplanes), cin_p=3),
        "blocks": [],
    }
    stage_planes = [int(64 * width_mult), int(128 * width_mult),
                    int(256 * width_mult), int(512 * width_mult)]
    stage_strides = [1, 2, 2, 2]
    stage_out = [input_size // 4, input_size // 8, input_size // 16, input_size // 32]
    ki, mi = 1, 0
    for s in range(4):
        for j in range(layers[s]):
            stride = stage_strides[s] if j == 0 else 1
            bp, inplanes = make_bottleneck_params(
                keys[ki], inplanes, stage_planes[s], stride, stage_out[s],
                mask_channel_group[mi], mask_spatial_granularity[mi])
            params["blocks"].append(bp)
            ki += 1
            mi += 1
    fc_in = int(512 * width_mult * 4)
    fc_w = 0.02 * jax.random.normal(keys[ki], (num_classes, fc_in), jnp.float32)
    params["fc_w_t"] = jnp.transpose(fc_w)      # pre-transposed (fc_in, num_classes)
    params["fc_b"] = jnp.zeros((num_classes,), jnp.float32)
    params["fc_in"] = fc_in
    return params


# ---------------------------------- main ----------------------------------- #

if __name__ == "__main__":
    key = jax.random.PRNGKey(0)
    pkey, xkey = jax.random.split(key)

    layers = [1, 1, 1, 1]                 # one Bottleneck per stage (small config)
    num_classes = 10
    width_mult = 0.25                     # stem channels = 16
    input_size = 32                       # feature maps 8 / 4 / 2 / 1

    params = make_resnet_params(
        pkey, layers, num_classes=num_classes, width_mult=width_mult,
        input_size=input_size,
        mask_channel_group=[1] * sum(layers),
        mask_spatial_granularity=[1] * sum(layers))

    x = jax.random.normal(xkey, (2, 3, 32, 32), jnp.float32)

    fwd = jax.jit(lambda inp: resnet_forward(params, inp, temperature=1.0))
    outs = fwd(x)
    jax.block_until_ready(outs)
    logits, sparsity_list, sparsity_list_dil, flops_perc_list, flops = outs

    assert logits.shape == (2, num_classes)
    assert sparsity_list.shape == (sum(layers),)
    assert sparsity_list_dil.shape == (sum(layers),)
    assert flops_perc_list.shape == (sum(layers),)
    assert bool(jnp.all(jnp.isfinite(logits)))
    print("KERNEL_OK")
</pallas_src>

<mosaic_0001>
module attributes {stable_mosaic.version = 11 : i64} {
  func.func @_mm_affine_kernel(%arg0: i32, %arg1: i32, %arg2: i32, %arg3: memref<512x256xbf16, #tpu.memory_space<vmem>>, %arg4: memref<256x128xbf16, #tpu.memory_space<vmem>>, %arg5: memref<1x128xf32, #tpu.memory_space<vmem>>, %arg6: memref<1x128xf32, #tpu.memory_space<vmem>>, %arg7: memref<512x128xbf16, #tpu.memory_space<vmem>>, %arg8: memref<512x128xf32, #tpu.memory_space<vmem>>) attributes {dimension_semantics = [#tpu.dimension_semantics<parallel>, #tpu.dimension_semantics<parallel>, #tpu.dimension_semantics<arbitrary>], iteration_bounds = array<i64: 1, 1, 1>, scalar_prefetch = 0 : i64, scratch_operands = 1 : i64, tpu.core_type = #tpu.core_type<tc>, window_params = [{transform_indices = @transform_0, window_bounds = array<i64: 512, 256>}, {transform_indices = @transform_1, window_bounds = array<i64: 256, 128>}, {transform_indices = @transform_2, window_bounds = array<i64: 1, 128>}, {transform_indices = @transform_3, window_bounds = array<i64: 1, 128>}, {transform_indices = @transform_4, window_bounds = array<i64: 512, 128>}]} {
    %c0_i32 = arith.constant 0 : i32
    %0 = arith.cmpi eq, %arg2, %c0_i32 : i32
    %1 = arith.extui %0 : i1 to i32
    %c0_i32_0 = arith.constant 0 : i32
    %2 = arith.cmpi ne, %1, %c0_i32_0 : i32
    scf.if %2 {
      %cst_10 = arith.constant 0.000000e+00 : f32
      %12 = vector.broadcast %cst_10 : f32 to vector<512x128xf32>
      %c0_11 = arith.constant 0 : index
      %c0_12 = arith.constant 0 : index
      %13 = vector.load %arg8[%c0_11, %c0_12] : memref<512x128xf32, #tpu.memory_space<vmem>>, vector<512x128xf32>
      tpu.vector_store %arg8[%c0_11, %c0_12], %12 {strides = array<i32>} : memref<512x128xf32, #tpu.memory_space<vmem>>, vector<512x128xf32>,
    } else {
    }
    %c0 = arith.constant 0 : index
    %c0_1 = arith.constant 0 : index
    %3 = vector.load %arg8[%c0, %c0_1] : memref<512x128xf32, #tpu.memory_space<vmem>>, vector<512x128xf32>
    %c0_2 = arith.constant 0 : index
    %c0_3 = arith.constant 0 : index
    %4 = vector.load %arg3[%c0_2, %c0_3] : memref<512x256xbf16, #tpu.memory_space<vmem>>, vector<512x256xbf16>
    %c0_4 = arith.constant 0 : index
    %c0_5 = arith.constant 0 : index
    %5 = vector.load %arg4[%c0_4, %c0_5] : memref<256x128xbf16, #tpu.memory_space<vmem>>, vector<256x128xbf16>
    %cst = arith.constant dense<0.000000e+00> : vector<512x128xf32>
    %6 = tpu.matmul %4, %5, %cst {dimension_numbers = #tpu.dot_dimension_numbers<[1], [0], [0], [1], [0, 0, 1, 1], [], []>} : vector<512x256xbf16>, vector<256x128xbf16>, vector<512x128xf32> -> vector<512x128xf32>
    %7 = arith.addf %3, %6 : vector<512x128xf32>
    %c0_6 = arith.constant 0 : index
    %c0_7 = arith.constant 0 : index
    %8 = vector.load %arg8[%c0_6, %c0_7] : memref<512x128xf32, #tpu.memory_space<vmem>>, vector<512x128xf32>
    tpu.vector_store %arg8[%c0_6, %c0_7], %7 {strides = array<i32>} : memref<512x128xf32, #tpu.memory_space<vmem>>, vector<512x128xf32>,
    %c0_i32_8 = arith.constant 0 : i32
    %9 = arith.cmpi eq, %arg2, %c0_i32_8 : i32
    %10 = arith.extui %9 : i1 to i32
    %c0_i32_9 = arith.constant 0 : i32
    %11 = arith.cmpi ne, %10, %c0_i32_9 : i32
    scf.if %11 {
      %c0_10 = arith.constant 0 : index
      %c0_11 = arith.constant 0 : index
      %12 = vector.load %arg8[%c0_10, %c0_11] : memref<512x128xf32, #tpu.memory_space<vmem>>, vector<512x128xf32>
      %c0_12 = arith.constant 0 : index
      %c0_13 = arith.constant 0 : index
      %13 = vector.load %arg5[%c0_12, %c0_13] : memref<1x128xf32, #tpu.memory_space<vmem>>, vector<1x128xf32>
      %14 = vector.broadcast %13 : vector<1x128xf32> to vector<512x128xf32>
      %15 = arith.mulf %12, %14 : vector<512x128xf32>
      %c0_14 = arith.constant 0 : index
      %c0_15 = arith.constant 0 : index
      %16 = vector.load %arg6[%c0_14, %c0_15] : memref<1x128xf32, #tpu.memory_space<vmem>>, vector<1x128xf32>
      %17 = vector.broadcast %16 : vector<1x128xf32> to vector<512x128xf32>
      %18 = arith.addf %15, %17 : vector<512x128xf32>
      %cst_16 = arith.constant 0.000000e+00 : f32
      %19 = vector.broadcast %cst_16 : f32 to vector<512x128xf32>
      %20 = arith.maximumf %18, %19 : vector<512x128xf32>
      %21 = arith.truncf %20 : vector<512x128xf32> to vector<512x128xbf16>
      %c0_17 = arith.constant 0 : index
      %c0_18 = arith.constant 0 : index
      %22 = vector.load %arg7[%c0_17, %c0_18] : memref<512x128xbf16, #tpu.memory_space<vmem>>, vector<512x128xbf16>
      tpu.vector_store %arg7[%c0_17, %c0_18], %21 {strides = array<i32>} : memref<512x128xbf16, #tpu.memory_space<vmem>>, vector<512x128xbf16>,
    } else {
    }
    return
  }
  func.func @transform_0(%arg0: i32, %arg1: i32, %arg2: i32) -> (i32, i32) {
    %c0_i32 = arith.constant 0 : i32
    return %arg0, %arg2 : i32, i32
  }
  func.func @transform_1(%arg0: i32, %arg1: i32, %arg2: i32) -> (i32, i32) {
    %c0_i32 = arith.constant 0 : i32
    return %arg2, %arg1 : i32, i32
  }
  func.func @transform_2(%arg0: i32, %arg1: i32, %arg2: i32) -> (i32, i32) {
    %c0_i32 = arith.constant 0 : i32
    %c0_i32_0 = arith.constant 0 : i32
    return %c0_i32, %arg1 : i32, i32
  }
  func.func @transform_3(%arg0: i32, %arg1: i32, %arg2: i32) -> (i32, i32) {
    %c0_i32 = arith.constant 0 : i32
    %c0_i32_0 = arith.constant 0 : i32
    return %c0_i32, %arg1 : i32, i32
  }
  func.func @transform_4(%arg0: i32, %arg1: i32, %arg2: i32) -> (i32, i32) {
    %c0_i32 = arith.constant 0 : i32
    return %arg0, %arg1 : i32, i32
  }
}

module attributes {stable_mosaic.version = 11 : i64} {
  func.func @_mm_affine_kernel(%arg0: i32, %arg1: i32, %arg2: i32, %arg3: memref<128x128xbf16, #tpu.memory_space<vmem>>, %arg4: memref<128x128xbf16, #tpu.memory_space<vmem>>, %arg5: memref<1x128xf32, #tpu.memory_space<vmem>>, %arg6: memref<1x128xf32, #tpu.memory_space<vmem>>, %arg7: memref<128x128xbf16, #tpu.memory_space<vmem>>, %arg8: memref<128x128xf32, #tpu.memory_space<vmem>>) attributes {dimension_semantics = [#tpu.dimension_semantics<parallel>, #tpu.dimension_semantics<parallel>, #tpu.dimension_semantics<arbitrary>], iteration_bounds = array<i64: 1, 1, 1>, scalar_prefetch = 0 : i64, scratch_operands = 1 : i64, tpu.core_type = #tpu.core_type<tc>, window_params = [{transform_indices = @transform_0, window_bounds = array<i64: 128, 128>}, {transform_indices = @transform_1, window_bounds = array<i64: 128, 128>}, {transform_indices = @transform_2, window_bounds = array<i64: 1, 128>}, {transform_indices = @transform_3, window_bounds = array<i64: 1, 128>}, {transform_indices = @transform_4, window_bounds = array<i64: 128, 128>}]} {
    %c0_i32 = arith.constant 0 : i32
    %0 = arith.cmpi eq, %arg2, %c0_i32 : i32
    %1 = arith.extui %0 : i1 to i32
    %c0_i32_0 = arith.constant 0 : i32
    %2 = arith.cmpi ne, %1, %c0_i32_0 : i32
    scf.if %2 {
      %cst_10 = arith.constant 0.000000e+00 : f32
      %12 = vector.broadcast %cst_10 : f32 to vector<128x128xf32>
      %c0_11 = arith.constant 0 : index
      %c0_12 = arith.constant 0 : index
      %13 = vector.load %arg8[%c0_11, %c0_12] : memref<128x128xf32, #tpu.memory_space<vmem>>, vector<128x128xf32>
      tpu.vector_store %arg8[%c0_11, %c0_12], %12 {strides = array<i32>} : memref<128x128xf32, #tpu.memory_space<vmem>>, vector<128x128xf32>,
    } else {
    }
    %c0 = arith.constant 0 : index
    %c0_1 = arith.constant 0 : index
    %3 = vector.load %arg8[%c0, %c0_1] : memref<128x128xf32, #tpu.memory_space<vmem>>, vector<128x128xf32>
    %c0_2 = arith.constant 0 : index
    %c0_3 = arith.constant 0 : index
    %4 = vector.load %arg3[%c0_2, %c0_3] : memref<128x128xbf16, #tpu.memory_space<vmem>>, vector<128x128xbf16>
    %c0_4 = arith.constant 0 : index
    %c0_5 = arith.constant 0 : index
    %5 = vector.load %arg4[%c0_4, %c0_5] : memref<128x128xbf16, #tpu.memory_space<vmem>>, vector<128x128xbf16>
    %cst = arith.constant dense<0.000000e+00> : vector<128x128xf32>
    %6 = tpu.matmul %4, %5, %cst {dimension_numbers = #tpu.dot_dimension_numbers<[1], [0], [0], [1], [0, 0, 1, 1], [], []>} : vector<128x128xbf16>, vector<128x128xbf16>, vector<128x128xf32> -> vector<128x128xf32>
    %7 = arith.addf %3, %6 : vector<128x128xf32>
    %c0_6 = arith.constant 0 : index
    %c0_7 = arith.constant 0 : index
    %8 = vector.load %arg8[%c0_6, %c0_7] : memref<128x128xf32, #tpu.memory_space<vmem>>, vector<128x128xf32>
    tpu.vector_store %arg8[%c0_6, %c0_7], %7 {strides = array<i32>} : memref<128x128xf32, #tpu.memory_space<vmem>>, vector<128x128xf32>,
    %c0_i32_8 = arith.constant 0 : i32
    %9 = arith.cmpi eq, %arg2, %c0_i32_8 : i32
    %10 = arith.extui %9 : i1 to i32
    %c0_i32_9 = arith.constant 0 : i32
    %11 = arith.cmpi ne, %10, %c0_i32_9 : i32
    scf.if %11 {
      %c0_10 = arith.constant 0 : index
      %c0_11 = arith.constant 0 : index
      %12 = vector.load %arg8[%c0_10, %c0_11] : memref<128x128xf32, #tpu.memory_space<vmem>>, vector<128x128xf32>
      %c0_12 = arith.constant 0 : index
      %c0_13 = arith.constant 0 : index
      %13 = vector.load %arg5[%c0_12, %c0_13] : memref<1x128xf32, #tpu.memory_space<vmem>>, vector<1x128xf32>
      %14 = vector.broadcast %13 : vector<1x128xf32> to vector<128x128xf32>
      %15 = arith.mulf %12, %14 : vector<128x128xf32>
      %c0_14 = arith.constant 0 : index
      %c0_15 = arith.constant 0 : index
      %16 = vector.load %arg6[%c0_14, %c0_15] : memref<1x128xf32, #tpu.memory_space<vmem>>, vector<1x128xf32>
      %17 = vector.broadcast %16 : vector<1x128xf32> to vector<128x128xf32>
      %18 = arith.addf %15, %17 : vector<128x128xf32>
      %cst_16 = arith.constant 0.000000e+00 : f32
      %19 = vector.broadcast %cst_16 : f32 to vector<128x128xf32>
      %20 = arith.maximumf %18, %19 : vector<128x128xf32>
      %21 = arith.truncf %20 : vector<128x128xf32> to vector<128x128xbf16>
      %c0_17 = arith.constant 0 : index
      %c0_18 = arith.constant 0 : index
      %22 = vector.load %arg7[%c0_17, %c0_18] : memref<128x128xbf16, #tpu.memory_space<vmem>>, vector<128x128xbf16>
      tpu.vector_store %arg7[%c0_17, %c0_18], %21 {strides = array<i32>} : memref<128x128xbf16, #tpu.memory_space<vmem>>, vector<128x128xbf16>,
    } else {
    }
    return
  }
  func.func @transform_0(%arg0: i32, %arg1: i32, %arg2: i32) -> (i32, i32) {
    %c0_i32 = arith.constant 0 : i32
    return %arg0, %arg2 : i32, i32
  }
  func.func @transform_1(%arg0: i32, %arg1: i32, %arg2: i32) -> (i32, i32) {
    %c0_i32 = arith.constant 0 : i32
    return %arg2, %arg1 : i32, i32
  }
  func.func @transform_2(%arg0: i32, %arg1: i32, %arg2: i32) -> (i32, i32) {
    %c0_i32 = arith.constant 0 : i32
    %c0_i32_0 = arith.constant 0 : i32
    return %c0_i32, %arg1 : i32, i32
  }
  func.func @transform_3(%arg0: i32, %arg1: i32, %arg2: i32) -> (i32, i32) {
    %c0_i32 = arith.constant 0 : i32
    %c0_i32_0 = arith.constant 0 : i32
    return %c0_i32, %arg1 : i32, i32
  }
  func.func @transform_4(%arg0: i32, %arg1: i32, %arg2: i32) -> (i32, i32) {
    %c0_i32 = arith.constant 0 : i32
    return %arg0, %arg1 : i32, i32
  }
}

module attributes {stable_mosaic.version = 11 : i64} {
  func.func @_conv_tap_kernel(%arg0: i32, %arg1: i32, %arg2: memref<1x110x128xbf16, #tpu.memory_space<vmem>>, %arg3: memref<9x128x128xbf16, #tpu.memory_space<vmem>>, %arg4: memref<1x128xf32, #tpu.memory_space<vmem>>, %arg5: memref<1x128xf32, #tpu.memory_space<vmem>>, %arg6: memref<1x80x128xbf16, #tpu.memory_space<vmem>>, %arg7: memref<80x128xf32, #tpu.memory_space<vmem>>) attributes {dimension_semantics = [#tpu.dimension_semantics<parallel>, #tpu.dimension_semantics<parallel>], iteration_bounds = array<i64: 2, 1>, scalar_prefetch = 0 : i64, scratch_operands = 1 : i64, tpu.core_type = #tpu.core_type<tc>, window_params = [{transform_indices = @transform_0, window_bounds = array<i64: 1, 110, 128>}, {transform_indices = @transform_1, window_bounds = array<i64: 9, 128, 128>}, {transform_indices = @transform_2, window_bounds = array<i64: 1, 128>}, {transform_indices = @transform_3, window_bounds = array<i64: 1, 128>}, {transform_indices = @transform_4, window_bounds = array<i64: 1, 80, 128>}]} {
    %cst = arith.constant 0.000000e+00 : f32
    %0 = vector.broadcast %cst : f32 to vector<80x128xf32>
    %c0 = arith.constant 0 : index
    %c0_0 = arith.constant 0 : index
    %1 = vector.load %arg7[%c0, %c0_0] : memref<80x128xf32, #tpu.memory_space<vmem>>, vector<80x128xf32>
    tpu.vector_store %arg7[%c0, %c0_0], %0 {strides = array<i32>} : memref<80x128xf32, #tpu.memory_space<vmem>>, vector<80x128xf32>,
    %c0_1 = arith.constant 0 : index
    %c0_2 = arith.constant 0 : index
    %2 = vector.load %arg7[%c0_1, %c0_2] : memref<80x128xf32, #tpu.memory_space<vmem>>, vector<80x128xf32>
    %c0_3 = arith.constant 0 : index
    %c0_4 = arith.constant 0 : index
    %c0_5 = arith.constant 0 : index
    %3 = vector.load %arg2[%c0_3, %c0_4, %c0_5] : memref<1x110x128xbf16, #tpu.memory_space<vmem>>, vector<1x80x128xbf16>
    %4 = vector.shape_cast %3 : vector<1x80x128xbf16> to vector<80x128xbf16>
    %c0_6 = arith.constant 0 : index
    %c0_7 = arith.constant 0 : index
    %c0_8 = arith.constant 0 : index
    %5 = vector.load %arg3[%c0_6, %c0_7, %c0_8] : memref<9x128x128xbf16, #tpu.memory_space<vmem>>, vector<1x128x128xbf16>
    %6 = vector.shape_cast %5 : vector<1x128x128xbf16> to vector<128x128xbf16>
    %cst_9 = arith.constant dense<0.000000e+00> : vector<80x128xf32>
    %7 = tpu.matmul %4, %6, %cst_9 {dimension_numbers = #tpu.dot_dimension_numbers<[1], [0], [0], [1], [0, 0, 1, 1], [], []>} : vector<80x128xbf16>, vector<128x128xbf16>, vector<80x128xf32> -> vector<80x128xf32>
    %8 = arith.addf %2, %7 : vector<80x128xf32>
    %c0_10 = arith.constant 0 : index
    %c0_11 = arith.constant 0 : index
    %9 = vector.load %arg7[%c0_10, %c0_11] : memref<80x128xf32, #tpu.memory_space<vmem>>, vector<80x128xf32>
    tpu.vector_store %arg7[%c0_10, %c0_11], %8 {strides = array<i32>} : memref<80x128xf32, #tpu.memory_space<vmem>>, vector<80x128xf32>,
    %c0_12 = arith.constant 0 : index
    %c0_13 = arith.constant 0 : index
    %10 = vector.load %arg7[%c0_12, %c0_13] : memref<80x128xf32, #tpu.memory_space<vmem>>, vector<80x128xf32>
    %c0_14 = arith.constant 0 : index
    %c1 = arith.constant 1 : index
    %c0_15 = arith.constant 0 : index
    %11 = vector.load %arg2[%c0_14, %c1, %c0_15] : memref<1x110x128xbf16, #tpu.memory_space<vmem>>, vector<1x80x128xbf16>
    %12 = vector.shape_cast %11 : vector<1x80x128xbf16> to vector<80x128xbf16>
    %c1_16 = arith.constant 1 : index
    %c0_17 = arith.constant 0 : index
    %c0_18 = arith.constant 0 : index
    %13 = vector.load %arg3[%c1_16, %c0_17, %c0_18] : memref<9x128x128xbf16, #tpu.memory_space<vmem>>, vector<1x128x128xbf16>
    %14 = vector.shape_cast %13 : vector<1x128x128xbf16> to vector<128x128xbf16>
    %cst_19 = arith.constant dense<0.000000e+00> : vector<80x128xf32>
    %15 = tpu.matmul %12, %14, %cst_19 {dimension_numbers = #tpu.dot_dimension_numbers<[1], [0], [0], [1], [0, 0, 1, 1], [], []>} : vector<80x128xbf16>, vector<128x128xbf16>, vector<80x128xf32> -> vector<80x128xf32>
    %16 = arith.addf %10, %15 : vector<80x128xf32>
    %c0_20 = arith.constant 0 : index
    %c0_21 = arith.constant 0 : index
    %17 = vector.load %arg7[%c0_20, %c0_21] : memref<80x128xf32, #tpu.memory_space<vmem>>, vector<80x128xf32>
    tpu.vector_store %arg7[%c0_20, %c0_21], %16 {strides = array<i32>} : memref<80x128xf32, #tpu.memory_space<vmem>>, vector<80x128xf32>,
    %c0_22 = arith.constant 0 : index
    %c0_23 = arith.constant 0 : index
    %18 = vector.load %arg7[%c0_22, %c0_23] : memref<80x128xf32, #tpu.memory_space<vmem>>, vector<80x128xf32>
    %c0_24 = arith.constant 0 : index
    %c2 = arith.constant 2 : index
    %c0_25 = arith.constant 0 : index
    %19 = vector.load %arg2[%c0_24, %c2, %c0_25] : memref<1x110x128xbf16, #tpu.memory_space<vmem>>, vector<1x80x128xbf16>
    %20 = vector.shape_cast %19 : vector<1x80x128xbf16> to vector<80x128xbf16>
    %c2_26 = arith.constant 2 : index
    %c0_27 = arith.constant 0 : index
    %c0_28 = arith.constant 0 : index
    %21 = vector.load %arg3[%c2_26, %c0_27, %c0_28] : memref<9x128x128xbf16, #tpu.memory_space<vmem>>, vector<1x128x128xbf16>
    %22 = vector.shape_cast %21 : vector<1x128x128xbf16> to vector<128x128xbf16>
    %cst_29 = arith.constant dense<0.000000e+00> : vector<80x128xf32>
    %23 = tpu.matmul %20, %22, %cst_29 {dimension_numbers = #tpu.dot_dimension_numbers<[1], [0], [0], [1], [0, 0, 1, 1], [], []>} : vector<80x128xbf16>, vector<128x128xbf16>, vector<80x128xf32> -> vector<80x128xf32>
    %24 = arith.addf %18, %23 : vector<80x128xf32>
    %c0_30 = arith.constant 0 : index
    %c0_31 = arith.constant 0 : index
    %25 = vector.load %arg7[%c0_30, %c0_31] : memref<80x128xf32, #tpu.memory_space<vmem>>, vector<80x128xf32>
    tpu.vector_store %arg7[%c0_30, %c0_31], %24 {strides = array<i32>} : memref<80x128xf32, #tpu.memory_space<vmem>>, vector<80x128xf32>,
    %c0_32 = arith.constant 0 : index
    %c0_33 = arith.constant 0 : index
    %26 = vector.load %arg7[%c0_32, %c0_33] : memref<80x128xf32, #tpu.memory_space<vmem>>, vector<80x128xf32>
    %c0_34 = arith.constant 0 : index
    %c10 = arith.constant 10 : index
    %c0_35 = arith.constant 0 : index
    %27 = vector.load %arg2[%c0_34, %c10, %c0_35] : memref<1x110x128xbf16, #tpu.memory_space<vmem>>, vector<1x80x128xbf16>
    %28 = vector.shape_cast %27 : vector<1x80x128xbf16> to vector<80x128xbf16>
    %c3 = arith.constant 3 : index
    %c0_36 = arith.constant 0 : index
    %c0_37 = arith.constant 0 : index
    %29 = vector.load %arg3[%c3, %c0_36, %c0_37] : memref<9x128x128xbf16, #tpu.memory_space<vmem>>, vector<1x128x128xbf16>
    %30 = vector.shape_cast %29 : vector<1x128x128xbf16> to vector<128x128xbf16>
    %cst_38 = arith.constant dense<0.000000e+00> : vector<80x128xf32>
    %31 = tpu.matmul %28, %30, %cst_38 {dimension_numbers = #tpu.dot_dimension_numbers<[1], [0], [0], [1], [0, 0, 1, 1], [], []>} : vector<80x128xbf16>, vector<128x128xbf16>, vector<80x128xf32> -> vector<80x128xf32>
    %32 = arith.addf %26, %31 : vector<80x128xf32>
    %c0_39 = arith.constant 0 : index
    %c0_40 = arith.constant 0 : index
    %33 = vector.load %arg7[%c0_39, %c0_40] : memref<80x128xf32, #tpu.memory_space<vmem>>, vector<80x128xf32>
    tpu.vector_store %arg7[%c0_39, %c0_40], %32 {strides = array<i32>} : memref<80x128xf32, #tpu.memory_space<vmem>>, vector<80x128xf32>,
    %c0_41 = arith.constant 0 : index
    %c0_42 = arith.constant 0 : index
    %34 = vector.load %arg7[%c0_41, %c0_42] : memref<80x128xf32, #tpu.memory_space<vmem>>, vector<80x128xf32>
    %c0_43 = arith.constant 0 : index
    %c11 = arith.constant 11 : index
    %c0_44 = arith.constant 0 : index
    %35 = vector.load %arg2[%c0_43, %c11, %c0_44] : memref<1x110x128xbf16, #tpu.memory_space<vmem>>, vector<1x80x128xbf16>
    %36 = vector.shape_cast %35 : vector<1x80x128xbf16> to vector<80x128xbf16>
    %c4 = arith.constant 4 : index
    %c0_45 = arith.constant 0 : index
    %c0_46 = arith.constant 0 : index
    %37 = vector.load %arg3[%c4, %c0_45, %c0_46] : memref<9x128x128xbf16, #tpu.memory_space<vmem>>, vector<1x128x128xbf16>
    %38 = vector.shape_cast %37 : vector<1x128x128xbf16> to vector<128x128xbf16>
    %cst_47 = arith.constant dense<0.000000e+00> : vector<80x128xf32>
    %39 = tpu.matmul %36, %38, %cst_47 {dimension_numbers = #tpu.dot_dimension_numbers<[1], [0], [0], [1], [0, 0, 1, 1], [], []>} : vector<80x128xbf16>, vector<128x128xbf16>, vector<80x128xf32> -> vector<80x128xf32>
    %40 = arith.addf %34, %39 : vector<80x128xf32>
    %c0_48 = arith.constant 0 : index
    %c0_49 = arith.constant 0 : index
    %41 = vector.load %arg7[%c0_48, %c0_49] : memref<80x128xf32, #tpu.memory_space<vmem>>, vector<80x128xf32>
    tpu.vector_store %arg7[%c0_48, %c0_49], %40 {strides = array<i32>} : memref<80x128xf32, #tpu.memory_space<vmem>>, vector<80x128xf32>,
    %c0_50 = arith.constant 0 : index
    %c0_51 = arith.constant 0 : index
    %42 = vector.load %arg7[%c0_50, %c0_51] : memref<80x128xf32, #tpu.memory_space<vmem>>, vector<80x128xf32>
    %c0_52 = arith.constant 0 : index
    %c12 = arith.constant 12 : index
    %c0_53 = arith.constant 0 : index
    %43 = vector.load %arg2[%c0_52, %c12, %c0_53] : memref<1x110x128xbf16, #tpu.memory_space<vmem>>, vector<1x80x128xbf16>
    %44 = vector.shape_cast %43 : vector<1x80x128xbf16> to vector<80x128xbf16>
    %c5 = arith.constant 5 : index
    %c0_54 = arith.constant 0 : index
    %c0_55 = arith.constant 0 : index
    %45 = vector.load %arg3[%c5, %c0_54, %c0_55] : memref<9x128x128xbf16, #tpu.memory_space<vmem>>, vector<1x128x128xbf16>
    %46 = vector.shape_cast %45 : vector<1x128x128xbf16> to vector<128x128xbf16>
    %cst_56 = arith.constant dense<0.000000e+00> : vector<80x128xf32>
    %47 = tpu.matmul %44, %46, %cst_56 {dimension_numbers = #tpu.dot_dimension_numbers<[1], [0], [0], [1], [0, 0, 1, 1], [], []>} : vector<80x128xbf16>, vector<128x128xbf16>, vector<80x128xf32> -> vector<80x128xf32>
    %48 = arith.addf %42, %47 : vector<80x128xf32>
    %c0_57 = arith.constant 0 : index
    %c0_58 = arith.constant 0 : index
    %49 = vector.load %arg7[%c0_57, %c0_58] : memref<80x128xf32, #tpu.memory_space<vmem>>, vector<80x128xf32>
    tpu.vector_store %arg7[%c0_57, %c0_58], %48 {strides = array<i32>} : memref<80x128xf32, #tpu.memory_space<vmem>>, vector<80x128xf32>,
    %c0_59 = arith.constant 0 : index
    %c0_60 = arith.constant 0 : index
    %50 = vector.load %arg7[%c0_59, %c0_60] : memref<80x128xf32, #tpu.memory_space<vmem>>, vector<80x128xf32>
    %c0_61 = arith.constant 0 : index
    %c20 = arith.constant 20 : index
    %c0_62 = arith.constant 0 : index
    %51 = vector.load %arg2[%c0_61, %c20, %c0_62] : memref<1x110x128xbf16, #tpu.memory_space<vmem>>, vector<1x80x128xbf16>
    %52 = vector.shape_cast %51 : vector<1x80x128xbf16> to vector<80x128xbf16>
    %c6 = arith.constant 6 : index
    %c0_63 = arith.constant 0 : index
    %c0_64 = arith.constant 0 : index
    %53 = vector.load %arg3[%c6, %c0_63, %c0_64] : memref<9x128x128xbf16, #tpu.memory_space<vmem>>, vector<1x128x128xbf16>
    %54 = vector.shape_cast %53 : vector<1x128x128xbf16> to vector<128x128xbf16>
    %cst_65 = arith.constant dense<0.000000e+00> : vector<80x128xf32>
    %55 = tpu.matmul %52, %54, %cst_65 {dimension_numbers = #tpu.dot_dimension_numbers<[1], [0], [0], [1], [0, 0, 1, 1], [], []>} : vector<80x128xbf16>, vector<128x128xbf16>, vector<80x128xf32> -> vector<80x128xf32>
    %56 = arith.addf %50, %55 : vector<80x128xf32>
    %c0_66 = arith.constant 0 : index
    %c0_67 = arith.constant 0 : index
    %57 = vector.load %arg7[%c0_66, %c0_67] : memref<80x128xf32, #tpu.memory_space<vmem>>, vector<80x128xf32>
    tpu.vector_store %arg7[%c0_66, %c0_67], %56 {strides = array<i32>} : memref<80x128xf32, #tpu.memory_space<vmem>>, vector<80x128xf32>,
    %c0_68 = arith.constant 0 : index
    %c0_69 = arith.constant 0 : index
    %58 = vector.load %arg7[%c0_68, %c0_69] : memref<80x128xf32, #tpu.memory_space<vmem>>, vector<80x128xf32>
    %c0_70 = arith.constant 0 : index
    %c21 = arith.constant 21 : index
    %c0_71 = arith.constant 0 : index
    %59 = vector.load %arg2[%c0_70, %c21, %c0_71] : memref<1x110x128xbf16, #tpu.memory_space<vmem>>, vector<1x80x128xbf16>
    %60 = vector.shape_cast %59 : vector<1x80x128xbf16> to vector<80x128xbf16>
    %c7 = arith.constant 7 : index
    %c0_72 = arith.constant 0 : index
    %c0_73 = arith.constant 0 : index
    %61 = vector.load %arg3[%c7, %c0_72, %c0_73] : memref<9x128x128xbf16, #tpu.memory_space<vmem>>, vector<1x128x128xbf16>
    %62 = vector.shape_cast %61 : vector<1x128x128xbf16> to vector<128x128xbf16>
    %cst_74 = arith.constant dense<0.000000e+00> : vector<80x128xf32>
    %63 = tpu.matmul %60, %62, %cst_74 {dimension_numbers = #tpu.dot_dimension_numbers<[1], [0], [0], [1], [0, 0, 1, 1], [], []>} : vector<80x128xbf16>, vector<128x128xbf16>, vector<80x128xf32> -> vector<80x128xf32>
    %64 = arith.addf %58, %63 : vector<80x128xf32>
    %c0_75 = arith.constant 0 : index
    %c0_76 = arith.constant 0 : index
    %65 = vector.load %arg7[%c0_75, %c0_76] : memref<80x128xf32, #tpu.memory_space<vmem>>, vector<80x128xf32>
    tpu.vector_store %arg7[%c0_75, %c0_76], %64 {strides = array<i32>} : memref<80x128xf32, #tpu.memory_space<vmem>>, vector<80x128xf32>,
    %c0_77 = arith.constant 0 : index
    %c0_78 = arith.constant 0 : index
    %66 = vector.load %arg7[%c0_77, %c0_78] : memref<80x128xf32, #tpu.memory_space<vmem>>, vector<80x128xf32>
    %c0_79 = arith.constant 0 : index
    %c22 = arith.constant 22 : index
    %c0_80 = arith.constant 0 : index
    %67 = vector.load %arg2[%c0_79, %c22, %c0_80] : memref<1x110x128xbf16, #tpu.memory_space<vmem>>, vector<1x80x128xbf16>
    %68 = vector.shape_cast %67 : vector<1x80x128xbf16> to vector<80x128xbf16>
    %c8 = arith.constant 8 : index
    %c0_81 = arith.constant 0 : index
    %c0_82 = arith.constant 0 : index
    %69 = vector.load %arg3[%c8, %c0_81, %c0_82] : memref<9x128x128xbf16, #tpu.memory_space<vmem>>, vector<1x128x128xbf16>
    %70 = vector.shape_cast %69 : vector<1x128x128xbf16> to vector<128x128xbf16>
    %cst_83 = arith.constant dense<0.000000e+00> : vector<80x128xf32>
    %71 = tpu.matmul %68, %70, %cst_83 {dimension_numbers = #tpu.dot_dimension_numbers<[1], [0], [0], [1], [0, 0, 1, 1], [], []>} : vector<80x128xbf16>, vector<128x128xbf16>, vector<80x128xf32> -> vector<80x128xf32>
    %72 = arith.addf %66, %71 : vector<80x128xf32>
    %c0_84 = arith.constant 0 : index
    %c0_85 = arith.constant 0 : index
    %73 = vector.load %arg7[%c0_84, %c0_85] : memref<80x128xf32, #tpu.memory_space<vmem>>, vector<80x128xf32>
    tpu.vector_store %arg7[%c0_84, %c0_85], %72 {strides = array<i32>} : memref<80x128xf32, #tpu.memory_space<vmem>>, vector<80x128xf32>,
    %c0_86 = arith.constant 0 : index
    %c0_87 = arith.constant 0 : index
    %74 = vector.load %arg7[%c0_86, %c0_87] : memref<80x128xf32, #tpu.memory_space<vmem>>, vector<80x128xf32>
    %c0_88 = arith.constant 0 : index
    %c0_89 = arith.constant 0 : index
    %75 = vector.load %arg4[%c0_88, %c0_89] : memref<1x128xf32, #tpu.memory_space<vmem>>, vector<1x128xf32>
    %76 = vector.broadcast %75 : vector<1x128xf32> to vector<80x128xf32>
    %77 = arith.mulf %74, %76 : vector<80x128xf32>
    %c0_90 = arith.constant 0 : index
    %c0_91 = arith.constant 0 : index
    %78 = vector.load %arg5[%c0_90, %c0_91] : memref<1x128xf32, #tpu.memory_space<vmem>>, vector<1x128xf32>
    %79 = vector.broadcast %78 : vector<1x128xf32> to vector<80x128xf32>
    %80 = arith.addf %77, %79 : vector<80x128xf32>
    %cst_92 = arith.constant 0.000000e+00 : f32
    %81 = vector.broadcast %cst_92 : f32 to vector<80x128xf32>
    %82 = arith.maximumf %80, %81 : vector<80x128xf32>
    %83 = arith.truncf %82 : vector<80x128xf32> to vector<80x128xbf16>
    %c0_93 = arith.constant 0 : index
    %c0_94 = arith.constant 0 : index
    %c0_95 = arith.constant 0 : index
    %84 = vector.load %arg6[%c0_93, %c0_94, %c0_95] : memref<1x80x128xbf16, #tpu.memory_space<vmem>>, vector<1x80x128xbf16>
    %85 = vector.shape_cast %84 : vector<1x80x128xbf16> to vector<80x128xbf16>
    %86 = vector.shape_cast %83 : vector<80x128xbf16> to vector<1x80x128xbf16>
    tpu.vector_store %arg6[%c0_93, %c0_94, %c0_95], %86 {strides = array<i32>} : memref<1x80x128xbf16, #tpu.memory_space<vmem>>, vector<1x80x128xbf16>,
    return
  }
  func.func @transform_0(%arg0: i32, %arg1: i32) -> (i32, i32, i32) {
    %c0_i32 = arith.constant 0 : i32
    %c0_i32_0 = arith.constant 0 : i32
    %c0_i32_1 = arith.constant 0 : i32
    return %arg0, %c0_i32, %c0_i32_0 : i32, i32, i32
  }
  func.func @transform_1(%arg0: i32, %arg1: i32) -> (i32, i32, i32) {
    %c0_i32 = arith.constant 0 : i32
    %c0_i32_0 = arith.constant 0 : i32
    %c0_i32_1 = arith.constant 0 : i32
    return %c0_i32, %c0_i32_0, %arg1 : i32, i32, i32
  }
  func.func @transform_2(%arg0: i32, %arg1: i32) -> (i32, i32) {
    %c0_i32 = arith.constant 0 : i32
    %c0_i32_0 = arith.constant 0 : i32
    return %c0_i32, %arg1 : i32, i32
  }
  func.func @transform_3(%arg0: i32, %arg1: i32) -> (i32, i32) {
    %c0_i32 = arith.constant 0 : i32
    %c0_i32_0 = arith.constant 0 : i32
    return %c0_i32, %arg1 : i32, i32
  }
  func.func @transform_4(%arg0: i32, %arg1: i32) -> (i32, i32, i32) {
    %c0_i32 = arith.constant 0 : i32
    %c0_i32_0 = arith.constant 0 : i32
    return %arg0, %c0_i32, %arg1 : i32, i32, i32
  }
}

module attributes {stable_mosaic.version = 11 : i64} {
  func.func @_mm_mask_residual_kernel(%arg0: i32, %arg1: i32, %arg2: i32, %arg3: memref<128x128xbf16, #tpu.memory_space<vmem>>, %arg4: memref<128x128xbf16, #tpu.memory_space<vmem>>, %arg5: memref<1x128xf32, #tpu.memory_space<vmem>>, %arg6: memref<1x128xf32, #tpu.memory_space<vmem>>, %arg7: memref<128x1xbf16, #tpu.memory_space<vmem>>, %arg8: memref<128x128xbf16, #tpu.memory_space<vmem>>, %arg9: memref<128x128xbf16, #tpu.memory_space<vmem>>, %arg10: memref<128x128xf32, #tpu.memory_space<vmem>>) attributes {dimension_semantics = [#tpu.dimension_semantics<parallel>, #tpu.dimension_semantics<parallel>, #tpu.dimension_semantics<arbitrary>], iteration_bounds = array<i64: 1, 1, 1>, scalar_prefetch = 0 : i64, scratch_operands = 1 : i64, tpu.core_type = #tpu.core_type<tc>, window_params = [{transform_indices = @transform_0, window_bounds = array<i64: 128, 128>}, {transform_indices = @transform_1, window_bounds = array<i64: 128, 128>}, {transform_indices = @transform_2, window_bounds = array<i64: 1, 128>}, {transform_indices = @transform_3, window_bounds = array<i64: 1, 128>}, {transform_indices = @transform_4, window_bounds = array<i64: 128, 1>}, {transform_indices = @transform_5, window_bounds = array<i64: 128, 128>}, {transform_indices = @transform_6, window_bounds = array<i64: 128, 128>}]} {
    %c0_i32 = arith.constant 0 : i32
    %0 = arith.cmpi eq, %arg2, %c0_i32 : i32
    %1 = arith.extui %0 : i1 to i32
    %c0_i32_0 = arith.constant 0 : i32
    %2 = arith.cmpi ne, %1, %c0_i32_0 : i32
    scf.if %2 {
      %cst_10 = arith.constant 0.000000e+00 : f32
      %12 = vector.broadcast %cst_10 : f32 to vector<128x128xf32>
      %c0_11 = arith.constant 0 : index
      %c0_12 = arith.constant 0 : index
      %13 = vector.load %arg10[%c0_11, %c0_12] : memref<128x128xf32, #tpu.memory_space<vmem>>, vector<128x128xf32>
      tpu.vector_store %arg10[%c0_11, %c0_12], %12 {strides = array<i32>} : memref<128x128xf32, #tpu.memory_space<vmem>>, vector<128x128xf32>,
    } else {
    }
    %c0 = arith.constant 0 : index
    %c0_1 = arith.constant 0 : index
    %3 = vector.load %arg10[%c0, %c0_1] : memref<128x128xf32, #tpu.memory_space<vmem>>, vector<128x128xf32>
    %c0_2 = arith.constant 0 : index
    %c0_3 = arith.constant 0 : index
    %4 = vector.load %arg3[%c0_2, %c0_3] : memref<128x128xbf16, #tpu.memory_space<vmem>>, vector<128x128xbf16>
    %c0_4 = arith.constant 0 : index
    %c0_5 = arith.constant 0 : index
    %5 = vector.load %arg4[%c0_4, %c0_5] : memref<128x128xbf16, #tpu.memory_space<vmem>>, vector<128x128xbf16>
    %cst = arith.constant dense<0.000000e+00> : vector<128x128xf32>
    %6 = tpu.matmul %4, %5, %cst {dimension_numbers = #tpu.dot_dimension_numbers<[1], [0], [0], [1], [0, 0, 1, 1], [], []>} : vector<128x128xbf16>, vector<128x128xbf16>, vector<128x128xf32> -> vector<128x128xf32>
    %7 = arith.addf %3, %6 : vector<128x128xf32>
    %c0_6 = arith.constant 0 : index
    %c0_7 = arith.constant 0 : index
    %8 = vector.load %arg10[%c0_6, %c0_7] : memref<128x128xf32, #tpu.memory_space<vmem>>, vector<128x128xf32>
    tpu.vector_store %arg10[%c0_6, %c0_7], %7 {strides = array<i32>} : memref<128x128xf32, #tpu.memory_space<vmem>>, vector<128x128xf32>,
    %c0_i32_8 = arith.constant 0 : i32
    %9 = arith.cmpi eq, %arg2, %c0_i32_8 : i32
    %10 = arith.extui %9 : i1 to i32
    %c0_i32_9 = arith.constant 0 : i32
    %11 = arith.cmpi ne, %10, %c0_i32_9 : i32
    scf.if %11 {
      %c0_10 = arith.constant 0 : index
      %c0_11 = arith.constant 0 : index
      %12 = vector.load %arg10[%c0_10, %c0_11] : memref<128x128xf32, #tpu.memory_space<vmem>>, vector<128x128xf32>
      %c0_12 = arith.constant 0 : index
      %c0_13 = arith.constant 0 : index
      %13 = vector.load %arg5[%c0_12, %c0_13] : memref<1x128xf32, #tpu.memory_space<vmem>>, vector<1x128xf32>
      %14 = vector.broadcast %13 : vector<1x128xf32> to vector<128x128xf32>
      %15 = arith.mulf %12, %14 : vector<128x128xf32>
      %c0_14 = arith.constant 0 : index
      %c0_15 = arith.constant 0 : index
      %16 = vector.load %arg6[%c0_14, %c0_15] : memref<1x128xf32, #tpu.memory_space<vmem>>, vector<1x128xf32>
      %17 = vector.broadcast %16 : vector<1x128xf32> to vector<128x128xf32>
      %18 = arith.addf %15, %17 : vector<128x128xf32>
      %c0_16 = arith.constant 0 : index
      %c0_17 = arith.constant 0 : index
      %19 = vector.load %arg7[%c0_16, %c0_17] : memref<128x1xbf16, #tpu.memory_space<vmem>>, vector<128x1xbf16>
      %20 = arith.extf %19 : vector<128x1xbf16> to vector<128x1xf32>
      %21 = vector.broadcast %20 : vector<128x1xf32> to vector<128x128xf32>
      %22 = arith.mulf %18, %21 : vector<128x128xf32>
      %c0_18 = arith.constant 0 : index
      %c0_19 = arith.constant 0 : index
      %23 = vector.load %arg8[%c0_18, %c0_19] : memref<128x128xbf16, #tpu.memory_space<vmem>>, vector<128x128xbf16>
      %24 = arith.extf %23 : vector<128x128xbf16> to vector<128x128xf32>
      %25 = arith.addf %22, %24 : vector<128x128xf32>
      %cst_20 = arith.constant 0.000000e+00 : f32
      %26 = vector.broadcast %cst_20 : f32 to vector<128x128xf32>
      %27 = arith.maximumf %25, %26 : vector<128x128xf32>
      %28 = arith.truncf %27 : vector<128x128xf32> to vector<128x128xbf16>
      %c0_21 = arith.constant 0 : index
      %c0_22 = arith.constant 0 : index
      %29 = vector.load %arg9[%c0_21, %c0_22] : memref<128x128xbf16, #tpu.memory_space<vmem>>, vector<128x128xbf16>
      tpu.vector_store %arg9[%c0_21, %c0_22], %28 {strides = array<i32>} : memref<128x128xbf16, #tpu.memory_space<vmem>>, vector<128x128xbf16>,
    } else {
    }
    return
  }
  func.func @transform_0(%arg0: i32, %arg1: i32, %arg2: i32) -> (i32, i32) {
    %c0_i32 = arith.constant 0 : i32
    return %arg0, %arg2 : i32, i32
  }
  func.func @transform_1(%arg0: i32, %arg1: i32, %arg2: i32) -> (i32, i32) {
    %c0_i32 = arith.constant 0 : i32
    return %arg2, %arg1 : i32, i32
  }
  func.func @transform_2(%arg0: i32, %arg1: i32, %arg2: i32) -> (i32, i32) {
    %c0_i32 = arith.constant 0 : i32
    %c0_i32_0 = arith.constant 0 : i32
    return %c0_i32, %arg1 : i32, i32
  }
  func.func @transform_3(%arg0: i32, %arg1: i32, %arg2: i32) -> (i32, i32) {
    %c0_i32 = arith.constant 0 : i32
    %c0_i32_0 = arith.constant 0 : i32
    return %c0_i32, %arg1 : i32, i32
  }
  func.func @transform_4(%arg0: i32, %arg1: i32, %arg2: i32) -> (i32, i32) {
    %c0_i32 = arith.constant 0 : i32
    %c0_i32_0 = arith.constant 0 : i32
    return %arg0, %c0_i32 : i32, i32
  }
  func.func @transform_5(%arg0: i32, %arg1: i32, %arg2: i32) -> (i32, i32) {
    %c0_i32 = arith.constant 0 : i32
    return %arg0, %arg1 : i32, i32
  }
  func.func @transform_6(%arg0: i32, %arg1: i32, %arg2: i32) -> (i32, i32) {
    %c0_i32 = arith.constant 0 : i32
    return %arg0, %arg1 : i32, i32
  }
}

module attributes {stable_mosaic.version = 11 : i64} {
  func.func @_mm_affine_kernel(%arg0: i32, %arg1: i32, %arg2: i32, %arg3: memref<128x128xbf16, #tpu.memory_space<vmem>>, %arg4: memref<128x128xbf16, #tpu.memory_space<vmem>>, %arg5: memref<1x128xf32, #tpu.memory_space<vmem>>, %arg6: memref<1x128xf32, #tpu.memory_space<vmem>>, %arg7: memref<128x128xbf16, #tpu.memory_space<vmem>>, %arg8: memref<128x128xf32, #tpu.memory_space<vmem>>) attributes {dimension_semantics = [#tpu.dimension_semantics<parallel>, #tpu.dimension_semantics<parallel>, #tpu.dimension_semantics<arbitrary>], iteration_bounds = array<i64: 1, 1, 1>, scalar_prefetch = 0 : i64, scratch_operands = 1 : i64, tpu.core_type = #tpu.core_type<tc>, window_params = [{transform_indices = @transform_0, window_bounds = array<i64: 128, 128>}, {transform_indices = @transform_1, window_bounds = array<i64: 128, 128>}, {transform_indices = @transform_2, window_bounds = array<i64: 1, 128>}, {transform_indices = @transform_3, window_bounds = array<i64: 1, 128>}, {transform_indices = @transform_4, window_bounds = array<i64: 128, 128>}]} {
    %c0_i32 = arith.constant 0 : i32
    %0 = arith.cmpi eq, %arg2, %c0_i32 : i32
    %1 = arith.extui %0 : i1 to i32
    %c0_i32_0 = arith.constant 0 : i32
    %2 = arith.cmpi ne, %1, %c0_i32_0 : i32
    scf.if %2 {
      %cst_10 = arith.constant 0.000000e+00 : f32
      %12 = vector.broadcast %cst_10 : f32 to vector<128x128xf32>
      %c0_11 = arith.constant 0 : index
      %c0_12 = arith.constant 0 : index
      %13 = vector.load %arg8[%c0_11, %c0_12] : memref<128x128xf32, #tpu.memory_space<vmem>>, vector<128x128xf32>
      tpu.vector_store %arg8[%c0_11, %c0_12], %12 {strides = array<i32>} : memref<128x128xf32, #tpu.memory_space<vmem>>, vector<128x128xf32>,
    } else {
    }
    %c0 = arith.constant 0 : index
    %c0_1 = arith.constant 0 : index
    %3 = vector.load %arg8[%c0, %c0_1] : memref<128x128xf32, #tpu.memory_space<vmem>>, vector<128x128xf32>
    %c0_2 = arith.constant 0 : index
    %c0_3 = arith.constant 0 : index
    %4 = vector.load %arg3[%c0_2, %c0_3] : memref<128x128xbf16, #tpu.memory_space<vmem>>, vector<128x128xbf16>
    %c0_4 = arith.constant 0 : index
    %c0_5 = arith.constant 0 : index
    %5 = vector.load %arg4[%c0_4, %c0_5] : memref<128x128xbf16, #tpu.memory_space<vmem>>, vector<128x128xbf16>
    %cst = arith.constant dense<0.000000e+00> : vector<128x128xf32>
    %6 = tpu.matmul %4, %5, %cst {dimension_numbers = #tpu.dot_dimension_numbers<[1], [0], [0], [1], [0, 0, 1, 1], [], []>} : vector<128x128xbf16>, vector<128x128xbf16>, vector<128x128xf32> -> vector<128x128xf32>
    %7 = arith.addf %3, %6 : vector<128x128xf32>
    %c0_6 = arith.constant 0 : index
    %c0_7 = arith.constant 0 : index
    %8 = vector.load %arg8[%c0_6, %c0_7] : memref<128x128xf32, #tpu.memory_space<vmem>>, vector<128x128xf32>
    tpu.vector_store %arg8[%c0_6, %c0_7], %7 {strides = array<i32>} : memref<128x128xf32, #tpu.memory_space<vmem>>, vector<128x128xf32>,
    %c0_i32_8 = arith.constant 0 : i32
    %9 = arith.cmpi eq, %arg2, %c0_i32_8 : i32
    %10 = arith.extui %9 : i1 to i32
    %c0_i32_9 = arith.constant 0 : i32
    %11 = arith.cmpi ne, %10, %c0_i32_9 : i32
    scf.if %11 {
      %c0_10 = arith.constant 0 : index
      %c0_11 = arith.constant 0 : index
      %12 = vector.load %arg8[%c0_10, %c0_11] : memref<128x128xf32, #tpu.memory_space<vmem>>, vector<128x128xf32>
      %c0_12 = arith.constant 0 : index
      %c0_13 = arith.constant 0 : index
      %13 = vector.load %arg5[%c0_12, %c0_13] : memref<1x128xf32, #tpu.memory_space<vmem>>, vector<1x128xf32>
      %14 = vector.broadcast %13 : vector<1x128xf32> to vector<128x128xf32>
      %15 = arith.mulf %12, %14 : vector<128x128xf32>
      %c0_14 = arith.constant 0 : index
      %c0_15 = arith.constant 0 : index
      %16 = vector.load %arg6[%c0_14, %c0_15] : memref<1x128xf32, #tpu.memory_space<vmem>>, vector<1x128xf32>
      %17 = vector.broadcast %16 : vector<1x128xf32> to vector<128x128xf32>
      %18 = arith.addf %15, %17 : vector<128x128xf32>
      %19 = arith.truncf %18 : vector<128x128xf32> to vector<128x128xbf16>
      %c0_16 = arith.constant 0 : index
      %c0_17 = arith.constant 0 : index
      %20 = vector.load %arg7[%c0_16, %c0_17] : memref<128x128xbf16, #tpu.memory_space<vmem>>, vector<128x128xbf16>
      tpu.vector_store %arg7[%c0_16, %c0_17], %19 {strides = array<i32>} : memref<128x128xbf16, #tpu.memory_space<vmem>>, vector<128x128xbf16>,
    } else {
    }
    return
  }
  func.func @transform_0(%arg0: i32, %arg1: i32, %arg2: i32) -> (i32, i32) {
    %c0_i32 = arith.constant 0 : i32
    return %arg0, %arg2 : i32, i32
  }
  func.func @transform_1(%arg0: i32, %arg1: i32, %arg2: i32) -> (i32, i32) {
    %c0_i32 = arith.constant 0 : i32
    return %arg2, %arg1 : i32, i32
  }
  func.func @transform_2(%arg0: i32, %arg1: i32, %arg2: i32) -> (i32, i32) {
    %c0_i32 = arith.constant 0 : i32
    %c0_i32_0 = arith.constant 0 : i32
    return %c0_i32, %arg1 : i32, i32
  }
  func.func @transform_3(%arg0: i32, %arg1: i32, %arg2: i32) -> (i32, i32) {
    %c0_i32 = arith.constant 0 : i32
    %c0_i32_0 = arith.constant 0 : i32
    return %c0_i32, %arg1 : i32, i32
  }
  func.func @transform_4(%arg0: i32, %arg1: i32, %arg2: i32) -> (i32, i32) {
    %c0_i32 = arith.constant 0 : i32
    return %arg0, %arg1 : i32, i32
  }
}

module attributes {stable_mosaic.version = 11 : i64} {
  func.func @_mm_affine_kernel(%arg0: i32, %arg1: i32, %arg2: i32, %arg3: memref<32x128xbf16, #tpu.memory_space<vmem>>, %arg4: memref<128x128xbf16, #tpu.memory_space<vmem>>, %arg5: memref<1x128xf32, #tpu.memory_space<vmem>>, %arg6: memref<1x128xf32, #tpu.memory_space<vmem>>, %arg7: memref<32x128xbf16, #tpu.memory_space<vmem>>, %arg8: memref<32x128xf32, #tpu.memory_space<vmem>>) attributes {dimension_semantics = [#tpu.dimension_semantics<parallel>, #tpu.dimension_semantics<parallel>, #tpu.dimension_semantics<arbitrary>], iteration_bounds = array<i64: 1, 1, 1>, scalar_prefetch = 0 : i64, scratch_operands = 1 : i64, tpu.core_type = #tpu.core_type<tc>, window_params = [{transform_indices = @transform_0, window_bounds = array<i64: 32, 128>}, {transform_indices = @transform_1, window_bounds = array<i64: 128, 128>}, {transform_indices = @transform_2, window_bounds = array<i64: 1, 128>}, {transform_indices = @transform_3, window_bounds = array<i64: 1, 128>}, {transform_indices = @transform_4, window_bounds = array<i64: 32, 128>}]} {
    %c0_i32 = arith.constant 0 : i32
    %0 = arith.cmpi eq, %arg2, %c0_i32 : i32
    %1 = arith.extui %0 : i1 to i32
    %c0_i32_0 = arith.constant 0 : i32
    %2 = arith.cmpi ne, %1, %c0_i32_0 : i32
    scf.if %2 {
      %cst_10 = arith.constant 0.000000e+00 : f32
      %12 = vector.broadcast %cst_10 : f32 to vector<32x128xf32>
      %c0_11 = arith.constant 0 : index
      %c0_12 = arith.constant 0 : index
      %13 = vector.load %arg8[%c0_11, %c0_12] : memref<32x128xf32, #tpu.memory_space<vmem>>, vector<32x128xf32>
      tpu.vector_store %arg8[%c0_11, %c0_12], %12 {strides = array<i32>} : memref<32x128xf32, #tpu.memory_space<vmem>>, vector<32x128xf32>,
    } else {
    }
    %c0 = arith.constant 0 : index
    %c0_1 = arith.constant 0 : index
    %3 = vector.load %arg8[%c0, %c0_1] : memref<32x128xf32, #tpu.memory_space<vmem>>, vector<32x128xf32>
    %c0_2 = arith.constant 0 : index
    %c0_3 = arith.constant 0 : index
    %4 = vector.load %arg3[%c0_2, %c0_3] : memref<32x128xbf16, #tpu.memory_space<vmem>>, vector<32x128xbf16>
    %c0_4 = arith.constant 0 : index
    %c0_5 = arith.constant 0 : index
    %5 = vector.load %arg4[%c0_4, %c0_5] : memref<128x128xbf16, #tpu.memory_space<vmem>>, vector<128x128xbf16>
    %cst = arith.constant dense<0.000000e+00> : vector<32x128xf32>
    %6 = tpu.matmul %4, %5, %cst {dimension_numbers = #tpu.dot_dimension_numbers<[1], [0], [0], [1], [0, 0, 1, 1], [], []>} : vector<32x128xbf16>, vector<128x128xbf16>, vector<32x128xf32> -> vector<32x128xf32>
    %7 = arith.addf %3, %6 : vector<32x128xf32>
    %c0_6 = arith.constant 0 : index
    %c0_7 = arith.constant 0 : index
    %8 = vector.load %arg8[%c0_6, %c0_7] : memref<32x128xf32, #tpu.memory_space<vmem>>, vector<32x128xf32>
    tpu.vector_store %arg8[%c0_6, %c0_7], %7 {strides = array<i32>} : memref<32x128xf32, #tpu.memory_space<vmem>>, vector<32x128xf32>,
    %c0_i32_8 = arith.constant 0 : i32
    %9 = arith.cmpi eq, %arg2, %c0_i32_8 : i32
    %10 = arith.extui %9 : i1 to i32
    %c0_i32_9 = arith.constant 0 : i32
    %11 = arith.cmpi ne, %10, %c0_i32_9 : i32
    scf.if %11 {
      %c0_10 = arith.constant 0 : index
      %c0_11 = arith.constant 0 : index
      %12 = vector.load %arg8[%c0_10, %c0_11] : memref<32x128xf32, #tpu.memory_space<vmem>>, vector<32x128xf32>
      %c0_12 = arith.constant 0 : index
      %c0_13 = arith.constant 0 : index
      %13 = vector.load %arg5[%c0_12, %c0_13] : memref<1x128xf32, #tpu.memory_space<vmem>>, vector<1x128xf32>
      %14 = vector.broadcast %13 : vector<1x128xf32> to vector<32x128xf32>
      %15 = arith.mulf %12, %14 : vector<32x128xf32>
      %c0_14 = arith.constant 0 : index
      %c0_15 = arith.constant 0 : index
      %16 = vector.load %arg6[%c0_14, %c0_15] : memref<1x128xf32, #tpu.memory_space<vmem>>, vector<1x128xf32>
      %17 = vector.broadcast %16 : vector<1x128xf32> to vector<32x128xf32>
      %18 = arith.addf %15, %17 : vector<32x128xf32>
      %19 = arith.truncf %18 : vector<32x128xf32> to vector<32x128xbf16>
      %c0_16 = arith.constant 0 : index
      %c0_17 = arith.constant 0 : index
      %20 = vector.load %arg7[%c0_16, %c0_17] : memref<32x128xbf16, #tpu.memory_space<vmem>>, vector<32x128xbf16>
      tpu.vector_store %arg7[%c0_16, %c0_17], %19 {strides = array<i32>} : memref<32x128xbf16, #tpu.memory_space<vmem>>, vector<32x128xbf16>,
    } else {
    }
    return
  }
  func.func @transform_0(%arg0: i32, %arg1: i32, %arg2: i32) -> (i32, i32) {
    %c0_i32 = arith.constant 0 : i32
    return %arg0, %arg2 : i32, i32
  }
  func.func @transform_1(%arg0: i32, %arg1: i32, %arg2: i32) -> (i32, i32) {
    %c0_i32 = arith.constant 0 : i32
    return %arg2, %arg1 : i32, i32
  }
  func.func @transform_2(%arg0: i32, %arg1: i32, %arg2: i32) -> (i32, i32) {
    %c0_i32 = arith.constant 0 : i32
    %c0_i32_0 = arith.constant 0 : i32
    return %c0_i32, %arg1 : i32, i32
  }
  func.func @transform_3(%arg0: i32, %arg1: i32, %arg2: i32) -> (i32, i32) {
    %c0_i32 = arith.constant 0 : i32
    %c0_i32_0 = arith.constant 0 : i32
    return %c0_i32, %arg1 : i32, i32
  }
  func.func @transform_4(%arg0: i32, %arg1: i32, %arg2: i32) -> (i32, i32) {
    %c0_i32 = arith.constant 0 : i32
    return %arg0, %arg1 : i32, i32
  }
}

module attributes {stable_mosaic.version = 11 : i64} {
  func.func @_mm_affine_kernel(%arg0: i32, %arg1: i32, %arg2: i32, %arg3: memref<32x1152xbf16, #tpu.memory_space<vmem>>, %arg4: memref<1152x128xbf16, #tpu.memory_space<vmem>>, %arg5: memref<1x128xf32, #tpu.memory_space<vmem>>, %arg6: memref<1x128xf32, #tpu.memory_space<vmem>>, %arg7: memref<32x128xbf16, #tpu.memory_space<vmem>>, %arg8: memref<32x128xf32, #tpu.memory_space<vmem>>) attributes {dimension_semantics = [#tpu.dimension_semantics<parallel>, #tpu.dimension_semantics<parallel>, #tpu.dimension_semantics<arbitrary>], iteration_bounds = array<i64: 1, 1, 1>, scalar_prefetch = 0 : i64, scratch_operands = 1 : i64, tpu.core_type = #tpu.core_type<tc>, window_params = [{transform_indices = @transform_0, window_bounds = array<i64: 32, 1152>}, {transform_indices = @transform_1, window_bounds = array<i64: 1152, 128>}, {transform_indices = @transform_2, window_bounds = array<i64: 1, 128>}, {transform_indices = @transform_3, window_bounds = array<i64: 1, 128>}, {transform_indices = @transform_4, window_bounds = array<i64: 32, 128>}]} {
    %c0_i32 = arith.constant 0 : i32
    %0 = arith.cmpi eq, %arg2, %c0_i32 : i32
    %1 = arith.extui %0 : i1 to i32
    %c0_i32_0 = arith.constant 0 : i32
    %2 = arith.cmpi ne, %1, %c0_i32_0 : i32
    scf.if %2 {
      %cst_10 = arith.constant 0.000000e+00 : f32
      %12 = vector.broadcast %cst_10 : f32 to vector<32x128xf32>
      %c0_11 = arith.constant 0 : index
      %c0_12 = arith.constant 0 : index
      %13 = vector.load %arg8[%c0_11, %c0_12] : memref<32x128xf32, #tpu.memory_space<vmem>>, vector<32x128xf32>
      tpu.vector_store %arg8[%c0_11, %c0_12], %12 {strides = array<i32>} : memref<32x128xf32, #tpu.memory_space<vmem>>, vector<32x128xf32>,
    } else {
    }
    %c0 = arith.constant 0 : index
    %c0_1 = arith.constant 0 : index
    %3 = vector.load %arg8[%c0, %c0_1] : memref<32x128xf32, #tpu.memory_space<vmem>>, vector<32x128xf32>
    %c0_2 = arith.constant 0 : index
    %c0_3 = arith.constant 0 : index
    %4 = vector.load %arg3[%c0_2, %c0_3] : memref<32x1152xbf16, #tpu.memory_space<vmem>>, vector<32x1152xbf16>
    %c0_4 = arith.constant 0 : index
    %c0_5 = arith.constant 0 : index
    %5 = vector.load %arg4[%c0_4, %c0_5] : memref<1152x128xbf16, #tpu.memory_space<vmem>>, vector<1152x128xbf16>
    %cst = arith.constant dense<0.000000e+00> : vector<32x128xf32>
    %6 = tpu.matmul %4, %5, %cst {dimension_numbers = #tpu.dot_dimension_numbers<[1], [0], [0], [1], [0, 0, 1, 1], [], []>} : vector<32x1152xbf16>, vector<1152x128xbf16>, vector<32x128xf32> -> vector<32x128xf32>
    %7 = arith.addf %3, %6 : vector<32x128xf32>
    %c0_6 = arith.constant 0 : index
    %c0_7 = arith.constant 0 : index
    %8 = vector.load %arg8[%c0_6, %c0_7] : memref<32x128xf32, #tpu.memory_space<vmem>>, vector<32x128xf32>
    tpu.vector_store %arg8[%c0_6, %c0_7], %7 {strides = array<i32>} : memref<32x128xf32, #tpu.memory_space<vmem>>, vector<32x128xf32>,
    %c0_i32_8 = arith.constant 0 : i32
    %9 = arith.cmpi eq, %arg2, %c0_i32_8 : i32
    %10 = arith.extui %9 : i1 to i32
    %c0_i32_9 = arith.constant 0 : i32
    %11 = arith.cmpi ne, %10, %c0_i32_9 : i32
    scf.if %11 {
      %c0_10 = arith.constant 0 : index
      %c0_11 = arith.constant 0 : index
      %12 = vector.load %arg8[%c0_10, %c0_11] : memref<32x128xf32, #tpu.memory_space<vmem>>, vector<32x128xf32>
      %c0_12 = arith.constant 0 : index
      %c0_13 = arith.constant 0 : index
      %13 = vector.load %arg5[%c0_12, %c0_13] : memref<1x128xf32, #tpu.memory_space<vmem>>, vector<1x128xf32>
      %14 = vector.broadcast %13 : vector<1x128xf32> to vector<32x128xf32>
      %15 = arith.mulf %12, %14 : vector<32x128xf32>
      %c0_14 = arith.constant 0 : index
      %c0_15 = arith.constant 0 : index
      %16 = vector.load %arg6[%c0_14, %c0_15] : memref<1x128xf32, #tpu.memory_space<vmem>>, vector<1x128xf32>
      %17 = vector.broadcast %16 : vector<1x128xf32> to vector<32x128xf32>
      %18 = arith.addf %15, %17 : vector<32x128xf32>
      %cst_16 = arith.constant 0.000000e+00 : f32
      %19 = vector.broadcast %cst_16 : f32 to vector<32x128xf32>
      %20 = arith.maximumf %18, %19 : vector<32x128xf32>
      %21 = arith.truncf %20 : vector<32x128xf32> to vector<32x128xbf16>
      %c0_17 = arith.constant 0 : index
      %c0_18 = arith.constant 0 : index
      %22 = vector.load %arg7[%c0_17, %c0_18] : memref<32x128xbf16, #tpu.memory_space<vmem>>, vector<32x128xbf16>
      tpu.vector_store %arg7[%c0_17, %c0_18], %21 {strides = array<i32>} : memref<32x128xbf16, #tpu.memory_space<vmem>>, vector<32x128xbf16>,
    } else {
    }
    return
  }
  func.func @transform_0(%arg0: i32, %arg1: i32, %arg2: i32) -> (i32, i32) {
    %c0_i32 = arith.constant 0 : i32
    return %arg0, %arg2 : i32, i32
  }
  func.func @transform_1(%arg0: i32, %arg1: i32, %arg2: i32) -> (i32, i32) {
    %c0_i32 = arith.constant 0 : i32
    return %arg2, %arg1 : i32, i32
  }
  func.func @transform_2(%arg0: i32, %arg1: i32, %arg2: i32) -> (i32, i32) {
    %c0_i32 = arith.constant 0 : i32
    %c0_i32_0 = arith.constant 0 : i32
    return %c0_i32, %arg1 : i32, i32
  }
  func.func @transform_3(%arg0: i32, %arg1: i32, %arg2: i32) -> (i32, i32) {
    %c0_i32 = arith.constant 0 : i32
    %c0_i32_0 = arith.constant 0 : i32
    return %c0_i32, %arg1 : i32, i32
  }
  func.func @transform_4(%arg0: i32, %arg1: i32, %arg2: i32) -> (i32, i32) {
    %c0_i32 = arith.constant 0 : i32
    return %arg0, %arg1 : i32, i32
  }
}

module attributes {stable_mosaic.version = 11 : i64} {
  func.func @_mm_mask_residual_kernel(%arg0: i32, %arg1: i32, %arg2: i32, %arg3: memref<32x128xbf16, #tpu.memory_space<vmem>>, %arg4: memref<128x128xbf16, #tpu.memory_space<vmem>>, %arg5: memref<1x128xf32, #tpu.memory_space<vmem>>, %arg6: memref<1x128xf32, #tpu.memory_space<vmem>>, %arg7: memref<32x1xbf16, #tpu.memory_space<vmem>>, %arg8: memref<32x128xbf16, #tpu.memory_space<vmem>>, %arg9: memref<32x128xbf16, #tpu.memory_space<vmem>>, %arg10: memref<32x128xf32, #tpu.memory_space<vmem>>) attributes {dimension_semantics = [#tpu.dimension_semantics<parallel>, #tpu.dimension_semantics<parallel>, #tpu.dimension_semantics<arbitrary>], iteration_bounds = array<i64: 1, 1, 1>, scalar_prefetch = 0 : i64, scratch_operands = 1 : i64, tpu.core_type = #tpu.core_type<tc>, window_params = [{transform_indices = @transform_0, window_bounds = array<i64: 32, 128>}, {transform_indices = @transform_1, window_bounds = array<i64: 128, 128>}, {transform_indices = @transform_2, window_bounds = array<i64: 1, 128>}, {transform_indices = @transform_3, window_bounds = array<i64: 1, 128>}, {transform_indices = @transform_4, window_bounds = array<i64: 32, 1>}, {transform_indices = @transform_5, window_bounds = array<i64: 32, 128>}, {transform_indices = @transform_6, window_bounds = array<i64: 32, 128>}]} {
    %c0_i32 = arith.constant 0 : i32
    %0 = arith.cmpi eq, %arg2, %c0_i32 : i32
    %1 = arith.extui %0 : i1 to i32
    %c0_i32_0 = arith.constant 0 : i32
    %2 = arith.cmpi ne, %1, %c0_i32_0 : i32
    scf.if %2 {
      %cst_10 = arith.constant 0.000000e+00 : f32
      %12 = vector.broadcast %cst_10 : f32 to vector<32x128xf32>
      %c0_11 = arith.constant 0 : index
      %c0_12 = arith.constant 0 : index
      %13 = vector.load %arg10[%c0_11, %c0_12] : memref<32x128xf32, #tpu.memory_space<vmem>>, vector<32x128xf32>
      tpu.vector_store %arg10[%c0_11, %c0_12], %12 {strides = array<i32>} : memref<32x128xf32, #tpu.memory_space<vmem>>, vector<32x128xf32>,
    } else {
    }
    %c0 = arith.constant 0 : index
    %c0_1 = arith.constant 0 : index
    %3 = vector.load %arg10[%c0, %c0_1] : memref<32x128xf32, #tpu.memory_space<vmem>>, vector<32x128xf32>
    %c0_2 = arith.constant 0 : index
    %c0_3 = arith.constant 0 : index
    %4 = vector.load %arg3[%c0_2, %c0_3] : memref<32x128xbf16, #tpu.memory_space<vmem>>, vector<32x128xbf16>
    %c0_4 = arith.constant 0 : index
    %c0_5 = arith.constant 0 : index
    %5 = vector.load %arg4[%c0_4, %c0_5] : memref<128x128xbf16, #tpu.memory_space<vmem>>, vector<128x128xbf16>
    %cst = arith.constant dense<0.000000e+00> : vector<32x128xf32>
    %6 = tpu.matmul %4, %5, %cst {dimension_numbers = #tpu.dot_dimension_numbers<[1], [0], [0], [1], [0, 0, 1, 1], [], []>} : vector<32x128xbf16>, vector<128x128xbf16>, vector<32x128xf32> -> vector<32x128xf32>
    %7 = arith.addf %3, %6 : vector<32x128xf32>
    %c0_6 = arith.constant 0 : index
    %c0_7 = arith.constant 0 : index
    %8 = vector.load %arg10[%c0_6, %c0_7] : memref<32x128xf32, #tpu.memory_space<vmem>>, vector<32x128xf32>
    tpu.vector_store %arg10[%c0_6, %c0_7], %7 {strides = array<i32>} : memref<32x128xf32, #tpu.memory_space<vmem>>, vector<32x128xf32>,
    %c0_i32_8 = arith.constant 0 : i32
    %9 = arith.cmpi eq, %arg2, %c0_i32_8 : i32
    %10 = arith.extui %9 : i1 to i32
    %c0_i32_9 = arith.constant 0 : i32
    %11 = arith.cmpi ne, %10, %c0_i32_9 : i32
    scf.if %11 {
      %c0_10 = arith.constant 0 : index
      %c0_11 = arith.constant 0 : index
      %12 = vector.load %arg10[%c0_10, %c0_11] : memref<32x128xf32, #tpu.memory_space<vmem>>, vector<32x128xf32>
      %c0_12 = arith.constant 0 : index
      %c0_13 = arith.constant 0 : index
      %13 = vector.load %arg5[%c0_12, %c0_13] : memref<1x128xf32, #tpu.memory_space<vmem>>, vector<1x128xf32>
      %14 = vector.broadcast %13 : vector<1x128xf32> to vector<32x128xf32>
      %15 = arith.mulf %12, %14 : vector<32x128xf32>
      %c0_14 = arith.constant 0 : index
      %c0_15 = arith.constant 0 : index
      %16 = vector.load %arg6[%c0_14, %c0_15] : memref<1x128xf32, #tpu.memory_space<vmem>>, vector<1x128xf32>
      %17 = vector.broadcast %16 : vector<1x128xf32> to vector<32x128xf32>
      %18 = arith.addf %15, %17 : vector<32x128xf32>
      %c0_16 = arith.constant 0 : index
      %c0_17 = arith.constant 0 : index
      %19 = vector.load %arg7[%c0_16, %c0_17] : memref<32x1xbf16, #tpu.memory_space<vmem>>, vector<32x1xbf16>
      %20 = arith.extf %19 : vector<32x1xbf16> to vector<32x1xf32>
      %21 = vector.broadcast %20 : vector<32x1xf32> to vector<32x128xf32>
      %22 = arith.mulf %18, %21 : vector<32x128xf32>
      %c0_18 = arith.constant 0 : index
      %c0_19 = arith.constant 0 : index
      %23 = vector.load %arg8[%c0_18, %c0_19] : memref<32x128xbf16, #tpu.memory_space<vmem>>, vector<32x128xbf16>
      %24 = arith.extf %23 : vector<32x128xbf16> to vector<32x128xf32>
      %25 = arith.addf %22, %24 : vector<32x128xf32>
      %cst_20 = arith.constant 0.000000e+00 : f32
      %26 = vector.broadcast %cst_20 : f32 to vector<32x128xf32>
      %27 = arith.maximumf %25, %26 : vector<32x128xf32>
      %28 = arith.truncf %27 : vector<32x128xf32> to vector<32x128xbf16>
      %c0_21 = arith.constant 0 : index
      %c0_22 = arith.constant 0 : index
      %29 = vector.load %arg9[%c0_21, %c0_22] : memref<32x128xbf16, #tpu.memory_space<vmem>>, vector<32x128xbf16>
      tpu.vector_store %arg9[%c0_21, %c0_22], %28 {strides = array<i32>} : memref<32x128xbf16, #tpu.memory_space<vmem>>, vector<32x128xbf16>,
    } else {
    }
    return
  }
  func.func @transform_0(%arg0: i32, %arg1: i32, %arg2: i32) -> (i32, i32) {
    %c0_i32 = arith.constant 0 : i32
    return %arg0, %arg2 : i32, i32
  }
  func.func @transform_1(%arg0: i32, %arg1: i32, %arg2: i32) -> (i32, i32) {
    %c0_i32 = arith.constant 0 : i32
    return %arg2, %arg1 : i32, i32
  }
  func.func @transform_2(%arg0: i32, %arg1: i32, %arg2: i32) -> (i32, i32) {
    %c0_i32 = arith.constant 0 : i32
    %c0_i32_0 = arith.constant 0 : i32
    return %c0_i32, %arg1 : i32, i32
  }
  func.func @transform_3(%arg0: i32, %arg1: i32, %arg2: i32) -> (i32, i32) {
    %c0_i32 = arith.constant 0 : i32
    %c0_i32_0 = arith.constant 0 : i32
    return %c0_i32, %arg1 : i32, i32
  }
  func.func @transform_4(%arg0: i32, %arg1: i32, %arg2: i32) -> (i32, i32) {
    %c0_i32 = arith.constant 0 : i32
    %c0_i32_0 = arith.constant 0 : i32
    return %arg0, %c0_i32 : i32, i32
  }
  func.func @transform_5(%arg0: i32, %arg1: i32, %arg2: i32) -> (i32, i32) {
    %c0_i32 = arith.constant 0 : i32
    return %arg0, %arg1 : i32, i32
  }
  func.func @transform_6(%arg0: i32, %arg1: i32, %arg2: i32) -> (i32, i32) {
    %c0_i32 = arith.constant 0 : i32
    return %arg0, %arg1 : i32, i32
  }
}

module attributes {stable_mosaic.version = 11 : i64} {
  func.func @_mm_affine_kernel(%arg0: i32, %arg1: i32, %arg2: i32, %arg3: memref<32x128xbf16, #tpu.memory_space<vmem>>, %arg4: memref<128x128xbf16, #tpu.memory_space<vmem>>, %arg5: memref<1x128xf32, #tpu.memory_space<vmem>>, %arg6: memref<1x128xf32, #tpu.memory_space<vmem>>, %arg7: memref<32x128xbf16, #tpu.memory_space<vmem>>, %arg8: memref<32x128xf32, #tpu.memory_space<vmem>>) attributes {dimension_semantics = [#tpu.dimension_semantics<parallel>, #tpu.dimension_semantics<parallel>, #tpu.dimension_semantics<arbitrary>], iteration_bounds = array<i64: 1, 1, 1>, scalar_prefetch = 0 : i64, scratch_operands = 1 : i64, tpu.core_type = #tpu.core_type<tc>, window_params = [{transform_indices = @transform_0, window_bounds = array<i64: 32, 128>}, {transform_indices = @transform_1, window_bounds = array<i64: 128, 128>}, {transform_indices = @transform_2, window_bounds = array<i64: 1, 128>}, {transform_indices = @transform_3, window_bounds = array<i64: 1, 128>}, {transform_indices = @transform_4, window_bounds = array<i64: 32, 128>}]} {
    %c0_i32 = arith.constant 0 : i32
    %0 = arith.cmpi eq, %arg2, %c0_i32 : i32
    %1 = arith.extui %0 : i1 to i32
    %c0_i32_0 = arith.constant 0 : i32
    %2 = arith.cmpi ne, %1, %c0_i32_0 : i32
    scf.if %2 {
      %cst_10 = arith.constant 0.000000e+00 : f32
      %12 = vector.broadcast %cst_10 : f32 to vector<32x128xf32>
      %c0_11 = arith.constant 0 : index
      %c0_12 = arith.constant 0 : index
      %13 = vector.load %arg8[%c0_11, %c0_12] : memref<32x128xf32, #tpu.memory_space<vmem>>, vector<32x128xf32>
      tpu.vector_store %arg8[%c0_11, %c0_12], %12 {strides = array<i32>} : memref<32x128xf32, #tpu.memory_space<vmem>>, vector<32x128xf32>,
    } else {
    }
    %c0 = arith.constant 0 : index
    %c0_1 = arith.constant 0 : index
    %3 = vector.load %arg8[%c0, %c0_1] : memref<32x128xf32, #tpu.memory_space<vmem>>, vector<32x128xf32>
    %c0_2 = arith.constant 0 : index
    %c0_3 = arith.constant 0 : index
    %4 = vector.load %arg3[%c0_2, %c0_3] : memref<32x128xbf16, #tpu.memory_space<vmem>>, vector<32x128xbf16>
    %c0_4 = arith.constant 0 : index
    %c0_5 = arith.constant 0 : index
    %5 = vector.load %arg4[%c0_4, %c0_5] : memref<128x128xbf16, #tpu.memory_space<vmem>>, vector<128x128xbf16>
    %cst = arith.constant dense<0.000000e+00> : vector<32x128xf32>
    %6 = tpu.matmul %4, %5, %cst {dimension_numbers = #tpu.dot_dimension_numbers<[1], [0], [0], [1], [0, 0, 1, 1], [], []>} : vector<32x128xbf16>, vector<128x128xbf16>, vector<32x128xf32> -> vector<32x128xf32>
    %7 = arith.addf %3, %6 : vector<32x128xf32>
    %c0_6 = arith.constant 0 : index
    %c0_7 = arith.constant 0 : index
    %8 = vector.load %arg8[%c0_6, %c0_7] : memref<32x128xf32, #tpu.memory_space<vmem>>, vector<32x128xf32>
    tpu.vector_store %arg8[%c0_6, %c0_7], %7 {strides = array<i32>} : memref<32x128xf32, #tpu.memory_space<vmem>>, vector<32x128xf32>,
    %c0_i32_8 = arith.constant 0 : i32
    %9 = arith.cmpi eq, %arg2, %c0_i32_8 : i32
    %10 = arith.extui %9 : i1 to i32
    %c0_i32_9 = arith.constant 0 : i32
    %11 = arith.cmpi ne, %10, %c0_i32_9 : i32
    scf.if %11 {
      %c0_10 = arith.constant 0 : index
      %c0_11 = arith.constant 0 : index
      %12 = vector.load %arg8[%c0_10, %c0_11] : memref<32x128xf32, #tpu.memory_space<vmem>>, vector<32x128xf32>
      %c0_12 = arith.constant 0 : index
      %c0_13 = arith.constant 0 : index
      %13 = vector.load %arg5[%c0_12, %c0_13] : memref<1x128xf32, #tpu.memory_space<vmem>>, vector<1x128xf32>
      %14 = vector.broadcast %13 : vector<1x128xf32> to vector<32x128xf32>
      %15 = arith.mulf %12, %14 : vector<32x128xf32>
      %c0_14 = arith.constant 0 : index
      %c0_15 = arith.constant 0 : index
      %16 = vector.load %arg6[%c0_14, %c0_15] : memref<1x128xf32, #tpu.memory_space<vmem>>, vector<1x128xf32>
      %17 = vector.broadcast %16 : vector<1x128xf32> to vector<32x128xf32>
      %18 = arith.addf %15, %17 : vector<32x128xf32>
      %cst_16 = arith.constant 0.000000e+00 : f32
      %19 = vector.broadcast %cst_16 : f32 to vector<32x128xf32>
      %20 = arith.maximumf %18, %19 : vector<32x128xf32>
      %21 = arith.truncf %20 : vector<32x128xf32> to vector<32x128xbf16>
      %c0_17 = arith.constant 0 : index
      %c0_18 = arith.constant 0 : index
      %22 = vector.load %arg7[%c0_17, %c0_18] : memref<32x128xbf16, #tpu.memory_space<vmem>>, vector<32x128xbf16>
      tpu.vector_store %arg7[%c0_17, %c0_18], %21 {strides = array<i32>} : memref<32x128xbf16, #tpu.memory_space<vmem>>, vector<32x128xbf16>,
    } else {
    }
    return
  }
  func.func @transform_0(%arg0: i32, %arg1: i32, %arg2: i32) -> (i32, i32) {
    %c0_i32 = arith.constant 0 : i32
    return %arg0, %arg2 : i32, i32
  }
  func.func @transform_1(%arg0: i32, %arg1: i32, %arg2: i32) -> (i32, i32) {
    %c0_i32 = arith.constant 0 : i32
    return %arg2, %arg1 : i32, i32
  }
  func.func @transform_2(%arg0: i32, %arg1: i32, %arg2: i32) -> (i32, i32) {
    %c0_i32 = arith.constant 0 : i32
    %c0_i32_0 = arith.constant 0 : i32
    return %c0_i32, %arg1 : i32, i32
  }
  func.func @transform_3(%arg0: i32, %arg1: i32, %arg2: i32) -> (i32, i32) {
    %c0_i32 = arith.constant 0 : i32
    %c0_i32_0 = arith.constant 0 : i32
    return %c0_i32, %arg1 : i32, i32
  }
  func.func @transform_4(%arg0: i32, %arg1: i32, %arg2: i32) -> (i32, i32) {
    %c0_i32 = arith.constant 0 : i32
    return %arg0, %arg1 : i32, i32
  }
}

module attributes {stable_mosaic.version = 11 : i64} {
  func.func @_mm_affine_kernel(%arg0: i32, %arg1: i32, %arg2: i32, %arg3: memref<16x1152xbf16, #tpu.memory_space<vmem>>, %arg4: memref<1152x128xbf16, #tpu.memory_space<vmem>>, %arg5: memref<1x128xf32, #tpu.memory_space<vmem>>, %arg6: memref<1x128xf32, #tpu.memory_space<vmem>>, %arg7: memref<16x128xbf16, #tpu.memory_space<vmem>>, %arg8: memref<16x128xf32, #tpu.memory_space<vmem>>) attributes {dimension_semantics = [#tpu.dimension_semantics<parallel>, #tpu.dimension_semantics<parallel>, #tpu.dimension_semantics<arbitrary>], iteration_bounds = array<i64: 1, 1, 1>, scalar_prefetch = 0 : i64, scratch_operands = 1 : i64, tpu.core_type = #tpu.core_type<tc>, window_params = [{transform_indices = @transform_0, window_bounds = array<i64: 16, 1152>}, {transform_indices = @transform_1, window_bounds = array<i64: 1152, 128>}, {transform_indices = @transform_2, window_bounds = array<i64: 1, 128>}, {transform_indices = @transform_3, window_bounds = array<i64: 1, 128>}, {transform_indices = @transform_4, window_bounds = array<i64: 16, 128>}]} {
    %c0_i32 = arith.constant 0 : i32
    %0 = arith.cmpi eq, %arg2, %c0_i32 : i32
    %1 = arith.extui %0 : i1 to i32
    %c0_i32_0 = arith.constant 0 : i32
    %2 = arith.cmpi ne, %1, %c0_i32_0 : i32
    scf.if %2 {
      %cst_10 = arith.constant 0.000000e+00 : f32
      %12 = vector.broadcast %cst_10 : f32 to vector<16x128xf32>
      %c0_11 = arith.constant 0 : index
      %c0_12 = arith.constant 0 : index
      %13 = vector.load %arg8[%c0_11, %c0_12] : memref<16x128xf32, #tpu.memory_space<vmem>>, vector<16x128xf32>
      tpu.vector_store %arg8[%c0_11, %c0_12], %12 {strides = array<i32>} : memref<16x128xf32, #tpu.memory_space<vmem>>, vector<16x128xf32>,
    } else {
    }
    %c0 = arith.constant 0 : index
    %c0_1 = arith.constant 0 : index
    %3 = vector.load %arg8[%c0, %c0_1] : memref<16x128xf32, #tpu.memory_space<vmem>>, vector<16x128xf32>
    %c0_2 = arith.constant 0 : index
    %c0_3 = arith.constant 0 : index
    %4 = vector.load %arg3[%c0_2, %c0_3] : memref<16x1152xbf16, #tpu.memory_space<vmem>>, vector<16x1152xbf16>
    %c0_4 = arith.constant 0 : index
    %c0_5 = arith.constant 0 : index
    %5 = vector.load %arg4[%c0_4, %c0_5] : memref<1152x128xbf16, #tpu.memory_space<vmem>>, vector<1152x128xbf16>
    %cst = arith.constant dense<0.000000e+00> : vector<16x128xf32>
    %6 = tpu.matmul %4, %5, %cst {dimension_numbers = #tpu.dot_dimension_numbers<[1], [0], [0], [1], [0, 0, 1, 1], [], []>} : vector<16x1152xbf16>, vector<1152x128xbf16>, vector<16x128xf32> -> vector<16x128xf32>
    %7 = arith.addf %3, %6 : vector<16x128xf32>
    %c0_6 = arith.constant 0 : index
    %c0_7 = arith.constant 0 : index
    %8 = vector.load %arg8[%c0_6, %c0_7] : memref<16x128xf32, #tpu.memory_space<vmem>>, vector<16x128xf32>
    tpu.vector_store %arg8[%c0_6, %c0_7], %7 {strides = array<i32>} : memref<16x128xf32, #tpu.memory_space<vmem>>, vector<16x128xf32>,
    %c0_i32_8 = arith.constant 0 : i32
    %9 = arith.cmpi eq, %arg2, %c0_i32_8 : i32
    %10 = arith.extui %9 : i1 to i32
    %c0_i32_9 = arith.constant 0 : i32
    %11 = arith.cmpi ne, %10, %c0_i32_9 : i32
    scf.if %11 {
      %c0_10 = arith.constant 0 : index
      %c0_11 = arith.constant 0 : index
      %12 = vector.load %arg8[%c0_10, %c0_11] : memref<16x128xf32, #tpu.memory_space<vmem>>, vector<16x128xf32>
      %c0_12 = arith.constant 0 : index
      %c0_13 = arith.constant 0 : index
      %13 = vector.load %arg5[%c0_12, %c0_13] : memref<1x128xf32, #tpu.memory_space<vmem>>, vector<1x128xf32>
      %14 = vector.broadcast %13 : vector<1x128xf32> to vector<16x128xf32>
      %15 = arith.mulf %12, %14 : vector<16x128xf32>
      %c0_14 = arith.constant 0 : index
      %c0_15 = arith.constant 0 : index
      %16 = vector.load %arg6[%c0_14, %c0_15] : memref<1x128xf32, #tpu.memory_space<vmem>>, vector<1x128xf32>
      %17 = vector.broadcast %16 : vector<1x128xf32> to vector<16x128xf32>
      %18 = arith.addf %15, %17 : vector<16x128xf32>
      %cst_16 = arith.constant 0.000000e+00 : f32
      %19 = vector.broadcast %cst_16 : f32 to vector<16x128xf32>
      %20 = arith.maximumf %18, %19 : vector<16x128xf32>
      %21 = arith.truncf %20 : vector<16x128xf32> to vector<16x128xbf16>
      %c0_17 = arith.constant 0 : index
      %c0_18 = arith.constant 0 : index
      %22 = vector.load %arg7[%c0_17, %c0_18] : memref<16x128xbf16, #tpu.memory_space<vmem>>, vector<16x128xbf16>
      tpu.vector_store %arg7[%c0_17, %c0_18], %21 {strides = array<i32>} : memref<16x128xbf16, #tpu.memory_space<vmem>>, vector<16x128xbf16>,
    } else {
    }
    return
  }
  func.func @transform_0(%arg0: i32, %arg1: i32, %arg2: i32) -> (i32, i32) {
    %c0_i32 = arith.constant 0 : i32
    return %arg0, %arg2 : i32, i32
  }
  func.func @transform_1(%arg0: i32, %arg1: i32, %arg2: i32) -> (i32, i32) {
    %c0_i32 = arith.constant 0 : i32
    return %arg2, %arg1 : i32, i32
  }
  func.func @transform_2(%arg0: i32, %arg1: i32, %arg2: i32) -> (i32, i32) {
    %c0_i32 = arith.constant 0 : i32
    %c0_i32_0 = arith.constant 0 : i32
    return %c0_i32, %arg1 : i32, i32
  }
  func.func @transform_3(%arg0: i32, %arg1: i32, %arg2: i32) -> (i32, i32) {
    %c0_i32 = arith.constant 0 : i32
    %c0_i32_0 = arith.constant 0 : i32
    return %c0_i32, %arg1 : i32, i32
  }
  func.func @transform_4(%arg0: i32, %arg1: i32, %arg2: i32) -> (i32, i32) {
    %c0_i32 = arith.constant 0 : i32
    return %arg0, %arg1 : i32, i32
  }
}

module attributes {stable_mosaic.version = 11 : i64} {
  func.func @_mm_affine_kernel(%arg0: i32, %arg1: i32, %arg2: i32, %arg3: memref<16x128xbf16, #tpu.memory_space<vmem>>, %arg4: memref<128x256xbf16, #tpu.memory_space<vmem>>, %arg5: memref<1x256xf32, #tpu.memory_space<vmem>>, %arg6: memref<1x256xf32, #tpu.memory_space<vmem>>, %arg7: memref<16x256xbf16, #tpu.memory_space<vmem>>, %arg8: memref<16x256xf32, #tpu.memory_space<vmem>>) attributes {dimension_semantics = [#tpu.dimension_semantics<parallel>, #tpu.dimension_semantics<parallel>, #tpu.dimension_semantics<arbitrary>], iteration_bounds = array<i64: 1, 1, 1>, scalar_prefetch = 0 : i64, scratch_operands = 1 : i64, tpu.core_type = #tpu.core_type<tc>, window_params = [{transform_indices = @transform_0, window_bounds = array<i64: 16, 128>}, {transform_indices = @transform_1, window_bounds = array<i64: 128, 256>}, {transform_indices = @transform_2, window_bounds = array<i64: 1, 256>}, {transform_indices = @transform_3, window_bounds = array<i64: 1, 256>}, {transform_indices = @transform_4, window_bounds = array<i64: 16, 256>}]} {
    %c0_i32 = arith.constant 0 : i32
    %0 = arith.cmpi eq, %arg2, %c0_i32 : i32
    %1 = arith.extui %0 : i1 to i32
    %c0_i32_0 = arith.constant 0 : i32
    %2 = arith.cmpi ne, %1, %c0_i32_0 : i32
    scf.if %2 {
      %cst_10 = arith.constant 0.000000e+00 : f32
      %12 = vector.broadcast %cst_10 : f32 to vector<16x256xf32>
      %c0_11 = arith.constant 0 : index
      %c0_12 = arith.constant 0 : index
      %13 = vector.load %arg8[%c0_11, %c0_12] : memref<16x256xf32, #tpu.memory_space<vmem>>, vector<16x256xf32>
      tpu.vector_store %arg8[%c0_11, %c0_12], %12 {strides = array<i32>} : memref<16x256xf32, #tpu.memory_space<vmem>>, vector<16x256xf32>,
    } else {
    }
    %c0 = arith.constant 0 : index
    %c0_1 = arith.constant 0 : index
    %3 = vector.load %arg8[%c0, %c0_1] : memref<16x256xf32, #tpu.memory_space<vmem>>, vector<16x256xf32>
    %c0_2 = arith.constant 0 : index
    %c0_3 = arith.constant 0 : index
    %4 = vector.load %arg3[%c0_2, %c0_3] : memref<16x128xbf16, #tpu.memory_space<vmem>>, vector<16x128xbf16>
    %c0_4 = arith.constant 0 : index
    %c0_5 = arith.constant 0 : index
    %5 = vector.load %arg4[%c0_4, %c0_5] : memref<128x256xbf16, #tpu.memory_space<vmem>>, vector<128x256xbf16>
    %cst = arith.constant dense<0.000000e+00> : vector<16x256xf32>
    %6 = tpu.matmul %4, %5, %cst {dimension_numbers = #tpu.dot_dimension_numbers<[1], [0], [0], [1], [0, 0, 1, 1], [], []>} : vector<16x128xbf16>, vector<128x256xbf16>, vector<16x256xf32> -> vector<16x256xf32>
    %7 = arith.addf %3, %6 : vector<16x256xf32>
    %c0_6 = arith.constant 0 : index
    %c0_7 = arith.constant 0 : index
    %8 = vector.load %arg8[%c0_6, %c0_7] : memref<16x256xf32, #tpu.memory_space<vmem>>, vector<16x256xf32>
    tpu.vector_store %arg8[%c0_6, %c0_7], %7 {strides = array<i32>} : memref<16x256xf32, #tpu.memory_space<vmem>>, vector<16x256xf32>,
    %c0_i32_8 = arith.constant 0 : i32
    %9 = arith.cmpi eq, %arg2, %c0_i32_8 : i32
    %10 = arith.extui %9 : i1 to i32
    %c0_i32_9 = arith.constant 0 : i32
    %11 = arith.cmpi ne, %10, %c0_i32_9 : i32
    scf.if %11 {
      %c0_10 = arith.constant 0 : index
      %c0_11 = arith.constant 0 : index
      %12 = vector.load %arg8[%c0_10, %c0_11] : memref<16x256xf32, #tpu.memory_space<vmem>>, vector<16x256xf32>
      %c0_12 = arith.constant 0 : index
      %c0_13 = arith.constant 0 : index
      %13 = vector.load %arg5[%c0_12, %c0_13] : memref<1x256xf32, #tpu.memory_space<vmem>>, vector<1x256xf32>
      %14 = vector.broadcast %13 : vector<1x256xf32> to vector<16x256xf32>
      %15 = arith.mulf %12, %14 : vector<16x256xf32>
      %c0_14 = arith.constant 0 : index
      %c0_15 = arith.constant 0 : index
      %16 = vector.load %arg6[%c0_14, %c0_15] : memref<1x256xf32, #tpu.memory_space<vmem>>, vector<1x256xf32>
      %17 = vector.broadcast %16 : vector<1x256xf32> to vector<16x256xf32>
      %18 = arith.addf %15, %17 : vector<16x256xf32>
      %19 = arith.truncf %18 : vector<16x256xf32> to vector<16x256xbf16>
      %c0_16 = arith.constant 0 : index
      %c0_17 = arith.constant 0 : index
      %20 = vector.load %arg7[%c0_16, %c0_17] : memref<16x256xbf16, #tpu.memory_space<vmem>>, vector<16x256xbf16>
      tpu.vector_store %arg7[%c0_16, %c0_17], %19 {strides = array<i32>} : memref<16x256xbf16, #tpu.memory_space<vmem>>, vector<16x256xbf16>,
    } else {
    }
    return
  }
  func.func @transform_0(%arg0: i32, %arg1: i32, %arg2: i32) -> (i32, i32) {
    %c0_i32 = arith.constant 0 : i32
    return %arg0, %arg2 : i32, i32
  }
  func.func @transform_1(%arg0: i32, %arg1: i32, %arg2: i32) -> (i32, i32) {
    %c0_i32 = arith.constant 0 : i32
    return %arg2, %arg1 : i32, i32
  }
  func.func @transform_2(%arg0: i32, %arg1: i32, %arg2: i32) -> (i32, i32) {
    %c0_i32 = arith.constant 0 : i32
    %c0_i32_0 = arith.constant 0 : i32
    return %c0_i32, %arg1 : i32, i32
  }
  func.func @transform_3(%arg0: i32, %arg1: i32, %arg2: i32) -> (i32, i32) {
    %c0_i32 = arith.constant 0 : i32
    %c0_i32_0 = arith.constant 0 : i32
    return %c0_i32, %arg1 : i32, i32
  }
  func.func @transform_4(%arg0: i32, %arg1: i32, %arg2: i32) -> (i32, i32) {
    %c0_i32 = arith.constant 0 : i32
    return %arg0, %arg1 : i32, i32
  }
}

module attributes {stable_mosaic.version = 11 : i64} {
  func.func @_mm_mask_residual_kernel(%arg0: i32, %arg1: i32, %arg2: i32, %arg3: memref<16x128xbf16, #tpu.memory_space<vmem>>, %arg4: memref<128x256xbf16, #tpu.memory_space<vmem>>, %arg5: memref<1x256xf32, #tpu.memory_space<vmem>>, %arg6: memref<1x256xf32, #tpu.memory_space<vmem>>, %arg7: memref<16x1xbf16, #tpu.memory_space<vmem>>, %arg8: memref<16x256xbf16, #tpu.memory_space<vmem>>, %arg9: memref<16x256xbf16, #tpu.memory_space<vmem>>, %arg10: memref<16x256xf32, #tpu.memory_space<vmem>>) attributes {dimension_semantics = [#tpu.dimension_semantics<parallel>, #tpu.dimension_semantics<parallel>, #tpu.dimension_semantics<arbitrary>], iteration_bounds = array<i64: 1, 1, 1>, scalar_prefetch = 0 : i64, scratch_operands = 1 : i64, tpu.core_type = #tpu.core_type<tc>, window_params = [{transform_indices = @transform_0, window_bounds = array<i64: 16, 128>}, {transform_indices = @transform_1, window_bounds = array<i64: 128, 256>}, {transform_indices = @transform_2, window_bounds = array<i64: 1, 256>}, {transform_indices = @transform_3, window_bounds = array<i64: 1, 256>}, {transform_indices = @transform_4, window_bounds = array<i64: 16, 1>}, {transform_indices = @transform_5, window_bounds = array<i64: 16, 256>}, {transform_indices = @transform_6, window_bounds = array<i64: 16, 256>}]} {
    %c0_i32 = arith.constant 0 : i32
    %0 = arith.cmpi eq, %arg2, %c0_i32 : i32
    %1 = arith.extui %0 : i1 to i32
    %c0_i32_0 = arith.constant 0 : i32
    %2 = arith.cmpi ne, %1, %c0_i32_0 : i32
    scf.if %2 {
      %cst_10 = arith.constant 0.000000e+00 : f32
      %12 = vector.broadcast %cst_10 : f32 to vector<16x256xf32>
      %c0_11 = arith.constant 0 : index
      %c0_12 = arith.constant 0 : index
      %13 = vector.load %arg10[%c0_11, %c0_12] : memref<16x256xf32, #tpu.memory_space<vmem>>, vector<16x256xf32>
      tpu.vector_store %arg10[%c0_11, %c0_12], %12 {strides = array<i32>} : memref<16x256xf32, #tpu.memory_space<vmem>>, vector<16x256xf32>,
    } else {
    }
    %c0 = arith.constant 0 : index
    %c0_1 = arith.constant 0 : index
    %3 = vector.load %arg10[%c0, %c0_1] : memref<16x256xf32, #tpu.memory_space<vmem>>, vector<16x256xf32>
    %c0_2 = arith.constant 0 : index
    %c0_3 = arith.constant 0 : index
    %4 = vector.load %arg3[%c0_2, %c0_3] : memref<16x128xbf16, #tpu.memory_space<vmem>>, vector<16x128xbf16>
    %c0_4 = arith.constant 0 : index
    %c0_5 = arith.constant 0 : index
    %5 = vector.load %arg4[%c0_4, %c0_5] : memref<128x256xbf16, #tpu.memory_space<vmem>>, vector<128x256xbf16>
    %cst = arith.constant dense<0.000000e+00> : vector<16x256xf32>
    %6 = tpu.matmul %4, %5, %cst {dimension_numbers = #tpu.dot_dimension_numbers<[1], [0], [0], [1], [0, 0, 1, 1], [], []>} : vector<16x128xbf16>, vector<128x256xbf16>, vector<16x256xf32> -> vector<16x256xf32>
    %7 = arith.addf %3, %6 : vector<16x256xf32>
    %c0_6 = arith.constant 0 : index
    %c0_7 = arith.constant 0 : index
    %8 = vector.load %arg10[%c0_6, %c0_7] : memref<16x256xf32, #tpu.memory_space<vmem>>, vector<16x256xf32>
    tpu.vector_store %arg10[%c0_6, %c0_7], %7 {strides = array<i32>} : memref<16x256xf32, #tpu.memory_space<vmem>>, vector<16x256xf32>,
    %c0_i32_8 = arith.constant 0 : i32
    %9 = arith.cmpi eq, %arg2, %c0_i32_8 : i32
    %10 = arith.extui %9 : i1 to i32
    %c0_i32_9 = arith.constant 0 : i32
    %11 = arith.cmpi ne, %10, %c0_i32_9 : i32
    scf.if %11 {
      %c0_10 = arith.constant 0 : index
      %c0_11 = arith.constant 0 : index
      %12 = vector.load %arg10[%c0_10, %c0_11] : memref<16x256xf32, #tpu.memory_space<vmem>>, vector<16x256xf32>
      %c0_12 = arith.constant 0 : index
      %c0_13 = arith.constant 0 : index
      %13 = vector.load %arg5[%c0_12, %c0_13] : memref<1x256xf32, #tpu.memory_space<vmem>>, vector<1x256xf32>
      %14 = vector.broadcast %13 : vector<1x256xf32> to vector<16x256xf32>
      %15 = arith.mulf %12, %14 : vector<16x256xf32>
      %c0_14 = arith.constant 0 : index
      %c0_15 = arith.constant 0 : index
      %16 = vector.load %arg6[%c0_14, %c0_15] : memref<1x256xf32, #tpu.memory_space<vmem>>, vector<1x256xf32>
      %17 = vector.broadcast %16 : vector<1x256xf32> to vector<16x256xf32>
      %18 = arith.addf %15, %17 : vector<16x256xf32>
      %c0_16 = arith.constant 0 : index
      %c0_17 = arith.constant 0 : index
      %19 = vector.load %arg7[%c0_16, %c0_17] : memref<16x1xbf16, #tpu.memory_space<vmem>>, vector<16x1xbf16>
      %20 = arith.extf %19 : vector<16x1xbf16> to vector<16x1xf32>
      %21 = vector.broadcast %20 : vector<16x1xf32> to vector<16x256xf32>
      %22 = arith.mulf %18, %21 : vector<16x256xf32>
      %c0_18 = arith.constant 0 : index
      %c0_19 = arith.constant 0 : index
      %23 = vector.load %arg8[%c0_18, %c0_19] : memref<16x256xbf16, #tpu.memory_space<vmem>>, vector<16x256xbf16>
      %24 = arith.extf %23 : vector<16x256xbf16> to vector<16x256xf32>
      %25 = arith.addf %22, %24 : vector<16x256xf32>
      %cst_20 = arith.constant 0.000000e+00 : f32
      %26 = vector.broadcast %cst_20 : f32 to vector<16x256xf32>
      %27 = arith.maximumf %25, %26 : vector<16x256xf32>
      %28 = arith.truncf %27 : vector<16x256xf32> to vector<16x256xbf16>
      %c0_21 = arith.constant 0 : index
      %c0_22 = arith.constant 0 : index
      %29 = vector.load %arg9[%c0_21, %c0_22] : memref<16x256xbf16, #tpu.memory_space<vmem>>, vector<16x256xbf16>
      tpu.vector_store %arg9[%c0_21, %c0_22], %28 {strides = array<i32>} : memref<16x256xbf16, #tpu.memory_space<vmem>>, vector<16x256xbf16>,
    } else {
    }
    return
  }
  func.func @transform_0(%arg0: i32, %arg1: i32, %arg2: i32) -> (i32, i32) {
    %c0_i32 = arith.constant 0 : i32
    return %arg0, %arg2 : i32, i32
  }
  func.func @transform_1(%arg0: i32, %arg1: i32, %arg2: i32) -> (i32, i32) {
    %c0_i32 = arith.constant 0 : i32
    return %arg2, %arg1 : i32, i32
  }
  func.func @transform_2(%arg0: i32, %arg1: i32, %arg2: i32) -> (i32, i32) {
    %c0_i32 = arith.constant 0 : i32
    %c0_i32_0 = arith.constant 0 : i32
    return %c0_i32, %arg1 : i32, i32
  }
  func.func @transform_3(%arg0: i32, %arg1: i32, %arg2: i32) -> (i32, i32) {
    %c0_i32 = arith.constant 0 : i32
    %c0_i32_0 = arith.constant 0 : i32
    return %c0_i32, %arg1 : i32, i32
  }
  func.func @transform_4(%arg0: i32, %arg1: i32, %arg2: i32) -> (i32, i32) {
    %c0_i32 = arith.constant 0 : i32
    %c0_i32_0 = arith.constant 0 : i32
    return %arg0, %c0_i32 : i32, i32
  }
  func.func @transform_5(%arg0: i32, %arg1: i32, %arg2: i32) -> (i32, i32) {
    %c0_i32 = arith.constant 0 : i32
    return %arg0, %arg1 : i32, i32
  }
  func.func @transform_6(%arg0: i32, %arg1: i32, %arg2: i32) -> (i32, i32) {
    %c0_i32 = arith.constant 0 : i32
    return %arg0, %arg1 : i32, i32
  }
}

module attributes {stable_mosaic.version = 11 : i64} {
  func.func @_mm_affine_kernel(%arg0: i32, %arg1: i32, %arg2: i32, %arg3: memref<16x256xbf16, #tpu.memory_space<vmem>>, %arg4: memref<256x128xbf16, #tpu.memory_space<vmem>>, %arg5: memref<1x128xf32, #tpu.memory_space<vmem>>, %arg6: memref<1x128xf32, #tpu.memory_space<vmem>>, %arg7: memref<16x128xbf16, #tpu.memory_space<vmem>>, %arg8: memref<16x128xf32, #tpu.memory_space<vmem>>) attributes {dimension_semantics = [#tpu.dimension_semantics<parallel>, #tpu.dimension_semantics<parallel>, #tpu.dimension_semantics<arbitrary>], iteration_bounds = array<i64: 1, 1, 1>, scalar_prefetch = 0 : i64, scratch_operands = 1 : i64, tpu.core_type = #tpu.core_type<tc>, window_params = [{transform_indices = @transform_0, window_bounds = array<i64: 16, 256>}, {transform_indices = @transform_1, window_bounds = array<i64: 256, 128>}, {transform_indices = @transform_2, window_bounds = array<i64: 1, 128>}, {transform_indices = @transform_3, window_bounds = array<i64: 1, 128>}, {transform_indices = @transform_4, window_bounds = array<i64: 16, 128>}]} {
    %c0_i32 = arith.constant 0 : i32
    %0 = arith.cmpi eq, %arg2, %c0_i32 : i32
    %1 = arith.extui %0 : i1 to i32
    %c0_i32_0 = arith.constant 0 : i32
    %2 = arith.cmpi ne, %1, %c0_i32_0 : i32
    scf.if %2 {
      %cst_10 = arith.constant 0.000000e+00 : f32
      %12 = vector.broadcast %cst_10 : f32 to vector<16x128xf32>
      %c0_11 = arith.constant 0 : index
      %c0_12 = arith.constant 0 : index
      %13 = vector.load %arg8[%c0_11, %c0_12] : memref<16x128xf32, #tpu.memory_space<vmem>>, vector<16x128xf32>
      tpu.vector_store %arg8[%c0_11, %c0_12], %12 {strides = array<i32>} : memref<16x128xf32, #tpu.memory_space<vmem>>, vector<16x128xf32>,
    } else {
    }
    %c0 = arith.constant 0 : index
    %c0_1 = arith.constant 0 : index
    %3 = vector.load %arg8[%c0, %c0_1] : memref<16x128xf32, #tpu.memory_space<vmem>>, vector<16x128xf32>
    %c0_2 = arith.constant 0 : index
    %c0_3 = arith.constant 0 : index
    %4 = vector.load %arg3[%c0_2, %c0_3] : memref<16x256xbf16, #tpu.memory_space<vmem>>, vector<16x256xbf16>
    %c0_4 = arith.constant 0 : index
    %c0_5 = arith.constant 0 : index
    %5 = vector.load %arg4[%c0_4, %c0_5] : memref<256x128xbf16, #tpu.memory_space<vmem>>, vector<256x128xbf16>
    %cst = arith.constant dense<0.000000e+00> : vector<16x128xf32>
    %6 = tpu.matmul %4, %5, %cst {dimension_numbers = #tpu.dot_dimension_numbers<[1], [0], [0], [1], [0, 0, 1, 1], [], []>} : vector<16x256xbf16>, vector<256x128xbf16>, vector<16x128xf32> -> vector<16x128xf32>
    %7 = arith.addf %3, %6 : vector<16x128xf32>
    %c0_6 = arith.constant 0 : index
    %c0_7 = arith.constant 0 : index
    %8 = vector.load %arg8[%c0_6, %c0_7] : memref<16x128xf32, #tpu.memory_space<vmem>>, vector<16x128xf32>
    tpu.vector_store %arg8[%c0_6, %c0_7], %7 {strides = array<i32>} : memref<16x128xf32, #tpu.memory_space<vmem>>, vector<16x128xf32>,
    %c0_i32_8 = arith.constant 0 : i32
    %9 = arith.cmpi eq, %arg2, %c0_i32_8 : i32
    %10 = arith.extui %9 : i1 to i32
    %c0_i32_9 = arith.constant 0 : i32
    %11 = arith.cmpi ne, %10, %c0_i32_9 : i32
    scf.if %11 {
      %c0_10 = arith.constant 0 : index
      %c0_11 = arith.constant 0 : index
      %12 = vector.load %arg8[%c0_10, %c0_11] : memref<16x128xf32, #tpu.memory_space<vmem>>, vector<16x128xf32>
      %c0_12 = arith.constant 0 : index
      %c0_13 = arith.constant 0 : index
      %13 = vector.load %arg5[%c0_12, %c0_13] : memref<1x128xf32, #tpu.memory_space<vmem>>, vector<1x128xf32>
      %14 = vector.broadcast %13 : vector<1x128xf32> to vector<16x128xf32>
      %15 = arith.mulf %12, %14 : vector<16x128xf32>
      %c0_14 = arith.constant 0 : index
      %c0_15 = arith.constant 0 : index
      %16 = vector.load %arg6[%c0_14, %c0_15] : memref<1x128xf32, #tpu.memory_space<vmem>>, vector<1x128xf32>
      %17 = vector.broadcast %16 : vector<1x128xf32> to vector<16x128xf32>
      %18 = arith.addf %15, %17 : vector<16x128xf32>
      %cst_16 = arith.constant 0.000000e+00 : f32
      %19 = vector.broadcast %cst_16 : f32 to vector<16x128xf32>
      %20 = arith.maximumf %18, %19 : vector<16x128xf32>
      %21 = arith.truncf %20 : vector<16x128xf32> to vector<16x128xbf16>
      %c0_17 = arith.constant 0 : index
      %c0_18 = arith.constant 0 : index
      %22 = vector.load %arg7[%c0_17, %c0_18] : memref<16x128xbf16, #tpu.memory_space<vmem>>, vector<16x128xbf16>
      tpu.vector_store %arg7[%c0_17, %c0_18], %21 {strides = array<i32>} : memref<16x128xbf16, #tpu.memory_space<vmem>>, vector<16x128xbf16>,
    } else {
    }
    return
  }
  func.func @transform_0(%arg0: i32, %arg1: i32, %arg2: i32) -> (i32, i32) {
    %c0_i32 = arith.constant 0 : i32
    return %arg0, %arg2 : i32, i32
  }
  func.func @transform_1(%arg0: i32, %arg1: i32, %arg2: i32) -> (i32, i32) {
    %c0_i32 = arith.constant 0 : i32
    return %arg2, %arg1 : i32, i32
  }
  func.func @transform_2(%arg0: i32, %arg1: i32, %arg2: i32) -> (i32, i32) {
    %c0_i32 = arith.constant 0 : i32
    %c0_i32_0 = arith.constant 0 : i32
    return %c0_i32, %arg1 : i32, i32
  }
  func.func @transform_3(%arg0: i32, %arg1: i32, %arg2: i32) -> (i32, i32) {
    %c0_i32 = arith.constant 0 : i32
    %c0_i32_0 = arith.constant 0 : i32
    return %c0_i32, %arg1 : i32, i32
  }
  func.func @transform_4(%arg0: i32, %arg1: i32, %arg2: i32) -> (i32, i32) {
    %c0_i32 = arith.constant 0 : i32
    return %arg0, %arg1 : i32, i32
  }
}

module attributes {stable_mosaic.version = 11 : i64} {
  func.func @_mm_affine_kernel(%arg0: i32, %arg1: i32, %arg2: i32, %arg3: memref<16x256xbf16, #tpu.memory_space<vmem>>, %arg4: memref<256x512xbf16, #tpu.memory_space<vmem>>, %arg5: memref<1x512xf32, #tpu.memory_space<vmem>>, %arg6: memref<1x512xf32, #tpu.memory_space<vmem>>, %arg7: memref<16x512xbf16, #tpu.memory_space<vmem>>, %arg8: memref<16x512xf32, #tpu.memory_space<vmem>>) attributes {dimension_semantics = [#tpu.dimension_semantics<parallel>, #tpu.dimension_semantics<parallel>, #tpu.dimension_semantics<arbitrary>], iteration_bounds = array<i64: 1, 1, 1>, scalar_prefetch = 0 : i64, scratch_operands = 1 : i64, tpu.core_type = #tpu.core_type<tc>, window_params = [{transform_indices = @transform_0, window_bounds = array<i64: 16, 256>}, {transform_indices = @transform_1, window_bounds = array<i64: 256, 512>}, {transform_indices = @transform_2, window_bounds = array<i64: 1, 512>}, {transform_indices = @transform_3, window_bounds = array<i64: 1, 512>}, {transform_indices = @transform_4, window_bounds = array<i64: 16, 512>}]} {
    %c0_i32 = arith.constant 0 : i32
    %0 = arith.cmpi eq, %arg2, %c0_i32 : i32
    %1 = arith.extui %0 : i1 to i32
    %c0_i32_0 = arith.constant 0 : i32
    %2 = arith.cmpi ne, %1, %c0_i32_0 : i32
    scf.if %2 {
      %cst_10 = arith.constant 0.000000e+00 : f32
      %12 = vector.broadcast %cst_10 : f32 to vector<16x512xf32>
      %c0_11 = arith.constant 0 : index
      %c0_12 = arith.constant 0 : index
      %13 = vector.load %arg8[%c0_11, %c0_12] : memref<16x512xf32, #tpu.memory_space<vmem>>, vector<16x512xf32>
      tpu.vector_store %arg8[%c0_11, %c0_12], %12 {strides = array<i32>} : memref<16x512xf32, #tpu.memory_space<vmem>>, vector<16x512xf32>,
    } else {
    }
    %c0 = arith.constant 0 : index
    %c0_1 = arith.constant 0 : index
    %3 = vector.load %arg8[%c0, %c0_1] : memref<16x512xf32, #tpu.memory_space<vmem>>, vector<16x512xf32>
    %c0_2 = arith.constant 0 : index
    %c0_3 = arith.constant 0 : index
    %4 = vector.load %arg3[%c0_2, %c0_3] : memref<16x256xbf16, #tpu.memory_space<vmem>>, vector<16x256xbf16>
    %c0_4 = arith.constant 0 : index
    %c0_5 = arith.constant 0 : index
    %5 = vector.load %arg4[%c0_4, %c0_5] : memref<256x512xbf16, #tpu.memory_space<vmem>>, vector<256x512xbf16>
    %cst = arith.constant dense<0.000000e+00> : vector<16x512xf32>
    %6 = tpu.matmul %4, %5, %cst {dimension_numbers = #tpu.dot_dimension_numbers<[1], [0], [0], [1], [0, 0, 1, 1], [], []>} : vector<16x256xbf16>, vector<256x512xbf16>, vector<16x512xf32> -> vector<16x512xf32>
    %7 = arith.addf %3, %6 : vector<16x512xf32>
    %c0_6 = arith.constant 0 : index
    %c0_7 = arith.constant 0 : index
    %8 = vector.load %arg8[%c0_6, %c0_7] : memref<16x512xf32, #tpu.memory_space<vmem>>, vector<16x512xf32>
    tpu.vector_store %arg8[%c0_6, %c0_7], %7 {strides = array<i32>} : memref<16x512xf32, #tpu.memory_space<vmem>>, vector<16x512xf32>,
    %c0_i32_8 = arith.constant 0 : i32
    %9 = arith.cmpi eq, %arg2, %c0_i32_8 : i32
    %10 = arith.extui %9 : i1 to i32
    %c0_i32_9 = arith.constant 0 : i32
    %11 = arith.cmpi ne, %10, %c0_i32_9 : i32
    scf.if %11 {
      %c0_10 = arith.constant 0 : index
      %c0_11 = arith.constant 0 : index
      %12 = vector.load %arg8[%c0_10, %c0_11] : memref<16x512xf32, #tpu.memory_space<vmem>>, vector<16x512xf32>
      %c0_12 = arith.constant 0 : index
      %c0_13 = arith.constant 0 : index
      %13 = vector.load %arg5[%c0_12, %c0_13] : memref<1x512xf32, #tpu.memory_space<vmem>>, vector<1x512xf32>
      %14 = vector.broadcast %13 : vector<1x512xf32> to vector<16x512xf32>
      %15 = arith.mulf %12, %14 : vector<16x512xf32>
      %c0_14 = arith.constant 0 : index
      %c0_15 = arith.constant 0 : index
      %16 = vector.load %arg6[%c0_14, %c0_15] : memref<1x512xf32, #tpu.memory_space<vmem>>, vector<1x512xf32>
      %17 = vector.broadcast %16 : vector<1x512xf32> to vector<16x512xf32>
      %18 = arith.addf %15, %17 : vector<16x512xf32>
      %19 = arith.truncf %18 : vector<16x512xf32> to vector<16x512xbf16>
      %c0_16 = arith.constant 0 : index
      %c0_17 = arith.constant 0 : index
      %20 = vector.load %arg7[%c0_16, %c0_17] : memref<16x512xbf16, #tpu.memory_space<vmem>>, vector<16x512xbf16>
      tpu.vector_store %arg7[%c0_16, %c0_17], %19 {strides = array<i32>} : memref<16x512xbf16, #tpu.memory_space<vmem>>, vector<16x512xbf16>,
    } else {
    }
    return
  }
  func.func @transform_0(%arg0: i32, %arg1: i32, %arg2: i32) -> (i32, i32) {
    %c0_i32 = arith.constant 0 : i32
    return %arg0, %arg2 : i32, i32
  }
  func.func @transform_1(%arg0: i32, %arg1: i32, %arg2: i32) -> (i32, i32) {
    %c0_i32 = arith.constant 0 : i32
    return %arg2, %arg1 : i32, i32
  }
  func.func @transform_2(%arg0: i32, %arg1: i32, %arg2: i32) -> (i32, i32) {
    %c0_i32 = arith.constant 0 : i32
    %c0_i32_0 = arith.constant 0 : i32
    return %c0_i32, %arg1 : i32, i32
  }
  func.func @transform_3(%arg0: i32, %arg1: i32, %arg2: i32) -> (i32, i32) {
    %c0_i32 = arith.constant 0 : i32
    %c0_i32_0 = arith.constant 0 : i32
    return %c0_i32, %arg1 : i32, i32
  }
  func.func @transform_4(%arg0: i32, %arg1: i32, %arg2: i32) -> (i32, i32) {
    %c0_i32 = arith.constant 0 : i32
    return %arg0, %arg1 : i32, i32
  }
}

module attributes {stable_mosaic.version = 11 : i64} {
  func.func @_mm_mask_residual_kernel(%arg0: i32, %arg1: i32, %arg2: i32, %arg3: memref<16x128xbf16, #tpu.memory_space<vmem>>, %arg4: memref<128x512xbf16, #tpu.memory_space<vmem>>, %arg5: memref<1x512xf32, #tpu.memory_space<vmem>>, %arg6: memref<1x512xf32, #tpu.memory_space<vmem>>, %arg7: memref<16x1xbf16, #tpu.memory_space<vmem>>, %arg8: memref<16x512xbf16, #tpu.memory_space<vmem>>, %arg9: memref<16x512xbf16, #tpu.memory_space<vmem>>, %arg10: memref<16x512xf32, #tpu.memory_space<vmem>>) attributes {dimension_semantics = [#tpu.dimension_semantics<parallel>, #tpu.dimension_semantics<parallel>, #tpu.dimension_semantics<arbitrary>], iteration_bounds = array<i64: 1, 1, 1>, scalar_prefetch = 0 : i64, scratch_operands = 1 : i64, tpu.core_type = #tpu.core_type<tc>, window_params = [{transform_indices = @transform_0, window_bounds = array<i64: 16, 128>}, {transform_indices = @transform_1, window_bounds = array<i64: 128, 512>}, {transform_indices = @transform_2, window_bounds = array<i64: 1, 512>}, {transform_indices = @transform_3, window_bounds = array<i64: 1, 512>}, {transform_indices = @transform_4, window_bounds = array<i64: 16, 1>}, {transform_indices = @transform_5, window_bounds = array<i64: 16, 512>}, {transform_indices = @transform_6, window_bounds = array<i64: 16, 512>}]} {
    %c0_i32 = arith.constant 0 : i32
    %0 = arith.cmpi eq, %arg2, %c0_i32 : i32
    %1 = arith.extui %0 : i1 to i32
    %c0_i32_0 = arith.constant 0 : i32
    %2 = arith.cmpi ne, %1, %c0_i32_0 : i32
    scf.if %2 {
      %cst_10 = arith.constant 0.000000e+00 : f32
      %12 = vector.broadcast %cst_10 : f32 to vector<16x512xf32>
      %c0_11 = arith.constant 0 : index
      %c0_12 = arith.constant 0 : index
      %13 = vector.load %arg10[%c0_11, %c0_12] : memref<16x512xf32, #tpu.memory_space<vmem>>, vector<16x512xf32>
      tpu.vector_store %arg10[%c0_11, %c0_12], %12 {strides = array<i32>} : memref<16x512xf32, #tpu.memory_space<vmem>>, vector<16x512xf32>,
    } else {
    }
    %c0 = arith.constant 0 : index
    %c0_1 = arith.constant 0 : index
    %3 = vector.load %arg10[%c0, %c0_1] : memref<16x512xf32, #tpu.memory_space<vmem>>, vector<16x512xf32>
    %c0_2 = arith.constant 0 : index
    %c0_3 = arith.constant 0 : index
    %4 = vector.load %arg3[%c0_2, %c0_3] : memref<16x128xbf16, #tpu.memory_space<vmem>>, vector<16x128xbf16>
    %c0_4 = arith.constant 0 : index
    %c0_5 = arith.constant 0 : index
    %5 = vector.load %arg4[%c0_4, %c0_5] : memref<128x512xbf16, #tpu.memory_space<vmem>>, vector<128x512xbf16>
    %cst = arith.constant dense<0.000000e+00> : vector<16x512xf32>
    %6 = tpu.matmul %4, %5, %cst {dimension_numbers = #tpu.dot_dimension_numbers<[1], [0], [0], [1], [0, 0, 1, 1], [], []>} : vector<16x128xbf16>, vector<128x512xbf16>, vector<16x512xf32> -> vector<16x512xf32>
    %7 = arith.addf %3, %6 : vector<16x512xf32>
    %c0_6 = arith.constant 0 : index
    %c0_7 = arith.constant 0 : index
    %8 = vector.load %arg10[%c0_6, %c0_7] : memref<16x512xf32, #tpu.memory_space<vmem>>, vector<16x512xf32>
    tpu.vector_store %arg10[%c0_6, %c0_7], %7 {strides = array<i32>} : memref<16x512xf32, #tpu.memory_space<vmem>>, vector<16x512xf32>,
    %c0_i32_8 = arith.constant 0 : i32
    %9 = arith.cmpi eq, %arg2, %c0_i32_8 : i32
    %10 = arith.extui %9 : i1 to i32
    %c0_i32_9 = arith.constant 0 : i32
    %11 = arith.cmpi ne, %10, %c0_i32_9 : i32
    scf.if %11 {
      %c0_10 = arith.constant 0 : index
      %c0_11 = arith.constant 0 : index
      %12 = vector.load %arg10[%c0_10, %c0_11] : memref<16x512xf32, #tpu.memory_space<vmem>>, vector<16x512xf32>
      %c0_12 = arith.constant 0 : index
      %c0_13 = arith.constant 0 : index
      %13 = vector.load %arg5[%c0_12, %c0_13] : memref<1x512xf32, #tpu.memory_space<vmem>>, vector<1x512xf32>
      %14 = vector.broadcast %13 : vector<1x512xf32> to vector<16x512xf32>
      %15 = arith.mulf %12, %14 : vector<16x512xf32>
      %c0_14 = arith.constant 0 : index
      %c0_15 = arith.constant 0 : index
      %16 = vector.load %arg6[%c0_14, %c0_15] : memref<1x512xf32, #tpu.memory_space<vmem>>, vector<1x512xf32>
      %17 = vector.broadcast %16 : vector<1x512xf32> to vector<16x512xf32>
      %18 = arith.addf %15, %17 : vector<16x512xf32>
      %c0_16 = arith.constant 0 : index
      %c0_17 = arith.constant 0 : index
      %19 = vector.load %arg7[%c0_16, %c0_17] : memref<16x1xbf16, #tpu.memory_space<vmem>>, vector<16x1xbf16>
      %20 = arith.extf %19 : vector<16x1xbf16> to vector<16x1xf32>
      %21 = vector.broadcast %20 : vector<16x1xf32> to vector<16x512xf32>
      %22 = arith.mulf %18, %21 : vector<16x512xf32>
      %c0_18 = arith.constant 0 : index
      %c0_19 = arith.constant 0 : index
      %23 = vector.load %arg8[%c0_18, %c0_19] : memref<16x512xbf16, #tpu.memory_space<vmem>>, vector<16x512xbf16>
      %24 = arith.extf %23 : vector<16x512xbf16> to vector<16x512xf32>
      %25 = arith.addf %22, %24 : vector<16x512xf32>
      %cst_20 = arith.constant 0.000000e+00 : f32
      %26 = vector.broadcast %cst_20 : f32 to vector<16x512xf32>
      %27 = arith.maximumf %25, %26 : vector<16x512xf32>
      %28 = arith.truncf %27 : vector<16x512xf32> to vector<16x512xbf16>
      %c0_21 = arith.constant 0 : index
      %c0_22 = arith.constant 0 : index
      %29 = vector.load %arg9[%c0_21, %c0_22] : memref<16x512xbf16, #tpu.memory_space<vmem>>, vector<16x512xbf16>
      tpu.vector_store %arg9[%c0_21, %c0_22], %28 {strides = array<i32>} : memref<16x512xbf16, #tpu.memory_space<vmem>>, vector<16x512xbf16>,
    } else {
    }
    return
  }
  func.func @transform_0(%arg0: i32, %arg1: i32, %arg2: i32) -> (i32, i32) {
    %c0_i32 = arith.constant 0 : i32
    return %arg0, %arg2 : i32, i32
  }
  func.func @transform_1(%arg0: i32, %arg1: i32, %arg2: i32) -> (i32, i32) {
    %c0_i32 = arith.constant 0 : i32
    return %arg2, %arg1 : i32, i32
  }
  func.func @transform_2(%arg0: i32, %arg1: i32, %arg2: i32) -> (i32, i32) {
    %c0_i32 = arith.constant 0 : i32
    %c0_i32_0 = arith.constant 0 : i32
    return %c0_i32, %arg1 : i32, i32
  }
  func.func @transform_3(%arg0: i32, %arg1: i32, %arg2: i32) -> (i32, i32) {
    %c0_i32 = arith.constant 0 : i32
    %c0_i32_0 = arith.constant 0 : i32
    return %c0_i32, %arg1 : i32, i32
  }
  func.func @transform_4(%arg0: i32, %arg1: i32, %arg2: i32) -> (i32, i32) {
    %c0_i32 = arith.constant 0 : i32
    %c0_i32_0 = arith.constant 0 : i32
    return %arg0, %c0_i32 : i32, i32
  }
  func.func @transform_5(%arg0: i32, %arg1: i32, %arg2: i32) -> (i32, i32) {
    %c0_i32 = arith.constant 0 : i32
    return %arg0, %arg1 : i32, i32
  }
  func.func @transform_6(%arg0: i32, %arg1: i32, %arg2: i32) -> (i32, i32) {
    %c0_i32 = arith.constant 0 : i32
    return %arg0, %arg1 : i32, i32
  }
}

</mosaic_0001>

<llo_original>
// kernel: _lambda_.18
$region0: #{_lambda_.18}
  #allocation0 [shape = 'u32[]', space=smem, size = 0x4, offset = 0x4, fixed_abs, tag = 'smem constant byte address 0x4 - core index']
  #allocation1 [shape = 'u32[144,128]{1,0:T(1,128)}', space=vmem, size = 0x12000, scoped, tag = 'internal scratch']
  #allocation2 [shape = 'f32[128,128]{1,0:T(8,128)}', space=vmem, size = 0x10000, scoped, tag = 'scratch operand']
  %s0 = inlined_call_operand.vmem [shape: bf16[128,128], index: 0, kind: input, shape index: {}]
  %s1 = inlined_call_operand.vmem [shape: bf16[128,128], index: 1, kind: input, shape index: {}]
  %s2 = inlined_call_operand.vmem [shape: f32[1,128], index: 2, kind: input, shape index: {}]
  %s3 = inlined_call_operand.vmem [shape: f32[1,128], index: 3, kind: input, shape index: {}]
  %s4 = inlined_call_operand.vmem [shape: bf16[128,128], index: 4, kind: output, shape index: {}]
  %s5 = sld [smem:[#allocation0]]
  $region34: #{_lambda_.18} parent=0
    _
  %s7 = ssub.s32 1, %s5
  %s8 = scalar_select 0, %s7, %s5
  // Predicated region
  $region2: #{_lambda_.18} parent=0 // pred_check
    _
  $region3: #{_lambda_.18} parent=0 // pred_check_branch
    %10 = sbr.rel (0) target = $region5
  $region4: #{_lambda_.18} parent=0 // pred_region
    _
  $region5: #{_lambda_.18} parent=0 // pred_fallthru
    _
  // Predicated region
  $region6: #{_lambda_.18} parent=0 // pred_check
    _
  $region7: #{_lambda_.18} parent=0 // pred_check_branch
    %12 = sbr.rel (0) target = $region9
  $region8: #{_lambda_.18} parent=0 // pred_region
    _
  $region9: #{_lambda_.18} parent=0 // pred_fallthru
    _
  // Predicated region
  $region10: #{_lambda_.18} parent=0 // pred_check
    _
  $region11: #{_lambda_.18} parent=0 // pred_check_branch
    %14 = sbr.rel (0) target = $region13
  $region12: #{_lambda_.18} parent=0 // pred_region
    _
  $region13: #{_lambda_.18} parent=0 // pred_fallthru
    _
  // Predicated region
  $region14: #{_lambda_.18} parent=0 // pred_check
    _
  $region15: #{_lambda_.18} parent=0 // pred_check_branch
    %16 = sbr.rel (0) target = $region17
  $region16: #{_lambda_.18} parent=0 // pred_region
    _
  $region17: #{_lambda_.18} parent=0 // pred_fallthru
    _
  %p18 = scmp.eq.s32.totalorder 0, 0
  // Predicated region
  $region18: #{_lambda_.18} parent=0 // pred_check
    %p19 = pneg %p18
  $region19: #{_lambda_.18} parent=0 // pred_check_branch
    %21 = sbr.rel (%p19) target = $region21
  $region20: #{_lambda_.18} parent=0 // pred_region
    %22 = vst [vmem:[#allocation2] sm:$0xff] 0.0
    %23 = vst [vmem:[#allocation2 + $0x8] sm:$0xff] 0.0
    %24 = vst [vmem:[#allocation2 + $0x10] sm:$0xff] 0.0
    %25 = vst [vmem:[#allocation2 + $0x18] sm:$0xff] 0.0
    %26 = vst [vmem:[#allocation2 + $0x20] sm:$0xff] 0.0
    %27 = vst [vmem:[#allocation2 + $0x28] sm:$0xff] 0.0
    %28 = vst [vmem:[#allocation2 + $0x30] sm:$0xff] 0.0
    %29 = vst [vmem:[#allocation2 + $0x38] sm:$0xff] 0.0
    %30 = vst [vmem:[#allocation2 + $0x40] sm:$0xff] 0.0
    %31 = vst [vmem:[#allocation2 + $0x48] sm:$0xff] 0.0
    %32 = vst [vmem:[#allocation2 + $0x50] sm:$0xff] 0.0
    %33 = vst [vmem:[#allocation2 + $0x58] sm:$0xff] 0.0
    %34 = vst [vmem:[#allocation2 + $0x60] sm:$0xff] 0.0
    %35 = vst [vmem:[#allocation2 + $0x68] sm:$0xff] 0.0
    %36 = vst [vmem:[#allocation2 + $0x70] sm:$0xff] 0.0
    %37 = vst [vmem:[#allocation2 + $0x78] sm:$0xff] 0.0
  $region21: #{_lambda_.18} parent=0 // pred_fallthru
    _
  %v38 = vld [vmem:[#allocation2] sm:$0xff]
  %v39 = vld [vmem:[#allocation2 + $0x8] sm:$0xff]
  %v40 = vld [vmem:[#allocation2 + $0x10] sm:$0xff]
  %v41 = vld [vmem:[#allocation2 + $0x18] sm:$0xff]
  %v42 = vld [vmem:[#allocation2 + $0x20] sm:$0xff]
  %v43 = vld [vmem:[#allocation2 + $0x28] sm:$0xff]
  %v44 = vld [vmem:[#allocation2 + $0x30] sm:$0xff]
  %v45 = vld [vmem:[#allocation2 + $0x38] sm:$0xff]
  %v46 = vld [vmem:[#allocation2 + $0x40] sm:$0xff]
  %v47 = vld [vmem:[#allocation2 + $0x48] sm:$0xff]
  %v48 = vld [vmem:[#allocation2 + $0x50] sm:$0xff]
  %v49 = vld [vmem:[#allocation2 + $0x58] sm:$0xff]
  %v50 = vld [vmem:[#allocation2 + $0x60] sm:$0xff]
  %v51 = vld [vmem:[#allocation2 + $0x68] sm:$0xff]
  %v52 = vld [vmem:[#allocation2 + $0x70] sm:$0xff]
  %v53 = vld [vmem:[#allocation2 + $0x78] sm:$0xff]
  %v54 = vld [vmem:[%s0] sm:$0xf]
  %v55 = vld [vmem:[%s0 + $0x4] sm:$0xf]
  %v56 = vld [vmem:[%s0 + $0x8] sm:$0xf]
  %v57 = vld [vmem:[%s0 + $0xc] sm:$0xf]
  %v58 = vld [vmem:[%s0 + $0x10] sm:$0xf]
  %v59 = vld [vmem:[%s0 + $0x14] sm:$0xf]
  %v60 = vld [vmem:[%s0 + $0x18] sm:$0xf]
  %v61 = vld [vmem:[%s0 + $0x1c] sm:$0xf]
  %v62 = vld [vmem:[%s0 + $0x20] sm:$0xf]
  %v63 = vld [vmem:[%s0 + $0x24] sm:$0xf]
  %v64 = vld [vmem:[%s0 + $0x28] sm:$0xf]
  %v65 = vld [vmem:[%s0 + $0x2c] sm:$0xf]
  %v66 = vld [vmem:[%s0 + $0x30] sm:$0xf]
  %v67 = vld [vmem:[%s0 + $0x34] sm:$0xf]
  %v68 = vld [vmem:[%s0 + $0x38] sm:$0xf]
  %v69 = vld [vmem:[%s0 + $0x3c] sm:$0xf]
  %v70 = vld [vmem:[%s1] sm:$0xf]
  %v71 = vld [vmem:[%s1 + $0x4] sm:$0xf]
  %v72 = vld [vmem:[%s1 + $0x8] sm:$0xf]
  %v73 = vld [vmem:[%s1 + $0xc] sm:$0xf]
  %v74 = vld [vmem:[%s1 + $0x10] sm:$0xf]
  %v75 = vld [vmem:[%s1 + $0x14] sm:$0xf]
  %v76 = vld [vmem:[%s1 + $0x18] sm:$0xf]
  %v77 = vld [vmem:[%s1 + $0x1c] sm:$0xf]
  %v78 = vld [vmem:[%s1 + $0x20] sm:$0xf]
  %v79 = vld [vmem:[%s1 + $0x24] sm:$0xf]
  %v80 = vld [vmem:[%s1 + $0x28] sm:$0xf]
  %v81 = vld [vmem:[%s1 + $0x2c] sm:$0xf]
  %v82 = vld [vmem:[%s1 + $0x30] sm:$0xf]
  %v83 = vld [vmem:[%s1 + $0x34] sm:$0xf]
  %v84 = vld [vmem:[%s1 + $0x38] sm:$0xf]
  %v85 = vld [vmem:[%s1 + $0x3c] sm:$0xf]
  %v102 = vunpack.c.l.b16 %v54
  %v103 = vunpack.c.l.b16 %v55
  %v104 = vunpack.c.l.b16 %v56
  %v105 = vunpack.c.l.b16 %v57
  %v106 = vunpack.c.l.b16 %v58
  %v107 = vunpack.c.l.b16 %v59
  %v108 = vunpack.c.l.b16 %v60
  %v109 = vunpack.c.l.b16 %v61
  %v110 = vunpack.c.l.b16 %v62
  %v111 = vunpack.c.l.b16 %v63
  %v112 = vunpack.c.l.b16 %v64
  %v113 = vunpack.c.l.b16 %v65
  %v114 = vunpack.c.l.b16 %v66
  %v115 = vunpack.c.l.b16 %v67
  %v116 = vunpack.c.l.b16 %v68
  %v117 = vunpack.c.l.b16 %v69
  %v118 = vpack.c.b16 %v103, %v102
  %v119 = vpack.c.b16 %v105, %v104
  %v120 = vpack.c.b16 %v107, %v106
  %v121 = vpack.c.b16 %v109, %v108
  %v122 = vpack.c.b16 %v111, %v110
  %v123 = vpack.c.b16 %v113, %v112
  %v124 = vpack.c.b16 %v115, %v114
  %v125 = vpack.c.b16 %v117, %v116
  %v150 = vunpack.c.l.b16 %v70
  %v151 = vunpack.c.l.b16 %v71
  %v152 = vunpack.c.l.b16 %v72
  %v153 = vunpack.c.l.b16 %v73
  %v154 = vunpack.c.l.b16 %v74
  %v155 = vunpack.c.l.b16 %v75
  %v156 = vunpack.c.l.b16 %v76
  %v157 = vunpack.c.l.b16 %v77
  %v158 = vunpack.c.l.b16 %v78
  %v159 = vunpack.c.l.b16 %v79
  %v160 = vunpack.c.l.b16 %v80
  %v161 = vunpack.c.l.b16 %v81
  %v162 = vunpack.c.l.b16 %v82
  %v163 = vunpack.c.l.b16 %v83
  %v164 = vunpack.c.l.b16 %v84
  %v165 = vunpack.c.l.b16 %v85
  %v166 = vpack.c.b16 %v151, %v150
  %v167 = vpack.c.b16 %v153, %v152
  %v168 = vpack.c.b16 %v155, %v154
  %v169 = vpack.c.b16 %v157, %v156
  %v170 = vpack.c.b16 %v159, %v158
  %v171 = vpack.c.b16 %v161, %v160
  %v172 = vpack.c.b16 %v163, %v162
  %v173 = vpack.c.b16 %v165, %v164
  %182 = vmatprep.subr.bf16.mxu0 0
  %183 = vmatpush1.bf16.msra.mxu0 %v173
  %184 = vmatprep.subr.bf16.mxu0 0
  %185 = vmatpush1.bf16.msra.mxu0 %v172
  %186 = vmatprep.subr.bf16.mxu0 0
  %187 = vmatpush1.bf16.msra.mxu0 %v171
  %188 = vmatprep.subr.bf16.mxu0 0
  %189 = vmatpush1.bf16.msra.mxu0 %v170
  %190 = vmatprep.subr.bf16.mxu0 0
  %191 = vmatpush1.bf16.msra.mxu0 %v169
  %192 = vmatprep.subr.bf16.mxu0 0
  %193 = vmatpush1.bf16.msra.mxu0 %v168
  %194 = vmatprep.subr.bf16.mxu0 0
  %195 = vmatpush1.bf16.msra.mxu0 %v167
  %196 = vmatprep.subr.bf16.mxu0 0
  %197 = vmatpush1.bf16.msra.mxu0 %v166
  %198 = vmatprep.subr.bf16.mxu0 0
  %199 = vmatpush2.bf16.msra.mxu0 0
  %200 = vmatprep.subr.bf16.mxu0 0
  %201 = vmatpush2.bf16.msra.mxu0 0
  %202 = vmatprep.subr.bf16.mxu0 0
  %203 = vmatpush2.bf16.msra.mxu0 0
  %204 = vmatprep.subr.bf16.mxu0 0
  %205 = vmatpush2.bf16.msra.mxu0 0
  %206 = vmatprep.subr.bf16.mxu0 0
  %207 = vmatpush2.bf16.msra.mxu0 0
  %208 = vmatprep.subr.bf16.mxu0 0
  %209 = vmatpush2.bf16.msra.mxu0 0
  %210 = vmatprep.subr.bf16.mxu0 0
  %211 = vmatpush2.bf16.msra.mxu0 0
  %212 = vmatprep.subr.bf16.mxu0 0
  %213 = vmatpush2.bf16.msra.mxu0 0
  %214 = vmatprep.mubr.bf16.mxu0 0
  %215 = vmatmul.mubr.bf16.gmra.mxu0 %v118
  %v216 = vpop.f32.mrf.mxu0
  %v217 = vadd.f32 0.0, %v216
  %v218 = vpop.f32.mrf.mxu0
  %v219 = vpop.f32.mrf.mxu0
  %v220 = vadd.f32 0.0, %v219
  %v221 = vpop.f32.mrf.mxu0
  %222 = vmatprep.mubr.bf16.mxu0 0
  %223 = vmatmul.mubr.bf16.gmra.mxu0 %v119
  %v224 = vpop.f32.mrf.mxu0
  %v225 = vadd.f32 0.0, %v224
  %v226 = vpop.f32.mrf.mxu0
  %v227 = vpop.f32.mrf.mxu0
  %v228 = vadd.f32 0.0, %v227
  %v229 = vpop.f32.mrf.mxu0
  %230 = vmatprep.mubr.bf16.mxu0 0
  %231 = vmatmul.mubr.bf16.gmra.mxu0 %v120
  %v232 = vpop.f32.mrf.mxu0
  %v233 = vadd.f32 0.0, %v232
  %v234 = vpop.f32.mrf.mxu0
  %v235 = vpop.f32.mrf.mxu0
  %v236 = vadd.f32 0.0, %v235
  %v237 = vpop.f32.mrf.mxu0
  %238 = vmatprep.mubr.bf16.mxu0 0
  %239 = vmatmul.mubr.bf16.gmra.mxu0 %v121
  %v240 = vpop.f32.mrf.mxu0
  %v241 = vadd.f32 0.0, %v240
  %v242 = vpop.f32.mrf.mxu0
  %v243 = vpop.f32.mrf.mxu0
  %v244 = vadd.f32 0.0, %v243
  %v245 = vpop.f32.mrf.mxu0
  %246 = vmatprep.mubr.bf16.mxu0 0
  %247 = vmatmul.mubr.bf16.gmra.mxu0 %v122
  %v248 = vpop.f32.mrf.mxu0
  %v249 = vadd.f32 0.0, %v248
  %v250 = vpop.f32.mrf.mxu0
  %v251 = vpop.f32.mrf.mxu0
  %v252 = vadd.f32 0.0, %v251
  %v253 = vpop.f32.mrf.mxu0
  %254 = vmatprep.mubr.bf16.mxu0 0
  %255 = vmatmul.mubr.bf16.gmra.mxu0 %v123
  %v256 = vpop.f32.mrf.mxu0
  %v257 = vadd.f32 0.0, %v256
  %v258 = vpop.f32.mrf.mxu0
  %v259 = vpop.f32.mrf.mxu0
  %v260 = vadd.f32 0.0, %v259
  %v261 = vpop.f32.mrf.mxu0
  %262 = vmatprep.mubr.bf16.mxu0 0
  %263 = vmatmul.mubr.bf16.gmra.mxu0 %v124
  %v264 = vpop.f32.mrf.mxu0
  %v265 = vadd.f32 0.0, %v264
  %v266 = vpop.f32.mrf.mxu0
  %v267 = vpop.f32.mrf.mxu0
  %v268 = vadd.f32 0.0, %v267
  %v269 = vpop.f32.mrf.mxu0
  %270 = vmatprep.mubr.bf16.mxu0 0
  %271 = vmatmul.mubr.bf16.gmra.mxu0 %v125
  %v272 = vpop.f32.mrf.mxu0
  %v273 = vadd.f32 0.0, %v272
  %v274 = vpop.f32.mrf.mxu0
  %v275 = vpop.f32.mrf.mxu0
  %v276 = vadd.f32 0.0, %v275
  %v277 = vpop.f32.mrf.mxu0
  %278 = vdwg.mxu0
  %v279 = vadd.f32 %v38, %v217
  %v280 = vadd.f32 %v39, %v220
  %v281 = vadd.f32 %v40, %v225
  %v282 = vadd.f32 %v41, %v228
  %v283 = vadd.f32 %v42, %v233
  %v284 = vadd.f32 %v43, %v236
  %v285 = vadd.f32 %v44, %v241
  %v286 = vadd.f32 %v45, %v244
  %v287 = vadd.f32 %v46, %v249
  %v288 = vadd.f32 %v47, %v252
  %v289 = vadd.f32 %v48, %v257
  %v290 = vadd.f32 %v49, %v260
  %v291 = vadd.f32 %v50, %v265
  %v292 = vadd.f32 %v51, %v268
  %v293 = vadd.f32 %v52, %v273
  %v294 = vadd.f32 %v53, %v276
  %295 = vst [vmem:[#allocation2] sm:$0xff] %v279
  %296 = vst [vmem:[#allocation2 + $0x8] sm:$0xff] %v280
  %297 = vst [vmem:[#allocation2 + $0x10] sm:$0xff] %v281
  %298 = vst [vmem:[#allocation2 + $0x18] sm:$0xff] %v282
  %299 = vst [vmem:[#allocation2 + $0x20] sm:$0xff] %v283
  %300 = vst [vmem:[#allocation2 + $0x28] sm:$0xff] %v284
  %301 = vst [vmem:[#allocation2 + $0x30] sm:$0xff] %v285
  %302 = vst [vmem:[#allocation2 + $0x38] sm:$0xff] %v286
  %303 = vst [vmem:[#allocation2 + $0x40] sm:$0xff] %v287
  %304 = vst [vmem:[#allocation2 + $0x48] sm:$0xff] %v288
  %305 = vst [vmem:[#allocation2 + $0x50] sm:$0xff] %v289
  %306 = vst [vmem:[#allocation2 + $0x58] sm:$0xff] %v290
  %307 = vst [vmem:[#allocation2 + $0x60] sm:$0xff] %v291
  %308 = vst [vmem:[#allocation2 + $0x68] sm:$0xff] %v292
  %309 = vst [vmem:[#allocation2 + $0x70] sm:$0xff] %v293
  %310 = vst [vmem:[#allocation2 + $0x78] sm:$0xff] %v294
  // Predicated region
  $region22: #{_lambda_.18} parent=0 // pred_check
    %p311 = pneg %p18
  $region23: #{_lambda_.18} parent=0 // pred_check_branch
    %313 = sbr.rel (%p311) target = $region25
  $region24: #{_lambda_.18} parent=0 // pred_region
    %v314 = vld [vmem:[#allocation2] sm:$0xff]
    %v315 = vld [vmem:[#allocation2 + $0x8] sm:$0xff]
    %v316 = vld [vmem:[#allocation2 + $0x10] sm:$0xff]
    %v317 = vld [vmem:[#allocation2 + $0x18] sm:$0xff]
    %v318 = vld [vmem:[#allocation2 + $0x20] sm:$0xff]
    %v319 = vld [vmem:[#allocation2 + $0x28] sm:$0xff]
    %v320 = vld [vmem:[#allocation2 + $0x30] sm:$0xff]
    %v321 = vld [vmem:[#allocation2 + $0x38] sm:$0xff]
    %v322 = vld [vmem:[#allocation2 + $0x40] sm:$0xff]
    %v323 = vld [vmem:[#allocation2 + $0x48] sm:$0xff]
    %v324 = vld [vmem:[#allocation2 + $0x50] sm:$0xff]
    %v325 = vld [vmem:[#allocation2 + $0x58] sm:$0xff]
    %v326 = vld [vmem:[#allocation2 + $0x60] sm:$0xff]
    %v327 = vld [vmem:[#allocation2 + $0x68] sm:$0xff]
    %v328 = vld [vmem:[#allocation2 + $0x70] sm:$0xff]
    %v329 = vld [vmem:[#allocation2 + $0x78] sm:$0xff]
    %v330 = vld [vmem:[%s2] sm:$0x1]
    %v332 = vlaneseq
    %v333 = vshrl.u32 %v332, 7
    %v334 = vsub.s32 0, %v333
    %v335 = vrot.slane %v330, %v334
    %v337 = vmul.f32 %v314, %v335
    %v338 = vmul.f32 %v315, %v335
    %v339 = vmul.f32 %v316, %v335
    %v340 = vmul.f32 %v317, %v335
    %v341 = vmul.f32 %v318, %v335
    %v342 = vmul.f32 %v319, %v335
    %v343 = vmul.f32 %v320, %v335
    %v344 = vmul.f32 %v321, %v335
    %v345 = vmul.f32 %v322, %v335
    %v346 = vmul.f32 %v323, %v335
    %v347 = vmul.f32 %v324, %v335
    %v348 = vmul.f32 %v325, %v335
    %v349 = vmul.f32 %v326, %v335
    %v350 = vmul.f32 %v327, %v335
    %v351 = vmul.f32 %v328, %v335
    %v352 = vmul.f32 %v329, %v335
    %v353 = vld [vmem:[%s3] sm:$0x1]
    %v355 = vlaneseq
    %v356 = vshrl.u32 %v355, 7
    %v357 = vsub.s32 0, %v356
    %v358 = vrot.slane %v353, %v357
    %v360 = vadd.f32 %v337, %v358
    %v361 = vadd.f32 %v338, %v358
    %v362 = vadd.f32 %v339, %v358
    %v363 = vadd.f32 %v340, %v358
    %v364 = vadd.f32 %v341, %v358
    %v365 = vadd.f32 %v342, %v358
    %v366 = vadd.f32 %v343, %v358
    %v367 = vadd.f32 %v344, %v358
    %v368 = vadd.f32 %v345, %v358
    %v369 = vadd.f32 %v346, %v358
    %v370 = vadd.f32 %v347, %v358
    %v371 = vadd.f32 %v348, %v358
    %v372 = vadd.f32 %v349, %v358
    %v373 = vadd.f32 %v350, %v358
    %v374 = vadd.f32 %v351, %v358
    %v375 = vadd.f32 %v352, %v358
    %v376 = vmax.f32 %v360, 0.0
    %v377 = vmax.f32 %v361, 0.0
    %v378 = vmax.f32 %v362, 0.0
    %v379 = vmax.f32 %v363, 0.0
    %v380 = vmax.f32 %v364, 0.0
    %v381 = vmax.f32 %v365, 0.0
    %v382 = vmax.f32 %v366, 0.0
    %v383 = vmax.f32 %v367, 0.0
    %v384 = vmax.f32 %v368, 0.0
    %v385 = vmax.f32 %v369, 0.0
    %v386 = vmax.f32 %v370, 0.0
    %v387 = vmax.f32 %v371, 0.0
    %v388 = vmax.f32 %v372, 0.0
    %v389 = vmax.f32 %v373, 0.0
    %v390 = vmax.f32 %v374, 0.0
    %v391 = vmax.f32 %v375, 0.0
    %v392 = vpack.c.bf16 %v377, %v376
    %v393 = vpack.c.bf16 %v379, %v378
    %v394 = vpack.c.bf16 %v381, %v380
    %v395 = vpack.c.bf16 %v383, %v382
    %v396 = vpack.c.bf16 %v385, %v384
    %v397 = vpack.c.bf16 %v387, %v386
    %v398 = vpack.c.bf16 %v389, %v388
    %v399 = vpack.c.bf16 %v391, %v390
    %v408 = vunpack.c.l.b16 %v392
    %v409 = vunpack.c.h.b16 %v392
    %v410 = vunpack.c.l.b16 %v393
    %v411 = vunpack.c.h.b16 %v393
    %v412 = vunpack.c.l.b16 %v394
    %v413 = vunpack.c.h.b16 %v394
    %v414 = vunpack.c.l.b16 %v395
    %v415 = vunpack.c.h.b16 %v395
    %v416 = vunpack.c.l.b16 %v396
    %v417 = vunpack.c.h.b16 %v396
    %v418 = vunpack.c.l.b16 %v397
    %v419 = vunpack.c.h.b16 %v397
    %v420 = vunpack.c.l.b16 %v398
    %v421 = vunpack.c.h.b16 %v398
    %v422 = vunpack.c.l.b16 %v399
    %v423 = vunpack.c.h.b16 %v399
    %v424 = vpack.c.b16 %v408, %v408
    %v425 = vpack.c.b16 %v409, %v409
    %v426 = vpack.c.b16 %v410, %v410
    %v427 = vpack.c.b16 %v411, %v411
    %v428 = vpack.c.b16 %v412, %v412
    %v429 = vpack.c.b16 %v413, %v413
    %v430 = vpack.c.b16 %v414, %v414
    %v431 = vpack.c.b16 %v415, %v415
    %v432 = vpack.c.b16 %v416, %v416
    %v433 = vpack.c.b16 %v417, %v417
    %v434 = vpack.c.b16 %v418, %v418
    %v435 = vpack.c.b16 %v419, %v419
    %v436 = vpack.c.b16 %v420, %v420
    %v437 = vpack.c.b16 %v421, %v421
    %v438 = vpack.c.b16 %v422, %v422
    %v439 = vpack.c.b16 %v423, %v423
    %456 = vst [vmem:[%s4] sm:$0xf] %v424
    %457 = vst [vmem:[%s4 + $0x4] sm:$0xf] %v425
    %458 = vst [vmem:[%s4 + $0x8] sm:$0xf] %v426
    %459 = vst [vmem:[%s4 + $0xc] sm:$0xf] %v427
    %460 = vst [vmem:[%s4 + $0x10] sm:$0xf] %v428
    %461 = vst [vmem:[%s4 + $0x14] sm:$0xf] %v429
    %462 = vst [vmem:[%s4 + $0x18] sm:$0xf] %v430
    %463 = vst [vmem:[%s4 + $0x1c] sm:$0xf] %v431
    %464 = vst [vmem:[%s4 + $0x20] sm:$0xf] %v432
    %465 = vst [vmem:[%s4 + $0x24] sm:$0xf] %v433
    %466 = vst [vmem:[%s4 + $0x28] sm:$0xf] %v434
    %467 = vst [vmem:[%s4 + $0x2c] sm:$0xf] %v435
    %468 = vst [vmem:[%s4 + $0x30] sm:$0xf] %v436
    %469 = vst [vmem:[%s4 + $0x34] sm:$0xf] %v437
    %470 = vst [vmem:[%s4 + $0x38] sm:$0xf] %v438
    %471 = vst [vmem:[%s4 + $0x3c] sm:$0xf] %v439
  $region25: #{_lambda_.18} parent=0 // pred_fallthru
    _
  // Predicated region
  $region26: #{_lambda_.18} parent=0 // pred_check
    _
  $region27: #{_lambda_.18} parent=0 // pred_check_branch
    %473 = sbr.rel (0) target = $region29
  $region28: #{_lambda_.18} parent=0 // pred_region
    _
  $region29: #{_lambda_.18} parent=0 // pred_fallthru
    _
  // Predicated region
  $region30: #{_lambda_.18} parent=0 // pred_check
    _
  $region31: #{_lambda_.18} parent=0 // pred_check_branch
    %475 = sbr.rel (0) target = $region33
  $region32: #{_lambda_.18} parent=0 // pred_region
    _
  $region33: #{_lambda_.18} parent=0 // pred_fallthru
    _

// kernel: _lambda_.17
$region0: #{_lambda_.17}
  #allocation0 [shape = 'u32[]', space=smem, size = 0x4, offset = 0x4, fixed_abs, tag = 'smem constant byte address 0x4 - core index']
  #allocation1 [shape = 'u32[144,128]{1,0:T(1,128)}', space=vmem, size = 0x12000, scoped, tag = 'internal scratch']
  #allocation2 [shape = 'f32[512,128]{1,0:T(8,128)}', space=vmem, size = 0x40000, scoped, tag = 'scratch operand']
  %s0 = inlined_call_operand.vmem [shape: bf16[512,256], index: 0, kind: input, shape index: {}]
  %s1 = inlined_call_operand.vmem [shape: bf16[256,128], index: 1, kind: input, shape index: {}]
  %s2 = inlined_call_operand.vmem [shape: f32[1,128], index: 2, kind: input, shape index: {}]
  %s3 = inlined_call_operand.vmem [shape: f32[1,128], index: 3, kind: input, shape index: {}]
  %s4 = inlined_call_operand.vmem [shape: bf16[512,128], index: 4, kind: output, shape index: {}]
  %s5 = sld [smem:[#allocation0]]
  $region34: #{_lambda_.17} parent=0
    _
  %s7 = ssub.s32 1, %s5
  %s8 = scalar_select 0, %s7, %s5
  // Predicated region
  $region2: #{_lambda_.17} parent=0 // pred_check
    _
  $region3: #{_lambda_.17} parent=0 // pred_check_branch
    %10 = sbr.rel (0) target = $region5
  $region4: #{_lambda_.17} parent=0 // pred_region
    _
  $region5: #{_lambda_.17} parent=0 // pred_fallthru
    _
  // Predicated region
  $region6: #{_lambda_.17} parent=0 // pred_check
    _
  $region7: #{_lambda_.17} parent=0 // pred_check_branch
    %12 = sbr.rel (0) target = $region9
  $region8: #{_lambda_.17} parent=0 // pred_region
    _
  $region9: #{_lambda_.17} parent=0 // pred_fallthru
    _
  // Predicated region
  $region10: #{_lambda_.17} parent=0 // pred_check
    _
  $region11: #{_lambda_.17} parent=0 // pred_check_branch
    %14 = sbr.rel (0) target = $region13
  $region12: #{_lambda_.17} parent=0 // pred_region
    _
  $region13: #{_lambda_.17} parent=0 // pred_fallthru
    _
  // Predicated region
  $region14: #{_lambda_.17} parent=0 // pred_check
    _
  $region15: #{_lambda_.17} parent=0 // pred_check_branch
    %16 = sbr.rel (0) target = $region17
  $region16: #{_lambda_.17} parent=0 // pred_region
    _
  $region17: #{_lambda_.17} parent=0 // pred_fallthru
    _
  %p18 = scmp.eq.s32.totalorder 0, 0
  // Predicated region
  $region18: #{_lambda_.17} parent=0 // pred_check
    %p19 = pneg %p18
  $region19: #{_lambda_.17} parent=0 // pred_check_branch
    %21 = sbr.rel (%p19) target = $region21
  $region20: #{_lambda_.17} parent=0 // pred_region
    %22 = vst [vmem:[#allocation2] sm:$0xff] 0.0
    %23 = vst [vmem:[#allocation2 + $0x8] sm:$0xff] 0.0
    %24 = vst [vmem:[#allocation2 + $0x10] sm:$0xff] 0.0
    %25 = vst [vmem:[#allocation2 + $0x18] sm:$0xff] 0.0
    %26 = vst [vmem:[#allocation2 + $0x20] sm:$0xff] 0.0
    %27 = vst [vmem:[#allocation2 + $0x28] sm:$0xff] 0.0
    %28 = vst [vmem:[#allocation2 + $0x30] sm:$0xff] 0.0
    %29 = vst [vmem:[#allocation2 + $0x38] sm:$0xff] 0.0
    %30 = vst [vmem:[#allocation2 + $0x40] sm:$0xff] 0.0
    %31 = vst [vmem:[#allocation2 + $0x48] sm:$0xff] 0.0
    %32 = vst [vmem:[#allocation2 + $0x50] sm:$0xff] 0.0
    %33 = vst [vmem:[#allocation2 + $0x58] sm:$0xff] 0.0
    %34 = vst [vmem:[#allocation2 + $0x60] sm:$0xff] 0.0
    %35 = vst [vmem:[#allocation2 + $0x68] sm:$0xff] 0.0
    %36 = vst [vmem:[#allocation2 + $0x70] sm:$0xff] 0.0
    %37 = vst [vmem:[#allocation2 + $0x78] sm:$0xff] 0.0
    %38 = vst [vmem:[#allocation2 + $0x80] sm:$0xff] 0.0
    %39 = vst [vmem:[#allocation2 + $0x88] sm:$0xff] 0.0
    %40 = vst [vmem:[#allocation2 + $0x90] sm:$0xff] 0.0
    %41 = vst [vmem:[#allocation2 + $0x98] sm:$0xff] 0.0
    %42 = vst [vmem:[#allocation2 + $0xa0] sm:$0xff] 0.0
    %43 = vst [vmem:[#allocation2 + $0xa8] sm:$0xff] 0.0
    %44 = vst [vmem:[#allocation2 + $0xb0] sm:$0xff] 0.0
    %45 = vst [vmem:[#allocation2 + $0xb8] sm:$0xff] 0.0
    %46 = vst [vmem:[#allocation2 + $0xc0] sm:$0xff] 0.0
    %47 = vst [vmem:[#allocation2 + $0xc8] sm:$0xff] 0.0
    %48 = vst [vmem:[#allocation2 + $0xd0] sm:$0xff] 0.0
    %49 = vst [vmem:[#allocation2 + $0xd8] sm:$0xff] 0.0
    %50 = vst [vmem:[#allocation2 + $0xe0] sm:$0xff] 0.0
    %51 = vst [vmem:[#allocation2 + $0xe8] sm:$0xff] 0.0
    %52 = vst [vmem:[#allocation2 + $0xf0] sm:$0xff] 0.0
    %53 = vst [vmem:[#allocation2 + $0xf8] sm:$0xff] 0.0
    %54 = vst [vmem:[#allocation2 + $0x100] sm:$0xff] 0.0
    %55 = vst [vmem:[#allocation2 + $0x108] sm:$0xff] 0.0
    %56 = vst [vmem:[#allocation2 + $0x110] sm:$0xff] 0.0
    %57 = vst [vmem:[#allocation2 + $0x118] sm:$0xff] 0.0
    %58 = vst [vmem:[#allocation2 + $0x120] sm:$0xff] 0.0
    %59 = vst [vmem:[#allocation2 + $0x128] sm:$0xff] 0.0
    %60 = vst [vmem:[#allocation2 + $0x130] sm:$0xff] 0.0
    %61 = vst [vmem:[#allocation2 + $0x138] sm:$0xff] 0.0
    %62 = vst [vmem:[#allocation2 + $0x140] sm:$0xff] 0.0
    %63 = vst [vmem:[#allocation2 + $0x148] sm:$0xff] 0.0
    %64 = vst [vmem:[#allocation2 + $0x150] sm:$0xff] 0.0
    %65 = vst [vmem:[#allocation2 + $0x158] sm:$0xff] 0.0
    %66 = vst [vmem:[#allocation2 + $0x160] sm:$0xff] 0.0
    %67 = vst [vmem:[#allocation2 + $0x168] sm:$0xff] 0.0
    %68 = vst [vmem:[#allocation2 + $0x170] sm:$0xff] 0.0
    %69 = vst [vmem:[#allocation2 + $0x178] sm:$0xff] 0.0
    %70 = vst [vmem:[#allocation2 + $0x180] sm:$0xff] 0.0
    %71 = vst [vmem:[#allocation2 + $0x188] sm:$0xff] 0.0
    %72 = vst [vmem:[#allocation2 + $0x190] sm:$0xff] 0.0
    %73 = vst [vmem:[#allocation2 + $0x198] sm:$0xff] 0.0
    %74 = vst [vmem:[#allocation2 + $0x1a0] sm:$0xff] 0.0
    %75 = vst [vmem:[#allocation2 + $0x1a8] sm:$0xff] 0.0
    %76 = vst [vmem:[#allocation2 + $0x1b0] sm:$0xff] 0.0
    %77 = vst [vmem:[#allocation2 + $0x1b8] sm:$0xff] 0.0
    %78 = vst [vmem:[#allocation2 + $0x1c0] sm:$0xff] 0.0
    %79 = vst [vmem:[#allocation2 + $0x1c8] sm:$0xff] 0.0
    %80 = vst [vmem:[#allocation2 + $0x1d0] sm:$0xff] 0.0
    %81 = vst [vmem:[#allocation2 + $0x1d8] sm:$0xff] 0.0
    %82 = vst [vmem:[#allocation2 + $0x1e0] sm:$0xff] 0.0
    %83 = vst [vmem:[#allocation2 + $0x1e8] sm:$0xff] 0.0
    %84 = vst [vmem:[#allocation2 + $0x1f0] sm:$0xff] 0.0
    %85 = vst [vmem:[#allocation2 + $0x1f8] sm:$0xff] 0.0
  $region21: #{_lambda_.17} parent=0 // pred_fallthru
    _
  %v86 = vld [vmem:[#allocation2] sm:$0xff]
  %v87 = vld [vmem:[#allocation2 + $0x8] sm:$0xff]
  %v88 = vld [vmem:[#allocation2 + $0x10] sm:$0xff]
  %v89 = vld [vmem:[#allocation2 + $0x18] sm:$0xff]
  %v90 = vld [vmem:[#allocation2 + $0x20] sm:$0xff]
  %v91 = vld [vmem:[#allocation2 + $0x28] sm:$0xff]
  %v92 = vld [vmem:[#allocation2 + $0x30] sm:$0xff]
  %v93 = vld [vmem:[#allocation2 + $0x38] sm:$0xff]
  %v94 = vld [vmem:[#allocation2 + $0x40] sm:$0xff]
  %v95 = vld [vmem:[#allocation2 + $0x48] sm:$0xff]
  %v96 = vld [vmem:[#allocation2 + $0x50] sm:$0xff]
  %v97 = vld [vmem:[#allocation2 + $0x58] sm:$0xff]
  %v98 = vld [vmem:[#allocation2 + $0x60] sm:$0xff]
  %v99 = vld [vmem:[#allocation2 + $0x68] sm:$0xff]
  %v100 = vld [vmem:[#allocation2 + $0x70] sm:$0xff]
  %v101 = vld [vmem:[#allocation2 + $0x78] sm:$0xff]
  %v102 = vld [vmem:[#allocation2 + $0x80] sm:$0xff]
  %v103 = vld [vmem:[#allocation2 + $0x88] sm:$0xff]
  %v104 = vld [vmem:[#allocation2 + $0x90] sm:$0xff]
  %v105 = vld [vmem:[#allocation2 + $0x98] sm:$0xff]
  %v106 = vld [vmem:[#allocation2 + $0xa0] sm:$0xff]
  %v107 = vld [vmem:[#allocation2 + $0xa8] sm:$0xff]
  %v108 = vld [vmem:[#allocation2 + $0xb0] sm:$0xff]
  %v109 = vld [vmem:[#allocation2 + $0xb8] sm:$0xff]
  %v110 = vld [vmem:[#allocation2 + $0xc0] sm:$0xff]
  %v111 = vld [vmem:[#allocation2 + $0xc8] sm:$0xff]
  %v112 = vld [vmem:[#allocation2 + $0xd0] sm:$0xff]
  %v113 = vld [vmem:[#allocation2 + $0xd8] sm:$0xff]
  %v114 = vld [vmem:[#allocation2 + $0xe0] sm:$0xff]
  %v115 = vld [vmem:[#allocation2 + $0xe8] sm:$0xff]
  %v116 = vld [vmem:[#allocation2 + $0xf0] sm:$0xff]
  %v117 = vld [vmem:[#allocation2 + $0xf8] sm:$0xff]
  %v118 = vld [vmem:[#allocation2 + $0x100] sm:$0xff]
  %v119 = vld [vmem:[#allocation2 + $0x108] sm:$0xff]
  %v120 = vld [vmem:[#allocation2 + $0x110] sm:$0xff]
  %v121 = vld [vmem:[#allocation2 + $0x118] sm:$0xff]
  %v122 = vld [vmem:[#allocation2 + $0x120] sm:$0xff]
  %v123 = vld [vmem:[#allocation2 + $0x128] sm:$0xff]
  %v124 = vld [vmem:[#allocation2 + $0x130] sm:$0xff]
  %v125 = vld [vmem:[#allocation2 + $0x138] sm:$0xff]
  %v126 = vld [vmem:[#allocation2 + $0x140] sm:$0xff]
  %v127 = vld [vmem:[#allocation2 + $0x148] sm:$0xff]
  %v128 = vld [vmem:[#allocation2 + $0x150] sm:$0xff]
  %v129 = vld [vmem:[#allocation2 + $0x158] sm:$0xff]
  %v130 = vld [vmem:[#allocation2 + $0x160] sm:$0xff]
  %v131 = vld [vmem:[#allocation2 + $0x168] sm:$0xff]
  %v132 = vld [vmem:[#allocation2 + $0x170] sm:$0xff]
  %v133 = vld [vmem:[#allocation2 + $0x178] sm:$0xff]
  %v134 = vld [vmem:[#allocation2 + $0x180] sm:$0xff]
  %v135 = vld [vmem:[#allocation2 + $0x188] sm:$0xff]
  %v136 = vld [vmem:[#allocation2 + $0x190] sm:$0xff]
  %v137 = vld [vmem:[#allocation2 + $0x198] sm:$0xff]
  %v138 = vld [vmem:[#allocation2 + $0x1a0] sm:$0xff]
  %v139 = vld [vmem:[#allocation2 + $0x1a8] sm:$0xff]
  %v140 = vld [vmem:[#allocation2 + $0x1b0] sm:$0xff]
  %v141 = vld [vmem:[#allocation2 + $0x1b8] sm:$0xff]
  %v142 = vld [vmem:[#allocation2 + $0x1c0] sm:$0xff]
  %v143 = vld [vmem:[#allocation2 + $0x1c8] sm:$0xff]
  %v144 = vld [vmem:[#allocation2 + $0x1d0] sm:$0xff]
  %v145 = vld [vmem:[#allocation2 + $0x1d8] sm:$0xff]
  %v146 = vld [vmem:[#allocation2 + $0x1e0] sm:$0xff]
  %v147 = vld [vmem:[#allocation2 + $0x1e8] sm:$0xff]
  %v148 = vld [vmem:[#allocation2 + $0x1f0] sm:$0xff]
  %v149 = vld [vmem:[#allocation2 + $0x1f8] sm:$0xff]
  %v150 = vld [vmem:[%s0] sm:$0xff]
  %v151 = vld [vmem:[%s0 + $0x8] sm:$0xff]
  %v152 = vld [vmem:[%s0 + $0x10] sm:$0xff]
  %v153 = vld [vmem:[%s0 + $0x18] sm:$0xff]
  %v154 = vld [vmem:[%s0 + $0x20] sm:$0xff]
  %v155 = vld [vmem:[%s0 + $0x28] sm:$0xff]
  %v156 = vld [vmem:[%s0 + $0x30] sm:$0xff]
  %v157 = vld [vmem:[%s0 + $0x38] sm:$0xff]
  %v158 = vld [vmem:[%s0 + $0x40] sm:$0xff]
  %v159 = vld [vmem:[%s0 + $0x48] sm:$0xff]
  %v160 = vld [vmem:[%s0 + $0x50] sm:$0xff]
  %v161 = vld [vmem:[%s0 + $0x58] sm:$0xff]
  %v162 = vld [vmem:[%s0 + $0x60] sm:$0xff]
  %v163 = vld [vmem:[%s0 + $0x68] sm:$0xff]
  %v164 = vld [vmem:[%s0 + $0x70] sm:$0xff]
  %v165 = vld [vmem:[%s0 + $0x78] sm:$0xff]
  %v166 = vld [vmem:[%s0 + $0x80] sm:$0xff]
  %v167 = vld [vmem:[%s0 + $0x88] sm:$0xff]
  %v168 = vld [vmem:[%s0 + $0x90] sm:$0xff]
  %v169 = vld [vmem:[%s0 + $0x98] sm:$0xff]
  %v170 = vld [vmem:[%s0 + $0xa0] sm:$0xff]
  %v171 = vld [vmem:[%s0 + $0xa8] sm:$0xff]
  %v172 = vld [vmem:[%s0 + $0xb0] sm:$0xff]
  %v173 = vld [vmem:[%s0 + $0xb8] sm:$0xff]
  %v174 = vld [vmem:[%s0 + $0xc0] sm:$0xff]
  %v175 = vld [vmem:[%s0 + $0xc8] sm:$0xff]
  %v176 = vld [vmem:[%s0 + $0xd0] sm:$0xff]
  %v177 = vld [vmem:[%s0 + $0xd8] sm:$0xff]
  %v178 = vld [vmem:[%s0 + $0xe0] sm:$0xff]
  %v179 = vld [vmem:[%s0 + $0xe8] sm:$0xff]
  %v180 = vld [vmem:[%s0 + $0xf0] sm:$0xff]
  %v181 = vld [vmem:[%s0 + $0xf8] sm:$0xff]
  %v182 = vld [vmem:[%s0 + $0x100] sm:$0xff]
  %v183 = vld [vmem:[%s0 + $0x108] sm:$0xff]
  %v184 = vld [vmem:[%s0 + $0x110] sm:$0xff]
  %v185 = vld [vmem:[%s0 + $0x118] sm:$0xff]
  %v186 = vld [vmem:[%s0 + $0x120] sm:$0xff]
  %v187 = vld [vmem:[%s0 + $0x128] sm:$0xff]
  %v188 = vld [vmem:[%s0 + $0x130] sm:$0xff]
  %v189 = vld [vmem:[%s0 + $0x138] sm:$0xff]
  %v190 = vld [vmem:[%s0 + $0x140] sm:$0xff]
  %v191 = vld [vmem:[%s0 + $0x148] sm:$0xff]
  %v192 = vld [vmem:[%s0 + $0x150] sm:$0xff]
  %v193 = vld [vmem:[%s0 + $0x158] sm:$0xff]
  %v194 = vld [vmem:[%s0 + $0x160] sm:$0xff]
  %v195 = vld [vmem:[%s0 + $0x168] sm:$0xff]
  %v196 = vld [vmem:[%s0 + $0x170] sm:$0xff]
  %v197 = vld [vmem:[%s0 + $0x178] sm:$0xff]
  %v198 = vld [vmem:[%s0 + $0x180] sm:$0xff]
  %v199 = vld [vmem:[%s0 + $0x188] sm:$0xff]
  %v200 = vld [vmem:[%s0 + $0x190] sm:$0xff]
  %v201 = vld [vmem:[%s0 + $0x198] sm:$0xff]
  %v202 = vld [vmem:[%s0 + $0x1a0] sm:$0xff]
  %v203 = vld [vmem:[%s0 + $0x1a8] sm:$0xff]
  %v204 = vld [vmem:[%s0 + $0x1b0] sm:$0xff]
  %v205 = vld [vmem:[%s0 + $0x1b8] sm:$0xff]
  %v206 = vld [vmem:[%s0 + $0x1c0] sm:$0xff]
  %v207 = vld [vmem:[%s0 + $0x1c8] sm:$0xff]
  %v208 = vld [vmem:[%s0 + $0x1d0] sm:$0xff]
  %v209 = vld [vmem:[%s0 + $0x1d8] sm:$0xff]
  %v210 = vld [vmem:[%s0 + $0x1e0] sm:$0xff]
  %v211 = vld [vmem:[%s0 + $0x1e8] sm:$0xff]
  %v212 = vld [vmem:[%s0 + $0x1f0] sm:$0xff]
  %v213 = vld [vmem:[%s0 + $0x1f8] sm:$0xff]
  %v214 = vld [vmem:[%s1] sm:$0xf]
  %v215 = vld [vmem:[%s1 + $0x4] sm:$0xf]
  %v216 = vld [vmem:[%s1 + $0x8] sm:$0xf]
  %v217 = vld [vmem:[%s1 + $0xc] sm:$0xf]
  %v218 = vld [vmem:[%s1 + $0x10] sm:$0xf]
  %v219 = vld [vmem:[%s1 + $0x14] sm:$0xf]
  %v220 = vld [vmem:[%s1 + $0x18] sm:$0xf]
  %v221 = vld [vmem:[%s1 + $0x1c] sm:$0xf]
  %v222 = vld [vmem:[%s1 + $0x20] sm:$0xf]
  %v223 = vld [vmem:[%s1 + $0x24] sm:$0xf]
  %v224 = vld [vmem:[%s1 + $0x28] sm:$0xf]
  %v225 = vld [vmem:[%s1 + $0x2c] sm:$0xf]
  %v226 = vld [vmem:[%s1 + $0x30] sm:$0xf]
  %v227 = vld [vmem:[%s1 + $0x34] sm:$0xf]
  %v228 = vld [vmem:[%s1 + $0x38] sm:$0xf]
  %v229 = vld [vmem:[%s1 + $0x3c] sm:$0xf]
  %v230 = vld [vmem:[%s1 + $0x40] sm:$0xf]
  %v231 = vld [vmem:[%s1 + $0x44] sm:$0xf]
  %v232 = vld [vmem:[%s1 + $0x48] sm:$0xf]
  %v233 = vld [vmem:[%s1 + $0x4c] sm:$0xf]
  %v234 = vld [vmem:[%s1 + $0x50] sm:$0xf]
  %v235 = vld [vmem:[%s1 + $0x54] sm:$0xf]
  %v236 = vld [vmem:[%s1 + $0x58] sm:$0xf]
  %v237 = vld [vmem:[%s1 + $0x5c] sm:$0xf]
  %v238 = vld [vmem:[%s1 + $0x60] sm:$0xf]
  %v239 = vld [vmem:[%s1 + $0x64] sm:$0xf]
  %v240 = vld [vmem:[%s1 + $0x68] sm:$0xf]
  %v241 = vld [vmem:[%s1 + $0x6c] sm:$0xf]
  %v242 = vld [vmem:[%s1 + $0x70] sm:$0xf]
  %v243 = vld [vmem:[%s1 + $0x74] sm:$0xf]
  %v244 = vld [vmem:[%s1 + $0x78] sm:$0xf]
  %v245 = vld [vmem:[%s1 + $0x7c] sm:$0xf]
  %v310 = vunpack.c.l.b16 %v150
  %v311 = vunpack.c.h.b16 %v150
  %v312 = vunpack.c.l.b16 %v151
  %v313 = vunpack.c.h.b16 %v151
  %v314 = vunpack.c.l.b16 %v152
  %v315 = vunpack.c.h.b16 %v152
  %v316 = vunpack.c.l.b16 %v153
  %v317 = vunpack.c.h.b16 %v153
  %v318 = vunpack.c.l.b16 %v154
  %v319 = vunpack.c.h.b16 %v154
  %v320 = vunpack.c.l.b16 %v155
  %v321 = vunpack.c.h.b16 %v155
  %v322 = vunpack.c.l.b16 %v156
  %v323 = vunpack.c.h.b16 %v156
  %v324 = vunpack.c.l.b16 %v157
  %v325 = vunpack.c.h.b16 %v157
  %v326 = vunpack.c.l.b16 %v158
  %v327 = vunpack.c.h.b16 %v158
  %v328 = vunpack.c.l.b16 %v159
  %v329 = vunpack.c.h.b16 %v159
  %v330 = vunpack.c.l.b16 %v160
  %v331 = vunpack.c.h.b16 %v160
  %v332 = vunpack.c.l.b16 %v161
  %v333 = vunpack.c.h.b16 %v161
  %v334 = vunpack.c.l.b16 %v162
  %v335 = vunpack.c.h.b16 %v162
  %v336 = vunpack.c.l.b16 %v163
  %v337 = vunpack.c.h.b16 %v163
  %v338 = vunpack.c.l.b16 %v164
  %v339 = vunpack.c.h.b16 %v164
  %v340 = vunpack.c.l.b16 %v165
  %v341 = vunpack.c.h.b16 %v165
  %v342 = vunpack.c.l.b16 %v166
  %v343 = vunpack.c.h.b16 %v166
  %v344 = vunpack.c.l.b16 %v167
  %v345 = vunpack.c.h.b16 %v167
  %v346 = vunpack.c.l.b16 %v168
  %v347 = vunpack.c.h.b16 %v168
  %v348 = vunpack.c.l.b16 %v169
  %v349 = vunpack.c.h.b16 %v169
  %v350 = vunpack.c.l.b16 %v170
  %v351 = vunpack.c.h.b16 %v170
  %v352 = vunpack.c.l.b16 %v171
  %v353 = vunpack.c.h.b16 %v171
  %v354 = vunpack.c.l.b16 %v172
  %v355 = vunpack.c.h.b16 %v172
  %v356 = vunpack.c.l.b16 %v173
  %v357 = vunpack.c.h.b16 %v173
  %v358 = vunpack.c.l.b16 %v174
  %v359 = vunpack.c.h.b16 %v174
  %v360 = vunpack.c.l.b16 %v175
  %v361 = vunpack.c.h.b16 %v175
  %v362 = vunpack.c.l.b16 %v176
  %v363 = vunpack.c.h.b16 %v176
  %v364 = vunpack.c.l.b16 %v177
  %v365 = vunpack.c.h.b16 %v177
  %v366 = vunpack.c.l.b16 %v178
  %v367 = vunpack.c.h.b16 %v178
  %v368 = vunpack.c.l.b16 %v179
  %v369 = vunpack.c.h.b16 %v179
  %v370 = vunpack.c.l.b16 %v180
  %v371 = vunpack.c.h.b16 %v180
  %v372 = vunpack.c.l.b16 %v181
  %v373 = vunpack.c.h.b16 %v181
  %v374 = vunpack.c.l.b16 %v182
  %v375 = vunpack.c.h.b16 %v182
  %v376 = vunpack.c.l.b16 %v183
  %v377 = vunpack.c.h.b16 %v183
  %v378 = vunpack.c.l.b16 %v184
  %v379 = vunpack.c.h.b16 %v184
  %v380 = vunpack.c.l.b16 %v185
  %v381 = vunpack.c.h.b16 %v185
  %v382 = vunpack.c.l.b16 %v186
  %v383 = vunpack.c.h.b16 %v186
  %v384 = vunpack.c.l.b16 %v187
  %v385 = vunpack.c.h.b16 %v187
  %v386 = vunpack.c.l.b16 %v188
  %v387 = vunpack.c.h.b16 %v188
  %v388 = vunpack.c.l.b16 %v189
  %v389 = vunpack.c.h.b16 %v189
  %v390 = vunpack.c.l.b16 %v190
  %v391 = vunpack.c.h.b16 %v190
  %v392 = vunpack.c.l.b16 %v191
  %v393 = vunpack.c.h.b16 %v191
  %v394 = vunpack.c.l.b16 %v192
  %v395 = vunpack.c.h.b16 %v192
  %v396 = vunpack.c.l.b16 %v193
  %v397 = vunpack.c.h.b16 %v193
  %v398 = vunpack.c.l.b16 %v194
  %v399 = vunpack.c.h.b16 %v194
  %v400 = vunpack.c.l.b16 %v195
  %v401 = vunpack.c.h.b16 %v195
  %v402 = vunpack.c.l.b16 %v196
  %v403 = vunpack.c.h.b16 %v196
  %v404 = vunpack.c.l.b16 %v197
  %v405 = vunpack.c.h.b16 %v197
  %v406 = vunpack.c.l.b16 %v198
  %v407 = vunpack.c.h.b16 %v198
  %v408 = vunpack.c.l.b16 %v199
  %v409 = vunpack.c.h.b16 %v199
  %v410 = vunpack.c.l.b16 %v200
  %v411 = vunpack.c.h.b16 %v200
  %v412 = vunpack.c.l.b16 %v201
  %v413 = vunpack.c.h.b16 %v201
  %v414 = vunpack.c.l.b16 %v202
  %v415 = vunpack.c.h.b16 %v202
  %v416 = vunpack.c.l.b16 %v203
  %v417 = vunpack.c.h.b16 %v203
  %v418 = vunpack.c.l.b16 %v204
  %v419 = vunpack.c.h.b16 %v204
  %v420 = vunpack.c.l.b16 %v205
  %v421 = vunpack.c.h.b16 %v205
  %v422 = vunpack.c.l.b16 %v206
  %v423 = vunpack.c.h.b16 %v206
  %v424 = vunpack.c.l.b16 %v207
  %v425 = vunpack.c.h.b16 %v207
  %v426 = vunpack.c.l.b16 %v208
  %v427 = vunpack.c.h.b16 %v208
  %v428 = vunpack.c.l.b16 %v209
  %v429 = vunpack.c.h.b16 %v209
  %v430 = vunpack.c.l.b16 %v210
  %v431 = vunpack.c.h.b16 %v210
  %v432 = vunpack.c.l.b16 %v211
  %v433 = vunpack.c.h.b16 %v211
  %v434 = vunpack.c.l.b16 %v212
  %v435 = vunpack.c.h.b16 %v212
  %v436 = vunpack.c.l.b16 %v213
  %v437 = vunpack.c.h.b16 %v213
  %v438 = vpack.c.b16 %v312, %v310
  %v439 = vpack.c.b16 %v313, %v311
  %v440 = vpack.c.b16 %v316, %v314
  %v441 = vpack.c.b16 %v317, %v315
  %v442 = vpack.c.b16 %v320, %v318
  %v443 = vpack.c.b16 %v321, %v319
  %v444 = vpack.c.b16 %v324, %v322
  %v445 = vpack.c.b16 %v325, %v323
  %v446 = vpack.c.b16 %v328, %v326
  %v447 = vpack.c.b16 %v329, %v327
  %v448 = vpack.c.b16 %v332, %v330
  %v449 = vpack.c.b16 %v333, %v331
  %v450 = vpack.c.b16 %v336, %v334
  %v451 = vpack.c.b16 %v337, %v335
  %v452 = vpack.c.b16 %v340, %v338
  %v453 = vpack.c.b16 %v341, %v339
  %v454 = vpack.c.b16 %v344, %v342
  %v455 = vpack.c.b16 %v345, %v343
  %v456 = vpack.c.b16 %v348, %v346
  %v457 = vpack.c.b16 %v349, %v347
  %v458 = vpack.c.b16 %v352, %v350
  %v459 = vpack.c.b16 %v353, %v351
  %v460 = vpack.c.b16 %v356, %v354
  %v461 = vpack.c.b16 %v357, %v355
  %v462 = vpack.c.b16 %v360, %v358
  %v463 = vpack.c.b16 %v361, %v359
  %v464 = vpack.c.b16 %v364, %v362
  %v465 = vpack.c.b16 %v365, %v363
  %v466 = vpack.c.b16 %v368, %v366
  %v467 = vpack.c.b16 %v369, %v367
  %v468 = vpack.c.b16 %v372, %v370
  %v469 = vpack.c.b16 %v373, %v371
  %v470 = vpack.c.b16 %v376, %v374
  %v471 = vpack.c.b16 %v377, %v375
  %v472 = vpack.c.b16 %v380, %v378
  %v473 = vpack.c.b16 %v381, %v379
  %v474 = vpack.c.b16 %v384, %v382
  %v475 = vpack.c.b16 %v385, %v383
  %v476 = vpack.c.b16 %v388, %v386
  %v477 = vpack.c.b16 %v389, %v387
  %v478 = vpack.c.b16 %v392, %v390
  %v479 = vpack.c.b16 %v393, %v391
  %v480 = vpack.c.b16 %v396, %v394
  %v481 = vpack.c.b16 %v397, %v395
  %v482 = vpack.c.b16 %v400, %v398
  %v483 = vpack.c.b16 %v401, %v399
  %v484 = vpack.c.b16 %v404, %v402
  %v485 = vpack.c.b16 %v405, %v403
  %v486 = vpack.c.b16 %v408, %v406
  %v487 = vpack.c.b16 %v409, %v407
  %v488 = vpack.c.b16 %v412, %v410
  %v489 = vpack.c.b16 %v413, %v411
  %v490 = vpack.c.b16 %v416, %v414
  %v491 = vpack.c.b16 %v417, %v415
  %v492 = vpack.c.b16 %v420, %v418
  %v493 = vpack.c.b16 %v421, %v419
  %v494 = vpack.c.b16 %v424, %v422
  %v495 = vpack.c.b16 %v425, %v423
  %v496 = vpack.c.b16 %v428, %v426
  %v497 = vpack.c.b16 %v429, %v427
  %v498 = vpack.c.b16 %v432, %v430
  %v499 = vpack.c.b16 %v433, %v431
  %v500 = vpack.c.b16 %v436, %v434
  %v501 = vpack.c.b16 %v437, %v435
  %v598 = vunpack.c.l.b16 %v214
  %v599 = vunpack.c.l.b16 %v215
  %v600 = vunpack.c.l.b16 %v216
  %v601 = vunpack.c.l.b16 %v217
  %v602 = vunpack.c.l.b16 %v218
  %v603 = vunpack.c.l.b16 %v219
  %v604 = vunpack.c.l.b16 %v220
  %v605 = vunpack.c.l.b16 %v221
  %v606 = vunpack.c.l.b16 %v222
  %v607 = vunpack.c.l.b16 %v223
  %v608 = vunpack.c.l.b16 %v224
  %v609 = vunpack.c.l.b16 %v225
  %v610 = vunpack.c.l.b16 %v226
  %v611 = vunpack.c.l.b16 %v227
  %v612 = vunpack.c.l.b16 %v228
  %v613 = vunpack.c.l.b16 %v229
  %v614 = vunpack.c.l.b16 %v230
  %v615 = vunpack.c.l.b16 %v231
  %v616 = vunpack.c.l.b16 %v232
  %v617 = vunpack.c.l.b16 %v233
  %v618 = vunpack.c.l.b16 %v234
  %v619 = vunpack.c.l.b16 %v235
  %v620 = vunpack.c.l.b16 %v236
  %v621 = vunpack.c.l.b16 %v237
  %v622 = vunpack.c.l.b16 %v238
  %v623 = vunpack.c.l.b16 %v239
  %v624 = vunpack.c.l.b16 %v240
  %v625 = vunpack.c.l.b16 %v241
  %v626 = vunpack.c.l.b16 %v242
  %v627 = vunpack.c.l.b16 %v243
  %v628 = vunpack.c.l.b16 %v244
  %v629 = vunpack.c.l.b16 %v245
  %v630 = vpack.c.b16 %v599, %v598
  %v631 = vpack.c.b16 %v601, %v600
  %v632 = vpack.c.b16 %v603, %v602
  %v633 = vpack.c.b16 %v605, %v604
  %v634 = vpack.c.b16 %v607, %v606
  %v635 = vpack.c.b16 %v609, %v608
  %v636 = vpack.c.b16 %v611, %v610
  %v637 = vpack.c.b16 %v613, %v612
  %v638 = vpack.c.b16 %v615, %v614
  %v639 = vpack.c.b16 %v617, %v616
  %v640 = vpack.c.b16 %v619, %v618
  %v641 = vpack.c.b16 %v621, %v620
  %v642 = vpack.c.b16 %v623, %v622
  %v643 = vpack.c.b16 %v625, %v624
  %v644 = vpack.c.b16 %v627, %v626
  %v645 = vpack.c.b16 %v629, %v628
  %662 = vmatprep.subr.bf16.mxu0 0
  %663 = vmatpush1.bf16.msra.mxu0 %v637
  %664 = vmatprep.subr.bf16.mxu0 0
  %665 = vmatpush1.bf16.msra.mxu0 %v636
  %666 = vmatprep.subr.bf16.mxu0 0
  %667 = vmatpush1.bf16.msra.mxu0 %v635
  %668 = vmatprep.subr.bf16.mxu0 0
  %669 = vmatpush1.bf16.msra.mxu0 %v634
  %670 = vmatprep.subr.bf16.mxu0 0
  %671 = vmatpush1.bf16.msra.mxu0 %v633
  %672 = vmatprep.subr.bf16.mxu0 0
  %673 = vmatpush1.bf16.msra.mxu0 %v632
  %674 = vmatprep.subr.bf16.mxu0 0
  %675 = vmatpush1.bf16.msra.mxu0 %v631
  %676 = vmatprep.subr.bf16.mxu0 0
  %677 = vmatpush1.bf16.msra.mxu0 %v630
  %678 = vmatprep.subr.bf16.mxu0 0
  %679 = vmatpush2.bf16.msra.mxu0 %v645
  %680 = vmatprep.subr.bf16.mxu0 0
  %681 = vmatpush2.bf16.msra.mxu0 %v644
  %682 = vmatprep.subr.bf16.mxu0 0
  %683 = vmatpush2.bf16.msra.mxu0 %v643
  %684 = vmatprep.subr.bf16.mxu0 0
  %685 = vmatpush2.bf16.msra.mxu0 %v642
  %686 = vmatprep.subr.bf16.mxu0 0
  %687 = vmatpush2.bf16.msra.mxu0 %v641
  %688 = vmatprep.subr.bf16.mxu0 0
  %689 = vmatpush2.bf16.msra.mxu0 %v640
  %690 = vmatprep.subr.bf16.mxu0 0
  %691 = vmatpush2.bf16.msra.mxu0 %v639
  %692 = vmatprep.subr.bf16.mxu0 0
  %693 = vmatpush2.bf16.msra.mxu0 %v638
  %694 = vmatprep.mubr.bf16.mxu0 %v439
  %695 = vmatmul.mubr.bf16.gmra.mxu0 %v438
  %v696 = vpop.f32.mrf.mxu0
  %v697 = vadd.f32 0.0, %v696
  %v698 = vpop.f32.mrf.mxu0
  %v699 = vpop.f32.mrf.mxu0
  %v700 = vadd.f32 0.0, %v699
  %v701 = vpop.f32.mrf.mxu0
  %702 = vmatprep.mubr.bf16.mxu0 %v441
  %703 = vmatmul.mubr.bf16.gmra.mxu0 %v440
  %v704 = vpop.f32.mrf.mxu0
  %v705 = vadd.f32 0.0, %v704
  %v706 = vpop.f32.mrf.mxu0
  %v707 = vpop.f32.mrf.mxu0
  %v708 = vadd.f32 0.0, %v707
  %v709 = vpop.f32.mrf.mxu0
  %710 = vmatprep.mubr.bf16.mxu0 %v443
  %711 = vmatmul.mubr.bf16.gmra.mxu0 %v442
  %v712 = vpop.f32.mrf.mxu0
  %v713 = vadd.f32 0.0, %v712
  %v714 = vpop.f32.mrf.mxu0
  %v715 = vpop.f32.mrf.mxu0
  %v716 = vadd.f32 0.0, %v715
  %v717 = vpop.f32.mrf.mxu0
  %718 = vmatprep.mubr.bf16.mxu0 %v445
  %719 = vmatmul.mubr.bf16.gmra.mxu0 %v444
  %v720 = vpop.f32.mrf.mxu0
  %v721 = vadd.f32 0.0, %v720
  %v722 = vpop.f32.mrf.mxu0
  %v723 = vpop.f32.mrf.mxu0
  %v724 = vadd.f32 0.0, %v723
  %v725 = vpop.f32.mrf.mxu0
  %726 = vmatprep.mubr.bf16.mxu0 %v447
  %727 = vmatmul.mubr.bf16.gmra.mxu0 %v446
  %v728 = vpop.f32.mrf.mxu0
  %v729 = vadd.f32 0.0, %v728
  %v730 = vpop.f32.mrf.mxu0
  %v731 = vpop.f32.mrf.mxu0
  %v732 = vadd.f32 0.0, %v731
  %v733 = vpop.f32.mrf.mxu0
  %734 = vmatprep.mubr.bf16.mxu0 %v449
  %735 = vmatmul.mubr.bf16.gmra.mxu0 %v448
  %v736 = vpop.f32.mrf.mxu0
  %v737 = vadd.f32 0.0, %v736
  %v738 = vpop.f32.mrf.mxu0
  %v739 = vpop.f32.mrf.mxu0
  %v740 = vadd.f32 0.0, %v739
  %v741 = vpop.f32.mrf.mxu0
  %742 = vmatprep.mubr.bf16.mxu0 %v451
  %743 = vmatmul.mubr.bf16.gmra.mxu0 %v450
  %v744 = vpop.f32.mrf.mxu0
  %v745 = vadd.f32 0.0, %v744
  %v746 = vpop.f32.mrf.mxu0
  %v747 = vpop.f32.mrf.mxu0
  %v748 = vadd.f32 0.0, %v747
  %v749 = vpop.f32.mrf.mxu0
  %750 = vmatprep.mubr.bf16.mxu0 %v453
  %751 = vmatmul.mubr.bf16.gmra.mxu0 %v452
  %v752 = vpop.f32.mrf.mxu0
  %v753 = vadd.f32 0.0, %v752
  %v754 = vpop.f32.mrf.mxu0
  %v755 = vpop.f32.mrf.mxu0
  %v756 = vadd.f32 0.0, %v755
  %v757 = vpop.f32.mrf.mxu0
  %758 = vmatprep.mubr.bf16.mxu0 %v455
  %759 = vmatmul.mubr.bf16.gmra.mxu0 %v454
  %v760 = vpop.f32.mrf.mxu0
  %v761 = vadd.f32 0.0, %v760
  %v762 = vpop.f32.mrf.mxu0
  %v763 = vpop.f32.mrf.mxu0
  %v764 = vadd.f32 0.0, %v763
  %v765 = vpop.f32.mrf.mxu0
  %766 = vmatprep.mubr.bf16.mxu0 %v457
  %767 = vmatmul.mubr.bf16.gmra.mxu0 %v456
  %v768 = vpop.f32.mrf.mxu0
  %v769 = vadd.f32 0.0, %v768
  %v770 = vpop.f32.mrf.mxu0
  %v771 = vpop.f32.mrf.mxu0
  %v772 = vadd.f32 0.0, %v771
  %v773 = vpop.f32.mrf.mxu0
  %774 = vmatprep.mubr.bf16.mxu0 %v459
  %775 = vmatmul.mubr.bf16.gmra.mxu0 %v458
  %v776 = vpop.f32.mrf.mxu0
  %v777 = vadd.f32 0.0, %v776
  %v778 = vpop.f32.mrf.mxu0
  %v779 = vpop.f32.mrf.mxu0
  %v780 = vadd.f32 0.0, %v779
  %v781 = vpop.f32.mrf.mxu0
  %782 = vmatprep.mubr.bf16.mxu0 %v461
  %783 = vmatmul.mubr.bf16.gmra.mxu0 %v460
  %v784 = vpop.f32.mrf.mxu0
  %v785 = vadd.f32 0.0, %v784
  %v786 = vpop.f32.mrf.mxu0
  %v787 = vpop.f32.mrf.mxu0
  %v788 = vadd.f32 0.0, %v787
  %v789 = vpop.f32.mrf.mxu0
  %790 = vmatprep.mubr.bf16.mxu0 %v463
  %791 = vmatmul.mubr.bf16.gmra.mxu0 %v462
  %v792 = vpop.f32.mrf.mxu0
  %v793 = vadd.f32 0.0, %v792
  %v794 = vpop.f32.mrf.mxu0
  %v795 = vpop.f32.mrf.mxu0
  %v796 = vadd.f32 0.0, %v795
  %v797 = vpop.f32.mrf.mxu0
  %798 = vmatprep.mubr.bf16.mxu0 %v465
  %799 = vmatmul.mubr.bf16.gmra.mxu0 %v464
  %v800 = vpop.f32.mrf.mxu0
  %v801 = vadd.f32 0.0, %v800
  %v802 = vpop.f32.mrf.mxu0
  %v803 = vpop.f32.mrf.mxu0
  %v804 = vadd.f32 0.0, %v803
  %v805 = vpop.f32.mrf.mxu0
  %806 = vmatprep.mubr.bf16.mxu0 %v467
  %807 = vmatmul.mubr.bf16.gmra.mxu0 %v466
  %v808 = vpop.f32.mrf.mxu0
  %v809 = vadd.f32 0.0, %v808
  %v810 = vpop.f32.mrf.mxu0
  %v811 = vpop.f32.mrf.mxu0
  %v812 = vadd.f32 0.0, %v811
  %v813 = vpop.f32.mrf.mxu0
  %814 = vmatprep.mubr.bf16.mxu0 %v469
  %815 = vmatmul.mubr.bf16.gmra.mxu0 %v468
  %v816 = vpop.f32.mrf.mxu0
  %v817 = vadd.f32 0.0, %v816
  %v818 = vpop.f32.mrf.mxu0
  %v819 = vpop.f32.mrf.mxu0
  %v820 = vadd.f32 0.0, %v819
  %v821 = vpop.f32.mrf.mxu0
  %822 = vmatprep.mubr.bf16.mxu0 %v471
  %823 = vmatmul.mubr.bf16.gmra.mxu0 %v470
  %v824 = vpop.f32.mrf.mxu0
  %v825 = vadd.f32 0.0, %v824
  %v826 = vpop.f32.mrf.mxu0
  %v827 = vpop.f32.mrf.mxu0
  %v828 = vadd.f32 0.0, %v827
  %v829 = vpop.f32.mrf.mxu0
  %830 = vmatprep.mubr.bf16.mxu0 %v473
  %831 = vmatmul.mubr.bf16.gmra.mxu0 %v472
  %v832 = vpop.f32.mrf.mxu0
  %v833 = vadd.f32 0.0, %v832
  %v834 = vpop.f32.mrf.mxu0
  %v835 = vpop.f32.mrf.mxu0
  %v836 = vadd.f32 0.0, %v835
  %v837 = vpop.f32.mrf.mxu0
  %838 = vmatprep.mubr.bf16.mxu0 %v475
  %839 = vmatmul.mubr.bf16.gmra.mxu0 %v474
  %v840 = vpop.f32.mrf.mxu0
  %v841 = vadd.f32 0.0, %v840
  %v842 = vpop.f32.mrf.mxu0
  %v843 = vpop.f32.mrf.mxu0
  %v844 = vadd.f32 0.0, %v843
  %v845 = vpop.f32.mrf.mxu0
  %846 = vmatprep.mubr.bf16.mxu0 %v477
  %847 = vmatmul.mubr.bf16.gmra.mxu0 %v476
  %v848 = vpop.f32.mrf.mxu0
  %v849 = vadd.f32 0.0, %v848
  %v850 = vpop.f32.mrf.mxu0
  %v851 = vpop.f32.mrf.mxu0
  %v852 = vadd.f32 0.0, %v851
  %v853 = vpop.f32.mrf.mxu0
  %854 = vmatprep.mubr.bf16.mxu0 %v479
  %855 = vmatmul.mubr.bf16.gmra.mxu0 %v478
  %v856 = vpop.f32.mrf.mxu0
  %v857 = vadd.f32 0.0, %v856
  %v858 = vpop.f32.mrf.mxu0
  %v859 = vpop.f32.mrf.mxu0
  %v860 = vadd.f32 0.0, %v859
  %v861 = vpop.f32.mrf.mxu0
  %862 = vmatprep.mubr.bf16.mxu0 %v481
  %863 = vmatmul.mubr.bf16.gmra.mxu0 %v480
  %v864 = vpop.f32.mrf.mxu0
  %v865 = vadd.f32 0.0, %v864
  %v866 = vpop.f32.mrf.mxu0
  %v867 = vpop.f32.mrf.mxu0
  %v868 = vadd.f32 0.0, %v867
  %v869 = vpop.f32.mrf.mxu0
  %870 = vmatprep.mubr.bf16.mxu0 %v483
  %871 = vmatmul.mubr.bf16.gmra.mxu0 %v482
  %v872 = vpop.f32.mrf.mxu0
  %v873 = vadd.f32 0.0, %v872
  %v874 = vpop.f32.mrf.mxu0
  %v875 = vpop.f32.mrf.mxu0
  %v876 = vadd.f32 0.0, %v875
  %v877 = vpop.f32.mrf.mxu0
  %878 = vmatprep.mubr.bf16.mxu0 %v485
  %879 = vmatmul.mubr.bf16.gmra.mxu0 %v484
  %v880 = vpop.f32.mrf.mxu0
  %v881 = vadd.f32 0.0, %v880
  %v882 = vpop.f32.mrf.mxu0
  %v883 = vpop.f32.mrf.mxu0
  %v884 = vadd.f32 0.0, %v883
  %v885 = vpop.f32.mrf.mxu0
  %886 = vmatprep.mubr.bf16.mxu0 %v487
  %887 = vmatmul.mubr.bf16.gmra.mxu0 %v486
  %v888 = vpop.f32.mrf.mxu0
  %v889 = vadd.f32 0.0, %v888
  %v890 = vpop.f32.mrf.mxu0
  %v891 = vpop.f32.mrf.mxu0
  %v892 = vadd.f32 0.0, %v891
  %v893 = vpop.f32.mrf.mxu0
  %894 = vmatprep.mubr.bf16.mxu0 %v489
  %895 = vmatmul.mubr.bf16.gmra.mxu0 %v488
  %v896 = vpop.f32.mrf.mxu0
  %v897 = vadd.f32 0.0, %v896
  %v898 = vpop.f32.mrf.mxu0
  %v899 = vpop.f32.mrf.mxu0
  %v900 = vadd.f32 0.0, %v899
  %v901 = vpop.f32.mrf.mxu0
  %902 = vmatprep.mubr.bf16.mxu0 %v491
  %903 = vmatmul.mubr.bf16.gmra.mxu0 %v490
  %v904 = vpop.f32.mrf.mxu0
  %v905 = vadd.f32 0.0, %v904
  %v906 = vpop.f32.mrf.mxu0
  %v907 = vpop.f32.mrf.mxu0
  %v908 = vadd.f32 0.0, %v907
  %v909 = vpop.f32.mrf.mxu0
  %910 = vmatprep.mubr.bf16.mxu0 %v493
  %911 = vmatmul.mubr.bf16.gmra.mxu0 %v492
  %v912 = vpop.f32.mrf.mxu0
  %v913 = vadd.f32 0.0, %v912
  %v914 = vpop.f32.mrf.mxu0
  %v915 = vpop.f32.mrf.mxu0
  %v916 = vadd.f32 0.0, %v915
  %v917 = vpop.f32.mrf.mxu0
  %918 = vmatprep.mubr.bf16.mxu0 %v495
  %919 = vmatmul.mubr.bf16.gmra.mxu0 %v494
  %v920 = vpop.f32.mrf.mxu0
  %v921 = vadd.f32 0.0, %v920
  %v922 = vpop.f32.mrf.mxu0
  %v923 = vpop.f32.mrf.mxu0
  %v924 = vadd.f32 0.0, %v923
  %v925 = vpop.f32.mrf.mxu0
  %926 = vmatprep.mubr.bf16.mxu0 %v497
  %927 = vmatmul.mubr.bf16.gmra.mxu0 %v496
  %v928 = vpop.f32.mrf.mxu0
  %v929 = vadd.f32 0.0, %v928
  %v930 = vpop.f32.mrf.mxu0
  %v931 = vpop.f32.mrf.mxu0
  %v932 = vadd.f32 0.0, %v931
  %v933 = vpop.f32.mrf.mxu0
  %934 = vmatprep.mubr.bf16.mxu0 %v499
  %935 = vmatmul.mubr.bf16.gmra.mxu0 %v498
  %v936 = vpop.f32.mrf.mxu0
  %v937 = vadd.f32 0.0, %v936
  %v938 = vpop.f32.mrf.mxu0
  %v939 = vpop.f32.mrf.mxu0
  %v940 = vadd.f32 0.0, %v939
  %v941 = vpop.f32.mrf.mxu0
  %942 = vmatprep.mubr.bf16.mxu0 %v501
  %943 = vmatmul.mubr.bf16.gmra.mxu0 %v500
  %v944 = vpop.f32.mrf.mxu0
  %v945 = vadd.f32 0.0, %v944
  %v946 = vpop.f32.mrf.mxu0
  %v947 = vpop.f32.mrf.mxu0
  %v948 = vadd.f32 0.0, %v947
  %v949 = vpop.f32.mrf.mxu0
  %950 = vdwg.mxu0
  %v951 = vadd.f32 %v86, %v697
  %v952 = vadd.f32 %v87, %v700
  %v953 = vadd.f32 %v88, %v705
  %v954 = vadd.f32 %v89, %v708
  %v955 = vadd.f32 %v90, %v713
  %v956 = vadd.f32 %v91, %v716
  %v957 = vadd.f32 %v92, %v721
  %v958 = vadd.f32 %v93, %v724
  %v959 = vadd.f32 %v94, %v729
  %v960 = vadd.f32 %v95, %v732
  %v961 = vadd.f32 %v96, %v737
  %v962 = vadd.f32 %v97, %v740
  %v963 = vadd.f32 %v98, %v745
  %v964 = vadd.f32 %v99, %v748
  %v965 = vadd.f32 %v100, %v753
  %v966 = vadd.f32 %v101, %v756
  %v967 = vadd.f32 %v102, %v761
  %v968 = vadd.f32 %v103, %v764
  %v969 = vadd.f32 %v104, %v769
  %v970 = vadd.f32 %v105, %v772
  %v971 = vadd.f32 %v106, %v777
  %v972 = vadd.f32 %v107, %v780
  %v973 = vadd.f32 %v108, %v785
  %v974 = vadd.f32 %v109, %v788
  %v975 = vadd.f32 %v110, %v793
  %v976 = vadd.f32 %v111, %v796
  %v977 = vadd.f32 %v112, %v801
  %v978 = vadd.f32 %v113, %v804
  %v979 = vadd.f32 %v114, %v809
  %v980 = vadd.f32 %v115, %v812
  %v981 = vadd.f32 %v116, %v817
  %v982 = vadd.f32 %v117, %v820
  %v983 = vadd.f32 %v118, %v825
  %v984 = vadd.f32 %v119, %v828
  %v985 = vadd.f32 %v120, %v833
  %v986 = vadd.f32 %v121, %v836
  %v987 = vadd.f32 %v122, %v841
  %v988 = vadd.f32 %v123, %v844
  %v989 = vadd.f32 %v124, %v849
  %v990 = vadd.f32 %v125, %v852
  %v991 = vadd.f32 %v126, %v857
  %v992 = vadd.f32 %v127, %v860
  %v993 = vadd.f32 %v128, %v865
  %v994 = vadd.f32 %v129, %v868
  %v995 = vadd.f32 %v130, %v873
  %v996 = vadd.f32 %v131, %v876
  %v997 = vadd.f32 %v132, %v881
  %v998 = vadd.f32 %v133, %v884
  %v999 = vadd.f32 %v134, %v889
  %v1000 = vadd.f32 %v135, %v892
  %v1001 = vadd.f32 %v136, %v897
  %v1002 = vadd.f32 %v137, %v900
  %v1003 = vadd.f32 %v138, %v905
  %v1004 = vadd.f32 %v139, %v908
  %v1005 = vadd.f32 %v140, %v913
  %v1006 = vadd.f32 %v141, %v916
  %v1007 = vadd.f32 %v142, %v921
  %v1008 = vadd.f32 %v143, %v924
  %v1009 = vadd.f32 %v144, %v929
  %v1010 = vadd.f32 %v145, %v932
  %v1011 = vadd.f32 %v146, %v937
  %v1012 = vadd.f32 %v147, %v940
  %v1013 = vadd.f32 %v148, %v945
  %v1014 = vadd.f32 %v149, %v948
  %1015 = vst [vmem:[#allocation2] sm:$0xff] %v951
  %1016 = vst [vmem:[#allocation2 + $0x8] sm:$0xff] %v952
  %1017 = vst [vmem:[#allocation2 + $0x10] sm:$0xff] %v953
  %1018 = vst [vmem:[#allocation2 + $0x18] sm:$0xff] %v954
  %1019 = vst [vmem:[#allocation2 + $0x20] sm:$0xff] %v955
  %1020 = vst [vmem:[#allocation2 + $0x28] sm:$0xff] %v956
  %1021 = vst [vmem:[#allocation2 + $0x30] sm:$0xff] %v957
  %1022 = vst [vmem:[#allocation2 + $0x38] sm:$0xff] %v958
  %1023 = vst [vmem:[#allocation2 + $0x40] sm:$0xff] %v959
  %1024 = vst [vmem:[#allocation2 + $0x48] sm:$0xff] %v960
  %1025 = vst [vmem:[#allocation2 + $0x50] sm:$0xff] %v961
  %1026 = vst [vmem:[#allocation2 + $0x58] sm:$0xff] %v962
  %1027 = vst [vmem:[#allocation2 + $0x60] sm:$0xff] %v963
  %1028 = vst [vmem:[#allocation2 + $0x68] sm:$0xff] %v964
  %1029 = vst [vmem:[#allocation2 + $0x70] sm:$0xff] %v965
  %1030 = vst [vmem:[#allocation2 + $0x78] sm:$0xff] %v966
  %1031 = vst [vmem:[#allocation2 + $0x80] sm:$0xff] %v967
  %1032 = vst [vmem:[#allocation2 + $0x88] sm:$0xff] %v968
  %1033 = vst [vmem:[#allocation2 + $0x90] sm:$0xff] %v969
  %1034 = vst [vmem:[#allocation2 + $0x98] sm:$0xff] %v970
  %1035 = vst [vmem:[#allocation2 + $0xa0] sm:$0xff] %v971
  %1036 = vst [vmem:[#allocation2 + $0xa8] sm:$0xff] %v972
  %1037 = vst [vmem:[#allocation2 + $0xb0] sm:$0xff] %v973
  %1038 = vst [vmem:[#allocation2 + $0xb8] sm:$0xff] %v974
  %1039 = vst [vmem:[#allocation2 + $0xc0] sm:$0xff] %v975
  %1040 = vst [vmem:[#allocation2 + $0xc8] sm:$0xff] %v976
  %1041 = vst [vmem:[#allocation2 + $0xd0] sm:$0xff] %v977
  %1042 = vst [vmem:[#allocation2 + $0xd8] sm:$0xff] %v978
  %1043 = vst [vmem:[#allocation2 + $0xe0] sm:$0xff] %v979
  %1044 = vst [vmem:[#allocation2 + $0xe8] sm:$0xff] %v980
  %1045 = vst [vmem:[#allocation2 + $0xf0] sm:$0xff] %v981
  %1046 = vst [vmem:[#allocation2 + $0xf8] sm:$0xff] %v982
  %1047 = vst [vmem:[#allocation2 + $0x100] sm:$0xff] %v983
  %1048 = vst [vmem:[#allocation2 + $0x108] sm:$0xff] %v984
  %1049 = vst [vmem:[#allocation2 + $0x110] sm:$0xff] %v985
  %1050 = vst [vmem:[#allocation2 + $0x118] sm:$0xff] %v986
  %1051 = vst [vmem:[#allocation2 + $0x120] sm:$0xff] %v987
  %1052 = vst [vmem:[#allocation2 + $0x128] sm:$0xff] %v988
  %1053 = vst [vmem:[#allocation2 + $0x130] sm:$0xff] %v989
  %1054 = vst [vmem:[#allocation2 + $0x138] sm:$0xff] %v990
  %1055 = vst [vmem:[#allocation2 + $0x140] sm:$0xff] %v991
  %1056 = vst [vmem:[#allocation2 + $0x148] sm:$0xff] %v992
  %1057 = vst [vmem:[#allocation2 + $0x150] sm:$0xff] %v993
  %1058 = vst [vmem:[#allocation2 + $0x158] sm:$0xff] %v994
  %1059 = vst [vmem:[#allocation2 + $0x160] sm:$0xff] %v995
  %1060 = vst [vmem:[#allocation2 + $0x168] sm:$0xff] %v996
  %1061 = vst [vmem:[#allocation2 + $0x170] sm:$0xff] %v997
  %1062 = vst [vmem:[#allocation2 + $0x178] sm:$0xff] %v998
  %1063 = vst [vmem:[#allocation2 + $0x180] sm:$0xff] %v999
  %1064 = vst [vmem:[#allocation2 + $0x188] sm:$0xff] %v1000
  %1065 = vst [vmem:[#allocation2 + $0x190] sm:$0xff] %v1001
  %1066 = vst [vmem:[#allocation2 + $0x198] sm:$0xff] %v1002
  %1067 = vst [vmem:[#allocation2 + $0x1a0] sm:$0xff] %v1003
  %1068 = vst [vmem:[#allocation2 + $0x1a8] sm:$0xff] %v1004
  %1069 = vst [vmem:[#allocation2 + $0x1b0] sm:$0xff] %v1005
  %1070 = vst [vmem:[#allocation2 + $0x1b8] sm:$0xff] %v1006
  %1071 = vst [vmem:[#allocation2 + $0x1c0] sm:$0xff] %v1007
  %1072 = vst [vmem:[#allocation2 + $0x1c8] sm:$0xff] %v1008
  %1073 = vst [vmem:[#allocation2 + $0x1d0] sm:$0xff] %v1009
  %1074 = vst [vmem:[#allocation2 + $0x1d8] sm:$0xff] %v1010
  %1075 = vst [vmem:[#allocation2 + $0x1e0] sm:$0xff] %v1011
  %1076 = vst [vmem:[#allocation2 + $0x1e8] sm:$0xff] %v1012
  %1077 = vst [vmem:[#allocation2 + $0x1f0] sm:$0xff] %v1013
  %1078 = vst [vmem:[#allocation2 + $0x1f8] sm:$0xff] %v1014
  // Predicated region
  $region22: #{_lambda_.17} parent=0 // pred_check
    %p1079 = pneg %p18
  $region23: #{_lambda_.17} parent=0 // pred_check_branch
    %1081 = sbr.rel (%p1079) target = $region25
  $region24: #{_lambda_.17} parent=0 // pred_region
    %v1082 = vld [vmem:[#allocation2] sm:$0xff]
    %v1083 = vld [vmem:[#allocation2 + $0x8] sm:$0xff]
    %v1084 = vld [vmem:[#allocation2 + $0x10] sm:$0xff]
    %v1085 = vld [vmem:[#allocation2 + $0x18] sm:$0xff]
    %v1086 = vld [vmem:[#allocation2 + $0x20] sm:$0xff]
    %v1087 = vld [vmem:[#allocation2 + $0x28] sm:$0xff]
    %v1088 = vld [vmem:[#allocation2 + $0x30] sm:$0xff]
    %v1089 = vld [vmem:[#allocation2 + $0x38] sm:$0xff]
    %v1090 = vld [vmem:[#allocation2 + $0x40] sm:$0xff]
    %v1091 = vld [vmem:[#allocation2 + $0x48] sm:$0xff]
    %v1092 = vld [vmem:[#allocation2 + $0x50] sm:$0xff]
    %v1093 = vld [vmem:[#allocation2 + $0x58] sm:$0xff]
    %v1094 = vld [vmem:[#allocation2 + $0x60] sm:$0xff]
    %v1095 = vld [vmem:[#allocation2 + $0x68] sm:$0xff]
    %v1096 = vld [vmem:[#allocation2 + $0x70] sm:$0xff]
    %v1097 = vld [vmem:[#allocation2 + $0x78] sm:$0xff]
    %v1098 = vld [vmem:[#allocation2 + $0x80] sm:$0xff]
    %v1099 = vld [vmem:[#allocation2 + $0x88] sm:$0xff]
    %v1100 = vld [vmem:[#allocation2 + $0x90] sm:$0xff]
    %v1101 = vld [vmem:[#allocation2 + $0x98] sm:$0xff]
    %v1102 = vld [vmem:[#allocation2 + $0xa0] sm:$0xff]
    %v1103 = vld [vmem:[#allocation2 + $0xa8] sm:$0xff]
    %v1104 = vld [vmem:[#allocation2 + $0xb0] sm:$0xff]
    %v1105 = vld [vmem:[#allocation2 + $0xb8] sm:$0xff]
    %v1106 = vld [vmem:[#allocation2 + $0xc0] sm:$0xff]
    %v1107 = vld [vmem:[#allocation2 + $0xc8] sm:$0xff]
    %v1108 = vld [vmem:[#allocation2 + $0xd0] sm:$0xff]
    %v1109 = vld [vmem:[#allocation2 + $0xd8] sm:$0xff]
    %v1110 = vld [vmem:[#allocation2 + $0xe0] sm:$0xff]
    %v1111 = vld [vmem:[#allocation2 + $0xe8] sm:$0xff]
    %v1112 = vld [vmem:[#allocation2 + $0xf0] sm:$0xff]
    %v1113 = vld [vmem:[#allocation2 + $0xf8] sm:$0xff]
    %v1114 = vld [vmem:[#allocation2 + $0x100] sm:$0xff]
    %v1115 = vld [vmem:[#allocation2 + $0x108] sm:$0xff]
    %v1116 = vld [vmem:[#allocation2 + $0x110] sm:$0xff]
    %v1117 = vld [vmem:[#allocation2 + $0x118] sm:$0xff]
    %v1118 = vld [vmem:[#allocation2 + $0x120] sm:$0xff]
    %v1119 = vld [vmem:[#allocation2 + $0x128] sm:$0xff]
    %v1120 = vld [vmem:[#allocation2 + $0x130] sm:$0xff]
    %v1121 = vld [vmem:[#allocation2 + $0x138] sm:$0xff]
    %v1122 = vld [vmem:[#allocation2 + $0x140] sm:$0xff]
    %v1123 = vld [vmem:[#allocation2 + $0x148] sm:$0xff]
    %v1124 = vld [vmem:[#allocation2 + $0x150] sm:$0xff]
    %v1125 = vld [vmem:[#allocation2 + $0x158] sm:$0xff]
    %v1126 = vld [vmem:[#allocation2 + $0x160] sm:$0xff]
    %v1127 = vld [vmem:[#allocation2 + $0x168] sm:$0xff]
    %v1128 = vld [vmem:[#allocation2 + $0x170] sm:$0xff]
    %v1129 = vld [vmem:[#allocation2 + $0x178] sm:$0xff]
    %v1130 = vld [vmem:[#allocation2 + $0x180] sm:$0xff]
    %v1131 = vld [vmem:[#allocation2 + $0x188] sm:$0xff]
    %v1132 = vld [vmem:[#allocation2 + $0x190] sm:$0xff]
    %v1133 = vld [vmem:[#allocation2 + $0x198] sm:$0xff]
    %v1134 = vld [vmem:[#allocation2 + $0x1a0] sm:$0xff]
    %v1135 = vld [vmem:[#allocation2 + $0x1a8] sm:$0xff]
    %v1136 = vld [vmem:[#allocation2 + $0x1b0] sm:$0xff]
    %v1137 = vld [vmem:[#allocation2 + $0x1b8] sm:$0xff]
    %v1138 = vld [vmem:[#allocation2 + $0x1c0] sm:$0xff]
    %v1139 = vld [vmem:[#allocation2 + $0x1c8] sm:$0xff]
    %v1140 = vld [vmem:[#allocation2 + $0x1d0] sm:$0xff]
    %v1141 = vld [vmem:[#allocation2 + $0x1d8] sm:$0xff]
    %v1142 = vld [vmem:[#allocation2 + $0x1e0] sm:$0xff]
    %v1143 = vld [vmem:[#allocation2 + $0x1e8] sm:$0xff]
    %v1144 = vld [vmem:[#allocation2 + $0x1f0] sm:$0xff]
    %v1145 = vld [vmem:[#allocation2 + $0x1f8] sm:$0xff]
    %v1146 = vld [vmem:[%s2] sm:$0x1]
    %v1148 = vlaneseq
    %v1149 = vshrl.u32 %v1148, 7
    %v1150 = vsub.s32 0, %v1149
    %v1151 = vrot.slane %v1146, %v1150
    %v1153 = vmul.f32 %v1082, %v1151
    %v1154 = vmul.f32 %v1083, %v1151
    %v1155 = vmul.f32 %v1084, %v1151
    %v1156 = vmul.f32 %v1085, %v1151
    %v1157 = vmul.f32 %v1086, %v1151
    %v1158 = vmul.f32 %v1087, %v1151
    %v1159 = vmul.f32 %v1088, %v1151
    %v1160 = vmul.f32 %v1089, %v1151
    %v1161 = vmul.f32 %v1090, %v1151
    %v1162 = vmul.f32 %v1091, %v1151
    %v1163 = vmul.f32 %v1092, %v1151
    %v1164 = vmul.f32 %v1093, %v1151
    %v1165 = vmul.f32 %v1094, %v1151
    %v1166 = vmul.f32 %v1095, %v1151
    %v1167 = vmul.f32 %v1096, %v1151
    %v1168 = vmul.f32 %v1097, %v1151
    %v1169 = vmul.f32 %v1098, %v1151
    %v1170 = vmul.f32 %v1099, %v1151
    %v1171 = vmul.f32 %v1100, %v1151
    %v1172 = vmul.f32 %v1101, %v1151
    %v1173 = vmul.f32 %v1102, %v1151
    %v1174 = vmul.f32 %v1103, %v1151
    %v1175 = vmul.f32 %v1104, %v1151
    %v1176 = vmul.f32 %v1105, %v1151
    %v1177 = vmul.f32 %v1106, %v1151
    %v1178 = vmul.f32 %v1107, %v1151
    %v1179 = vmul.f32 %v1108, %v1151
    %v1180 = vmul.f32 %v1109, %v1151
    %v1181 = vmul.f32 %v1110, %v1151
    %v1182 = vmul.f32 %v1111, %v1151
    %v1183 = vmul.f32 %v1112, %v1151
    %v1184 = vmul.f32 %v1113, %v1151
    %v1185 = vmul.f32 %v1114, %v1151
    %v1186 = vmul.f32 %v1115, %v1151
    %v1187 = vmul.f32 %v1116, %v1151
    %v1188 = vmul.f32 %v1117, %v1151
    %v1189 = vmul.f32 %v1118, %v1151
    %v1190 = vmul.f32 %v1119, %v1151
    %v1191 = vmul.f32 %v1120, %v1151
    %v1192 = vmul.f32 %v1121, %v1151
    %v1193 = vmul.f32 %v1122, %v1151
    %v1194 = vmul.f32 %v1123, %v1151
    %v1195 = vmul.f32 %v1124, %v1151
    %v1196 = vmul.f32 %v1125, %v1151
    %v1197 = vmul.f32 %v1126, %v1151
    %v1198 = vmul.f32 %v1127, %v1151
    %v1199 = vmul.f32 %v1128, %v1151
    %v1200 = vmul.f32 %v1129, %v1151
    %v1201 = vmul.f32 %v1130, %v1151
    %v1202 = vmul.f32 %v1131, %v1151
    %v1203 = vmul.f32 %v1132, %v1151
    %v1204 = vmul.f32 %v1133, %v1151
    %v1205 = vmul.f32 %v1134, %v1151
    %v1206 = vmul.f32 %v1135, %v1151
    %v1207 = vmul.f32 %v1136, %v1151
    %v1208 = vmul.f32 %v1137, %v1151
    %v1209 = vmul.f32 %v1138, %v1151
    %v1210 = vmul.f32 %v1139, %v1151
    %v1211 = vmul.f32 %v1140, %v1151
    %v1212 = vmul.f32 %v1141, %v1151
    %v1213 = vmul.f32 %v1142, %v1151
    %v1214 = vmul.f32 %v1143, %v1151
    %v1215 = vmul.f32 %v1144, %v1151
    %v1216 = vmul.f32 %v1145, %v1151
    %v1217 = vld [vmem:[%s3] sm:$0x1]
    %v1219 = vlaneseq
    %v1220 = vshrl.u32 %v1219, 7
    %v1221 = vsub.s32 0, %v1220
    %v1222 = vrot.slane %v1217, %v1221
    %v1224 = vadd.f32 %v1153, %v1222
    %v1225 = vadd.f32 %v1154, %v1222
    %v1226 = vadd.f32 %v1155, %v1222
    %v1227 = vadd.f32 %v1156, %v1222
    %v1228 = vadd.f32 %v1157, %v1222
    %v1229 = vadd.f32 %v1158, %v1222
    %v1230 = vadd.f32 %v1159, %v1222
    %v1231 = vadd.f32 %v1160, %v1222
    %v1232 = vadd.f32 %v1161, %v1222
    %v1233 = vadd.f32 %v1162, %v1222
    %v1234 = vadd.f32 %v1163, %v1222
    %v1235 = vadd.f32 %v1164, %v1222
    %v1236 = vadd.f32 %v1165, %v1222
    %v1237 = vadd.f32 %v1166, %v1222
    %v1238 = vadd.f32 %v1167, %v1222
    %v1239 = vadd.f32 %v1168, %v1222
    %v1240 = vadd.f32 %v1169, %v1222
    %v1241 = vadd.f32 %v1170, %v1222
    %v1242 = vadd.f32 %v1171, %v1222
    %v1243 = vadd.f32 %v1172, %v1222
    %v1244 = vadd.f32 %v1173, %v1222
    %v1245 = vadd.f32 %v1174, %v1222
    %v1246 = vadd.f32 %v1175, %v1222
    %v1247 = vadd.f32 %v1176, %v1222
    %v1248 = vadd.f32 %v1177, %v1222
    %v1249 = vadd.f32 %v1178, %v1222
    %v1250 = vadd.f32 %v1179, %v1222
    %v1251 = vadd.f32 %v1180, %v1222
    %v1252 = vadd.f32 %v1181, %v1222
    %v1253 = vadd.f32 %v1182, %v1222
    %v1254 = vadd.f32 %v1183, %v1222
    %v1255 = vadd.f32 %v1184, %v1222
    %v1256 = vadd.f32 %v1185, %v1222
    %v1257 = vadd.f32 %v1186, %v1222
    %v1258 = vadd.f32 %v1187, %v1222
    %v1259 = vadd.f32 %v1188, %v1222
    %v1260 = vadd.f32 %v1189, %v1222
    %v1261 = vadd.f32 %v1190, %v1222
    %v1262 = vadd.f32 %v1191, %v1222
    %v1263 = vadd.f32 %v1192, %v1222
    %v1264 = vadd.f32 %v1193, %v1222
    %v1265 = vadd.f32 %v1194, %v1222
    %v1266 = vadd.f32 %v1195, %v1222
    %v1267 = vadd.f32 %v1196, %v1222
    %v1268 = vadd.f32 %v1197, %v1222
    %v1269 = vadd.f32 %v1198, %v1222
    %v1270 = vadd.f32 %v1199, %v1222
    %v1271 = vadd.f32 %v1200, %v1222
    %v1272 = vadd.f32 %v1201, %v1222
    %v1273 = vadd.f32 %v1202, %v1222
    %v1274 = vadd.f32 %v1203, %v1222
    %v1275 = vadd.f32 %v1204, %v1222
    %v1276 = vadd.f32 %v1205, %v1222
    %v1277 = vadd.f32 %v1206, %v1222
    %v1278 = vadd.f32 %v1207, %v1222
    %v1279 = vadd.f32 %v1208, %v1222
    %v1280 = vadd.f32 %v1209, %v1222
    %v1281 = vadd.f32 %v1210, %v1222
    %v1282 = vadd.f32 %v1211, %v1222
    %v1283 = vadd.f32 %v1212, %v1222
    %v1284 = vadd.f32 %v1213, %v1222
    %v1285 = vadd.f32 %v1214, %v1222
    %v1286 = vadd.f32 %v1215, %v1222
    %v1287 = vadd.f32 %v1216, %v1222
    %v1288 = vmax.f32 %v1224, 0.0
    %v1289 = vmax.f32 %v1225, 0.0
    %v1290 = vmax.f32 %v1226, 0.0
    %v1291 = vmax.f32 %v1227, 0.0
    %v1292 = vmax.f32 %v1228, 0.0
    %v1293 = vmax.f32 %v1229, 0.0
    %v1294 = vmax.f32 %v1230, 0.0
    %v1295 = vmax.f32 %v1231, 0.0
    %v1296 = vmax.f32 %v1232, 0.0
    %v1297 = vmax.f32 %v1233, 0.0
    %v1298 = vmax.f32 %v1234, 0.0
    %v1299 = vmax.f32 %v1235, 0.0
    %v1300 = vmax.f32 %v1236, 0.0
    %v1301 = vmax.f32 %v1237, 0.0
    %v1302 = vmax.f32 %v1238, 0.0
    %v1303 = vmax.f32 %v1239, 0.0
    %v1304 = vmax.f32 %v1240, 0.0
    %v1305 = vmax.f32 %v1241, 0.0
    %v1306 = vmax.f32 %v1242, 0.0
    %v1307 = vmax.f32 %v1243, 0.0
    %v1308 = vmax.f32 %v1244, 0.0
    %v1309 = vmax.f32 %v1245, 0.0
    %v1310 = vmax.f32 %v1246, 0.0
    %v1311 = vmax.f32 %v1247, 0.0
    %v1312 = vmax.f32 %v1248, 0.0
    %v1313 = vmax.f32 %v1249, 0.0
    %v1314 = vmax.f32 %v1250, 0.0
    %v1315 = vmax.f32 %v1251, 0.0
    %v1316 = vmax.f32 %v1252, 0.0
    %v1317 = vmax.f32 %v1253, 0.0
    %v1318 = vmax.f32 %v1254, 0.0
    %v1319 = vmax.f32 %v1255, 0.0
    %v1320 = vmax.f32 %v1256, 0.0
    %v1321 = vmax.f32 %v1257, 0.0
    %v1322 = vmax.f32 %v1258, 0.0
    %v1323 = vmax.f32 %v1259, 0.0
    %v1324 = vmax.f32 %v1260, 0.0
    %v1325 = vmax.f32 %v1261, 0.0
    %v1326 = vmax.f32 %v1262, 0.0
    %v1327 = vmax.f32 %v1263, 0.0
    %v1328 = vmax.f32 %v1264, 0.0
    %v1329 = vmax.f32 %v1265, 0.0
    %v1330 = vmax.f32 %v1266, 0.0
    %v1331 = vmax.f32 %v1267, 0.0
    %v1332 = vmax.f32 %v1268, 0.0
    %v1333 = vmax.f32 %v1269, 0.0
    %v1334 = vmax.f32 %v1270, 0.0
    %v1335 = vmax.f32 %v1271, 0.0
    %v1336 = vmax.f32 %v1272, 0.0
    %v1337 = vmax.f32 %v1273, 0.0
    %v1338 = vmax.f32 %v1274, 0.0
    %v1339 = vmax.f32 %v1275, 0.0
    %v1340 = vmax.f32 %v1276, 0.0
    %v1341 = vmax.f32 %v1277, 0.0
    %v1342 = vmax.f32 %v1278, 0.0
    %v1343 = vmax.f32 %v1279, 0.0
    %v1344 = vmax.f32 %v1280, 0.0
    %v1345 = vmax.f32 %v1281, 0.0
    %v1346 = vmax.f32 %v1282, 0.0
    %v1347 = vmax.f32 %v1283, 0.0
    %v1348 = vmax.f32 %v1284, 0.0
    %v1349 = vmax.f32 %v1285, 0.0
    %v1350 = vmax.f32 %v1286, 0.0
    %v1351 = vmax.f32 %v1287, 0.0
    %v1352 = vpack.c.bf16 %v1289, %v1288
    %v1353 = vpack.c.bf16 %v1291, %v1290
    %v1354 = vpack.c.bf16 %v1293, %v1292
    %v1355 = vpack.c.bf16 %v1295, %v1294
    %v1356 = vpack.c.bf16 %v1297, %v1296
    %v1357 = vpack.c.bf16 %v1299, %v1298
    %v1358 = vpack.c.bf16 %v1301, %v1300
    %v1359 = vpack.c.bf16 %v1303, %v1302
    %v1360 = vpack.c.bf16 %v1305, %v1304
    %v1361 = vpack.c.bf16 %v1307, %v1306
    %v1362 = vpack.c.bf16 %v1309, %v1308
    %v1363 = vpack.c.bf16 %v1311, %v1310
    %v1364 = vpack.c.bf16 %v1313, %v1312
    %v1365 = vpack.c.bf16 %v1315, %v1314
    %v1366 = vpack.c.bf16 %v1317, %v1316
    %v1367 = vpack.c.bf16 %v1319, %v1318
    %v1368 = vpack.c.bf16 %v1321, %v1320
    %v1369 = vpack.c.bf16 %v1323, %v1322
    %v1370 = vpack.c.bf16 %v1325, %v1324
    %v1371 = vpack.c.bf16 %v1327, %v1326
    %v1372 = vpack.c.bf16 %v1329, %v1328
    %v1373 = vpack.c.bf16 %v1331, %v1330
    %v1374 = vpack.c.bf16 %v1333, %v1332
    %v1375 = vpack.c.bf16 %v1335, %v1334
    %v1376 = vpack.c.bf16 %v1337, %v1336
    %v1377 = vpack.c.bf16 %v1339, %v1338
    %v1378 = vpack.c.bf16 %v1341, %v1340
    %v1379 = vpack.c.bf16 %v1343, %v1342
    %v1380 = vpack.c.bf16 %v1345, %v1344
    %v1381 = vpack.c.bf16 %v1347, %v1346
    %v1382 = vpack.c.bf16 %v1349, %v1348
    %v1383 = vpack.c.bf16 %v1351, %v1350
    %v1416 = vunpack.c.l.b16 %v1352
    %v1417 = vunpack.c.h.b16 %v1352
    %v1418 = vunpack.c.l.b16 %v1353
    %v1419 = vunpack.c.h.b16 %v1353
    %v1420 = vunpack.c.l.b16 %v1354
    %v1421 = vunpack.c.h.b16 %v1354
    %v1422 = vunpack.c.l.b16 %v1355
    %v1423 = vunpack.c.h.b16 %v1355
    %v1424 = vunpack.c.l.b16 %v1356
    %v1425 = vunpack.c.h.b16 %v1356
    %v1426 = vunpack.c.l.b16 %v1357
    %v1427 = vunpack.c.h.b16 %v1357
    %v1428 = vunpack.c.l.b16 %v1358
    %v1429 = vunpack.c.h.b16 %v1358
    %v1430 = vunpack.c.l.b16 %v1359
    %v1431 = vunpack.c.h.b16 %v1359
    %v1432 = vunpack.c.l.b16 %v1360
    %v1433 = vunpack.c.h.b16 %v1360
    %v1434 = vunpack.c.l.b16 %v1361
    %v1435 = vunpack.c.h.b16 %v1361
    %v1436 = vunpack.c.l.b16 %v1362
    %v1437 = vunpack.c.h.b16 %v1362
    %v1438 = vunpack.c.l.b16 %v1363
    %v1439 = vunpack.c.h.b16 %v1363
    %v1440 = vunpack.c.l.b16 %v1364
    %v1441 = vunpack.c.h.b16 %v1364
    %v1442 = vunpack.c.l.b16 %v1365
    %v1443 = vunpack.c.h.b16 %v1365
    %v1444 = vunpack.c.l.b16 %v1366
    %v1445 = vunpack.c.h.b16 %v1366
    %v1446 = vunpack.c.l.b16 %v1367
    %v1447 = vunpack.c.h.b16 %v1367
    %v1448 = vunpack.c.l.b16 %v1368
    %v1449 = vunpack.c.h.b16 %v1368
    %v1450 = vunpack.c.l.b16 %v1369
    %v1451 = vunpack.c.h.b16 %v1369
    %v1452 = vunpack.c.l.b16 %v1370
    %v1453 = vunpack.c.h.b16 %v1370
    %v1454 = vunpack.c.l.b16 %v1371
    %v1455 = vunpack.c.h.b16 %v1371
    %v1456 = vunpack.c.l.b16 %v1372
    %v1457 = vunpack.c.h.b16 %v1372
    %v1458 = vunpack.c.l.b16 %v1373
    %v1459 = vunpack.c.h.b16 %v1373
    %v1460 = vunpack.c.l.b16 %v1374
    %v1461 = vunpack.c.h.b16 %v1374
    %v1462 = vunpack.c.l.b16 %v1375
    %v1463 = vunpack.c.h.b16 %v1375
    %v1464 = vunpack.c.l.b16 %v1376
    %v1465 = vunpack.c.h.b16 %v1376
    %v1466 = vunpack.c.l.b16 %v1377
    %v1467 = vunpack.c.h.b16 %v1377
    %v1468 = vunpack.c.l.b16 %v1378
    %v1469 = vunpack.c.h.b16 %v1378
    %v1470 = vunpack.c.l.b16 %v1379
    %v1471 = vunpack.c.h.b16 %v1379
    %v1472 = vunpack.c.l.b16 %v1380
    %v1473 = vunpack.c.h.b16 %v1380
    %v1474 = vunpack.c.l.b16 %v1381
    %v1475 = vunpack.c.h.b16 %v1381
    %v1476 = vunpack.c.l.b16 %v1382
    %v1477 = vunpack.c.h.b16 %v1382
    %v1478 = vunpack.c.l.b16 %v1383
    %v1479 = vunpack.c.h.b16 %v1383
    %v1480 = vpack.c.b16 %v1416, %v1416
    %v1481 = vpack.c.b16 %v1417, %v1417
    %v1482 = vpack.c.b16 %v1418, %v1418
    %v1483 = vpack.c.b16 %v1419, %v1419
    %v1484 = vpack.c.b16 %v1420, %v1420
    %v1485 = vpack.c.b16 %v1421, %v1421
    %v1486 = vpack.c.b16 %v1422, %v1422
    %v1487 = vpack.c.b16 %v1423, %v1423
    %v1488 = vpack.c.b16 %v1424, %v1424
    %v1489 = vpack.c.b16 %v1425, %v1425
    %v1490 = vpack.c.b16 %v1426, %v1426
    %v1491 = vpack.c.b16 %v1427, %v1427
    %v1492 = vpack.c.b16 %v1428, %v1428
    %v1493 = vpack.c.b16 %v1429, %v1429
    %v1494 = vpack.c.b16 %v1430, %v1430
    %v1495 = vpack.c.b16 %v1431, %v1431
    %v1496 = vpack.c.b16 %v1432, %v1432
    %v1497 = vpack.c.b16 %v1433, %v1433
    %v1498 = vpack.c.b16 %v1434, %v1434
    %v1499 = vpack.c.b16 %v1435, %v1435
    %v1500 = vpack.c.b16 %v1436, %v1436
    %v1501 = vpack.c.b16 %v1437, %v1437
    %v1502 = vpack.c.b16 %v1438, %v1438
    %v1503 = vpack.c.b16 %v1439, %v1439
    %v1504 = vpack.c.b16 %v1440, %v1440
    %v1505 = vpack.c.b16 %v1441, %v1441
    %v1506 = vpack.c.b16 %v1442, %v1442
    %v1507 = vpack.c.b16 %v1443, %v1443
    %v1508 = vpack.c.b16 %v1444, %v1444
    %v1509 = vpack.c.b16 %v1445, %v1445
    %v1510 = vpack.c.b16 %v1446, %v1446
    %v1511 = vpack.c.b16 %v1447, %v1447
    %v1512 = vpack.c.b16 %v1448, %v1448
    %v1513 = vpack.c.b16 %v1449, %v1449
    %v1514 = vpack.c.b16 %v1450, %v1450
    %v1515 = vpack.c.b16 %v1451, %v1451
    %v1516 = vpack.c.b16 %v1452, %v1452
    %v1517 = vpack.c.b16 %v1453, %v1453
    %v1518 = vpack.c.b16 %v1454, %v1454
    %v1519 = vpack.c.b16 %v1455, %v1455
    %v1520 = vpack.c.b16 %v1456, %v1456
    %v1521 = vpack.c.b16 %v1457, %v1457
    %v1522 = vpack.c.b16 %v1458, %v1458
    %v1523 = vpack.c.b16 %v1459, %v1459
    %v1524 = vpack.c.b16 %v1460, %v1460
    %v1525 = vpack.c.b16 %v1461, %v1461
    %v1526 = vpack.c.b16 %v1462, %v1462
    %v1527 = vpack.c.b16 %v1463, %v1463
    %v1528 = vpack.c.b16 %v1464, %v1464
    %v1529 = vpack.c.b16 %v1465, %v1465
    %v1530 = vpack.c.b16 %v1466, %v1466
    %v1531 = vpack.c.b16 %v1467, %v1467
    %v1532 = vpack.c.b16 %v1468, %v1468
    %v1533 = vpack.c.b16 %v1469, %v1469
    %v1534 = vpack.c.b16 %v1470, %v1470
    %v1535 = vpack.c.b16 %v1471, %v1471
    %v1536 = vpack.c.b16 %v1472, %v1472
    %v1537 = vpack.c.b16 %v1473, %v1473
    %v1538 = vpack.c.b16 %v1474, %v1474
    %v1539 = vpack.c.b16 %v1475, %v1475
    %v1540 = vpack.c.b16 %v1476, %v1476
    %v1541 = vpack.c.b16 %v1477, %v1477
    %v1542 = vpack.c.b16 %v1478, %v1478
    %v1543 = vpack.c.b16 %v1479, %v1479
    %1608 = vst [vmem:[%s4] sm:$0xf] %v1480
    %1609 = vst [vmem:[%s4 + $0x4] sm:$0xf] %v1481
    %1610 = vst [vmem:[%s4 + $0x8] sm:$0xf] %v1482
    %1611 = vst [vmem:[%s4 + $0xc] sm:$0xf] %v1483
    %1612 = vst [vmem:[%s4 + $0x10] sm:$0xf] %v1484
    %1613 = vst [vmem:[%s4 + $0x14] sm:$0xf] %v1485
    %1614 = vst [vmem:[%s4 + $0x18] sm:$0xf] %v1486
    %1615 = vst [vmem:[%s4 + $0x1c] sm:$0xf] %v1487
    %1616 = vst [vmem:[%s4 + $0x20] sm:$0xf] %v1488
    %1617 = vst [vmem:[%s4 + $0x24] sm:$0xf] %v1489
    %1618 = vst [vmem:[%s4 + $0x28] sm:$0xf] %v1490
    %1619 = vst [vmem:[%s4 + $0x2c] sm:$0xf] %v1491
    %1620 = vst [vmem:[%s4 + $0x30] sm:$0xf] %v1492
    %1621 = vst [vmem:[%s4 + $0x34] sm:$0xf] %v1493
    %1622 = vst [vmem:[%s4 + $0x38] sm:$0xf] %v1494
    %1623 = vst [vmem:[%s4 + $0x3c] sm:$0xf] %v1495
    %1624 = vst [vmem:[%s4 + $0x40] sm:$0xf] %v1496
    %1625 = vst [vmem:[%s4 + $0x44] sm:$0xf] %v1497
    %1626 = vst [vmem:[%s4 + $0x48] sm:$0xf] %v1498
    %1627 = vst [vmem:[%s4 + $0x4c] sm:$0xf] %v1499
    %1628 = vst [vmem:[%s4 + $0x50] sm:$0xf] %v1500
    %1629 = vst [vmem:[%s4 + $0x54] sm:$0xf] %v1501
    %1630 = vst [vmem:[%s4 + $0x58] sm:$0xf] %v1502
    %1631 = vst [vmem:[%s4 + $0x5c] sm:$0xf] %v1503
    %1632 = vst [vmem:[%s4 + $0x60] sm:$0xf] %v1504
    %1633 = vst [vmem:[%s4 + $0x64] sm:$0xf] %v1505
    %1634 = vst [vmem:[%s4 + $0x68] sm:$0xf] %v1506
    %1635 = vst [vmem:[%s4 + $0x6c] sm:$0xf] %v1507
    %1636 = vst [vmem:[%s4 + $0x70] sm:$0xf] %v1508
    %1637 = vst [vmem:[%s4 + $0x74] sm:$0xf] %v1509
    %1638 = vst [vmem:[%s4 + $0x78] sm:$0xf] %v1510
    %1639 = vst [vmem:[%s4 + $0x7c] sm:$0xf] %v1511
    %1640 = vst [vmem:[%s4 + $0x80] sm:$0xf] %v1512
    %1641 = vst [vmem:[%s4 + $0x84] sm:$0xf] %v1513
    %1642 = vst [vmem:[%s4 + $0x88] sm:$0xf] %v1514
    %1643 = vst [vmem:[%s4 + $0x8c] sm:$0xf] %v1515
    %1644 = vst [vmem:[%s4 + $0x90] sm:$0xf] %v1516
    %1645 = vst [vmem:[%s4 + $0x94] sm:$0xf] %v1517
    %1646 = vst [vmem:[%s4 + $0x98] sm:$0xf] %v1518
    %1647 = vst [vmem:[%s4 + $0x9c] sm:$0xf] %v1519
    %1648 = vst [vmem:[%s4 + $0xa0] sm:$0xf] %v1520
    %1649 = vst [vmem:[%s4 + $0xa4] sm:$0xf] %v1521
    %1650 = vst [vmem:[%s4 + $0xa8] sm:$0xf] %v1522
    %1651 = vst [vmem:[%s4 + $0xac] sm:$0xf] %v1523
    %1652 = vst [vmem:[%s4 + $0xb0] sm:$0xf] %v1524
    %1653 = vst [vmem:[%s4 + $0xb4] sm:$0xf] %v1525
    %1654 = vst [vmem:[%s4 + $0xb8] sm:$0xf] %v1526
    %1655 = vst [vmem:[%s4 + $0xbc] sm:$0xf] %v1527
    %1656 = vst [vmem:[%s4 + $0xc0] sm:$0xf] %v1528
    %1657 = vst [vmem:[%s4 + $0xc4] sm:$0xf] %v1529
    %1658 = vst [vmem:[%s4 + $0xc8] sm:$0xf] %v1530
    %1659 = vst [vmem:[%s4 + $0xcc] sm:$0xf] %v1531
    %1660 = vst [vmem:[%s4 + $0xd0] sm:$0xf] %v1532
    %1661 = vst [vmem:[%s4 + $0xd4] sm:$0xf] %v1533
    %1662 = vst [vmem:[%s4 + $0xd8] sm:$0xf] %v1534
    %1663 = vst [vmem:[%s4 + $0xdc] sm:$0xf] %v1535
    %1664 = vst [vmem:[%s4 + $0xe0] sm:$0xf] %v1536
    %1665 = vst [vmem:[%s4 + $0xe4] sm:$0xf] %v1537
    %1666 = vst [vmem:[%s4 + $0xe8] sm:$0xf] %v1538
    %1667 = vst [vmem:[%s4 + $0xec] sm:$0xf] %v1539
    %1668 = vst [vmem:[%s4 + $0xf0] sm:$0xf] %v1540
    %1669 = vst [vmem:[%s4 + $0xf4] sm:$0xf] %v1541
    %1670 = vst [vmem:[%s4 + $0xf8] sm:$0xf] %v1542
    %1671 = vst [vmem:[%s4 + $0xfc] sm:$0xf] %v1543
  $region25: #{_lambda_.17} parent=0 // pred_fallthru
    _
  // Predicated region
  $region26: #{_lambda_.17} parent=0 // pred_check
    _
  $region27: #{_lambda_.17} parent=0 // pred_check_branch
    %1673 = sbr.rel (0) target = $region29
  $region28: #{_lambda_.17} parent=0 // pred_region
    _
  $region29: #{_lambda_.17} parent=0 // pred_fallthru
    _
  // Predicated region
  $region30: #{_lambda_.17} parent=0 // pred_check
    _
  $region31: #{_lambda_.17} parent=0 // pred_check_branch
    %1675 = sbr.rel (0) target = $region33
  $region32: #{_lambda_.17} parent=0 // pred_region
    _
  $region33: #{_lambda_.17} parent=0 // pred_fallthru
    _

// kernel: _lambda_.20
$region0: #{_lambda_.20}
  #allocation0 [shape = 'u32[]', space=smem, size = 0x4, offset = 0x4, fixed_abs, tag = 'smem constant byte address 0x4 - core index']
  #allocation1 [shape = 'u32[144,128]{1,0:T(1,128)}', space=vmem, size = 0x12000, scoped, tag = 'internal scratch']
  #allocation2 [shape = 'f32[128,128]{1,0:T(8,128)}', space=vmem, size = 0x10000, scoped, tag = 'scratch operand']
  %s0 = inlined_call_operand.vmem [shape: bf16[128,128], index: 0, kind: input, shape index: {}]
  %s1 = inlined_call_operand.vmem [shape: bf16[128,128], index: 1, kind: input, shape index: {}]
  %s2 = inlined_call_operand.vmem [shape: f32[1,128], index: 2, kind: input, shape index: {}]
  %s3 = inlined_call_operand.vmem [shape: f32[1,128], index: 3, kind: input, shape index: {}]
  %s4 = inlined_call_operand.vmem [shape: bf16[128,128], index: 4, kind: output, shape index: {}]
  %s5 = sld [smem:[#allocation0]]
  $region34: #{_lambda_.20} parent=0
    _
  %s7 = ssub.s32 1, %s5
  %s8 = scalar_select 0, %s7, %s5
  // Predicated region
  $region2: #{_lambda_.20} parent=0 // pred_check
    _
  $region3: #{_lambda_.20} parent=0 // pred_check_branch
    %10 = sbr.rel (0) target = $region5
  $region4: #{_lambda_.20} parent=0 // pred_region
    _
  $region5: #{_lambda_.20} parent=0 // pred_fallthru
    _
  // Predicated region
  $region6: #{_lambda_.20} parent=0 // pred_check
    _
  $region7: #{_lambda_.20} parent=0 // pred_check_branch
    %12 = sbr.rel (0) target = $region9
  $region8: #{_lambda_.20} parent=0 // pred_region
    _
  $region9: #{_lambda_.20} parent=0 // pred_fallthru
    _
  // Predicated region
  $region10: #{_lambda_.20} parent=0 // pred_check
    _
  $region11: #{_lambda_.20} parent=0 // pred_check_branch
    %14 = sbr.rel (0) target = $region13
  $region12: #{_lambda_.20} parent=0 // pred_region
    _
  $region13: #{_lambda_.20} parent=0 // pred_fallthru
    _
  // Predicated region
  $region14: #{_lambda_.20} parent=0 // pred_check
    _
  $region15: #{_lambda_.20} parent=0 // pred_check_branch
    %16 = sbr.rel (0) target = $region17
  $region16: #{_lambda_.20} parent=0 // pred_region
    _
  $region17: #{_lambda_.20} parent=0 // pred_fallthru
    _
  %p18 = scmp.eq.s32.totalorder 0, 0
  // Predicated region
  $region18: #{_lambda_.20} parent=0 // pred_check
    %p19 = pneg %p18
  $region19: #{_lambda_.20} parent=0 // pred_check_branch
    %21 = sbr.rel (%p19) target = $region21
  $region20: #{_lambda_.20} parent=0 // pred_region
    %22 = vst [vmem:[#allocation2] sm:$0xff] 0.0
    %23 = vst [vmem:[#allocation2 + $0x8] sm:$0xff] 0.0
    %24 = vst [vmem:[#allocation2 + $0x10] sm:$0xff] 0.0
    %25 = vst [vmem:[#allocation2 + $0x18] sm:$0xff] 0.0
    %26 = vst [vmem:[#allocation2 + $0x20] sm:$0xff] 0.0
    %27 = vst [vmem:[#allocation2 + $0x28] sm:$0xff] 0.0
    %28 = vst [vmem:[#allocation2 + $0x30] sm:$0xff] 0.0
    %29 = vst [vmem:[#allocation2 + $0x38] sm:$0xff] 0.0
    %30 = vst [vmem:[#allocation2 + $0x40] sm:$0xff] 0.0
    %31 = vst [vmem:[#allocation2 + $0x48] sm:$0xff] 0.0
    %32 = vst [vmem:[#allocation2 + $0x50] sm:$0xff] 0.0
    %33 = vst [vmem:[#allocation2 + $0x58] sm:$0xff] 0.0
    %34 = vst [vmem:[#allocation2 + $0x60] sm:$0xff] 0.0
    %35 = vst [vmem:[#allocation2 + $0x68] sm:$0xff] 0.0
    %36 = vst [vmem:[#allocation2 + $0x70] sm:$0xff] 0.0
    %37 = vst [vmem:[#allocation2 + $0x78] sm:$0xff] 0.0
  $region21: #{_lambda_.20} parent=0 // pred_fallthru
    _
  %v38 = vld [vmem:[#allocation2] sm:$0xff]
  %v39 = vld [vmem:[#allocation2 + $0x8] sm:$0xff]
  %v40 = vld [vmem:[#allocation2 + $0x10] sm:$0xff]
  %v41 = vld [vmem:[#allocation2 + $0x18] sm:$0xff]
  %v42 = vld [vmem:[#allocation2 + $0x20] sm:$0xff]
  %v43 = vld [vmem:[#allocation2 + $0x28] sm:$0xff]
  %v44 = vld [vmem:[#allocation2 + $0x30] sm:$0xff]
  %v45 = vld [vmem:[#allocation2 + $0x38] sm:$0xff]
  %v46 = vld [vmem:[#allocation2 + $0x40] sm:$0xff]
  %v47 = vld [vmem:[#allocation2 + $0x48] sm:$0xff]
  %v48 = vld [vmem:[#allocation2 + $0x50] sm:$0xff]
  %v49 = vld [vmem:[#allocation2 + $0x58] sm:$0xff]
  %v50 = vld [vmem:[#allocation2 + $0x60] sm:$0xff]
  %v51 = vld [vmem:[#allocation2 + $0x68] sm:$0xff]
  %v52 = vld [vmem:[#allocation2 + $0x70] sm:$0xff]
  %v53 = vld [vmem:[#allocation2 + $0x78] sm:$0xff]
  %v54 = vld [vmem:[%s0] sm:$0xf]
  %v55 = vld [vmem:[%s0 + $0x4] sm:$0xf]
  %v56 = vld [vmem:[%s0 + $0x8] sm:$0xf]
  %v57 = vld [vmem:[%s0 + $0xc] sm:$0xf]
  %v58 = vld [vmem:[%s0 + $0x10] sm:$0xf]
  %v59 = vld [vmem:[%s0 + $0x14] sm:$0xf]
  %v60 = vld [vmem:[%s0 + $0x18] sm:$0xf]
  %v61 = vld [vmem:[%s0 + $0x1c] sm:$0xf]
  %v62 = vld [vmem:[%s0 + $0x20] sm:$0xf]
  %v63 = vld [vmem:[%s0 + $0x24] sm:$0xf]
  %v64 = vld [vmem:[%s0 + $0x28] sm:$0xf]
  %v65 = vld [vmem:[%s0 + $0x2c] sm:$0xf]
  %v66 = vld [vmem:[%s0 + $0x30] sm:$0xf]
  %v67 = vld [vmem:[%s0 + $0x34] sm:$0xf]
  %v68 = vld [vmem:[%s0 + $0x38] sm:$0xf]
  %v69 = vld [vmem:[%s0 + $0x3c] sm:$0xf]
  %v70 = vld [vmem:[%s1] sm:$0xf]
  %v71 = vld [vmem:[%s1 + $0x4] sm:$0xf]
  %v72 = vld [vmem:[%s1 + $0x8] sm:$0xf]
  %v73 = vld [vmem:[%s1 + $0xc] sm:$0xf]
  %v74 = vld [vmem:[%s1 + $0x10] sm:$0xf]
  %v75 = vld [vmem:[%s1 + $0x14] sm:$0xf]
  %v76 = vld [vmem:[%s1 + $0x18] sm:$0xf]
  %v77 = vld [vmem:[%s1 + $0x1c] sm:$0xf]
  %v78 = vld [vmem:[%s1 + $0x20] sm:$0xf]
  %v79 = vld [vmem:[%s1 + $0x24] sm:$0xf]
  %v80 = vld [vmem:[%s1 + $0x28] sm:$0xf]
  %v81 = vld [vmem:[%s1 + $0x2c] sm:$0xf]
  %v82 = vld [vmem:[%s1 + $0x30] sm:$0xf]
  %v83 = vld [vmem:[%s1 + $0x34] sm:$0xf]
  %v84 = vld [vmem:[%s1 + $0x38] sm:$0xf]
  %v85 = vld [vmem:[%s1 + $0x3c] sm:$0xf]
  %v102 = vunpack.c.l.b16 %v54
  %v103 = vunpack.c.l.b16 %v55
  %v104 = vunpack.c.l.b16 %v56
  %v105 = vunpack.c.l.b16 %v57
  %v106 = vunpack.c.l.b16 %v58
  %v107 = vunpack.c.l.b16 %v59
  %v108 = vunpack.c.l.b16 %v60
  %v109 = vunpack.c.l.b16 %v61
  %v110 = vunpack.c.l.b16 %v62
  %v111 = vunpack.c.l.b16 %v63
  %v112 = vunpack.c.l.b16 %v64
  %v113 = vunpack.c.l.b16 %v65
  %v114 = vunpack.c.l.b16 %v66
  %v115 = vunpack.c.l.b16 %v67
  %v116 = vunpack.c.l.b16 %v68
  %v117 = vunpack.c.l.b16 %v69
  %v118 = vpack.c.b16 %v103, %v102
  %v119 = vpack.c.b16 %v105, %v104
  %v120 = vpack.c.b16 %v107, %v106
  %v121 = vpack.c.b16 %v109, %v108
  %v122 = vpack.c.b16 %v111, %v110
  %v123 = vpack.c.b16 %v113, %v112
  %v124 = vpack.c.b16 %v115, %v114
  %v125 = vpack.c.b16 %v117, %v116
  %v150 = vunpack.c.l.b16 %v70
  %v151 = vunpack.c.l.b16 %v71
  %v152 = vunpack.c.l.b16 %v72
  %v153 = vunpack.c.l.b16 %v73
  %v154 = vunpack.c.l.b16 %v74
  %v155 = vunpack.c.l.b16 %v75
  %v156 = vunpack.c.l.b16 %v76
  %v157 = vunpack.c.l.b16 %v77
  %v158 = vunpack.c.l.b16 %v78
  %v159 = vunpack.c.l.b16 %v79
  %v160 = vunpack.c.l.b16 %v80
  %v161 = vunpack.c.l.b16 %v81
  %v162 = vunpack.c.l.b16 %v82
  %v163 = vunpack.c.l.b16 %v83
  %v164 = vunpack.c.l.b16 %v84
  %v165 = vunpack.c.l.b16 %v85
  %v166 = vpack.c.b16 %v151, %v150
  %v167 = vpack.c.b16 %v153, %v152
  %v168 = vpack.c.b16 %v155, %v154
  %v169 = vpack.c.b16 %v157, %v156
  %v170 = vpack.c.b16 %v159, %v158
  %v171 = vpack.c.b16 %v161, %v160
  %v172 = vpack.c.b16 %v163, %v162
  %v173 = vpack.c.b16 %v165, %v164
  %182 = vmatprep.subr.bf16.mxu0 0
  %183 = vmatpush1.bf16.msra.mxu0 %v173
  %184 = vmatprep.subr.bf16.mxu0 0
  %185 = vmatpush1.bf16.msra.mxu0 %v172
  %186 = vmatprep.subr.bf16.mxu0 0
  %187 = vmatpush1.bf16.msra.mxu0 %v171
  %188 = vmatprep.subr.bf16.mxu0 0
  %189 = vmatpush1.bf16.msra.mxu0 %v170
  %190 = vmatprep.subr.bf16.mxu0 0
  %191 = vmatpush1.bf16.msra.mxu0 %v169
  %192 = vmatprep.subr.bf16.mxu0 0
  %193 = vmatpush1.bf16.msra.mxu0 %v168
  %194 = vmatprep.subr.bf16.mxu0 0
  %195 = vmatpush1.bf16.msra.mxu0 %v167
  %196 = vmatprep.subr.bf16.mxu0 0
  %197 = vmatpush1.bf16.msra.mxu0 %v166
  %198 = vmatprep.subr.bf16.mxu0 0
  %199 = vmatpush2.bf16.msra.mxu0 0
  %200 = vmatprep.subr.bf16.mxu0 0
  %201 = vmatpush2.bf16.msra.mxu0 0
  %202 = vmatprep.subr.bf16.mxu0 0
  %203 = vmatpush2.bf16.msra.mxu0 0
  %204 = vmatprep.subr.bf16.mxu0 0
  %205 = vmatpush2.bf16.msra.mxu0 0
  %206 = vmatprep.subr.bf16.mxu0 0
  %207 = vmatpush2.bf16.msra.mxu0 0
  %208 = vmatprep.subr.bf16.mxu0 0
  %209 = vmatpush2.bf16.msra.mxu0 0
  %210 = vmatprep.subr.bf16.mxu0 0
  %211 = vmatpush2.bf16.msra.mxu0 0
  %212 = vmatprep.subr.bf16.mxu0 0
  %213 = vmatpush2.bf16.msra.mxu0 0
  %214 = vmatprep.mubr.bf16.mxu0 0
  %215 = vmatmul.mubr.bf16.gmra.mxu0 %v118
  %v216 = vpop.f32.mrf.mxu0
  %v217 = vadd.f32 0.0, %v216
  %v218 = vpop.f32.mrf.mxu0
  %v219 = vpop.f32.mrf.mxu0
  %v220 = vadd.f32 0.0, %v219
  %v221 = vpop.f32.mrf.mxu0
  %222 = vmatprep.mubr.bf16.mxu0 0
  %223 = vmatmul.mubr.bf16.gmra.mxu0 %v119
  %v224 = vpop.f32.mrf.mxu0
  %v225 = vadd.f32 0.0, %v224
  %v226 = vpop.f32.mrf.mxu0
  %v227 = vpop.f32.mrf.mxu0
  %v228 = vadd.f32 0.0, %v227
  %v229 = vpop.f32.mrf.mxu0
  %230 = vmatprep.mubr.bf16.mxu0 0
  %231 = vmatmul.mubr.bf16.gmra.mxu0 %v120
  %v232 = vpop.f32.mrf.mxu0
  %v233 = vadd.f32 0.0, %v232
  %v234 = vpop.f32.mrf.mxu0
  %v235 = vpop.f32.mrf.mxu0
  %v236 = vadd.f32 0.0, %v235
  %v237 = vpop.f32.mrf.mxu0
  %238 = vmatprep.mubr.bf16.mxu0 0
  %239 = vmatmul.mubr.bf16.gmra.mxu0 %v121
  %v240 = vpop.f32.mrf.mxu0
  %v241 = vadd.f32 0.0, %v240
  %v242 = vpop.f32.mrf.mxu0
  %v243 = vpop.f32.mrf.mxu0
  %v244 = vadd.f32 0.0, %v243
  %v245 = vpop.f32.mrf.mxu0
  %246 = vmatprep.mubr.bf16.mxu0 0
  %247 = vmatmul.mubr.bf16.gmra.mxu0 %v122
  %v248 = vpop.f32.mrf.mxu0
  %v249 = vadd.f32 0.0, %v248
  %v250 = vpop.f32.mrf.mxu0
  %v251 = vpop.f32.mrf.mxu0
  %v252 = vadd.f32 0.0, %v251
  %v253 = vpop.f32.mrf.mxu0
  %254 = vmatprep.mubr.bf16.mxu0 0
  %255 = vmatmul.mubr.bf16.gmra.mxu0 %v123
  %v256 = vpop.f32.mrf.mxu0
  %v257 = vadd.f32 0.0, %v256
  %v258 = vpop.f32.mrf.mxu0
  %v259 = vpop.f32.mrf.mxu0
  %v260 = vadd.f32 0.0, %v259
  %v261 = vpop.f32.mrf.mxu0
  %262 = vmatprep.mubr.bf16.mxu0 0
  %263 = vmatmul.mubr.bf16.gmra.mxu0 %v124
  %v264 = vpop.f32.mrf.mxu0
  %v265 = vadd.f32 0.0, %v264
  %v266 = vpop.f32.mrf.mxu0
  %v267 = vpop.f32.mrf.mxu0
  %v268 = vadd.f32 0.0, %v267
  %v269 = vpop.f32.mrf.mxu0
  %270 = vmatprep.mubr.bf16.mxu0 0
  %271 = vmatmul.mubr.bf16.gmra.mxu0 %v125
  %v272 = vpop.f32.mrf.mxu0
  %v273 = vadd.f32 0.0, %v272
  %v274 = vpop.f32.mrf.mxu0
  %v275 = vpop.f32.mrf.mxu0
  %v276 = vadd.f32 0.0, %v275
  %v277 = vpop.f32.mrf.mxu0
  %278 = vdwg.mxu0
  %v279 = vadd.f32 %v38, %v217
  %v280 = vadd.f32 %v39, %v220
  %v281 = vadd.f32 %v40, %v225
  %v282 = vadd.f32 %v41, %v228
  %v283 = vadd.f32 %v42, %v233
  %v284 = vadd.f32 %v43, %v236
  %v285 = vadd.f32 %v44, %v241
  %v286 = vadd.f32 %v45, %v244
  %v287 = vadd.f32 %v46, %v249
  %v288 = vadd.f32 %v47, %v252
  %v289 = vadd.f32 %v48, %v257
  %v290 = vadd.f32 %v49, %v260
  %v291 = vadd.f32 %v50, %v265
  %v292 = vadd.f32 %v51, %v268
  %v293 = vadd.f32 %v52, %v273
  %v294 = vadd.f32 %v53, %v276
  %295 = vst [vmem:[#allocation2] sm:$0xff] %v279
  %296 = vst [vmem:[#allocation2 + $0x8] sm:$0xff] %v280
  %297 = vst [vmem:[#allocation2 + $0x10] sm:$0xff] %v281
  %298 = vst [vmem:[#allocation2 + $0x18] sm:$0xff] %v282
  %299 = vst [vmem:[#allocation2 + $0x20] sm:$0xff] %v283
  %300 = vst [vmem:[#allocation2 + $0x28] sm:$0xff] %v284
  %301 = vst [vmem:[#allocation2 + $0x30] sm:$0xff] %v285
  %302 = vst [vmem:[#allocation2 + $0x38] sm:$0xff] %v286
  %303 = vst [vmem:[#allocation2 + $0x40] sm:$0xff] %v287
  %304 = vst [vmem:[#allocation2 + $0x48] sm:$0xff] %v288
  %305 = vst [vmem:[#allocation2 + $0x50] sm:$0xff] %v289
  %306 = vst [vmem:[#allocation2 + $0x58] sm:$0xff] %v290
  %307 = vst [vmem:[#allocation2 + $0x60] sm:$0xff] %v291
  %308 = vst [vmem:[#allocation2 + $0x68] sm:$0xff] %v292
  %309 = vst [vmem:[#allocation2 + $0x70] sm:$0xff] %v293
  %310 = vst [vmem:[#allocation2 + $0x78] sm:$0xff] %v294
  // Predicated region
  $region22: #{_lambda_.20} parent=0 // pred_check
    %p311 = pneg %p18
  $region23: #{_lambda_.20} parent=0 // pred_check_branch
    %313 = sbr.rel (%p311) target = $region25
  $region24: #{_lambda_.20} parent=0 // pred_region
    %v314 = vld [vmem:[#allocation2] sm:$0xff]
    %v315 = vld [vmem:[#allocation2 + $0x8] sm:$0xff]
    %v316 = vld [vmem:[#allocation2 + $0x10] sm:$0xff]
    %v317 = vld [vmem:[#allocation2 + $0x18] sm:$0xff]
    %v318 = vld [vmem:[#allocation2 + $0x20] sm:$0xff]
    %v319 = vld [vmem:[#allocation2 + $0x28] sm:$0xff]
    %v320 = vld [vmem:[#allocation2 + $0x30] sm:$0xff]
    %v321 = vld [vmem:[#allocation2 + $0x38] sm:$0xff]
    %v322 = vld [vmem:[#allocation2 + $0x40] sm:$0xff]
    %v323 = vld [vmem:[#allocation2 + $0x48] sm:$0xff]
    %v324 = vld [vmem:[#allocation2 + $0x50] sm:$0xff]
    %v325 = vld [vmem:[#allocation2 + $0x58] sm:$0xff]
    %v326 = vld [vmem:[#allocation2 + $0x60] sm:$0xff]
    %v327 = vld [vmem:[#allocation2 + $0x68] sm:$0xff]
    %v328 = vld [vmem:[#allocation2 + $0x70] sm:$0xff]
    %v329 = vld [vmem:[#allocation2 + $0x78] sm:$0xff]
    %v330 = vld [vmem:[%s2] sm:$0x1]
    %v332 = vlaneseq
    %v333 = vshrl.u32 %v332, 7
    %v334 = vsub.s32 0, %v333
    %v335 = vrot.slane %v330, %v334
    %v337 = vmul.f32 %v314, %v335
    %v338 = vmul.f32 %v315, %v335
    %v339 = vmul.f32 %v316, %v335
    %v340 = vmul.f32 %v317, %v335
    %v341 = vmul.f32 %v318, %v335
    %v342 = vmul.f32 %v319, %v335
    %v343 = vmul.f32 %v320, %v335
    %v344 = vmul.f32 %v321, %v335
    %v345 = vmul.f32 %v322, %v335
    %v346 = vmul.f32 %v323, %v335
    %v347 = vmul.f32 %v324, %v335
    %v348 = vmul.f32 %v325, %v335
    %v349 = vmul.f32 %v326, %v335
    %v350 = vmul.f32 %v327, %v335
    %v351 = vmul.f32 %v328, %v335
    %v352 = vmul.f32 %v329, %v335
    %v353 = vld [vmem:[%s3] sm:$0x1]
    %v355 = vlaneseq
    %v356 = vshrl.u32 %v355, 7
    %v357 = vsub.s32 0, %v356
    %v358 = vrot.slane %v353, %v357
    %v360 = vadd.f32 %v337, %v358
    %v361 = vadd.f32 %v338, %v358
    %v362 = vadd.f32 %v339, %v358
    %v363 = vadd.f32 %v340, %v358
    %v364 = vadd.f32 %v341, %v358
    %v365 = vadd.f32 %v342, %v358
    %v366 = vadd.f32 %v343, %v358
    %v367 = vadd.f32 %v344, %v358
    %v368 = vadd.f32 %v345, %v358
    %v369 = vadd.f32 %v346, %v358
    %v370 = vadd.f32 %v347, %v358
    %v371 = vadd.f32 %v348, %v358
    %v372 = vadd.f32 %v349, %v358
    %v373 = vadd.f32 %v350, %v358
    %v374 = vadd.f32 %v351, %v358
    %v375 = vadd.f32 %v352, %v358
    %v376 = vpack.c.bf16 %v361, %v360
    %v377 = vpack.c.bf16 %v363, %v362
    %v378 = vpack.c.bf16 %v365, %v364
    %v379 = vpack.c.bf16 %v367, %v366
    %v380 = vpack.c.bf16 %v369, %v368
    %v381 = vpack.c.bf16 %v371, %v370
    %v382 = vpack.c.bf16 %v373, %v372
    %v383 = vpack.c.bf16 %v375, %v374
    %v392 = vunpack.c.l.b16 %v376
    %v393 = vunpack.c.h.b16 %v376
    %v394 = vunpack.c.l.b16 %v377
    %v395 = vunpack.c.h.b16 %v377
    %v396 = vunpack.c.l.b16 %v378
    %v397 = vunpack.c.h.b16 %v378
    %v398 = vunpack.c.l.b16 %v379
    %v399 = vunpack.c.h.b16 %v379
    %v400 = vunpack.c.l.b16 %v380
    %v401 = vunpack.c.h.b16 %v380
    %v402 = vunpack.c.l.b16 %v381
    %v403 = vunpack.c.h.b16 %v381
    %v404 = vunpack.c.l.b16 %v382
    %v405 = vunpack.c.h.b16 %v382
    %v406 = vunpack.c.l.b16 %v383
    %v407 = vunpack.c.h.b16 %v383
    %v408 = vpack.c.b16 %v392, %v392
    %v409 = vpack.c.b16 %v393, %v393
    %v410 = vpack.c.b16 %v394, %v394
    %v411 = vpack.c.b16 %v395, %v395
    %v412 = vpack.c.b16 %v396, %v396
    %v413 = vpack.c.b16 %v397, %v397
    %v414 = vpack.c.b16 %v398, %v398
    %v415 = vpack.c.b16 %v399, %v399
    %v416 = vpack.c.b16 %v400, %v400
    %v417 = vpack.c.b16 %v401, %v401
    %v418 = vpack.c.b16 %v402, %v402
    %v419 = vpack.c.b16 %v403, %v403
    %v420 = vpack.c.b16 %v404, %v404
    %v421 = vpack.c.b16 %v405, %v405
    %v422 = vpack.c.b16 %v406, %v406
    %v423 = vpack.c.b16 %v407, %v407
    %440 = vst [vmem:[%s4] sm:$0xf] %v408
    %441 = vst [vmem:[%s4 + $0x4] sm:$0xf] %v409
    %442 = vst [vmem:[%s4 + $0x8] sm:$0xf] %v410
    %443 = vst [vmem:[%s4 + $0xc] sm:$0xf] %v411
    %444 = vst [vmem:[%s4 + $0x10] sm:$0xf] %v412
    %445 = vst [vmem:[%s4 + $0x14] sm:$0xf] %v413
    %446 = vst [vmem:[%s4 + $0x18] sm:$0xf] %v414
    %447 = vst [vmem:[%s4 + $0x1c] sm:$0xf] %v415
    %448 = vst [vmem:[%s4 + $0x20] sm:$0xf] %v416
    %449 = vst [vmem:[%s4 + $0x24] sm:$0xf] %v417
    %450 = vst [vmem:[%s4 + $0x28] sm:$0xf] %v418
    %451 = vst [vmem:[%s4 + $0x2c] sm:$0xf] %v419
    %452 = vst [vmem:[%s4 + $0x30] sm:$0xf] %v420
    %453 = vst [vmem:[%s4 + $0x34] sm:$0xf] %v421
    %454 = vst [vmem:[%s4 + $0x38] sm:$0xf] %v422
    %455 = vst [vmem:[%s4 + $0x3c] sm:$0xf] %v423
  $region25: #{_lambda_.20} parent=0 // pred_fallthru
    _
  // Predicated region
  $region26: #{_lambda_.20} parent=0 // pred_check
    _
  $region27: #{_lambda_.20} parent=0 // pred_check_branch
    %457 = sbr.rel (0) target = $region29
  $region28: #{_lambda_.20} parent=0 // pred_region
    _
  $region29: #{_lambda_.20} parent=0 // pred_fallthru
    _
  // Predicated region
  $region30: #{_lambda_.20} parent=0 // pred_check
    _
  $region31: #{_lambda_.20} parent=0 // pred_check_branch
    %459 = sbr.rel (0) target = $region33
  $region32: #{_lambda_.20} parent=0 // pred_region
    _
  $region33: #{_lambda_.20} parent=0 // pred_fallthru
    _

// kernel: _lambda_.21
$region0: #{_lambda_.21}
  #allocation0 [shape = 'u32[]', space=smem, size = 0x4, offset = 0x4, fixed_abs, tag = 'smem constant byte address 0x4 - core index']
  #allocation1 [shape = 'u32[144,128]{1,0:T(1,128)}', space=vmem, size = 0x12000, scoped, tag = 'internal scratch']
  #allocation2 [shape = 'f32[128,128]{1,0:T(8,128)}', space=vmem, size = 0x10000, scoped, tag = 'scratch operand']
  %s0 = inlined_call_operand.vmem [shape: bf16[128,128], index: 0, kind: input, shape index: {}]
  %s1 = inlined_call_operand.vmem [shape: bf16[128,128], index: 1, kind: input, shape index: {}]
  %s2 = inlined_call_operand.vmem [shape: f32[1,128], index: 2, kind: input, shape index: {}]
  %s3 = inlined_call_operand.vmem [shape: f32[1,128], index: 3, kind: input, shape index: {}]
  %s4 = inlined_call_operand.vmem [shape: bf16[128,1], index: 4, kind: input, shape index: {}]
  %s5 = inlined_call_operand.vmem [shape: bf16[128,128], index: 5, kind: input, shape index: {}]
  %s6 = inlined_call_operand.vmem [shape: bf16[128,128], index: 6, kind: output, shape index: {}]
  %s7 = sld [smem:[#allocation0]]
  $region42: #{_lambda_.21} parent=0
    _
  %s9 = ssub.s32 1, %s7
  %s10 = scalar_select 0, %s9, %s7
  // Predicated region
  $region2: #{_lambda_.21} parent=0 // pred_check
    _
  $region3: #{_lambda_.21} parent=0 // pred_check_branch
    %12 = sbr.rel (0) target = $region5
  $region4: #{_lambda_.21} parent=0 // pred_region
    _
  $region5: #{_lambda_.21} parent=0 // pred_fallthru
    _
  // Predicated region
  $region6: #{_lambda_.21} parent=0 // pred_check
    _
  $region7: #{_lambda_.21} parent=0 // pred_check_branch
    %14 = sbr.rel (0) target = $region9
  $region8: #{_lambda_.21} parent=0 // pred_region
    _
  $region9: #{_lambda_.21} parent=0 // pred_fallthru
    _
  // Predicated region
  $region10: #{_lambda_.21} parent=0 // pred_check
    _
  $region11: #{_lambda_.21} parent=0 // pred_check_branch
    %16 = sbr.rel (0) target = $region13
  $region12: #{_lambda_.21} parent=0 // pred_region
    _
  $region13: #{_lambda_.21} parent=0 // pred_fallthru
    _
  // Predicated region
  $region14: #{_lambda_.21} parent=0 // pred_check
    _
  $region15: #{_lambda_.21} parent=0 // pred_check_branch
    %18 = sbr.rel (0) target = $region17
  $region16: #{_lambda_.21} parent=0 // pred_region
    _
  $region17: #{_lambda_.21} parent=0 // pred_fallthru
    _
  // Predicated region
  $region18: #{_lambda_.21} parent=0 // pred_check
    _
  $region19: #{_lambda_.21} parent=0 // pred_check_branch
    %20 = sbr.rel (0) target = $region21
  $region20: #{_lambda_.21} parent=0 // pred_region
    _
  $region21: #{_lambda_.21} parent=0 // pred_fallthru
    _
  // Predicated region
  $region22: #{_lambda_.21} parent=0 // pred_check
    _
  $region23: #{_lambda_.21} parent=0 // pred_check_branch
    %22 = sbr.rel (0) target = $region25
  $region24: #{_lambda_.21} parent=0 // pred_region
    _
  $region25: #{_lambda_.21} parent=0 // pred_fallthru
    _
  %p24 = scmp.eq.s32.totalorder 0, 0
  // Predicated region
  $region26: #{_lambda_.21} parent=0 // pred_check
    %p25 = pneg %p24
  $region27: #{_lambda_.21} parent=0 // pred_check_branch
    %27 = sbr.rel (%p25) target = $region29
  $region28: #{_lambda_.21} parent=0 // pred_region
    %28 = vst [vmem:[#allocation2] sm:$0xff] 0.0
    %29 = vst [vmem:[#allocation2 + $0x8] sm:$0xff] 0.0
    %30 = vst [vmem:[#allocation2 + $0x10] sm:$0xff] 0.0
    %31 = vst [vmem:[#allocation2 + $0x18] sm:$0xff] 0.0
    %32 = vst [vmem:[#allocation2 + $0x20] sm:$0xff] 0.0
    %33 = vst [vmem:[#allocation2 + $0x28] sm:$0xff] 0.0
    %34 = vst [vmem:[#allocation2 + $0x30] sm:$0xff] 0.0
    %35 = vst [vmem:[#allocation2 + $0x38] sm:$0xff] 0.0
    %36 = vst [vmem:[#allocation2 + $0x40] sm:$0xff] 0.0
    %37 = vst [vmem:[#allocation2 + $0x48] sm:$0xff] 0.0
    %38 = vst [vmem:[#allocation2 + $0x50] sm:$0xff] 0.0
    %39 = vst [vmem:[#allocation2 + $0x58] sm:$0xff] 0.0
    %40 = vst [vmem:[#allocation2 + $0x60] sm:$0xff] 0.0
    %41 = vst [vmem:[#allocation2 + $0x68] sm:$0xff] 0.0
    %42 = vst [vmem:[#allocation2 + $0x70] sm:$0xff] 0.0
    %43 = vst [vmem:[#allocation2 + $0x78] sm:$0xff] 0.0
  $region29: #{_lambda_.21} parent=0 // pred_fallthru
    _
  %v44 = vld [vmem:[#allocation2] sm:$0xff]
  %v45 = vld [vmem:[#allocation2 + $0x8] sm:$0xff]
  %v46 = vld [vmem:[#allocation2 + $0x10] sm:$0xff]
  %v47 = vld [vmem:[#allocation2 + $0x18] sm:$0xff]
  %v48 = vld [vmem:[#allocation2 + $0x20] sm:$0xff]
  %v49 = vld [vmem:[#allocation2 + $0x28] sm:$0xff]
  %v50 = vld [vmem:[#allocation2 + $0x30] sm:$0xff]
  %v51 = vld [vmem:[#allocation2 + $0x38] sm:$0xff]
  %v52 = vld [vmem:[#allocation2 + $0x40] sm:$0xff]
  %v53 = vld [vmem:[#allocation2 + $0x48] sm:$0xff]
  %v54 = vld [vmem:[#allocation2 + $0x50] sm:$0xff]
  %v55 = vld [vmem:[#allocation2 + $0x58] sm:$0xff]
  %v56 = vld [vmem:[#allocation2 + $0x60] sm:$0xff]
  %v57 = vld [vmem:[#allocation2 + $0x68] sm:$0xff]
  %v58 = vld [vmem:[#allocation2 + $0x70] sm:$0xff]
  %v59 = vld [vmem:[#allocation2 + $0x78] sm:$0xff]
  %v60 = vld [vmem:[%s0] sm:$0xf]
  %v61 = vld [vmem:[%s0 + $0x4] sm:$0xf]
  %v62 = vld [vmem:[%s0 + $0x8] sm:$0xf]
  %v63 = vld [vmem:[%s0 + $0xc] sm:$0xf]
  %v64 = vld [vmem:[%s0 + $0x10] sm:$0xf]
  %v65 = vld [vmem:[%s0 + $0x14] sm:$0xf]
  %v66 = vld [vmem:[%s0 + $0x18] sm:$0xf]
  %v67 = vld [vmem:[%s0 + $0x1c] sm:$0xf]
  %v68 = vld [vmem:[%s0 + $0x20] sm:$0xf]
  %v69 = vld [vmem:[%s0 + $0x24] sm:$0xf]
  %v70 = vld [vmem:[%s0 + $0x28] sm:$0xf]
  %v71 = vld [vmem:[%s0 + $0x2c] sm:$0xf]
  %v72 = vld [vmem:[%s0 + $0x30] sm:$0xf]
  %v73 = vld [vmem:[%s0 + $0x34] sm:$0xf]
  %v74 = vld [vmem:[%s0 + $0x38] sm:$0xf]
  %v75 = vld [vmem:[%s0 + $0x3c] sm:$0xf]
  %v76 = vld [vmem:[%s1] sm:$0xf]
  %v77 = vld [vmem:[%s1 + $0x4] sm:$0xf]
  %v78 = vld [vmem:[%s1 + $0x8] sm:$0xf]
  %v79 = vld [vmem:[%s1 + $0xc] sm:$0xf]
  %v80 = vld [vmem:[%s1 + $0x10] sm:$0xf]
  %v81 = vld [vmem:[%s1 + $0x14] sm:$0xf]
  %v82 = vld [vmem:[%s1 + $0x18] sm:$0xf]
  %v83 = vld [vmem:[%s1 + $0x1c] sm:$0xf]
  %v84 = vld [vmem:[%s1 + $0x20] sm:$0xf]
  %v85 = vld [vmem:[%s1 + $0x24] sm:$0xf]
  %v86 = vld [vmem:[%s1 + $0x28] sm:$0xf]
  %v87 = vld [vmem:[%s1 + $0x2c] sm:$0xf]
  %v88 = vld [vmem:[%s1 + $0x30] sm:$0xf]
  %v89 = vld [vmem:[%s1 + $0x34] sm:$0xf]
  %v90 = vld [vmem:[%s1 + $0x38] sm:$0xf]
  %v91 = vld [vmem:[%s1 + $0x3c] sm:$0xf]
  %v108 = vunpack.c.l.b16 %v60
  %v109 = vunpack.c.l.b16 %v61
  %v110 = vunpack.c.l.b16 %v62
  %v111 = vunpack.c.l.b16 %v63
  %v112 = vunpack.c.l.b16 %v64
  %v113 = vunpack.c.l.b16 %v65
  %v114 = vunpack.c.l.b16 %v66
  %v115 = vunpack.c.l.b16 %v67
  %v116 = vunpack.c.l.b16 %v68
  %v117 = vunpack.c.l.b16 %v69
  %v118 = vunpack.c.l.b16 %v70
  %v119 = vunpack.c.l.b16 %v71
  %v120 = vunpack.c.l.b16 %v72
  %v121 = vunpack.c.l.b16 %v73
  %v122 = vunpack.c.l.b16 %v74
  %v123 = vunpack.c.l.b16 %v75
  %v124 = vpack.c.b16 %v109, %v108
  %v125 = vpack.c.b16 %v111, %v110
  %v126 = vpack.c.b16 %v113, %v112
  %v127 = vpack.c.b16 %v115, %v114
  %v128 = vpack.c.b16 %v117, %v116
  %v129 = vpack.c.b16 %v119, %v118
  %v130 = vpack.c.b16 %v121, %v120
  %v131 = vpack.c.b16 %v123, %v122
  %v156 = vunpack.c.l.b16 %v76
  %v157 = vunpack.c.l.b16 %v77
  %v158 = vunpack.c.l.b16 %v78
  %v159 = vunpack.c.l.b16 %v79
  %v160 = vunpack.c.l.b16 %v80
  %v161 = vunpack.c.l.b16 %v81
  %v162 = vunpack.c.l.b16 %v82
  %v163 = vunpack.c.l.b16 %v83
  %v164 = vunpack.c.l.b16 %v84
  %v165 = vunpack.c.l.b16 %v85
  %v166 = vunpack.c.l.b16 %v86
  %v167 = vunpack.c.l.b16 %v87
  %v168 = vunpack.c.l.b16 %v88
  %v169 = vunpack.c.l.b16 %v89
  %v170 = vunpack.c.l.b16 %v90
  %v171 = vunpack.c.l.b16 %v91
  %v172 = vpack.c.b16 %v157, %v156
  %v173 = vpack.c.b16 %v159, %v158
  %v174 = vpack.c.b16 %v161, %v160
  %v175 = vpack.c.b16 %v163, %v162
  %v176 = vpack.c.b16 %v165, %v164
  %v177 = vpack.c.b16 %v167, %v166
  %v178 = vpack.c.b16 %v169, %v168
  %v179 = vpack.c.b16 %v171, %v170
  %188 = vmatprep.subr.bf16.mxu0 0
  %189 = vmatpush1.bf16.msra.mxu0 %v179
  %190 = vmatprep.subr.bf16.mxu0 0
  %191 = vmatpush1.bf16.msra.mxu0 %v178
  %192 = vmatprep.subr.bf16.mxu0 0
  %193 = vmatpush1.bf16.msra.mxu0 %v177
  %194 = vmatprep.subr.bf16.mxu0 0
  %195 = vmatpush1.bf16.msra.mxu0 %v176
  %196 = vmatprep.subr.bf16.mxu0 0
  %197 = vmatpush1.bf16.msra.mxu0 %v175
  %198 = vmatprep.subr.bf16.mxu0 0
  %199 = vmatpush1.bf16.msra.mxu0 %v174
  %200 = vmatprep.subr.bf16.mxu0 0
  %201 = vmatpush1.bf16.msra.mxu0 %v173
  %202 = vmatprep.subr.bf16.mxu0 0
  %203 = vmatpush1.bf16.msra.mxu0 %v172
  %204 = vmatprep.subr.bf16.mxu0 0
  %205 = vmatpush2.bf16.msra.mxu0 0
  %206 = vmatprep.subr.bf16.mxu0 0
  %207 = vmatpush2.bf16.msra.mxu0 0
  %208 = vmatprep.subr.bf16.mxu0 0
  %209 = vmatpush2.bf16.msra.mxu0 0
  %210 = vmatprep.subr.bf16.mxu0 0
  %211 = vmatpush2.bf16.msra.mxu0 0
  %212 = vmatprep.subr.bf16.mxu0 0
  %213 = vmatpush2.bf16.msra.mxu0 0
  %214 = vmatprep.subr.bf16.mxu0 0
  %215 = vmatpush2.bf16.msra.mxu0 0
  %216 = vmatprep.subr.bf16.mxu0 0
  %217 = vmatpush2.bf16.msra.mxu0 0
  %218 = vmatprep.subr.bf16.mxu0 0
  %219 = vmatpush2.bf16.msra.mxu0 0
  %220 = vmatprep.mubr.bf16.mxu0 0
  %221 = vmatmul.mubr.bf16.gmra.mxu0 %v124
  %v222 = vpop.f32.mrf.mxu0
  %v223 = vadd.f32 0.0, %v222
  %v224 = vpop.f32.mrf.mxu0
  %v225 = vpop.f32.mrf.mxu0
  %v226 = vadd.f32 0.0, %v225
  %v227 = vpop.f32.mrf.mxu0
  %228 = vmatprep.mubr.bf16.mxu0 0
  %229 = vmatmul.mubr.bf16.gmra.mxu0 %v125
  %v230 = vpop.f32.mrf.mxu0
  %v231 = vadd.f32 0.0, %v230
  %v232 = vpop.f32.mrf.mxu0
  %v233 = vpop.f32.mrf.mxu0
  %v234 = vadd.f32 0.0, %v233
  %v235 = vpop.f32.mrf.mxu0
  %236 = vmatprep.mubr.bf16.mxu0 0
  %237 = vmatmul.mubr.bf16.gmra.mxu0 %v126
  %v238 = vpop.f32.mrf.mxu0
  %v239 = vadd.f32 0.0, %v238
  %v240 = vpop.f32.mrf.mxu0
  %v241 = vpop.f32.mrf.mxu0
  %v242 = vadd.f32 0.0, %v241
  %v243 = vpop.f32.mrf.mxu0
  %244 = vmatprep.mubr.bf16.mxu0 0
  %245 = vmatmul.mubr.bf16.gmra.mxu0 %v127
  %v246 = vpop.f32.mrf.mxu0
  %v247 = vadd.f32 0.0, %v246
  %v248 = vpop.f32.mrf.mxu0
  %v249 = vpop.f32.mrf.mxu0
  %v250 = vadd.f32 0.0, %v249
  %v251 = vpop.f32.mrf.mxu0
  %252 = vmatprep.mubr.bf16.mxu0 0
  %253 = vmatmul.mubr.bf16.gmra.mxu0 %v128
  %v254 = vpop.f32.mrf.mxu0
  %v255 = vadd.f32 0.0, %v254
  %v256 = vpop.f32.mrf.mxu0
  %v257 = vpop.f32.mrf.mxu0
  %v258 = vadd.f32 0.0, %v257
  %v259 = vpop.f32.mrf.mxu0
  %260 = vmatprep.mubr.bf16.mxu0 0
  %261 = vmatmul.mubr.bf16.gmra.mxu0 %v129
  %v262 = vpop.f32.mrf.mxu0
  %v263 = vadd.f32 0.0, %v262
  %v264 = vpop.f32.mrf.mxu0
  %v265 = vpop.f32.mrf.mxu0
  %v266 = vadd.f32 0.0, %v265
  %v267 = vpop.f32.mrf.mxu0
  %268 = vmatprep.mubr.bf16.mxu0 0
  %269 = vmatmul.mubr.bf16.gmra.mxu0 %v130
  %v270 = vpop.f32.mrf.mxu0
  %v271 = vadd.f32 0.0, %v270
  %v272 = vpop.f32.mrf.mxu0
  %v273 = vpop.f32.mrf.mxu0
  %v274 = vadd.f32 0.0, %v273
  %v275 = vpop.f32.mrf.mxu0
  %276 = vmatprep.mubr.bf16.mxu0 0
  %277 = vmatmul.mubr.bf16.gmra.mxu0 %v131
  %v278 = vpop.f32.mrf.mxu0
  %v279 = vadd.f32 0.0, %v278
  %v280 = vpop.f32.mrf.mxu0
  %v281 = vpop.f32.mrf.mxu0
  %v282 = vadd.f32 0.0, %v281
  %v283 = vpop.f32.mrf.mxu0
  %284 = vdwg.mxu0
  %v285 = vadd.f32 %v44, %v223
  %v286 = vadd.f32 %v45, %v226
  %v287 = vadd.f32 %v46, %v231
  %v288 = vadd.f32 %v47, %v234
  %v289 = vadd.f32 %v48, %v239
  %v290 = vadd.f32 %v49, %v242
  %v291 = vadd.f32 %v50, %v247
  %v292 = vadd.f32 %v51, %v250
  %v293 = vadd.f32 %v52, %v255
  %v294 = vadd.f32 %v53, %v258
  %v295 = vadd.f32 %v54, %v263
  %v296 = vadd.f32 %v55, %v266
  %v297 = vadd.f32 %v56, %v271
  %v298 = vadd.f32 %v57, %v274
  %v299 = vadd.f32 %v58, %v279
  %v300 = vadd.f32 %v59, %v282
  %301 = vst [vmem:[#allocation2] sm:$0xff] %v285
  %302 = vst [vmem:[#allocation2 + $0x8] sm:$0xff] %v286
  %303 = vst [vmem:[#allocation2 + $0x10] sm:$0xff] %v287
  %304 = vst [vmem:[#allocation2 + $0x18] sm:$0xff] %v288
  %305 = vst [vmem:[#allocation2 + $0x20] sm:$0xff] %v289
  %306 = vst [vmem:[#allocation2 + $0x28] sm:$0xff] %v290
  %307 = vst [vmem:[#allocation2 + $0x30] sm:$0xff] %v291
  %308 = vst [vmem:[#allocation2 + $0x38] sm:$0xff] %v292
  %309 = vst [vmem:[#allocation2 + $0x40] sm:$0xff] %v293
  %310 = vst [vmem:[#allocation2 + $0x48] sm:$0xff] %v294
  %311 = vst [vmem:[#allocation2 + $0x50] sm:$0xff] %v295
  %312 = vst [vmem:[#allocation2 + $0x58] sm:$0xff] %v296
  %313 = vst [vmem:[#allocation2 + $0x60] sm:$0xff] %v297
  %314 = vst [vmem:[#allocation2 + $0x68] sm:$0xff] %v298
  %315 = vst [vmem:[#allocation2 + $0x70] sm:$0xff] %v299
  %316 = vst [vmem:[#allocation2 + $0x78] sm:$0xff] %v300
  // Predicated region
  $region30: #{_lambda_.21} parent=0 // pred_check
    %p317 = pneg %p24
  $region31: #{_lambda_.21} parent=0 // pred_check_branch
    %319 = sbr.rel (%p317) target = $region33
  $region32: #{_lambda_.21} parent=0 // pred_region
    %v320 = vld [vmem:[#allocation2] sm:$0xff]
    %v321 = vld [vmem:[#allocation2 + $0x8] sm:$0xff]
    %v322 = vld [vmem:[#allocation2 + $0x10] sm:$0xff]
    %v323 = vld [vmem:[#allocation2 + $0x18] sm:$0xff]
    %v324 = vld [vmem:[#allocation2 + $0x20] sm:$0xff]
    %v325 = vld [vmem:[#allocation2 + $0x28] sm:$0xff]
    %v326 = vld [vmem:[#allocation2 + $0x30] sm:$0xff]
    %v327 = vld [vmem:[#allocation2 + $0x38] sm:$0xff]
    %v328 = vld [vmem:[#allocation2 + $0x40] sm:$0xff]
    %v329 = vld [vmem:[#allocation2 + $0x48] sm:$0xff]
    %v330 = vld [vmem:[#allocation2 + $0x50] sm:$0xff]
    %v331 = vld [vmem:[#allocation2 + $0x58] sm:$0xff]
    %v332 = vld [vmem:[#allocation2 + $0x60] sm:$0xff]
    %v333 = vld [vmem:[#allocation2 + $0x68] sm:$0xff]
    %v334 = vld [vmem:[#allocation2 + $0x70] sm:$0xff]
    %v335 = vld [vmem:[#allocation2 + $0x78] sm:$0xff]
    %v336 = vld [vmem:[%s2] sm:$0x1]
    %v338 = vlaneseq
    %v339 = vshrl.u32 %v338, 7
    %v340 = vsub.s32 0, %v339
    %v341 = vrot.slane %v336, %v340
    %v343 = vmul.f32 %v320, %v341
    %v344 = vmul.f32 %v321, %v341
    %v345 = vmul.f32 %v322, %v341
    %v346 = vmul.f32 %v323, %v341
    %v347 = vmul.f32 %v324, %v341
    %v348 = vmul.f32 %v325, %v341
    %v349 = vmul.f32 %v326, %v341
    %v350 = vmul.f32 %v327, %v341
    %v351 = vmul.f32 %v328, %v341
    %v352 = vmul.f32 %v329, %v341
    %v353 = vmul.f32 %v330, %v341
    %v354 = vmul.f32 %v331, %v341
    %v355 = vmul.f32 %v332, %v341
    %v356 = vmul.f32 %v333, %v341
    %v357 = vmul.f32 %v334, %v341
    %v358 = vmul.f32 %v335, %v341
    %v359 = vld [vmem:[%s3] sm:$0x1]
    %v361 = vlaneseq
    %v362 = vshrl.u32 %v361, 7
    %v363 = vsub.s32 0, %v362
    %v364 = vrot.slane %v359, %v363
    %v366 = vadd.f32 %v343, %v364
    %v367 = vadd.f32 %v344, %v364
    %v368 = vadd.f32 %v345, %v364
    %v369 = vadd.f32 %v346, %v364
    %v370 = vadd.f32 %v347, %v364
    %v371 = vadd.f32 %v348, %v364
    %v372 = vadd.f32 %v349, %v364
    %v373 = vadd.f32 %v350, %v364
    %v374 = vadd.f32 %v351, %v364
    %v375 = vadd.f32 %v352, %v364
    %v376 = vadd.f32 %v353, %v364
    %v377 = vadd.f32 %v354, %v364
    %v378 = vadd.f32 %v355, %v364
    %v379 = vadd.f32 %v356, %v364
    %v380 = vadd.f32 %v357, %v364
    %v381 = vadd.f32 %v358, %v364
    %v382 = vld [vmem:[%s4] sm:$0xf]
    %v383 = vld [vmem:[%s4 + $0x4] sm:$0xf]
    %v384 = vld [vmem:[%s4 + $0x8] sm:$0xf]
    %v385 = vld [vmem:[%s4 + $0xc] sm:$0xf]
    %v386 = vld [vmem:[%s4 + $0x10] sm:$0xf]
    %v387 = vld [vmem:[%s4 + $0x14] sm:$0xf]
    %v388 = vld [vmem:[%s4 + $0x18] sm:$0xf]
    %v389 = vld [vmem:[%s4 + $0x1c] sm:$0xf]
    %v390 = vld [vmem:[%s4 + $0x20] sm:$0xf]
    %v391 = vld [vmem:[%s4 + $0x24] sm:$0xf]
    %v392 = vld [vmem:[%s4 + $0x28] sm:$0xf]
    %v393 = vld [vmem:[%s4 + $0x2c] sm:$0xf]
    %v394 = vld [vmem:[%s4 + $0x30] sm:$0xf]
    %v395 = vld [vmem:[%s4 + $0x34] sm:$0xf]
    %v396 = vld [vmem:[%s4 + $0x38] sm:$0xf]
    %v397 = vld [vmem:[%s4 + $0x3c] sm:$0xf]
    %v398 = vunpack.c.l.bf16 %v382
    %v399 = vunpack.c.l.bf16 %v383
    %v400 = vunpack.c.l.bf16 %v384
    %v401 = vunpack.c.l.bf16 %v385
    %v402 = vunpack.c.l.bf16 %v386
    %v403 = vunpack.c.l.bf16 %v387
    %v404 = vunpack.c.l.bf16 %v388
    %v405 = vunpack.c.l.bf16 %v389
    %v406 = vunpack.c.l.bf16 %v390
    %v407 = vunpack.c.l.bf16 %v391
    %v408 = vunpack.c.l.bf16 %v392
    %v409 = vunpack.c.l.bf16 %v393
    %v410 = vunpack.c.l.bf16 %v394
    %v411 = vunpack.c.l.bf16 %v395
    %v412 = vunpack.c.l.bf16 %v396
    %v413 = vunpack.c.l.bf16 %v397
    %415 = vset.pattern.permute.xlu0 0
    %416 = vperm.xlu0 %415, %v398
    %v417 = vpop.permute.xlu0 %416
    %420 = vset.pattern.permute.xlu0 0
    %421 = vperm.xlu0 %420, %v399
    %v422 = vpop.permute.xlu0 %421
    %425 = vset.pattern.permute.xlu0 0
    %426 = vperm.xlu0 %425, %v400
    %v427 = vpop.permute.xlu0 %426
    %430 = vset.pattern.permute.xlu0 0
    %431 = vperm.xlu0 %430, %v401
    %v432 = vpop.permute.xlu0 %431
    %435 = vset.pattern.permute.xlu0 0
    %436 = vperm.xlu0 %435, %v402
    %v437 = vpop.permute.xlu0 %436
    %440 = vset.pattern.permute.xlu0 0
    %441 = vperm.xlu0 %440, %v403
    %v442 = vpop.permute.xlu0 %441
    %445 = vset.pattern.permute.xlu0 0
    %446 = vperm.xlu0 %445, %v404
    %v447 = vpop.permute.xlu0 %446
    %450 = vset.pattern.permute.xlu0 0
    %451 = vperm.xlu0 %450, %v405
    %v452 = vpop.permute.xlu0 %451
    %455 = vset.pattern.permute.xlu0 0
    %456 = vperm.xlu0 %455, %v406
    %v457 = vpop.permute.xlu0 %456
    %460 = vset.pattern.permute.xlu0 0
    %461 = vperm.xlu0 %460, %v407
    %v462 = vpop.permute.xlu0 %461
    %465 = vset.pattern.permute.xlu0 0
    %466 = vperm.xlu0 %465, %v408
    %v467 = vpop.permute.xlu0 %466
    %470 = vset.pattern.permute.xlu0 0
    %471 = vperm.xlu0 %470, %v409
    %v472 = vpop.permute.xlu0 %471
    %475 = vset.pattern.permute.xlu0 0
    %476 = vperm.xlu0 %475, %v410
    %v477 = vpop.permute.xlu0 %476
    %480 = vset.pattern.permute.xlu0 0
    %481 = vperm.xlu0 %480, %v411
    %v482 = vpop.permute.xlu0 %481
    %485 = vset.pattern.permute.xlu0 0
    %486 = vperm.xlu0 %485, %v412
    %v487 = vpop.permute.xlu0 %486
    %490 = vset.pattern.permute.xlu0 0
    %491 = vperm.xlu0 %490, %v413
    %v492 = vpop.permute.xlu0 %491
    %v494 = vmul.f32 %v366, %v417
    %v495 = vmul.f32 %v367, %v422
    %v496 = vmul.f32 %v368, %v427
    %v497 = vmul.f32 %v369, %v432
    %v498 = vmul.f32 %v370, %v437
    %v499 = vmul.f32 %v371, %v442
    %v500 = vmul.f32 %v372, %v447
    %v501 = vmul.f32 %v373, %v452
    %v502 = vmul.f32 %v374, %v457
    %v503 = vmul.f32 %v375, %v462
    %v504 = vmul.f32 %v376, %v467
    %v505 = vmul.f32 %v377, %v472
    %v506 = vmul.f32 %v378, %v477
    %v507 = vmul.f32 %v379, %v482
    %v508 = vmul.f32 %v380, %v487
    %v509 = vmul.f32 %v381, %v492
    %v510 = vld [vmem:[%s5] sm:$0xf]
    %v511 = vld [vmem:[%s5 + $0x4] sm:$0xf]
    %v512 = vld [vmem:[%s5 + $0x8] sm:$0xf]
    %v513 = vld [vmem:[%s5 + $0xc] sm:$0xf]
    %v514 = vld [vmem:[%s5 + $0x10] sm:$0xf]
    %v515 = vld [vmem:[%s5 + $0x14] sm:$0xf]
    %v516 = vld [vmem:[%s5 + $0x18] sm:$0xf]
    %v517 = vld [vmem:[%s5 + $0x1c] sm:$0xf]
    %v518 = vld [vmem:[%s5 + $0x20] sm:$0xf]
    %v519 = vld [vmem:[%s5 + $0x24] sm:$0xf]
    %v520 = vld [vmem:[%s5 + $0x28] sm:$0xf]
    %v521 = vld [vmem:[%s5 + $0x2c] sm:$0xf]
    %v522 = vld [vmem:[%s5 + $0x30] sm:$0xf]
    %v523 = vld [vmem:[%s5 + $0x34] sm:$0xf]
    %v524 = vld [vmem:[%s5 + $0x38] sm:$0xf]
    %v525 = vld [vmem:[%s5 + $0x3c] sm:$0xf]
    %v526 = vunpack.c.l.bf16 %v510
    %v527 = vunpack.c.l.bf16 %v511
    %v528 = vunpack.c.l.bf16 %v512
    %v529 = vunpack.c.l.bf16 %v513
    %v530 = vunpack.c.l.bf16 %v514
    %v531 = vunpack.c.l.bf16 %v515
    %v532 = vunpack.c.l.bf16 %v516
    %v533 = vunpack.c.l.bf16 %v517
    %v534 = vunpack.c.l.bf16 %v518
    %v535 = vunpack.c.l.bf16 %v519
    %v536 = vunpack.c.l.bf16 %v520
    %v537 = vunpack.c.l.bf16 %v521
    %v538 = vunpack.c.l.bf16 %v522
    %v539 = vunpack.c.l.bf16 %v523
    %v540 = vunpack.c.l.bf16 %v524
    %v541 = vunpack.c.l.bf16 %v525
    %v542 = vadd.f32 %v494, %v526
    %v543 = vadd.f32 %v495, %v527
    %v544 = vadd.f32 %v496, %v528
    %v545 = vadd.f32 %v497, %v529
    %v546 = vadd.f32 %v498, %v530
    %v547 = vadd.f32 %v499, %v531
    %v548 = vadd.f32 %v500, %v532
    %v549 = vadd.f32 %v501, %v533
    %v550 = vadd.f32 %v502, %v534
    %v551 = vadd.f32 %v503, %v535
    %v552 = vadd.f32 %v504, %v536
    %v553 = vadd.f32 %v505, %v537
    %v554 = vadd.f32 %v506, %v538
    %v555 = vadd.f32 %v507, %v539
    %v556 = vadd.f32 %v508, %v540
    %v557 = vadd.f32 %v509, %v541
    %v558 = vmax.f32 %v542, 0.0
    %v559 = vmax.f32 %v543, 0.0
    %v560 = vmax.f32 %v544, 0.0
    %v561 = vmax.f32 %v545, 0.0
    %v562 = vmax.f32 %v546, 0.0
    %v563 = vmax.f32 %v547, 0.0
    %v564 = vmax.f32 %v548, 0.0
    %v565 = vmax.f32 %v549, 0.0
    %v566 = vmax.f32 %v550, 0.0
    %v567 = vmax.f32 %v551, 0.0
    %v568 = vmax.f32 %v552, 0.0
    %v569 = vmax.f32 %v553, 0.0
    %v570 = vmax.f32 %v554, 0.0
    %v571 = vmax.f32 %v555, 0.0
    %v572 = vmax.f32 %v556, 0.0
    %v573 = vmax.f32 %v557, 0.0
    %v574 = vpack.c.bf16 %v559, %v558
    %v575 = vpack.c.bf16 %v561, %v560
    %v576 = vpack.c.bf16 %v563, %v562
    %v577 = vpack.c.bf16 %v565, %v564
    %v578 = vpack.c.bf16 %v567, %v566
    %v579 = vpack.c.bf16 %v569, %v568
    %v580 = vpack.c.bf16 %v571, %v570
    %v581 = vpack.c.bf16 %v573, %v572
    %v590 = vunpack.c.l.b16 %v574
    %v591 = vunpack.c.h.b16 %v574
    %v592 = vunpack.c.l.b16 %v575
    %v593 = vunpack.c.h.b16 %v575
    %v594 = vunpack.c.l.b16 %v576
    %v595 = vunpack.c.h.b16 %v576
    %v596 = vunpack.c.l.b16 %v577
    %v597 = vunpack.c.h.b16 %v577
    %v598 = vunpack.c.l.b16 %v578
    %v599 = vunpack.c.h.b16 %v578
    %v600 = vunpack.c.l.b16 %v579
    %v601 = vunpack.c.h.b16 %v579
    %v602 = vunpack.c.l.b16 %v580
    %v603 = vunpack.c.h.b16 %v580
    %v604 = vunpack.c.l.b16 %v581
    %v605 = vunpack.c.h.b16 %v581
    %v606 = vpack.c.b16 %v590, %v590
    %v607 = vpack.c.b16 %v591, %v591
    %v608 = vpack.c.b16 %v592, %v592
    %v609 = vpack.c.b16 %v593, %v593
    %v610 = vpack.c.b16 %v594, %v594
    %v611 = vpack.c.b16 %v595, %v595
    %v612 = vpack.c.b16 %v596, %v596
    %v613 = vpack.c.b16 %v597, %v597
    %v614 = vpack.c.b16 %v598, %v598
    %v615 = vpack.c.b16 %v599, %v599
    %v616 = vpack.c.b16 %v600, %v600
    %v617 = vpack.c.b16 %v601, %v601
    %v618 = vpack.c.b16 %v602, %v602
    %v619 = vpack.c.b16 %v603, %v603
    %v620 = vpack.c.b16 %v604, %v604
    %v621 = vpack.c.b16 %v605, %v605
    %638 = vst [vmem:[%s6] sm:$0xf] %v606
    %639 = vst [vmem:[%s6 + $0x4] sm:$0xf] %v607
    %640 = vst [vmem:[%s6 + $0x8] sm:$0xf] %v608
    %641 = vst [vmem:[%s6 + $0xc] sm:$0xf] %v609
    %642 = vst [vmem:[%s6 + $0x10] sm:$0xf] %v610
    %643 = vst [vmem:[%s6 + $0x14] sm:$0xf] %v611
    %644 = vst [vmem:[%s6 + $0x18] sm:$0xf] %v612
    %645 = vst [vmem:[%s6 + $0x1c] sm:$0xf] %v613
    %646 = vst [vmem:[%s6 + $0x20] sm:$0xf] %v614
    %647 = vst [vmem:[%s6 + $0x24] sm:$0xf] %v615
    %648 = vst [vmem:[%s6 + $0x28] sm:$0xf] %v616
    %649 = vst [vmem:[%s6 + $0x2c] sm:$0xf] %v617
    %650 = vst [vmem:[%s6 + $0x30] sm:$0xf] %v618
    %651 = vst [vmem:[%s6 + $0x34] sm:$0xf] %v619
    %652 = vst [vmem:[%s6 + $0x38] sm:$0xf] %v620
    %653 = vst [vmem:[%s6 + $0x3c] sm:$0xf] %v621
  $region33: #{_lambda_.21} parent=0 // pred_fallthru
    _
  // Predicated region
  $region34: #{_lambda_.21} parent=0 // pred_check
    _
  $region35: #{_lambda_.21} parent=0 // pred_check_branch
    %655 = sbr.rel (0) target = $region37
  $region36: #{_lambda_.21} parent=0 // pred_region
    _
  $region37: #{_lambda_.21} parent=0 // pred_fallthru
    _
  // Predicated region
  $region38: #{_lambda_.21} parent=0 // pred_check
    _
  $region39: #{_lambda_.21} parent=0 // pred_check_branch
    %657 = sbr.rel (0) target = $region41
  $region40: #{_lambda_.21} parent=0 // pred_region
    _
  $region41: #{_lambda_.21} parent=0 // pred_fallthru
    _

// kernel: _lambda_.19
$region0: #{_lambda_.19}
  #allocation0 [shape = 'u32[]', space=smem, size = 0x4, offset = 0x4, fixed_abs, tag = 'smem constant byte address 0x4 - core index']
  #allocation1 [shape = 'u32[144,128]{1,0:T(1,128)}', space=vmem, size = 0x12000, scoped, tag = 'internal scratch']
  #allocation2 [shape = 'f32[80,128]{1,0:T(8,128)}', space=vmem, size = 0xa000, scoped, tag = 'scratch operand']
  %s0 = inlined_call_operand.vmem [shape: bf16[2,110,128], index: 0, kind: input, shape index: {}]
  %s1 = inlined_call_operand.vmem [shape: bf16[9,128,128], index: 1, kind: input, shape index: {}]
  %s2 = inlined_call_operand.vmem [shape: f32[1,128], index: 2, kind: input, shape index: {}]
  %s3 = inlined_call_operand.vmem [shape: f32[1,128], index: 3, kind: input, shape index: {}]
  %s4 = inlined_call_operand.vmem [shape: bf16[2,80,128], index: 4, kind: output, shape index: {}]
  %s5 = sld [smem:[#allocation0]]
  $region49: #{_lambda_.19} parent=0
    _
  %s7 = ssub.s32 1, %s5
  %s8 = scalar_select 0, %s7, %s5
  loop: start=0, step=1, limit=4
  $region2: #{_lambda_.19} parent=0 // loop_pre_header
    _
  $region3: #{_lambda_.19} parent=0 // loop_header
    %s10 = sphi 0, %s14
    %p11 = scmp.ge.s32.totalorder %s10, 4
    %s17 = sphi 0, %s29
    %s18 = sphi 0, %s25
    %s19 = sphi 0, %s17
    %s20 = sphi 0, %s18
    %s21 = sphi 0, %s19
    %s22 = sphi 0, %s20
    %s32 = sphi 0, %s34
    %s35 = sphi 0, %s32
    %s36 = sphi 0, %s35
    %s52 = sphi 0, %s36
    %s58 = sphi 0, %s60
    %s61 = sphi 0, %s58
    %s62 = sphi 0, %s61
    %s78 = sphi 0, %s62
    %s84 = sphi 0, %s86
    %s87 = sphi 0, %s84
    %s88 = sphi 0, %s87
    %s104 = sphi 0, %s88
    %s110 = sphi 0, %s112
    %s113 = sphi 0, %s110
    %s114 = sphi 0, %s113
    %s130 = sphi 0, %s114
    %s138 = sphi 0, %s140
    %s141 = sphi 0, %s138
    %s142 = sphi 0, %s141
    %s158 = sphi 0, %s142
  $region4: #{_lambda_.19} parent=0 // loop_header_branch
    %13 = sbr.rel (%p11) target = $region8
  $region5: #{_lambda_.19} parent=0 // loop_body
    %s15 = ssub.s32 %s10, 1
    %s16 = ssub.s32 %s10, 2
    %s23 = sadd.s32 1, %s18
    %p24 = scmp.ge.s32.totalorder %s23, 1
    %s25 = scalar_select %p24, 0, %s23
    %s26 = sadd.s32 1, %s17
    %s27 = scalar_select %p24, %s26, %s17
    %p28 = scmp.ge.s32.totalorder %s27, 2
    %s29 = scalar_select %p28, 0, %s27
    %s30 = ssub.s32 %s17, %s29
    %p31 = scmp.eq.s32.totalorder %s30, 0
    %s33 = sadd.s32 %s32, 1
    %s34 = scalar_select %p31, %s32, %s33
    %p37 = pneg %p31
    %p38 = scmp.eq.s32.totalorder %s10, 1
    %p39 = por %p37, %p38
    %p40 = scmp.ne.s32.totalorder %s32, %s35
    %p41 = scmp.eq.s32.totalorder %s10, 0
    %p42 = por %p40, %p41
    %p43 = scmp.ne.s32.totalorder %s32, %s35
    %p44 = scmp.eq.s32.totalorder %s15, 1
    %p45 = por %p43, %p44
    %p46 = scmp.ne.s32.totalorder %s35, %s36
    %p47 = scmp.eq.s32.totalorder %s15, 0
    %p48 = por %p46, %p47
    %p49 = scmp.ne.s32.totalorder %s35, %s36
    %p50 = scmp.eq.s32.totalorder %s16, 1
    %p51 = por %p49, %p50
    %p53 = scmp.ne.s32.totalorder %s36, %s52
    %p54 = scmp.eq.s32.totalorder %s16, 0
    %p55 = por %p53, %p54
    %s56 = ssub.s32 %s18, %s25
    %p57 = scmp.eq.s32.totalorder %s56, 0
    %s59 = sadd.s32 %s58, 1
    %s60 = scalar_select %p57, %s58, %s59
    %p63 = pneg %p57
    %p64 = scmp.eq.s32.totalorder %s10, 1
    %p65 = por %p63, %p64
    %p66 = scmp.ne.s32.totalorder %s58, %s61
    %p67 = scmp.eq.s32.totalorder %s10, 0
    %p68 = por %p66, %p67
    %p69 = scmp.ne.s32.totalorder %s58, %s61
    %p70 = scmp.eq.s32.totalorder %s15, 1
    %p71 = por %p69, %p70
    %p72 = scmp.ne.s32.totalorder %s61, %s62
    %p73 = scmp.eq.s32.totalorder %s15, 0
    %p74 = por %p72, %p73
    %p75 = scmp.ne.s32.totalorder %s61, %s62
    %p76 = scmp.eq.s32.totalorder %s16, 1
    %p77 = por %p75, %p76
    %p79 = scmp.ne.s32.totalorder %s62, %s78
    %p80 = scmp.eq.s32.totalorder %s16, 0
    %p81 = por %p79, %p80
    %s82 = ssub.s32 %s18, %s25
    %p83 = scmp.eq.s32.totalorder %s82, 0
    %s85 = sadd.s32 %s84, 1
    %s86 = scalar_select %p83, %s84, %s85
    %p89 = pneg %p83
    %p90 = scmp.eq.s32.totalorder %s10, 1
    %p91 = por %p89, %p90
    %p92 = scmp.ne.s32.totalorder %s84, %s87
    %p93 = scmp.eq.s32.totalorder %s10, 0
    %p94 = por %p92, %p93
    %p95 = scmp.ne.s32.totalorder %s84, %s87
    %p96 = scmp.eq.s32.totalorder %s15, 1
    %p97 = por %p95, %p96
    %p98 = scmp.ne.s32.totalorder %s87, %s88
    %p99 = scmp.eq.s32.totalorder %s15, 0
    %p100 = por %p98, %p99
    %p101 = scmp.ne.s32.totalorder %s87, %s88
    %p102 = scmp.eq.s32.totalorder %s16, 1
    %p103 = por %p101, %p102
    %p105 = scmp.ne.s32.totalorder %s88, %s104
    %p106 = scmp.eq.s32.totalorder %s16, 0
    %p107 = por %p105, %p106
    %s108 = ssub.s32 %s18, %s25
    %p109 = scmp.eq.s32.totalorder %s108, 0
    %s111 = sadd.s32 %s110, 1
    %s112 = scalar_select %p109, %s110, %s111
    %p115 = pneg %p109
    %p116 = scmp.eq.s32.totalorder %s10, 1
    %p117 = por %p115, %p116
    %p118 = scmp.ne.s32.totalorder %s110, %s113
    %p119 = scmp.eq.s32.totalorder %s10, 0
    %p120 = por %p118, %p119
    %p121 = scmp.ne.s32.totalorder %s110, %s113
    %p122 = scmp.eq.s32.totalorder %s15, 1
    %p123 = por %p121, %p122
    %p124 = scmp.ne.s32.totalorder %s113, %s114
    %p125 = scmp.eq.s32.totalorder %s15, 0
    %p126 = por %p124, %p125
    %p127 = scmp.ne.s32.totalorder %s113, %s114
    %p128 = scmp.eq.s32.totalorder %s16, 1
    %p129 = por %p127, %p128
    %p131 = scmp.ne.s32.totalorder %s114, %s130
    %p132 = scmp.eq.s32.totalorder %s16, 0
    %p133 = por %p131, %p132
    %s134 = ssub.s32 %s17, %s29
    %s135 = ssub.s32 %s18, %s25
    %s136 = sor.u32 %s134, %s135
    %p137 = scmp.eq.s32.totalorder %s136, 0
    %s139 = sadd.s32 %s138, 1
    %s140 = scalar_select %p137, %s138, %s139
    %p143 = pneg %p137
    %p144 = scmp.eq.s32.totalorder %s10, 1
    %p145 = por %p143, %p144
    %p146 = scmp.ne.s32.totalorder %s138, %s141
    %p147 = scmp.eq.s32.totalorder %s10, 0
    %p148 = por %p146, %p147
    %p149 = scmp.ne.s32.totalorder %s138, %s141
    %p150 = scmp.eq.s32.totalorder %s15, 1
    %p151 = por %p149, %p150
    %p152 = scmp.ne.s32.totalorder %s141, %s142
    %p153 = scmp.eq.s32.totalorder %s15, 0
    %p154 = por %p152, %p153
    %p155 = scmp.ne.s32.totalorder %s141, %s142
    %p156 = scmp.eq.s32.totalorder %s16, 1
    %p157 = por %p155, %p156
    %p159 = scmp.ne.s32.totalorder %s142, %s158
    %p160 = scmp.eq.s32.totalorder %s16, 0
    %p161 = por %p159, %p160
    %p162 = scmp.le.s32.totalorder 1, %s10
    %p163 = scmp.lt.s32.totalorder %s10, 3
    %p164 = pnand %p162, %p163
    %p165 = pneg %p164
    // Predicated region
    $region9: #{_lambda_.19} parent=5 // pred_check
      _
    $region10: #{_lambda_.19} parent=5 // pred_check_branch
      %167 = sbr.rel (%p164) target = $region12
    $region11: #{_lambda_.19} parent=5 // pred_region
      %s168 = ssub.s32 %s10, 1
      // Predicated region
      $region13: #{_lambda_.19} parent=11 // pred_check
        %p169 = pneg %p74
      $region14: #{_lambda_.19} parent=11 // pred_check_branch
        %171 = sbr.rel (%p169) target = $region16
      $region15: #{_lambda_.19} parent=11 // pred_region
        %p172 = scmp.lt.s32.totalorder %s20, 0
        %s173 = scalar_select %p172, %s20, 0
        %s174 = smul.addr %s173, 4
        %s175 = scalar_lea.vmem %s1, %s174
      $region16: #{_lambda_.19} parent=11 // pred_fallthru
        _
      // Predicated region
      $region17: #{_lambda_.19} parent=11 // pred_check
        %p176 = pneg %p100
      $region18: #{_lambda_.19} parent=11 // pred_check_branch
        %178 = sbr.rel (%p176) target = $region20
      $region19: #{_lambda_.19} parent=11 // pred_region
        %p179 = scmp.lt.s32.totalorder %s20, 0
        %s180 = scalar_select %p179, %s20, 0
        %s181 = scalar_lea.vmem %s2, %s180
      $region20: #{_lambda_.19} parent=11 // pred_fallthru
        _
      // Predicated region
      $region21: #{_lambda_.19} parent=11 // pred_check
        %p182 = pneg %p126
      $region22: #{_lambda_.19} parent=11 // pred_check_branch
        %184 = sbr.rel (%p182) target = $region24
      $region23: #{_lambda_.19} parent=11 // pred_region
        %p185 = scmp.lt.s32.totalorder %s20, 0
        %s186 = scalar_select %p185, %s20, 0
        %s187 = scalar_lea.vmem %s3, %s186
      $region24: #{_lambda_.19} parent=11 // pred_fallthru
        _
    $region12: #{_lambda_.19} parent=5 // pred_fallthru
      _
    %p188 = scmp.lt.s32.totalorder %s10, 2
    // Predicated region
    $region25: #{_lambda_.19} parent=5 // pred_check
      %p189 = pneg %p188
    $region26: #{_lambda_.19} parent=5 // pred_check_branch
      %191 = sbr.rel (%p189) target = $region28
    $region27: #{_lambda_.19} parent=5 // pred_region
      // Predicated region
      $region29: #{_lambda_.19} parent=27 // pred_check
        %p192 = pneg %p42
      $region30: #{_lambda_.19} parent=27 // pred_check_branch
        %194 = sbr.rel (%p192) target = $region32
      $region31: #{_lambda_.19} parent=27 // pred_region
        %p195 = scmp.lt.s32.totalorder %s17, 1
        %s196 = scalar_select %p195, %s17, 1
        %s197 = smul.addr %s196, 14
        %s198 = smul.addr %s197, 4
        %s199 = scalar_lea.vmem %s0, %s198
      $region32: #{_lambda_.19} parent=27 // pred_fallthru
        _
    $region28: #{_lambda_.19} parent=5 // pred_fallthru
      _
    %p200 = scmp.le.s32.totalorder 1, %s10
    %p201 = scmp.lt.s32.totalorder %s10, 3
    %p202 = pnand %p200, %p201
    %p203 = pneg %p202
    // Predicated region
    $region33: #{_lambda_.19} parent=5 // pred_check
      _
    $region34: #{_lambda_.19} parent=5 // pred_check_branch
      %205 = sbr.rel (%p202) target = $region36
    $region35: #{_lambda_.19} parent=5 // pred_region
      %s206 = ssub.s32 %s10, 1
      %p207 = scmp.lt.s32.totalorder %s19, 1
      %s208 = scalar_select %p207, %s19, 1
      %s209 = smul.addr %s208, 14
      %s210 = smul.addr %s209, 4
      %s211 = scalar_lea.vmem %s0, %s210
      %p212 = pneg %p48
      %p213 = pneg %p45
      %p214 = scmp.lt.s32.totalorder %s20, 0
      %s215 = scalar_select %p214, %s20, 0
      %s216 = smul.addr %s215, 4
      %s217 = scalar_lea.vmem %s1, %s216
      %p218 = pneg %p74
      %p219 = pneg %p71
      %p220 = scmp.lt.s32.totalorder %s20, 0
      %s221 = scalar_select %p220, %s20, 0
      %s222 = scalar_lea.vmem %s2, %s221
      %p223 = pneg %p100
      %p224 = pneg %p97
      %p225 = scmp.lt.s32.totalorder %s20, 0
      %s226 = scalar_select %p225, %s20, 0
      %s227 = scalar_lea.vmem %s3, %s226
      %p228 = pneg %p126
      %p229 = pneg %p123
      %p230 = pneg %p154
      %p231 = pneg %p151
      %p232 = scmp.lt.s32.totalorder %s19, 1
      %s233 = scalar_select %p232, %s19, 1
      %p234 = scmp.lt.s32.totalorder %s20, 0
      %s235 = scalar_select %p234, %s20, 0
      %s236 = smul.addr %s233, 10
      %s237 = sadd.s32 %s235, %s236
      %s238 = smul.addr %s237, 4
      %s239 = scalar_lea.vmem %s4, %s238
      %p240 = scmp.lt.s32.totalorder %s19, 1
      %s241 = scalar_select %p240, %s19, 1
      %s242 = smul.addr %s241, 14
      %s243 = smul.addr %s242, 4
      %s244 = scalar_lea.vmem %s0, %s243
      %p245 = scmp.lt.s32.totalorder %s20, 0
      %s246 = scalar_select %p245, %s20, 0
      %s247 = smul.addr %s246, 4
      %s248 = scalar_lea.vmem %s1, %s247
      %p249 = scmp.lt.s32.totalorder %s20, 0
      %s250 = scalar_select %p249, %s20, 0
      %s251 = scalar_lea.vmem %s2, %s250
      %p252 = scmp.lt.s32.totalorder %s20, 0
      %s253 = scalar_select %p252, %s20, 0
      %s254 = scalar_lea.vmem %s3, %s253
      %p255 = scmp.lt.s32.totalorder %s19, 1
      %s256 = scalar_select %p255, %s19, 1
      %p257 = scmp.lt.s32.totalorder %s20, 0
      %s258 = scalar_select %p257, %s20, 0
      %s259 = smul.addr %s256, 10
      %s260 = sadd.s32 %s258, %s259
      %s261 = smul.addr %s260, 4
      %s262 = scalar_lea.vmem %s4, %s261
      %264 = vst [vmem:[#allocation2] sm:$0xff] 0.0
      %265 = vst [vmem:[#allocation2 + $0x8] sm:$0xff] 0.0
      %266 = vst [vmem:[#allocation2 + $0x10] sm:$0xff] 0.0
      %267 = vst [vmem:[#allocation2 + $0x18] sm:$0xff] 0.0
      %268 = vst [vmem:[#allocation2 + $0x20] sm:$0xff] 0.0
      %269 = vst [vmem:[#allocation2 + $0x28] sm:$0xff] 0.0
      %270 = vst [vmem:[#allocation2 + $0x30] sm:$0xff] 0.0
      %271 = vst [vmem:[#allocation2 + $0x38] sm:$0xff] 0.0
      %272 = vst [vmem:[#allocation2 + $0x40] sm:$0xff] 0.0
      %273 = vst [vmem:[#allocation2 + $0x48] sm:$0xff] 0.0
      %v274 = vld [vmem:[#allocation2] sm:$0xff]
      %v275 = vld [vmem:[#allocation2 + $0x8] sm:$0xff]
      %v276 = vld [vmem:[#allocation2 + $0x10] sm:$0xff]
      %v277 = vld [vmem:[#allocation2 + $0x18] sm:$0xff]
      %v278 = vld [vmem:[#allocation2 + $0x20] sm:$0xff]
      %v279 = vld [vmem:[#allocation2 + $0x28] sm:$0xff]
      %v280 = vld [vmem:[#allocation2 + $0x30] sm:$0xff]
      %v281 = vld [vmem:[#allocation2 + $0x38] sm:$0xff]
      %v282 = vld [vmem:[#allocation2 + $0x40] sm:$0xff]
      %v283 = vld [vmem:[#allocation2 + $0x48] sm:$0xff]
      %v284 = vld [vmem:[%s244] sm:$0xf]
      %v285 = vld [vmem:[%s244 + $0x4] sm:$0xf]
      %v286 = vld [vmem:[%s244 + $0x8] sm:$0xf]
      %v287 = vld [vmem:[%s244 + $0xc] sm:$0xf]
      %v288 = vld [vmem:[%s244 + $0x10] sm:$0xf]
      %v289 = vld [vmem:[%s244 + $0x14] sm:$0xf]
      %v290 = vld [vmem:[%s244 + $0x18] sm:$0xf]
      %v291 = vld [vmem:[%s244 + $0x1c] sm:$0xf]
      %v292 = vld [vmem:[%s244 + $0x20] sm:$0xf]
      %v293 = vld [vmem:[%s244 + $0x24] sm:$0xf]
      %v294 = vld [vmem:[%s248] sm:$0xf]
      %v295 = vld [vmem:[%s248 + $0x4] sm:$0xf]
      %v296 = vld [vmem:[%s248 + $0x8] sm:$0xf]
      %v297 = vld [vmem:[%s248 + $0xc] sm:$0xf]
      %v298 = vld [vmem:[%s248 + $0x10] sm:$0xf]
      %v299 = vld [vmem:[%s248 + $0x14] sm:$0xf]
      %v300 = vld [vmem:[%s248 + $0x18] sm:$0xf]
      %v301 = vld [vmem:[%s248 + $0x1c] sm:$0xf]
      %v302 = vld [vmem:[%s248 + $0x20] sm:$0xf]
      %v303 = vld [vmem:[%s248 + $0x24] sm:$0xf]
      %v304 = vld [vmem:[%s248 + $0x28] sm:$0xf]
      %v305 = vld [vmem:[%s248 + $0x2c] sm:$0xf]
      %v306 = vld [vmem:[%s248 + $0x30] sm:$0xf]
      %v307 = vld [vmem:[%s248 + $0x34] sm:$0xf]
      %v308 = vld [vmem:[%s248 + $0x38] sm:$0xf]
      %v309 = vld [vmem:[%s248 + $0x3c] sm:$0xf]
      %v320 = vunpack.c.l.b16 %v284
      %v321 = vunpack.c.l.b16 %v285
      %v322 = vunpack.c.l.b16 %v286
      %v323 = vunpack.c.l.b16 %v287
      %v324 = vunpack.c.l.b16 %v288
      %v325 = vunpack.c.l.b16 %v289
      %v326 = vunpack.c.l.b16 %v290
      %v327 = vunpack.c.l.b16 %v291
      %v328 = vunpack.c.l.b16 %v292
      %v329 = vunpack.c.l.b16 %v293
      %v330 = vpack.c.b16 %v321, %v320
      %v331 = vpack.c.b16 %v323, %v322
      %v332 = vpack.c.b16 %v325, %v324
      %v333 = vpack.c.b16 %v327, %v326
      %v334 = vpack.c.b16 %v329, %v328
      %v356 = vunpack.c.l.b16 %v294
      %v357 = vunpack.c.l.b16 %v295
      %v358 = vunpack.c.l.b16 %v296
      %v359 = vunpack.c.l.b16 %v297
      %v360 = vunpack.c.l.b16 %v298
      %v361 = vunpack.c.l.b16 %v299
      %v362 = vunpack.c.l.b16 %v300
      %v363 = vunpack.c.l.b16 %v301
      %v364 = vunpack.c.l.b16 %v302
      %v365 = vunpack.c.l.b16 %v303
      %v366 = vunpack.c.l.b16 %v304
      %v367 = vunpack.c.l.b16 %v305
      %v368 = vunpack.c.l.b16 %v306
      %v369 = vunpack.c.l.b16 %v307
      %v370 = vunpack.c.l.b16 %v308
      %v371 = vunpack.c.l.b16 %v309
      %v372 = vpack.c.b16 %v357, %v356
      %v373 = vpack.c.b16 %v359, %v358
      %v374 = vpack.c.b16 %v361, %v360
      %v375 = vpack.c.b16 %v363, %v362
      %v376 = vpack.c.b16 %v365, %v364
      %v377 = vpack.c.b16 %v367, %v366
      %v378 = vpack.c.b16 %v369, %v368
      %v379 = vpack.c.b16 %v371, %v370
      %388 = vmatprep.subr.bf16.mxu0 0
      %389 = vmatpush1.bf16.msra.mxu0 %v379
      %390 = vmatprep.subr.bf16.mxu0 0
      %391 = vmatpush1.bf16.msra.mxu0 %v378
      %392 = vmatprep.subr.bf16.mxu0 0
      %393 = vmatpush1.bf16.msra.mxu0 %v377
      %394 = vmatprep.subr.bf16.mxu0 0
      %395 = vmatpush1.bf16.msra.mxu0 %v376
      %396 = vmatprep.subr.bf16.mxu0 0
      %397 = vmatpush1.bf16.msra.mxu0 %v375
      %398 = vmatprep.subr.bf16.mxu0 0
      %399 = vmatpush1.bf16.msra.mxu0 %v374
      %400 = vmatprep.subr.bf16.mxu0 0
      %401 = vmatpush1.bf16.msra.mxu0 %v373
      %402 = vmatprep.subr.bf16.mxu0 0
      %403 = vmatpush1.bf16.msra.mxu0 %v372
      %404 = vmatprep.subr.bf16.mxu0 0
      %405 = vmatpush2.bf16.msra.mxu0 0
      %406 = vmatprep.subr.bf16.mxu0 0
      %407 = vmatpush2.bf16.msra.mxu0 0
      %408 = vmatprep.subr.bf16.mxu0 0
      %409 = vmatpush2.bf16.msra.mxu0 0
      %410 = vmatprep.subr.bf16.mxu0 0
      %411 = vmatpush2.bf16.msra.mxu0 0
      %412 = vmatprep.subr.bf16.mxu0 0
      %413 = vmatpush2.bf16.msra.mxu0 0
      %414 = vmatprep.subr.bf16.mxu0 0
      %415 = vmatpush2.bf16.msra.mxu0 0
      %416 = vmatprep.subr.bf16.mxu0 0
      %417 = vmatpush2.bf16.msra.mxu0 0
      %418 = vmatprep.subr.bf16.mxu0 0
      %419 = vmatpush2.bf16.msra.mxu0 0
      %420 = vmatprep.mubr.bf16.mxu0 0
      %421 = vmatmul.mubr.bf16.gmra.mxu0 %v330
      %v422 = vpop.f32.mrf.mxu0
      %v423 = vadd.f32 0.0, %v422
      %v424 = vpop.f32.mrf.mxu0
      %v425 = vpop.f32.mrf.mxu0
      %v426 = vadd.f32 0.0, %v425
      %v427 = vpop.f32.mrf.mxu0
      %428 = vmatprep.mubr.bf16.mxu0 0
      %429 = vmatmul.mubr.bf16.gmra.mxu0 %v331
      %v430 = vpop.f32.mrf.mxu0
      %v431 = vadd.f32 0.0, %v430
      %v432 = vpop.f32.mrf.mxu0
      %v433 = vpop.f32.mrf.mxu0
      %v434 = vadd.f32 0.0, %v433
      %v435 = vpop.f32.mrf.mxu0
      %436 = vmatprep.mubr.bf16.mxu0 0
      %437 = vmatmul.mubr.bf16.gmra.mxu0 %v332
      %v438 = vpop.f32.mrf.mxu0
      %v439 = vadd.f32 0.0, %v438
      %v440 = vpop.f32.mrf.mxu0
      %v441 = vpop.f32.mrf.mxu0
      %v442 = vadd.f32 0.0, %v441
      %v443 = vpop.f32.mrf.mxu0
      %444 = vmatprep.mubr.bf16.mxu0 0
      %445 = vmatmul.mubr.bf16.gmra.mxu0 %v333
      %v446 = vpop.f32.mrf.mxu0
      %v447 = vadd.f32 0.0, %v446
      %v448 = vpop.f32.mrf.mxu0
      %v449 = vpop.f32.mrf.mxu0
      %v450 = vadd.f32 0.0, %v449
      %v451 = vpop.f32.mrf.mxu0
      %452 = vmatprep.mubr.bf16.mxu0 0
      %453 = vmatmul.mubr.bf16.gmra.mxu0 %v334
      %v454 = vpop.f32.mrf.mxu0
      %v455 = vadd.f32 0.0, %v454
      %v456 = vpop.f32.mrf.mxu0
      %v457 = vpop.f32.mrf.mxu0
      %v458 = vadd.f32 0.0, %v457
      %v459 = vpop.f32.mrf.mxu0
      %460 = vdwg.mxu0
      %v461 = vadd.f32 %v274, %v423
      %v462 = vadd.f32 %v275, %v426
      %v463 = vadd.f32 %v276, %v431
      %v464 = vadd.f32 %v277, %v434
      %v465 = vadd.f32 %v278, %v439
      %v466 = vadd.f32 %v279, %v442
      %v467 = vadd.f32 %v280, %v447
      %v468 = vadd.f32 %v281, %v450
      %v469 = vadd.f32 %v282, %v455
      %v470 = vadd.f32 %v283, %v458
      %471 = vst [vmem:[#allocation2] sm:$0xff] %v461
      %472 = vst [vmem:[#allocation2 + $0x8] sm:$0xff] %v462
      %473 = vst [vmem:[#allocation2 + $0x10] sm:$0xff] %v463
      %474 = vst [vmem:[#allocation2 + $0x18] sm:$0xff] %v464
      %475 = vst [vmem:[#allocation2 + $0x20] sm:$0xff] %v465
      %476 = vst [vmem:[#allocation2 + $0x28] sm:$0xff] %v466
      %477 = vst [vmem:[#allocation2 + $0x30] sm:$0xff] %v467
      %478 = vst [vmem:[#allocation2 + $0x38] sm:$0xff] %v468
      %479 = vst [vmem:[#allocation2 + $0x40] sm:$0xff] %v469
      %480 = vst [vmem:[#allocation2 + $0x48] sm:$0xff] %v470
      %v481 = vld [vmem:[#allocation2] sm:$0xff]
      %v482 = vld [vmem:[#allocation2 + $0x8] sm:$0xff]
      %v483 = vld [vmem:[#allocation2 + $0x10] sm:$0xff]
      %v484 = vld [vmem:[#allocation2 + $0x18] sm:$0xff]
      %v485 = vld [vmem:[#allocation2 + $0x20] sm:$0xff]
      %v486 = vld [vmem:[#allocation2 + $0x28] sm:$0xff]
      %v487 = vld [vmem:[#allocation2 + $0x30] sm:$0xff]
      %v488 = vld [vmem:[#allocation2 + $0x38] sm:$0xff]
      %v489 = vld [vmem:[#allocation2 + $0x40] sm:$0xff]
      %v490 = vld [vmem:[#allocation2 + $0x48] sm:$0xff]
      %v491 = vld [vmem:[%s244] sm:$0xf]
      %v492 = vld [vmem:[%s244 + $0x4] sm:$0xf]
      %v493 = vld [vmem:[%s244 + $0x8] sm:$0xf]
      %v494 = vld [vmem:[%s244 + $0xc] sm:$0xf]
      %v495 = vld [vmem:[%s244 + $0x10] sm:$0xf]
      %v496 = vld [vmem:[%s244 + $0x14] sm:$0xf]
      %v497 = vld [vmem:[%s244 + $0x18] sm:$0xf]
      %v498 = vld [vmem:[%s244 + $0x1c] sm:$0xf]
      %v499 = vld [vmem:[%s244 + $0x20] sm:$0xf]
      %v500 = vld [vmem:[%s244 + $0x24] sm:$0xf]
      %v501 = vld [vmem:[%s244 + $0x28] sm:$0x1]
      %s502 = scalar_lea.vmem %s248, 64
      %v503 = vld [vmem:[%s502] sm:$0xf]
      %v504 = vld [vmem:[%s502 + $0x4] sm:$0xf]
      %v505 = vld [vmem:[%s502 + $0x8] sm:$0xf]
      %v506 = vld [vmem:[%s502 + $0xc] sm:$0xf]
      %v507 = vld [vmem:[%s502 + $0x10] sm:$0xf]
      %v508 = vld [vmem:[%s502 + $0x14] sm:$0xf]
      %v509 = vld [vmem:[%s502 + $0x18] sm:$0xf]
      %v510 = vld [vmem:[%s502 + $0x1c] sm:$0xf]
      %v511 = vld [vmem:[%s502 + $0x20] sm:$0xf]
      %v512 = vld [vmem:[%s502 + $0x24] sm:$0xf]
      %v513 = vld [vmem:[%s502 + $0x28] sm:$0xf]
      %v514 = vld [vmem:[%s502 + $0x2c] sm:$0xf]
      %v515 = vld [vmem:[%s502 + $0x30] sm:$0xf]
      %v516 = vld [vmem:[%s502 + $0x34] sm:$0xf]
      %v517 = vld [vmem:[%s502 + $0x38] sm:$0xf]
      %v518 = vld [vmem:[%s502 + $0x3c] sm:$0xf]
      %v530 = vunpack.c.l.b16 %v491
      %v531 = vunpack.c.l.b16 %v492
      %v532 = vunpack.c.l.b16 %v493
      %v533 = vunpack.c.l.b16 %v494
      %v534 = vunpack.c.l.b16 %v495
      %v535 = vunpack.c.l.b16 %v496
      %v536 = vunpack.c.l.b16 %v497
      %v537 = vunpack.c.l.b16 %v498
      %v538 = vunpack.c.l.b16 %v499
      %v539 = vunpack.c.l.b16 %v500
      %v540 = vunpack.c.l.b16 %v501
      %v541 = vpack.c.b16 %v531, %v530
      %v542 = vpack.c.b16 %v533, %v532
      %v543 = vpack.c.b16 %v535, %v534
      %v544 = vpack.c.b16 %v537, %v536
      %v545 = vpack.c.b16 %v539, %v538
      %v546 = vpack.c.b16 %v540, %v540
      %vm547 = vsmask.f32 7424
      %v549 = vshrl.u32 %v541, 16
      %v551 = vshll.u32 %v541, 16
      %v553 = vrot.slane %v551, 1
      %v554 = vor.u32 %v549, %v553
      %v556 = vshll.u32 %v542, 16
      %v558 = vrot.slane %v556, 1
      %v559 = vsel %vm547, %v554, %v558
      %v560 = vshrl.u32 %v542, 16
      %v562 = vor.u32 %v560, %v558
      %v564 = vshll.u32 %v543, 16
      %v566 = vrot.slane %v564, 1
      %v567 = vsel %vm547, %v562, %v566
      %v568 = vshrl.u32 %v543, 16
      %v570 = vor.u32 %v568, %v566
      %v572 = vshll.u32 %v544, 16
      %v574 = vrot.slane %v572, 1
      %v575 = vsel %vm547, %v570, %v574
      %v576 = vshrl.u32 %v544, 16
      %v578 = vor.u32 %v576, %v574
      %v580 = vshll.u32 %v545, 16
      %v582 = vrot.slane %v580, 1
      %v583 = vsel %vm547, %v578, %v582
      %v584 = vshrl.u32 %v545, 16
      %v586 = vor.u32 %v584, %v582
      %v588 = vshll.u32 %v546, 16
      %v590 = vrot.slane %v588, 1
      %v591 = vsel %vm547, %v586, %v590
      %v613 = vunpack.c.l.b16 %v503
      %v614 = vunpack.c.l.b16 %v504
      %v615 = vunpack.c.l.b16 %v505
      %v616 = vunpack.c.l.b16 %v506
      %v617 = vunpack.c.l.b16 %v507
      %v618 = vunpack.c.l.b16 %v508
      %v619 = vunpack.c.l.b16 %v509
      %v620 = vunpack.c.l.b16 %v510
      %v621 = vunpack.c.l.b16 %v511
      %v622 = vunpack.c.l.b16 %v512
      %v623 = vunpack.c.l.b16 %v513
      %v624 = vunpack.c.l.b16 %v514
      %v625 = vunpack.c.l.b16 %v515
      %v626 = vunpack.c.l.b16 %v516
      %v627 = vunpack.c.l.b16 %v517
      %v628 = vunpack.c.l.b16 %v518
      %v629 = vpack.c.b16 %v614, %v613
      %v630 = vpack.c.b16 %v616, %v615
      %v631 = vpack.c.b16 %v618, %v617
      %v632 = vpack.c.b16 %v620, %v619
      %v633 = vpack.c.b16 %v622, %v621
      %v634 = vpack.c.b16 %v624, %v623
      %v635 = vpack.c.b16 %v626, %v625
      %v636 = vpack.c.b16 %v628, %v627
      %645 = vmatprep.subr.bf16.mxu0 0
      %646 = vmatpush1.bf16.msra.mxu0 %v636
      %647 = vmatprep.subr.bf16.mxu0 0
      %648 = vmatpush1.bf16.msra.mxu0 %v635
      %649 = vmatprep.subr.bf16.mxu0 0
      %650 = vmatpush1.bf16.msra.mxu0 %v634
      %651 = vmatprep.subr.bf16.mxu0 0
      %652 = vmatpush1.bf16.msra.mxu0 %v633
      %653 = vmatprep.subr.bf16.mxu0 0
      %654 = vmatpush1.bf16.msra.mxu0 %v632
      %655 = vmatprep.subr.bf16.mxu0 0
      %656 = vmatpush1.bf16.msra.mxu0 %v631
      %657 = vmatprep.subr.bf16.mxu0 0
      %658 = vmatpush1.bf16.msra.mxu0 %v630
      %659 = vmatprep.subr.bf16.mxu0 0
      %660 = vmatpush1.bf16.msra.mxu0 %v629
      %661 = vmatprep.subr.bf16.mxu0 0
      %662 = vmatpush2.bf16.msra.mxu0 0
      %663 = vmatprep.subr.bf16.mxu0 0
      %664 = vmatpush2.bf16.msra.mxu0 0
      %665 = vmatprep.subr.bf16.mxu0 0
      %666 = vmatpush2.bf16.msra.mxu0 0
      %667 = vmatprep.subr.bf16.mxu0 0
      %668 = vmatpush2.bf16.msra.mxu0 0
      %669 = vmatprep.subr.bf16.mxu0 0
      %670 = vmatpush2.bf16.msra.mxu0 0
      %671 = vmatprep.subr.bf16.mxu0 0
      %672 = vmatpush2.bf16.msra.mxu0 0
      %673 = vmatprep.subr.bf16.mxu0 0
      %674 = vmatpush2.bf16.msra.mxu0 0
      %675 = vmatprep.subr.bf16.mxu0 0
      %676 = vmatpush2.bf16.msra.mxu0 0
      %677 = vmatprep.mubr.bf16.mxu0 0
      %678 = vmatmul.mubr.bf16.gmra.mxu0 %v559
      %v679 = vpop.f32.mrf.mxu0
      %v680 = vadd.f32 0.0, %v679
      %v681 = vpop.f32.mrf.mxu0
      %v682 = vpop.f32.mrf.mxu0
      %v683 = vadd.f32 0.0, %v682
      %v684 = vpop.f32.mrf.mxu0
      %685 = vmatprep.mubr.bf16.mxu0 0
      %686 = vmatmul.mubr.bf16.gmra.mxu0 %v567
      %v687 = vpop.f32.mrf.mxu0
      %v688 = vadd.f32 0.0, %v687
      %v689 = vpop.f32.mrf.mxu0
      %v690 = vpop.f32.mrf.mxu0
      %v691 = vadd.f32 0.0, %v690
      %v692 = vpop.f32.mrf.mxu0
      %693 = vmatprep.mubr.bf16.mxu0 0
      %694 = vmatmul.mubr.bf16.gmra.mxu0 %v575
      %v695 = vpop.f32.mrf.mxu0
      %v696 = vadd.f32 0.0, %v695
      %v697 = vpop.f32.mrf.mxu0
      %v698 = vpop.f32.mrf.mxu0
      %v699 = vadd.f32 0.0, %v698
      %v700 = vpop.f32.mrf.mxu0
      %701 = vmatprep.mubr.bf16.mxu0 0
      %702 = vmatmul.mubr.bf16.gmra.mxu0 %v583
      %v703 = vpop.f32.mrf.mxu0
      %v704 = vadd.f32 0.0, %v703
      %v705 = vpop.f32.mrf.mxu0
      %v706 = vpop.f32.mrf.mxu0
      %v707 = vadd.f32 0.0, %v706
      %v708 = vpop.f32.mrf.mxu0
      %709 = vmatprep.mubr.bf16.mxu0 0
      %710 = vmatmul.mubr.bf16.gmra.mxu0 %v591
      %v711 = vpop.f32.mrf.mxu0
      %v712 = vadd.f32 0.0, %v711
      %v713 = vpop.f32.mrf.mxu0
      %v714 = vpop.f32.mrf.mxu0
      %v715 = vadd.f32 0.0, %v714
      %v716 = vpop.f32.mrf.mxu0
      %717 = vdwg.mxu0
      %v718 = vadd.f32 %v481, %v680
      %v719 = vadd.f32 %v482, %v683
      %v720 = vadd.f32 %v483, %v688
      %v721 = vadd.f32 %v484, %v691
      %v722 = vadd.f32 %v485, %v696
      %v723 = vadd.f32 %v486, %v699
      %v724 = vadd.f32 %v487, %v704
      %v725 = vadd.f32 %v488, %v707
      %v726 = vadd.f32 %v489, %v712
      %v727 = vadd.f32 %v490, %v715
      %728 = vst [vmem:[#allocation2] sm:$0xff] %v718
      %729 = vst [vmem:[#allocation2 + $0x8] sm:$0xff] %v719
      %730 = vst [vmem:[#allocation2 + $0x10] sm:$0xff] %v720
      %731 = vst [vmem:[#allocation2 + $0x18] sm:$0xff] %v721
      %732 = vst [vmem:[#allocation2 + $0x20] sm:$0xff] %v722
      %733 = vst [vmem:[#allocation2 + $0x28] sm:$0xff] %v723
      %734 = vst [vmem:[#allocation2 + $0x30] sm:$0xff] %v724
      %735 = vst [vmem:[#allocation2 + $0x38] sm:$0xff] %v725
      %736 = vst [vmem:[#allocation2 + $0x40] sm:$0xff] %v726
      %737 = vst [vmem:[#allocation2 + $0x48] sm:$0xff] %v727
      %v738 = vld [vmem:[#allocation2] sm:$0xff]
      %v739 = vld [vmem:[#allocation2 + $0x8] sm:$0xff]
      %v740 = vld [vmem:[#allocation2 + $0x10] sm:$0xff]
      %v741 = vld [vmem:[#allocation2 + $0x18] sm:$0xff]
      %v742 = vld [vmem:[#allocation2 + $0x20] sm:$0xff]
      %v743 = vld [vmem:[#allocation2 + $0x28] sm:$0xff]
      %v744 = vld [vmem:[#allocation2 + $0x30] sm:$0xff]
      %v745 = vld [vmem:[#allocation2 + $0x38] sm:$0xff]
      %v746 = vld [vmem:[#allocation2 + $0x40] sm:$0xff]
      %v747 = vld [vmem:[#allocation2 + $0x48] sm:$0xff]
      %v748 = vld [vmem:[%s244] sm:$0xe]
      %v749 = vld [vmem:[%s244 + $0x4] sm:$0xf]
      %v750 = vld [vmem:[%s244 + $0x8] sm:$0xf]
      %v751 = vld [vmem:[%s244 + $0xc] sm:$0xf]
      %v752 = vld [vmem:[%s244 + $0x10] sm:$0xf]
      %v753 = vld [vmem:[%s244 + $0x14] sm:$0xf]
      %v754 = vld [vmem:[%s244 + $0x18] sm:$0xf]
      %v755 = vld [vmem:[%s244 + $0x1c] sm:$0xf]
      %v756 = vld [vmem:[%s244 + $0x20] sm:$0xf]
      %v757 = vld [vmem:[%s244 + $0x24] sm:$0xf]
      %v758 = vld [vmem:[%s244 + $0x28] sm:$0x1]
      %s759 = scalar_lea.vmem %s248, 128
      %v760 = vld [vmem:[%s759] sm:$0xf]
      %v761 = vld [vmem:[%s759 + $0x4] sm:$0xf]
      %v762 = vld [vmem:[%s759 + $0x8] sm:$0xf]
      %v763 = vld [vmem:[%s759 + $0xc] sm:$0xf]
      %v764 = vld [vmem:[%s759 + $0x10] sm:$0xf]
      %v765 = vld [vmem:[%s759 + $0x14] sm:$0xf]
      %v766 = vld [vmem:[%s759 + $0x18] sm:$0xf]
      %v767 = vld [vmem:[%s759 + $0x1c] sm:$0xf]
      %v768 = vld [vmem:[%s759 + $0x20] sm:$0xf]
      %v769 = vld [vmem:[%s759 + $0x24] sm:$0xf]
      %v770 = vld [vmem:[%s759 + $0x28] sm:$0xf]
      %v771 = vld [vmem:[%s759 + $0x2c] sm:$0xf]
      %v772 = vld [vmem:[%s759 + $0x30] sm:$0xf]
      %v773 = vld [vmem:[%s759 + $0x34] sm:$0xf]
      %v774 = vld [vmem:[%s759 + $0x38] sm:$0xf]
      %v775 = vld [vmem:[%s759 + $0x3c] sm:$0xf]
      %v787 = vunpack.c.l.b16 %v748
      %v788 = vunpack.c.l.b16 %v749
      %v789 = vunpack.c.l.b16 %v750
      %v790 = vunpack.c.l.b16 %v751
      %v791 = vunpack.c.l.b16 %v752
      %v792 = vunpack.c.l.b16 %v753
      %v793 = vunpack.c.l.b16 %v754
      %v794 = vunpack.c.l.b16 %v755
      %v795 = vunpack.c.l.b16 %v756
      %v796 = vunpack.c.l.b16 %v757
      %v797 = vunpack.c.l.b16 %v758
      %v798 = vpack.c.b16 %v788, %v787
      %v799 = vpack.c.b16 %v790, %v789
      %v800 = vpack.c.b16 %v792, %v791
      %v801 = vpack.c.b16 %v794, %v793
      %v802 = vpack.c.b16 %v796, %v795
      %v803 = vpack.c.b16 %v797, %v797
      %vm804 = vcmask 1046528
      %v805 = vrot.slane %v798, 1
      %v806 = vrot.slane %v799, 1
      %v807 = vsel %vm804, %v805, %v806
      %v808 = vrot.slane %v800, 1
      %v809 = vsel %vm804, %v806, %v808
      %v810 = vrot.slane %v801, 1
      %v811 = vsel %vm804, %v808, %v810
      %v812 = vrot.slane %v802, 1
      %v813 = vsel %vm804, %v810, %v812
      %v814 = vrot.slane %v803, 1
      %v815 = vsel %vm804, %v812, %v814
      %v837 = vunpack.c.l.b16 %v760
      %v838 = vunpack.c.l.b16 %v761
      %v839 = vunpack.c.l.b16 %v762
      %v840 = vunpack.c.l.b16 %v763
      %v841 = vunpack.c.l.b16 %v764
      %v842 = vunpack.c.l.b16 %v765
      %v843 = vunpack.c.l.b16 %v766
      %v844 = vunpack.c.l.b16 %v767
      %v845 = vunpack.c.l.b16 %v768
      %v846 = vunpack.c.l.b16 %v769
      %v847 = vunpack.c.l.b16 %v770
      %v848 = vunpack.c.l.b16 %v771
      %v849 = vunpack.c.l.b16 %v772
      %v850 = vunpack.c.l.b16 %v773
      %v851 = vunpack.c.l.b16 %v774
      %v852 = vunpack.c.l.b16 %v775
      %v853 = vpack.c.b16 %v838, %v837
      %v854 = vpack.c.b16 %v840, %v839
      %v855 = vpack.c.b16 %v842, %v841
      %v856 = vpack.c.b16 %v844, %v843
      %v857 = vpack.c.b16 %v846, %v845
      %v858 = vpack.c.b16 %v848, %v847
      %v859 = vpack.c.b16 %v850, %v849
      %v860 = vpack.c.b16 %v852, %v851
      %869 = vmatprep.subr.bf16.mxu0 0
      %870 = vmatpush1.bf16.msra.mxu0 %v860
      %871 = vmatprep.subr.bf16.mxu0 0
      %872 = vmatpush1.bf16.msra.mxu0 %v859
      %873 = vmatprep.subr.bf16.mxu0 0
      %874 = vmatpush1.bf16.msra.mxu0 %v858
      %875 = vmatprep.subr.bf16.mxu0 0
      %876 = vmatpush1.bf16.msra.mxu0 %v857
      %877 = vmatprep.subr.bf16.mxu0 0
      %878 = vmatpush1.bf16.msra.mxu0 %v856
      %879 = vmatprep.subr.bf16.mxu0 0
      %880 = vmatpush1.bf16.msra.mxu0 %v855
      %881 = vmatprep.subr.bf16.mxu0 0
      %882 = vmatpush1.bf16.msra.mxu0 %v854
      %883 = vmatprep.subr.bf16.mxu0 0
      %884 = vmatpush1.bf16.msra.mxu0 %v853
      %885 = vmatprep.subr.bf16.mxu0 0
      %886 = vmatpush2.bf16.msra.mxu0 0
      %887 = vmatprep.subr.bf16.mxu0 0
      %888 = vmatpush2.bf16.msra.mxu0 0
      %889 = vmatprep.subr.bf16.mxu0 0
      %890 = vmatpush2.bf16.msra.mxu0 0
      %891 = vmatprep.subr.bf16.mxu0 0
      %892 = vmatpush2.bf16.msra.mxu0 0
      %893 = vmatprep.subr.bf16.mxu0 0
      %894 = vmatpush2.bf16.msra.mxu0 0
      %895 = vmatprep.subr.bf16.mxu0 0
      %896 = vmatpush2.bf16.msra.mxu0 0
      %897 = vmatprep.subr.bf16.mxu0 0
      %898 = vmatpush2.bf16.msra.mxu0 0
      %899 = vmatprep.subr.bf16.mxu0 0
      %900 = vmatpush2.bf16.msra.mxu0 0
      %901 = vmatprep.mubr.bf16.mxu0 0
      %902 = vmatmul.mubr.bf16.gmra.mxu0 %v807
      %v903 = vpop.f32.mrf.mxu0
      %v904 = vadd.f32 0.0, %v903
      %v905 = vpop.f32.mrf.mxu0
      %v906 = vpop.f32.mrf.mxu0
      %v907 = vadd.f32 0.0, %v906
      %v908 = vpop.f32.mrf.mxu0
      %909 = vmatprep.mubr.bf16.mxu0 0
      %910 = vmatmul.mubr.bf16.gmra.mxu0 %v809
      %v911 = vpop.f32.mrf.mxu0
      %v912 = vadd.f32 0.0, %v911
      %v913 = vpop.f32.mrf.mxu0
      %v914 = vpop.f32.mrf.mxu0
      %v915 = vadd.f32 0.0, %v914
      %v916 = vpop.f32.mrf.mxu0
      %917 = vmatprep.mubr.bf16.mxu0 0
      %918 = vmatmul.mubr.bf16.gmra.mxu0 %v811
      %v919 = vpop.f32.mrf.mxu0
      %v920 = vadd.f32 0.0, %v919
      %v921 = vpop.f32.mrf.mxu0
      %v922 = vpop.f32.mrf.mxu0
      %v923 = vadd.f32 0.0, %v922
      %v924 = vpop.f32.mrf.mxu0
      %925 = vmatprep.mubr.bf16.mxu0 0
      %926 = vmatmul.mubr.bf16.gmra.mxu0 %v813
      %v927 = vpop.f32.mrf.mxu0
      %v928 = vadd.f32 0.0, %v927
      %v929 = vpop.f32.mrf.mxu0
      %v930 = vpop.f32.mrf.mxu0
      %v931 = vadd.f32 0.0, %v930
      %v932 = vpop.f32.mrf.mxu0
      %933 = vmatprep.mubr.bf16.mxu0 0
      %934 = vmatmul.mubr.bf16.gmra.mxu0 %v815
      %v935 = vpop.f32.mrf.mxu0
      %v936 = vadd.f32 0.0, %v935
      %v937 = vpop.f32.mrf.mxu0
      %v938 = vpop.f32.mrf.mxu0
      %v939 = vadd.f32 0.0, %v938
      %v940 = vpop.f32.mrf.mxu0
      %941 = vdwg.mxu0
      %v942 = vadd.f32 %v738, %v904
      %v943 = vadd.f32 %v739, %v907
      %v944 = vadd.f32 %v740, %v912
      %v945 = vadd.f32 %v741, %v915
      %v946 = vadd.f32 %v742, %v920
      %v947 = vadd.f32 %v743, %v923
      %v948 = vadd.f32 %v744, %v928
      %v949 = vadd.f32 %v745, %v931
      %v950 = vadd.f32 %v746, %v936
      %v951 = vadd.f32 %v747, %v939
      %952 = vst [vmem:[#allocation2] sm:$0xff] %v942
      %953 = vst [vmem:[#allocation2 + $0x8] sm:$0xff] %v943
      %954 = vst [vmem:[#allocation2 + $0x10] sm:$0xff] %v944
      %955 = vst [vmem:[#allocation2 + $0x18] sm:$0xff] %v945
      %956 = vst [vmem:[#allocation2 + $0x20] sm:$0xff] %v946
      %957 = vst [vmem:[#allocation2 + $0x28] sm:$0xff] %v947
      %958 = vst [vmem:[#allocation2 + $0x30] sm:$0xff] %v948
      %959 = vst [vmem:[#allocation2 + $0x38] sm:$0xff] %v949
      %960 = vst [vmem:[#allocation2 + $0x40] sm:$0xff] %v950
      %961 = vst [vmem:[#allocation2 + $0x48] sm:$0xff] %v951
      %v962 = vld [vmem:[#allocation2] sm:$0xff]
      %v963 = vld [vmem:[#allocation2 + $0x8] sm:$0xff]
      %v964 = vld [vmem:[#allocation2 + $0x10] sm:$0xff]
      %v965 = vld [vmem:[#allocation2 + $0x18] sm:$0xff]
      %v966 = vld [vmem:[#allocation2 + $0x20] sm:$0xff]
      %v967 = vld [vmem:[#allocation2 + $0x28] sm:$0xff]
      %v968 = vld [vmem:[#allocation2 + $0x30] sm:$0xff]
      %v969 = vld [vmem:[#allocation2 + $0x38] sm:$0xff]
      %v970 = vld [vmem:[#allocation2 + $0x40] sm:$0xff]
      %v971 = vld [vmem:[#allocation2 + $0x48] sm:$0xff]
      %v972 = vld [vmem:[%s244 + $0x4] sm:$0xe]
      %v973 = vld [vmem:[%s244 + $0x8] sm:$0xf]
      %v974 = vld [vmem:[%s244 + $0xc] sm:$0xf]
      %v975 = vld [vmem:[%s244 + $0x10] sm:$0xf]
      %v976 = vld [vmem:[%s244 + $0x14] sm:$0xf]
      %v977 = vld [vmem:[%s244 + $0x18] sm:$0xf]
      %v978 = vld [vmem:[%s244 + $0x1c] sm:$0xf]
      %v979 = vld [vmem:[%s244 + $0x20] sm:$0xf]
      %v980 = vld [vmem:[%s244 + $0x24] sm:$0xf]
      %v981 = vld [vmem:[%s244 + $0x28] sm:$0xf]
      %v982 = vld [vmem:[%s244 + $0x2c] sm:$0x1]
      %s983 = scalar_lea.vmem %s248, 192
      %v984 = vld [vmem:[%s983] sm:$0xf]
      %v985 = vld [vmem:[%s983 + $0x4] sm:$0xf]
      %v986 = vld [vmem:[%s983 + $0x8] sm:$0xf]
      %v987 = vld [vmem:[%s983 + $0xc] sm:$0xf]
      %v988 = vld [vmem:[%s983 + $0x10] sm:$0xf]
      %v989 = vld [vmem:[%s983 + $0x14] sm:$0xf]
      %v990 = vld [vmem:[%s983 + $0x18] sm:$0xf]
      %v991 = vld [vmem:[%s983 + $0x1c] sm:$0xf]
      %v992 = vld [vmem:[%s983 + $0x20] sm:$0xf]
      %v993 = vld [vmem:[%s983 + $0x24] sm:$0xf]
      %v994 = vld [vmem:[%s983 + $0x28] sm:$0xf]
      %v995 = vld [vmem:[%s983 + $0x2c] sm:$0xf]
      %v996 = vld [vmem:[%s983 + $0x30] sm:$0xf]
      %v997 = vld [vmem:[%s983 + $0x34] sm:$0xf]
      %v998 = vld [vmem:[%s983 + $0x38] sm:$0xf]
      %v999 = vld [vmem:[%s983 + $0x3c] sm:$0xf]
      %v1011 = vunpack.c.l.b16 %v972
      %v1012 = vunpack.c.l.b16 %v973
      %v1013 = vunpack.c.l.b16 %v974
      %v1014 = vunpack.c.l.b16 %v975
      %v1015 = vunpack.c.l.b16 %v976
      %v1016 = vunpack.c.l.b16 %v977
      %v1017 = vunpack.c.l.b16 %v978
      %v1018 = vunpack.c.l.b16 %v979
      %v1019 = vunpack.c.l.b16 %v980
      %v1020 = vunpack.c.l.b16 %v981
      %v1021 = vunpack.c.l.b16 %v982
      %v1022 = vpack.c.b16 %v1012, %v1011
      %v1023 = vpack.c.b16 %v1014, %v1013
      %v1024 = vpack.c.b16 %v1016, %v1015
      %v1025 = vpack.c.b16 %v1018, %v1017
      %v1026 = vpack.c.b16 %v1020, %v1019
      %v1027 = vpack.c.b16 %v1021, %v1021
      %v1028 = vrot.slane %v1022, 1
      %v1029 = vrot.slane %v1023, 1
      %v1030 = vsel %vm804, %v1028, %v1029
      %v1031 = vrot.slane %v1024, 1
      %v1032 = vsel %vm804, %v1029, %v1031
      %v1033 = vrot.slane %v1025, 1
      %v1034 = vsel %vm804, %v1031, %v1033
      %v1035 = vrot.slane %v1026, 1
      %v1036 = vsel %vm804, %v1033, %v1035
      %v1037 = vrot.slane %v1027, 1
      %v1038 = vsel %vm804, %v1035, %v1037
      %v1060 = vunpack.c.l.b16 %v984
      %v1061 = vunpack.c.l.b16 %v985
      %v1062 = vunpack.c.l.b16 %v986
      %v1063 = vunpack.c.l.b16 %v987
      %v1064 = vunpack.c.l.b16 %v988
      %v1065 = vunpack.c.l.b16 %v989
      %v1066 = vunpack.c.l.b16 %v990
      %v1067 = vunpack.c.l.b16 %v991
      %v1068 = vunpack.c.l.b16 %v992
      %v1069 = vunpack.c.l.b16 %v993
      %v1070 = vunpack.c.l.b16 %v994
      %v1071 = vunpack.c.l.b16 %v995
      %v1072 = vunpack.c.l.b16 %v996
      %v1073 = vunpack.c.l.b16 %v997
      %v1074 = vunpack.c.l.b16 %v998
      %v1075 = vunpack.c.l.b16 %v999
      %v1076 = vpack.c.b16 %v1061, %v1060
      %v1077 = vpack.c.b16 %v1063, %v1062
      %v1078 = vpack.c.b16 %v1065, %v1064
      %v1079 = vpack.c.b16 %v1067, %v1066
      %v1080 = vpack.c.b16 %v1069, %v1068
      %v1081 = vpack.c.b16 %v1071, %v1070
      %v1082 = vpack.c.b16 %v1073, %v1072
      %v1083 = vpack.c.b16 %v1075, %v1074
      %1092 = vmatprep.subr.bf16.mxu0 0
      %1093 = vmatpush1.bf16.msra.mxu0 %v1083
      %1094 = vmatprep.subr.bf16.mxu0 0
      %1095 = vmatpush1.bf16.msra.mxu0 %v1082
      %1096 = vmatprep.subr.bf16.mxu0 0
      %1097 = vmatpush1.bf16.msra.mxu0 %v1081
      %1098 = vmatprep.subr.bf16.mxu0 0
      %1099 = vmatpush1.bf16.msra.mxu0 %v1080
      %1100 = vmatprep.subr.bf16.mxu0 0
      %1101 = vmatpush1.bf16.msra.mxu0 %v1079
      %1102 = vmatprep.subr.bf16.mxu0 0
      %1103 = vmatpush1.bf16.msra.mxu0 %v1078
      %1104 = vmatprep.subr.bf16.mxu0 0
      %1105 = vmatpush1.bf16.msra.mxu0 %v1077
      %1106 = vmatprep.subr.bf16.mxu0 0
      %1107 = vmatpush1.bf16.msra.mxu0 %v1076
      %1108 = vmatprep.subr.bf16.mxu0 0
      %1109 = vmatpush2.bf16.msra.mxu0 0
      %1110 = vmatprep.subr.bf16.mxu0 0
      %1111 = vmatpush2.bf16.msra.mxu0 0
      %1112 = vmatprep.subr.bf16.mxu0 0
      %1113 = vmatpush2.bf16.msra.mxu0 0
      %1114 = vmatprep.subr.bf16.mxu0 0
      %1115 = vmatpush2.bf16.msra.mxu0 0
      %1116 = vmatprep.subr.bf16.mxu0 0
      %1117 = vmatpush2.bf16.msra.mxu0 0
      %1118 = vmatprep.subr.bf16.mxu0 0
      %1119 = vmatpush2.bf16.msra.mxu0 0
      %1120 = vmatprep.subr.bf16.mxu0 0
      %1121 = vmatpush2.bf16.msra.mxu0 0
      %1122 = vmatprep.subr.bf16.mxu0 0
      %1123 = vmatpush2.bf16.msra.mxu0 0
      %1124 = vmatprep.mubr.bf16.mxu0 0
      %1125 = vmatmul.mubr.bf16.gmra.mxu0 %v1030
      %v1126 = vpop.f32.mrf.mxu0
      %v1127 = vadd.f32 0.0, %v1126
      %v1128 = vpop.f32.mrf.mxu0
      %v1129 = vpop.f32.mrf.mxu0
      %v1130 = vadd.f32 0.0, %v1129
      %v1131 = vpop.f32.mrf.mxu0
      %1132 = vmatprep.mubr.bf16.mxu0 0
      %1133 = vmatmul.mubr.bf16.gmra.mxu0 %v1032
      %v1134 = vpop.f32.mrf.mxu0
      %v1135 = vadd.f32 0.0, %v1134
      %v1136 = vpop.f32.mrf.mxu0
      %v1137 = vpop.f32.mrf.mxu0
      %v1138 = vadd.f32 0.0, %v1137
      %v1139 = vpop.f32.mrf.mxu0
      %1140 = vmatprep.mubr.bf16.mxu0 0
      %1141 = vmatmul.mubr.bf16.gmra.mxu0 %v1034
      %v1142 = vpop.f32.mrf.mxu0
      %v1143 = vadd.f32 0.0, %v1142
      %v1144 = vpop.f32.mrf.mxu0
      %v1145 = vpop.f32.mrf.mxu0
      %v1146 = vadd.f32 0.0, %v1145
      %v1147 = vpop.f32.mrf.mxu0
      %1148 = vmatprep.mubr.bf16.mxu0 0
      %1149 = vmatmul.mubr.bf16.gmra.mxu0 %v1036
      %v1150 = vpop.f32.mrf.mxu0
      %v1151 = vadd.f32 0.0, %v1150
      %v1152 = vpop.f32.mrf.mxu0
      %v1153 = vpop.f32.mrf.mxu0
      %v1154 = vadd.f32 0.0, %v1153
      %v1155 = vpop.f32.mrf.mxu0
      %1156 = vmatprep.mubr.bf16.mxu0 0
      %1157 = vmatmul.mubr.bf16.gmra.mxu0 %v1038
      %v1158 = vpop.f32.mrf.mxu0
      %v1159 = vadd.f32 0.0, %v1158
      %v1160 = vpop.f32.mrf.mxu0
      %v1161 = vpop.f32.mrf.mxu0
      %v1162 = vadd.f32 0.0, %v1161
      %v1163 = vpop.f32.mrf.mxu0
      %1164 = vdwg.mxu0
      %v1165 = vadd.f32 %v962, %v1127
      %v1166 = vadd.f32 %v963, %v1130
      %v1167 = vadd.f32 %v964, %v1135
      %v1168 = vadd.f32 %v965, %v1138
      %v1169 = vadd.f32 %v966, %v1143
      %v1170 = vadd.f32 %v967, %v1146
      %v1171 = vadd.f32 %v968, %v1151
      %v1172 = vadd.f32 %v969, %v1154
      %v1173 = vadd.f32 %v970, %v1159
      %v1174 = vadd.f32 %v971, %v1162
      %1175 = vst [vmem:[#allocation2] sm:$0xff] %v1165
      %1176 = vst [vmem:[#allocation2 + $0x8] sm:$0xff] %v1166
      %1177 = vst [vmem:[#allocation2 + $0x10] sm:$0xff] %v1167
      %1178 = vst [vmem:[#allocation2 + $0x18] sm:$0xff] %v1168
      %1179 = vst [vmem:[#allocation2 + $0x20] sm:$0xff] %v1169
      %1180 = vst [vmem:[#allocation2 + $0x28] sm:$0xff] %v1170
      %1181 = vst [vmem:[#allocation2 + $0x30] sm:$0xff] %v1171
      %1182 = vst [vmem:[#allocation2 + $0x38] sm:$0xff] %v1172
      %1183 = vst [vmem:[#allocation2 + $0x40] sm:$0xff] %v1173
      %1184 = vst [vmem:[#allocation2 + $0x48] sm:$0xff] %v1174
      %v1185 = vld [vmem:[#allocation2] sm:$0xff]
      %v1186 = vld [vmem:[#allocation2 + $0x8] sm:$0xff]
      %v1187 = vld [vmem:[#allocation2 + $0x10] sm:$0xff]
      %v1188 = vld [vmem:[#allocation2 + $0x18] sm:$0xff]
      %v1189 = vld [vmem:[#allocation2 + $0x20] sm:$0xff]
      %v1190 = vld [vmem:[#allocation2 + $0x28] sm:$0xff]
      %v1191 = vld [vmem:[#allocation2 + $0x30] sm:$0xff]
      %v1192 = vld [vmem:[#allocation2 + $0x38] sm:$0xff]
      %v1193 = vld [vmem:[#allocation2 + $0x40] sm:$0xff]
      %v1194 = vld [vmem:[#allocation2 + $0x48] sm:$0xff]
      %v1195 = vld [vmem:[%s244 + $0x4] sm:$0xe]
      %v1196 = vld [vmem:[%s244 + $0x8] sm:$0xf]
      %v1197 = vld [vmem:[%s244 + $0xc] sm:$0xf]
      %v1198 = vld [vmem:[%s244 + $0x10] sm:$0xf]
      %v1199 = vld [vmem:[%s244 + $0x14] sm:$0xf]
      %v1200 = vld [vmem:[%s244 + $0x18] sm:$0xf]
      %v1201 = vld [vmem:[%s244 + $0x1c] sm:$0xf]
      %v1202 = vld [vmem:[%s244 + $0x20] sm:$0xf]
      %v1203 = vld [vmem:[%s244 + $0x24] sm:$0xf]
      %v1204 = vld [vmem:[%s244 + $0x28] sm:$0xf]
      %v1205 = vld [vmem:[%s244 + $0x2c] sm:$0x3]
      %s1206 = scalar_lea.vmem %s248, 256
      %v1207 = vld [vmem:[%s1206] sm:$0xf]
      %v1208 = vld [vmem:[%s1206 + $0x4] sm:$0xf]
      %v1209 = vld [vmem:[%s1206 + $0x8] sm:$0xf]
      %v1210 = vld [vmem:[%s1206 + $0xc] sm:$0xf]
      %v1211 = vld [vmem:[%s1206 + $0x10] sm:$0xf]
      %v1212 = vld [vmem:[%s1206 + $0x14] sm:$0xf]
      %v1213 = vld [vmem:[%s1206 + $0x18] sm:$0xf]
      %v1214 = vld [vmem:[%s1206 + $0x1c] sm:$0xf]
      %v1215 = vld [vmem:[%s1206 + $0x20] sm:$0xf]
      %v1216 = vld [vmem:[%s1206 + $0x24] sm:$0xf]
      %v1217 = vld [vmem:[%s1206 + $0x28] sm:$0xf]
      %v1218 = vld [vmem:[%s1206 + $0x2c] sm:$0xf]
      %v1219 = vld [vmem:[%s1206 + $0x30] sm:$0xf]
      %v1220 = vld [vmem:[%s1206 + $0x34] sm:$0xf]
      %v1221 = vld [vmem:[%s1206 + $0x38] sm:$0xf]
      %v1222 = vld [vmem:[%s1206 + $0x3c] sm:$0xf]
      %v1234 = vunpack.c.l.b16 %v1195
      %v1235 = vunpack.c.l.b16 %v1196
      %v1236 = vunpack.c.l.b16 %v1197
      %v1237 = vunpack.c.l.b16 %v1198
      %v1238 = vunpack.c.l.b16 %v1199
      %v1239 = vunpack.c.l.b16 %v1200
      %v1240 = vunpack.c.l.b16 %v1201
      %v1241 = vunpack.c.l.b16 %v1202
      %v1242 = vunpack.c.l.b16 %v1203
      %v1243 = vunpack.c.l.b16 %v1204
      %v1244 = vunpack.c.l.b16 %v1205
      %v1245 = vpack.c.b16 %v1235, %v1234
      %v1246 = vpack.c.b16 %v1237, %v1236
      %v1247 = vpack.c.b16 %v1239, %v1238
      %v1248 = vpack.c.b16 %v1241, %v1240
      %v1249 = vpack.c.b16 %v1243, %v1242
      %v1250 = vpack.c.b16 %v1244, %v1244
      %vm1251 = vsmask.f32 6400
      %v1253 = vshrl.u32 %v1245, 16
      %v1255 = vrot.slane %v1253, 1
      %v1256 = vshll.u32 %v1245, 16
      %v1258 = vrot.slane %v1256, 2
      %v1259 = vor.u32 %v1255, %v1258
      %v1261 = vshrl.u32 %v1246, 16
      %v1263 = vrot.slane %v1261, 1
      %v1264 = vshll.u32 %v1246, 16
      %v1266 = vrot.slane %v1264, 2
      %v1267 = vor.u32 %v1263, %v1266
      %v1268 = vsel %vm1251, %v1259, %v1267
      %v1270 = vshrl.u32 %v1247, 16
      %v1272 = vrot.slane %v1270, 1
      %v1273 = vshll.u32 %v1247, 16
      %v1275 = vrot.slane %v1273, 2
      %v1276 = vor.u32 %v1272, %v1275
      %v1277 = vsel %vm1251, %v1267, %v1276
      %v1279 = vshrl.u32 %v1248, 16
      %v1281 = vrot.slane %v1279, 1
      %v1282 = vshll.u32 %v1248, 16
      %v1284 = vrot.slane %v1282, 2
      %v1285 = vor.u32 %v1281, %v1284
      %v1286 = vsel %vm1251, %v1276, %v1285
      %v1288 = vshrl.u32 %v1249, 16
      %v1290 = vrot.slane %v1288, 1
      %v1291 = vshll.u32 %v1249, 16
      %v1293 = vrot.slane %v1291, 2
      %v1294 = vor.u32 %v1290, %v1293
      %v1295 = vsel %vm1251, %v1285, %v1294
      %v1297 = vshrl.u32 %v1250, 16
      %v1299 = vrot.slane %v1297, 1
      %v1300 = vshll.u32 %v1250, 16
      %v1302 = vrot.slane %v1300, 2
      %v1303 = vor.u32 %v1299, %v1302
      %v1304 = vsel %vm1251, %v1294, %v1303
      %v1326 = vunpack.c.l.b16 %v1207
      %v1327 = vunpack.c.l.b16 %v1208
      %v1328 = vunpack.c.l.b16 %v1209
      %v1329 = vunpack.c.l.b16 %v1210
      %v1330 = vunpack.c.l.b16 %v1211
      %v1331 = vunpack.c.l.b16 %v1212
      %v1332 = vunpack.c.l.b16 %v1213
      %v1333 = vunpack.c.l.b16 %v1214
      %v1334 = vunpack.c.l.b16 %v1215
      %v1335 = vunpack.c.l.b16 %v1216
      %v1336 = vunpack.c.l.b16 %v1217
      %v1337 = vunpack.c.l.b16 %v1218
      %v1338 = vunpack.c.l.b16 %v1219
      %v1339 = vunpack.c.l.b16 %v1220
      %v1340 = vunpack.c.l.b16 %v1221
      %v1341 = vunpack.c.l.b16 %v1222
      %v1342 = vpack.c.b16 %v1327, %v1326
      %v1343 = vpack.c.b16 %v1329, %v1328
      %v1344 = vpack.c.b16 %v1331, %v1330
      %v1345 = vpack.c.b16 %v1333, %v1332
      %v1346 = vpack.c.b16 %v1335, %v1334
      %v1347 = vpack.c.b16 %v1337, %v1336
      %v1348 = vpack.c.b16 %v1339, %v1338
      %v1349 = vpack.c.b16 %v1341, %v1340
      %1358 = vmatprep.subr.bf16.mxu0 0
      %1359 = vmatpush1.bf16.msra.mxu0 %v1349
      %1360 = vmatprep.subr.bf16.mxu0 0
      %1361 = vmatpush1.bf16.msra.mxu0 %v1348
      %1362 = vmatprep.subr.bf16.mxu0 0
      %1363 = vmatpush1.bf16.msra.mxu0 %v1347
      %1364 = vmatprep.subr.bf16.mxu0 0
      %1365 = vmatpush1.bf16.msra.mxu0 %v1346
      %1366 = vmatprep.subr.bf16.mxu0 0
      %1367 = vmatpush1.bf16.msra.mxu0 %v1345
      %1368 = vmatprep.subr.bf16.mxu0 0
      %1369 = vmatpush1.bf16.msra.mxu0 %v1344
      %1370 = vmatprep.subr.bf16.mxu0 0
      %1371 = vmatpush1.bf16.msra.mxu0 %v1343
      %1372 = vmatprep.subr.bf16.mxu0 0
      %1373 = vmatpush1.bf16.msra.mxu0 %v1342
      %1374 = vmatprep.subr.bf16.mxu0 0
      %1375 = vmatpush2.bf16.msra.mxu0 0
      %1376 = vmatprep.subr.bf16.mxu0 0
      %1377 = vmatpush2.bf16.msra.mxu0 0
      %1378 = vmatprep.subr.bf16.mxu0 0
      %1379 = vmatpush2.bf16.msra.mxu0 0
      %1380 = vmatprep.subr.bf16.mxu0 0
      %1381 = vmatpush2.bf16.msra.mxu0 0
      %1382 = vmatprep.subr.bf16.mxu0 0
      %1383 = vmatpush2.bf16.msra.mxu0 0
      %1384 = vmatprep.subr.bf16.mxu0 0
      %1385 = vmatpush2.bf16.msra.mxu0 0
      %1386 = vmatprep.subr.bf16.mxu0 0
      %1387 = vmatpush2.bf16.msra.mxu0 0
      %1388 = vmatprep.subr.bf16.mxu0 0
      %1389 = vmatpush2.bf16.msra.mxu0 0
      %1390 = vmatprep.mubr.bf16.mxu0 0
      %1391 = vmatmul.mubr.bf16.gmra.mxu0 %v1268
      %v1392 = vpop.f32.mrf.mxu0
      %v1393 = vadd.f32 0.0, %v1392
      %v1394 = vpop.f32.mrf.mxu0
      %v1395 = vpop.f32.mrf.mxu0
      %v1396 = vadd.f32 0.0, %v1395
      %v1397 = vpop.f32.mrf.mxu0
      %1398 = vmatprep.mubr.bf16.mxu0 0
      %1399 = vmatmul.mubr.bf16.gmra.mxu0 %v1277
      %v1400 = vpop.f32.mrf.mxu0
      %v1401 = vadd.f32 0.0, %v1400
      %v1402 = vpop.f32.mrf.mxu0
      %v1403 = vpop.f32.mrf.mxu0
      %v1404 = vadd.f32 0.0, %v1403
      %v1405 = vpop.f32.mrf.mxu0
      %1406 = vmatprep.mubr.bf16.mxu0 0
      %1407 = vmatmul.mubr.bf16.gmra.mxu0 %v1286
      %v1408 = vpop.f32.mrf.mxu0
      %v1409 = vadd.f32 0.0, %v1408
      %v1410 = vpop.f32.mrf.mxu0
      %v1411 = vpop.f32.mrf.mxu0
      %v1412 = vadd.f32 0.0, %v1411
      %v1413 = vpop.f32.mrf.mxu0
      %1414 = vmatprep.mubr.bf16.mxu0 0
      %1415 = vmatmul.mubr.bf16.gmra.mxu0 %v1295
      %v1416 = vpop.f32.mrf.mxu0
      %v1417 = vadd.f32 0.0, %v1416
      %v1418 = vpop.f32.mrf.mxu0
      %v1419 = vpop.f32.mrf.mxu0
      %v1420 = vadd.f32 0.0, %v1419
      %v1421 = vpop.f32.mrf.mxu0
      %1422 = vmatprep.mubr.bf16.mxu0 0
      %1423 = vmatmul.mubr.bf16.gmra.mxu0 %v1304
      %v1424 = vpop.f32.mrf.mxu0
      %v1425 = vadd.f32 0.0, %v1424
      %v1426 = vpop.f32.mrf.mxu0
      %v1427 = vpop.f32.mrf.mxu0
      %v1428 = vadd.f32 0.0, %v1427
      %v1429 = vpop.f32.mrf.mxu0
      %1430 = vdwg.mxu0
      %v1431 = vadd.f32 %v1185, %v1393
      %v1432 = vadd.f32 %v1186, %v1396
      %v1433 = vadd.f32 %v1187, %v1401
      %v1434 = vadd.f32 %v1188, %v1404
      %v1435 = vadd.f32 %v1189, %v1409
      %v1436 = vadd.f32 %v1190, %v1412
      %v1437 = vadd.f32 %v1191, %v1417
      %v1438 = vadd.f32 %v1192, %v1420
      %v1439 = vadd.f32 %v1193, %v1425
      %v1440 = vadd.f32 %v1194, %v1428
      %1441 = vst [vmem:[#allocation2] sm:$0xff] %v1431
      %1442 = vst [vmem:[#allocation2 + $0x8] sm:$0xff] %v1432
      %1443 = vst [vmem:[#allocation2 + $0x10] sm:$0xff] %v1433
      %1444 = vst [vmem:[#allocation2 + $0x18] sm:$0xff] %v1434
      %1445 = vst [vmem:[#allocation2 + $0x20] sm:$0xff] %v1435
      %1446 = vst [vmem:[#allocation2 + $0x28] sm:$0xff] %v1436
      %1447 = vst [vmem:[#allocation2 + $0x30] sm:$0xff] %v1437
      %1448 = vst [vmem:[#allocation2 + $0x38] sm:$0xff] %v1438
      %1449 = vst [vmem:[#allocation2 + $0x40] sm:$0xff] %v1439
      %1450 = vst [vmem:[#allocation2 + $0x48] sm:$0xff] %v1440
      %v1451 = vld [vmem:[#allocation2] sm:$0xff]
      %v1452 = vld [vmem:[#allocation2 + $0x8] sm:$0xff]
      %v1453 = vld [vmem:[#allocation2 + $0x10] sm:$0xff]
      %v1454 = vld [vmem:[#allocation2 + $0x18] sm:$0xff]
      %v1455 = vld [vmem:[#allocation2 + $0x20] sm:$0xff]
      %v1456 = vld [vmem:[#allocation2 + $0x28] sm:$0xff]
      %v1457 = vld [vmem:[#allocation2 + $0x30] sm:$0xff]
      %v1458 = vld [vmem:[#allocation2 + $0x38] sm:$0xff]
      %v1459 = vld [vmem:[#allocation2 + $0x40] sm:$0xff]
      %v1460 = vld [vmem:[#allocation2 + $0x48] sm:$0xff]
      %v1461 = vld [vmem:[%s244 + $0x4] sm:$0xc]
      %v1462 = vld [vmem:[%s244 + $0x8] sm:$0xf]
      %v1463 = vld [vmem:[%s244 + $0xc] sm:$0xf]
      %v1464 = vld [vmem:[%s244 + $0x10] sm:$0xf]
      %v1465 = vld [vmem:[%s244 + $0x14] sm:$0xf]
      %v1466 = vld [vmem:[%s244 + $0x18] sm:$0xf]
      %v1467 = vld [vmem:[%s244 + $0x1c] sm:$0xf]
      %v1468 = vld [vmem:[%s244 + $0x20] sm:$0xf]
      %v1469 = vld [vmem:[%s244 + $0x24] sm:$0xf]
      %v1470 = vld [vmem:[%s244 + $0x28] sm:$0xf]
      %v1471 = vld [vmem:[%s244 + $0x2c] sm:$0x3]
      %s1472 = scalar_lea.vmem %s248, 320
      %v1473 = vld [vmem:[%s1472] sm:$0xf]
      %v1474 = vld [vmem:[%s1472 + $0x4] sm:$0xf]
      %v1475 = vld [vmem:[%s1472 + $0x8] sm:$0xf]
      %v1476 = vld [vmem:[%s1472 + $0xc] sm:$0xf]
      %v1477 = vld [vmem:[%s1472 + $0x10] sm:$0xf]
      %v1478 = vld [vmem:[%s1472 + $0x14] sm:$0xf]
      %v1479 = vld [vmem:[%s1472 + $0x18] sm:$0xf]
      %v1480 = vld [vmem:[%s1472 + $0x1c] sm:$0xf]
      %v1481 = vld [vmem:[%s1472 + $0x20] sm:$0xf]
      %v1482 = vld [vmem:[%s1472 + $0x24] sm:$0xf]
      %v1483 = vld [vmem:[%s1472 + $0x28] sm:$0xf]
      %v1484 = vld [vmem:[%s1472 + $0x2c] sm:$0xf]
      %v1485 = vld [vmem:[%s1472 + $0x30] sm:$0xf]
      %v1486 = vld [vmem:[%s1472 + $0x34] sm:$0xf]
      %v1487 = vld [vmem:[%s1472 + $0x38] sm:$0xf]
      %v1488 = vld [vmem:[%s1472 + $0x3c] sm:$0xf]
      %v1500 = vunpack.c.l.b16 %v1461
      %v1501 = vunpack.c.l.b16 %v1462
      %v1502 = vunpack.c.l.b16 %v1463
      %v1503 = vunpack.c.l.b16 %v1464
      %v1504 = vunpack.c.l.b16 %v1465
      %v1505 = vunpack.c.l.b16 %v1466
      %v1506 = vunpack.c.l.b16 %v1467
      %v1507 = vunpack.c.l.b16 %v1468
      %v1508 = vunpack.c.l.b16 %v1469
      %v1509 = vunpack.c.l.b16 %v1470
      %v1510 = vunpack.c.l.b16 %v1471
      %v1511 = vpack.c.b16 %v1501, %v1500
      %v1512 = vpack.c.b16 %v1503, %v1502
      %v1513 = vpack.c.b16 %v1505, %v1504
      %v1514 = vpack.c.b16 %v1507, %v1506
      %v1515 = vpack.c.b16 %v1509, %v1508
      %v1516 = vpack.c.b16 %v1510, %v1510
      %vm1517 = vcmask 1045504
      %v1518 = vrot.slane %v1511, 2
      %v1519 = vrot.slane %v1512, 2
      %v1520 = vsel %vm1517, %v1518, %v1519
      %v1521 = vrot.slane %v1513, 2
      %v1522 = vsel %vm1517, %v1519, %v1521
      %v1523 = vrot.slane %v1514, 2
      %v1524 = vsel %vm1517, %v1521, %v1523
      %v1525 = vrot.slane %v1515, 2
      %v1526 = vsel %vm1517, %v1523, %v1525
      %v1527 = vrot.slane %v1516, 2
      %v1528 = vsel %vm1517, %v1525, %v1527
      %v1550 = vunpack.c.l.b16 %v1473
      %v1551 = vunpack.c.l.b16 %v1474
      %v1552 = vunpack.c.l.b16 %v1475
      %v1553 = vunpack.c.l.b16 %v1476
      %v1554 = vunpack.c.l.b16 %v1477
      %v1555 = vunpack.c.l.b16 %v1478
      %v1556 = vunpack.c.l.b16 %v1479
      %v1557 = vunpack.c.l.b16 %v1480
      %v1558 = vunpack.c.l.b16 %v1481
      %v1559 = vunpack.c.l.b16 %v1482
      %v1560 = vunpack.c.l.b16 %v1483
      %v1561 = vunpack.c.l.b16 %v1484
      %v1562 = vunpack.c.l.b16 %v1485
      %v1563 = vunpack.c.l.b16 %v1486
      %v1564 = vunpack.c.l.b16 %v1487
      %v1565 = vunpack.c.l.b16 %v1488
      %v1566 = vpack.c.b16 %v1551, %v1550
      %v1567 = vpack.c.b16 %v1553, %v1552
      %v1568 = vpack.c.b16 %v1555, %v1554
      %v1569 = vpack.c.b16 %v1557, %v1556
      %v1570 = vpack.c.b16 %v1559, %v1558
      %v1571 = vpack.c.b16 %v1561, %v1560
      %v1572 = vpack.c.b16 %v1563, %v1562
      %v1573 = vpack.c.b16 %v1565, %v1564
      %1582 = vmatprep.subr.bf16.mxu0 0
      %1583 = vmatpush1.bf16.msra.mxu0 %v1573
      %1584 = vmatprep.subr.bf16.mxu0 0
      %1585 = vmatpush1.bf16.msra.mxu0 %v1572
      %1586 = vmatprep.subr.bf16.mxu0 0
      %1587 = vmatpush1.bf16.msra.mxu0 %v1571
      %1588 = vmatprep.subr.bf16.mxu0 0
      %1589 = vmatpush1.bf16.msra.mxu0 %v1570
      %1590 = vmatprep.subr.bf16.mxu0 0
      %1591 = vmatpush1.bf16.msra.mxu0 %v1569
      %1592 = vmatprep.subr.bf16.mxu0 0
      %1593 = vmatpush1.bf16.msra.mxu0 %v1568
      %1594 = vmatprep.subr.bf16.mxu0 0
      %1595 = vmatpush1.bf16.msra.mxu0 %v1567
      %1596 = vmatprep.subr.bf16.mxu0 0
      %1597 = vmatpush1.bf16.msra.mxu0 %v1566
      %1598 = vmatprep.subr.bf16.mxu0 0
      %1599 = vmatpush2.bf16.msra.mxu0 0
      %1600 = vmatprep.subr.bf16.mxu0 0
      %1601 = vmatpush2.bf16.msra.mxu0 0
      %1602 = vmatprep.subr.bf16.mxu0 0
      %1603 = vmatpush2.bf16.msra.mxu0 0
      %1604 = vmatprep.subr.bf16.mxu0 0
      %1605 = vmatpush2.bf16.msra.mxu0 0
      %1606 = vmatprep.subr.bf16.mxu0 0
      %1607 = vmatpush2.bf16.msra.mxu0 0
      %1608 = vmatprep.subr.bf16.mxu0 0
      %1609 = vmatpush2.bf16.msra.mxu0 0
      %1610 = vmatprep.subr.bf16.mxu0 0
      %1611 = vmatpush2.bf16.msra.mxu0 0
      %1612 = vmatprep.subr.bf16.mxu0 0
      %1613 = vmatpush2.bf16.msra.mxu0 0
      %1614 = vmatprep.mubr.bf16.mxu0 0
      %1615 = vmatmul.mubr.bf16.gmra.mxu0 %v1520
      %v1616 = vpop.f32.mrf.mxu0
      %v1617 = vadd.f32 0.0, %v1616
      %v1618 = vpop.f32.mrf.mxu0
      %v1619 = vpop.f32.mrf.mxu0
      %v1620 = vadd.f32 0.0, %v1619
      %v1621 = vpop.f32.mrf.mxu0
      %1622 = vmatprep.mubr.bf16.mxu0 0
      %1623 = vmatmul.mubr.bf16.gmra.mxu0 %v1522
      %v1624 = vpop.f32.mrf.mxu0
      %v1625 = vadd.f32 0.0, %v1624
      %v1626 = vpop.f32.mrf.mxu0
      %v1627 = vpop.f32.mrf.mxu0
      %v1628 = vadd.f32 0.0, %v1627
      %v1629 = vpop.f32.mrf.mxu0
      %1630 = vmatprep.mubr.bf16.mxu0 0
      %1631 = vmatmul.mubr.bf16.gmra.mxu0 %v1524
      %v1632 = vpop.f32.mrf.mxu0
      %v1633 = vadd.f32 0.0, %v1632
      %v1634 = vpop.f32.mrf.mxu0
      %v1635 = vpop.f32.mrf.mxu0
      %v1636 = vadd.f32 0.0, %v1635
      %v1637 = vpop.f32.mrf.mxu0
      %1638 = vmatprep.mubr.bf16.mxu0 0
      %1639 = vmatmul.mubr.bf16.gmra.mxu0 %v1526
      %v1640 = vpop.f32.mrf.mxu0
      %v1641 = vadd.f32 0.0, %v1640
      %v1642 = vpop.f32.mrf.mxu0
      %v1643 = vpop.f32.mrf.mxu0
      %v1644 = vadd.f32 0.0, %v1643
      %v1645 = vpop.f32.mrf.mxu0
      %1646 = vmatprep.mubr.bf16.mxu0 0
      %1647 = vmatmul.mubr.bf16.gmra.mxu0 %v1528
      %v1648 = vpop.f32.mrf.mxu0
      %v1649 = vadd.f32 0.0, %v1648
      %v1650 = vpop.f32.mrf.mxu0
      %v1651 = vpop.f32.mrf.mxu0
      %v1652 = vadd.f32 0.0, %v1651
      %v1653 = vpop.f32.mrf.mxu0
      %1654 = vdwg.mxu0
      %v1655 = vadd.f32 %v1451, %v1617
      %v1656 = vadd.f32 %v1452, %v1620
      %v1657 = vadd.f32 %v1453, %v1625
      %v1658 = vadd.f32 %v1454, %v1628
      %v1659 = vadd.f32 %v1455, %v1633
      %v1660 = vadd.f32 %v1456, %v1636
      %v1661 = vadd.f32 %v1457, %v1641
      %v1662 = vadd.f32 %v1458, %v1644
      %v1663 = vadd.f32 %v1459, %v1649
      %v1664 = vadd.f32 %v1460, %v1652
      %1665 = vst [vmem:[#allocation2] sm:$0xff] %v1655
      %1666 = vst [vmem:[#allocation2 + $0x8] sm:$0xff] %v1656
      %1667 = vst [vmem:[#allocation2 + $0x10] sm:$0xff] %v1657
      %1668 = vst [vmem:[#allocation2 + $0x18] sm:$0xff] %v1658
      %1669 = vst [vmem:[#allocation2 + $0x20] sm:$0xff] %v1659
      %1670 = vst [vmem:[#allocation2 + $0x28] sm:$0xff] %v1660
      %1671 = vst [vmem:[#allocation2 + $0x30] sm:$0xff] %v1661
      %1672 = vst [vmem:[#allocation2 + $0x38] sm:$0xff] %v1662
      %1673 = vst [vmem:[#allocation2 + $0x40] sm:$0xff] %v1663
      %1674 = vst [vmem:[#allocation2 + $0x48] sm:$0xff] %v1664
      %v1675 = vld [vmem:[#allocation2] sm:$0xff]
      %v1676 = vld [vmem:[#allocation2 + $0x8] sm:$0xff]
      %v1677 = vld [vmem:[#allocation2 + $0x10] sm:$0xff]
      %v1678 = vld [vmem:[#allocation2 + $0x18] sm:$0xff]
      %v1679 = vld [vmem:[#allocation2 + $0x20] sm:$0xff]
      %v1680 = vld [vmem:[#allocation2 + $0x28] sm:$0xff]
      %v1681 = vld [vmem:[#allocation2 + $0x30] sm:$0xff]
      %v1682 = vld [vmem:[#allocation2 + $0x38] sm:$0xff]
      %v1683 = vld [vmem:[#allocation2 + $0x40] sm:$0xff]
      %v1684 = vld [vmem:[#allocation2 + $0x48] sm:$0xff]
      %v1685 = vld [vmem:[%s244 + $0x8] sm:$0xc]
      %v1686 = vld [vmem:[%s244 + $0xc] sm:$0xf]
      %v1687 = vld [vmem:[%s244 + $0x10] sm:$0xf]
      %v1688 = vld [vmem:[%s244 + $0x14] sm:$0xf]
      %v1689 = vld [vmem:[%s244 + $0x18] sm:$0xf]
      %v1690 = vld [vmem:[%s244 + $0x1c] sm:$0xf]
      %v1691 = vld [vmem:[%s244 + $0x20] sm:$0xf]
      %v1692 = vld [vmem:[%s244 + $0x24] sm:$0xf]
      %v1693 = vld [vmem:[%s244 + $0x28] sm:$0xf]
      %v1694 = vld [vmem:[%s244 + $0x2c] sm:$0xf]
      %v1695 = vld [vmem:[%s244 + $0x30] sm:$0x3]
      %s1696 = scalar_lea.vmem %s248, 384
      %v1697 = vld [vmem:[%s1696] sm:$0xf]
      %v1698 = vld [vmem:[%s1696 + $0x4] sm:$0xf]
      %v1699 = vld [vmem:[%s1696 + $0x8] sm:$0xf]
      %v1700 = vld [vmem:[%s1696 + $0xc] sm:$0xf]
      %v1701 = vld [vmem:[%s1696 + $0x10] sm:$0xf]
      %v1702 = vld [vmem:[%s1696 + $0x14] sm:$0xf]
      %v1703 = vld [vmem:[%s1696 + $0x18] sm:$0xf]
      %v1704 = vld [vmem:[%s1696 + $0x1c] sm:$0xf]
      %v1705 = vld [vmem:[%s1696 + $0x20] sm:$0xf]
      %v1706 = vld [vmem:[%s1696 + $0x24] sm:$0xf]
      %v1707 = vld [vmem:[%s1696 + $0x28] sm:$0xf]
      %v1708 = vld [vmem:[%s1696 + $0x2c] sm:$0xf]
      %v1709 = vld [vmem:[%s1696 + $0x30] sm:$0xf]
      %v1710 = vld [vmem:[%s1696 + $0x34] sm:$0xf]
      %v1711 = vld [vmem:[%s1696 + $0x38] sm:$0xf]
      %v1712 = vld [vmem:[%s1696 + $0x3c] sm:$0xf]
      %v1724 = vunpack.c.l.b16 %v1685
      %v1725 = vunpack.c.l.b16 %v1686
      %v1726 = vunpack.c.l.b16 %v1687
      %v1727 = vunpack.c.l.b16 %v1688
      %v1728 = vunpack.c.l.b16 %v1689
      %v1729 = vunpack.c.l.b16 %v1690
      %v1730 = vunpack.c.l.b16 %v1691
      %v1731 = vunpack.c.l.b16 %v1692
      %v1732 = vunpack.c.l.b16 %v1693
      %v1733 = vunpack.c.l.b16 %v1694
      %v1734 = vunpack.c.l.b16 %v1695
      %v1735 = vpack.c.b16 %v1725, %v1724
      %v1736 = vpack.c.b16 %v1727, %v1726
      %v1737 = vpack.c.b16 %v1729, %v1728
      %v1738 = vpack.c.b16 %v1731, %v1730
      %v1739 = vpack.c.b16 %v1733, %v1732
      %v1740 = vpack.c.b16 %v1734, %v1734
      %v1741 = vrot.slane %v1735, 2
      %v1742 = vrot.slane %v1736, 2
      %v1743 = vsel %vm1517, %v1741, %v1742
      %v1744 = vrot.slane %v1737, 2
      %v1745 = vsel %vm1517, %v1742, %v1744
      %v1746 = vrot.slane %v1738, 2
      %v1747 = vsel %vm1517, %v1744, %v1746
      %v1748 = vrot.slane %v1739, 2
      %v1749 = vsel %vm1517, %v1746, %v1748
      %v1750 = vrot.slane %v1740, 2
      %v1751 = vsel %vm1517, %v1748, %v1750
      %v1773 = vunpack.c.l.b16 %v1697
      %v1774 = vunpack.c.l.b16 %v1698
      %v1775 = vunpack.c.l.b16 %v1699
      %v1776 = vunpack.c.l.b16 %v1700
      %v1777 = vunpack.c.l.b16 %v1701
      %v1778 = vunpack.c.l.b16 %v1702
      %v1779 = vunpack.c.l.b16 %v1703
      %v1780 = vunpack.c.l.b16 %v1704
      %v1781 = vunpack.c.l.b16 %v1705
      %v1782 = vunpack.c.l.b16 %v1706
      %v1783 = vunpack.c.l.b16 %v1707
      %v1784 = vunpack.c.l.b16 %v1708
      %v1785 = vunpack.c.l.b16 %v1709
      %v1786 = vunpack.c.l.b16 %v1710
      %v1787 = vunpack.c.l.b16 %v1711
      %v1788 = vunpack.c.l.b16 %v1712
      %v1789 = vpack.c.b16 %v1774, %v1773
      %v1790 = vpack.c.b16 %v1776, %v1775
      %v1791 = vpack.c.b16 %v1778, %v1777
      %v1792 = vpack.c.b16 %v1780, %v1779
      %v1793 = vpack.c.b16 %v1782, %v1781
      %v1794 = vpack.c.b16 %v1784, %v1783
      %v1795 = vpack.c.b16 %v1786, %v1785
      %v1796 = vpack.c.b16 %v1788, %v1787
      %1805 = vmatprep.subr.bf16.mxu0 0
      %1806 = vmatpush1.bf16.msra.mxu0 %v1796
      %1807 = vmatprep.subr.bf16.mxu0 0
      %1808 = vmatpush1.bf16.msra.mxu0 %v1795
      %1809 = vmatprep.subr.bf16.mxu0 0
      %1810 = vmatpush1.bf16.msra.mxu0 %v1794
      %1811 = vmatprep.subr.bf16.mxu0 0
      %1812 = vmatpush1.bf16.msra.mxu0 %v1793
      %1813 = vmatprep.subr.bf16.mxu0 0
      %1814 = vmatpush1.bf16.msra.mxu0 %v1792
      %1815 = vmatprep.subr.bf16.mxu0 0
      %1816 = vmatpush1.bf16.msra.mxu0 %v1791
      %1817 = vmatprep.subr.bf16.mxu0 0
      %1818 = vmatpush1.bf16.msra.mxu0 %v1790
      %1819 = vmatprep.subr.bf16.mxu0 0
      %1820 = vmatpush1.bf16.msra.mxu0 %v1789
      %1821 = vmatprep.subr.bf16.mxu0 0
      %1822 = vmatpush2.bf16.msra.mxu0 0
      %1823 = vmatprep.subr.bf16.mxu0 0
      %1824 = vmatpush2.bf16.msra.mxu0 0
      %1825 = vmatprep.subr.bf16.mxu0 0
      %1826 = vmatpush2.bf16.msra.mxu0 0
      %1827 = vmatprep.subr.bf16.mxu0 0
      %1828 = vmatpush2.bf16.msra.mxu0 0
      %1829 = vmatprep.subr.bf16.mxu0 0
      %1830 = vmatpush2.bf16.msra.mxu0 0
      %1831 = vmatprep.subr.bf16.mxu0 0
      %1832 = vmatpush2.bf16.msra.mxu0 0
      %1833 = vmatprep.subr.bf16.mxu0 0
      %1834 = vmatpush2.bf16.msra.mxu0 0
      %1835 = vmatprep.subr.bf16.mxu0 0
      %1836 = vmatpush2.bf16.msra.mxu0 0
      %1837 = vmatprep.mubr.bf16.mxu0 0
      %1838 = vmatmul.mubr.bf16.gmra.mxu0 %v1743
      %v1839 = vpop.f32.mrf.mxu0
      %v1840 = vadd.f32 0.0, %v1839
      %v1841 = vpop.f32.mrf.mxu0
      %v1842 = vpop.f32.mrf.mxu0
      %v1843 = vadd.f32 0.0, %v1842
      %v1844 = vpop.f32.mrf.mxu0
      %1845 = vmatprep.mubr.bf16.mxu0 0
      %1846 = vmatmul.mubr.bf16.gmra.mxu0 %v1745
      %v1847 = vpop.f32.mrf.mxu0
      %v1848 = vadd.f32 0.0, %v1847
      %v1849 = vpop.f32.mrf.mxu0
      %v1850 = vpop.f32.mrf.mxu0
      %v1851 = vadd.f32 0.0, %v1850
      %v1852 = vpop.f32.mrf.mxu0
      %1853 = vmatprep.mubr.bf16.mxu0 0
      %1854 = vmatmul.mubr.bf16.gmra.mxu0 %v1747
      %v1855 = vpop.f32.mrf.mxu0
      %v1856 = vadd.f32 0.0, %v1855
      %v1857 = vpop.f32.mrf.mxu0
      %v1858 = vpop.f32.mrf.mxu0
      %v1859 = vadd.f32 0.0, %v1858
      %v1860 = vpop.f32.mrf.mxu0
      %1861 = vmatprep.mubr.bf16.mxu0 0
      %1862 = vmatmul.mubr.bf16.gmra.mxu0 %v1749
      %v1863 = vpop.f32.mrf.mxu0
      %v1864 = vadd.f32 0.0, %v1863
      %v1865 = vpop.f32.mrf.mxu0
      %v1866 = vpop.f32.mrf.mxu0
      %v1867 = vadd.f32 0.0, %v1866
      %v1868 = vpop.f32.mrf.mxu0
      %1869 = vmatprep.mubr.bf16.mxu0 0
      %1870 = vmatmul.mubr.bf16.gmra.mxu0 %v1751
      %v1871 = vpop.f32.mrf.mxu0
      %v1872 = vadd.f32 0.0, %v1871
      %v1873 = vpop.f32.mrf.mxu0
      %v1874 = vpop.f32.mrf.mxu0
      %v1875 = vadd.f32 0.0, %v1874
      %v1876 = vpop.f32.mrf.mxu0
      %1877 = vdwg.mxu0
      %v1878 = vadd.f32 %v1675, %v1840
      %v1879 = vadd.f32 %v1676, %v1843
      %v1880 = vadd.f32 %v1677, %v1848
      %v1881 = vadd.f32 %v1678, %v1851
      %v1882 = vadd.f32 %v1679, %v1856
      %v1883 = vadd.f32 %v1680, %v1859
      %v1884 = vadd.f32 %v1681, %v1864
      %v1885 = vadd.f32 %v1682, %v1867
      %v1886 = vadd.f32 %v1683, %v1872
      %v1887 = vadd.f32 %v1684, %v1875
      %1888 = vst [vmem:[#allocation2] sm:$0xff] %v1878
      %1889 = vst [vmem:[#allocation2 + $0x8] sm:$0xff] %v1879
      %1890 = vst [vmem:[#allocation2 + $0x10] sm:$0xff] %v1880
      %1891 = vst [vmem:[#allocation2 + $0x18] sm:$0xff] %v1881
      %1892 = vst [vmem:[#allocation2 + $0x20] sm:$0xff] %v1882
      %1893 = vst [vmem:[#allocation2 + $0x28] sm:$0xff] %v1883
      %1894 = vst [vmem:[#allocation2 + $0x30] sm:$0xff] %v1884
      %1895 = vst [vmem:[#allocation2 + $0x38] sm:$0xff] %v1885
      %1896 = vst [vmem:[#allocation2 + $0x40] sm:$0xff] %v1886
      %1897 = vst [vmem:[#allocation2 + $0x48] sm:$0xff] %v1887
      %v1898 = vld [vmem:[#allocation2] sm:$0xff]
      %v1899 = vld [vmem:[#allocation2 + $0x8] sm:$0xff]
      %v1900 = vld [vmem:[#allocation2 + $0x10] sm:$0xff]
      %v1901 = vld [vmem:[#allocation2 + $0x18] sm:$0xff]
      %v1902 = vld [vmem:[#allocation2 + $0x20] sm:$0xff]
      %v1903 = vld [vmem:[#allocation2 + $0x28] sm:$0xff]
      %v1904 = vld [vmem:[#allocation2 + $0x30] sm:$0xff]
      %v1905 = vld [vmem:[#allocation2 + $0x38] sm:$0xff]
      %v1906 = vld [vmem:[#allocation2 + $0x40] sm:$0xff]
      %v1907 = vld [vmem:[#allocation2 + $0x48] sm:$0xff]
      %v1908 = vld [vmem:[%s244 + $0x8] sm:$0xc]
      %v1909 = vld [vmem:[%s244 + $0xc] sm:$0xf]
      %v1910 = vld [vmem:[%s244 + $0x10] sm:$0xf]
      %v1911 = vld [vmem:[%s244 + $0x14] sm:$0xf]
      %v1912 = vld [vmem:[%s244 + $0x18] sm:$0xf]
      %v1913 = vld [vmem:[%s244 + $0x1c] sm:$0xf]
      %v1914 = vld [vmem:[%s244 + $0x20] sm:$0xf]
      %v1915 = vld [vmem:[%s244 + $0x24] sm:$0xf]
      %v1916 = vld [vmem:[%s244 + $0x28] sm:$0xf]
      %v1917 = vld [vmem:[%s244 + $0x2c] sm:$0xf]
      %v1918 = vld [vmem:[%s244 + $0x30] sm:$0x7]
      %s1919 = scalar_lea.vmem %s248, 448
      %v1920 = vld [vmem:[%s1919] sm:$0xf]
      %v1921 = vld [vmem:[%s1919 + $0x4] sm:$0xf]
      %v1922 = vld [vmem:[%s1919 + $0x8] sm:$0xf]
      %v1923 = vld [vmem:[%s1919 + $0xc] sm:$0xf]
      %v1924 = vld [vmem:[%s1919 + $0x10] sm:$0xf]
      %v1925 = vld [vmem:[%s1919 + $0x14] sm:$0xf]
      %v1926 = vld [vmem:[%s1919 + $0x18] sm:$0xf]
      %v1927 = vld [vmem:[%s1919 + $0x1c] sm:$0xf]
      %v1928 = vld [vmem:[%s1919 + $0x20] sm:$0xf]
      %v1929 = vld [vmem:[%s1919 + $0x24] sm:$0xf]
      %v1930 = vld [vmem:[%s1919 + $0x28] sm:$0xf]
      %v1931 = vld [vmem:[%s1919 + $0x2c] sm:$0xf]
      %v1932 = vld [vmem:[%s1919 + $0x30] sm:$0xf]
      %v1933 = vld [vmem:[%s1919 + $0x34] sm:$0xf]
      %v1934 = vld [vmem:[%s1919 + $0x38] sm:$0xf]
      %v1935 = vld [vmem:[%s1919 + $0x3c] sm:$0xf]
      %v1947 = vunpack.c.l.b16 %v1908
      %v1948 = vunpack.c.l.b16 %v1909
      %v1949 = vunpack.c.l.b16 %v1910
      %v1950 = vunpack.c.l.b16 %v1911
      %v1951 = vunpack.c.l.b16 %v1912
      %v1952 = vunpack.c.l.b16 %v1913
      %v1953 = vunpack.c.l.b16 %v1914
      %v1954 = vunpack.c.l.b16 %v1915
      %v1955 = vunpack.c.l.b16 %v1916
      %v1956 = vunpack.c.l.b16 %v1917
      %v1957 = vunpack.c.l.b16 %v1918
      %v1958 = vpack.c.b16 %v1948, %v1947
      %v1959 = vpack.c.b16 %v1950, %v1949
      %v1960 = vpack.c.b16 %v1952, %v1951
      %v1961 = vpack.c.b16 %v1954, %v1953
      %v1962 = vpack.c.b16 %v1956, %v1955
      %v1963 = vpack.c.b16 %v1957, %v1957
      %vm1964 = vsmask.f32 5376
      %v1966 = vshrl.u32 %v1958, 16
      %v1968 = vrot.slane %v1966, 2
      %v1969 = vshll.u32 %v1958, 16
      %v1971 = vrot.slane %v1969, 3
      %v1972 = vor.u32 %v1968, %v1971
      %v1974 = vshrl.u32 %v1959, 16
      %v1976 = vrot.slane %v1974, 2
      %v1977 = vshll.u32 %v1959, 16
      %v1979 = vrot.slane %v1977, 3
      %v1980 = vor.u32 %v1976, %v1979
      %v1981 = vsel %vm1964, %v1972, %v1980
      %v1983 = vshrl.u32 %v1960, 16
      %v1985 = vrot.slane %v1983, 2
      %v1986 = vshll.u32 %v1960, 16
      %v1988 = vrot.slane %v1986, 3
      %v1989 = vor.u32 %v1985, %v1988
      %v1990 = vsel %vm1964, %v1980, %v1989
      %v1992 = vshrl.u32 %v1961, 16
      %v1994 = vrot.slane %v1992, 2
      %v1995 = vshll.u32 %v1961, 16
      %v1997 = vrot.slane %v1995, 3
      %v1998 = vor.u32 %v1994, %v1997
      %v1999 = vsel %vm1964, %v1989, %v1998
      %v2001 = vshrl.u32 %v1962, 16
      %v2003 = vrot.slane %v2001, 2
      %v2004 = vshll.u32 %v1962, 16
      %v2006 = vrot.slane %v2004, 3
      %v2007 = vor.u32 %v2003, %v2006
      %v2008 = vsel %vm1964, %v1998, %v2007
      %v2010 = vshrl.u32 %v1963, 16
      %v2012 = vrot.slane %v2010, 2
      %v2013 = vshll.u32 %v1963, 16
      %v2015 = vrot.slane %v2013, 3
      %v2016 = vor.u32 %v2012, %v2015
      %v2017 = vsel %vm1964, %v2007, %v2016
      %v2039 = vunpack.c.l.b16 %v1920
      %v2040 = vunpack.c.l.b16 %v1921
      %v2041 = vunpack.c.l.b16 %v1922
      %v2042 = vunpack.c.l.b16 %v1923
      %v2043 = vunpack.c.l.b16 %v1924
      %v2044 = vunpack.c.l.b16 %v1925
      %v2045 = vunpack.c.l.b16 %v1926
      %v2046 = vunpack.c.l.b16 %v1927
      %v2047 = vunpack.c.l.b16 %v1928
      %v2048 = vunpack.c.l.b16 %v1929
      %v2049 = vunpack.c.l.b16 %v1930
      %v2050 = vunpack.c.l.b16 %v1931
      %v2051 = vunpack.c.l.b16 %v1932
      %v2052 = vunpack.c.l.b16 %v1933
      %v2053 = vunpack.c.l.b16 %v1934
      %v2054 = vunpack.c.l.b16 %v1935
      %v2055 = vpack.c.b16 %v2040, %v2039
      %v2056 = vpack.c.b16 %v2042, %v2041
      %v2057 = vpack.c.b16 %v2044, %v2043
      %v2058 = vpack.c.b16 %v2046, %v2045
      %v2059 = vpack.c.b16 %v2048, %v2047
      %v2060 = vpack.c.b16 %v2050, %v2049
      %v2061 = vpack.c.b16 %v2052, %v2051
      %v2062 = vpack.c.b16 %v2054, %v2053
      %2071 = vmatprep.subr.bf16.mxu0 0
      %2072 = vmatpush1.bf16.msra.mxu0 %v2062
      %2073 = vmatprep.subr.bf16.mxu0 0
      %2074 = vmatpush1.bf16.msra.mxu0 %v2061
      %2075 = vmatprep.subr.bf16.mxu0 0
      %2076 = vmatpush1.bf16.msra.mxu0 %v2060
      %2077 = vmatprep.subr.bf16.mxu0 0
      %2078 = vmatpush1.bf16.msra.mxu0 %v2059
      %2079 = vmatprep.subr.bf16.mxu0 0
      %2080 = vmatpush1.bf16.msra.mxu0 %v2058
      %2081 = vmatprep.subr.bf16.mxu0 0
      %2082 = vmatpush1.bf16.msra.mxu0 %v2057
      %2083 = vmatprep.subr.bf16.mxu0 0
      %2084 = vmatpush1.bf16.msra.mxu0 %v2056
      %2085 = vmatprep.subr.bf16.mxu0 0
      %2086 = vmatpush1.bf16.msra.mxu0 %v2055
      %2087 = vmatprep.subr.bf16.mxu0 0
      %2088 = vmatpush2.bf16.msra.mxu0 0
      %2089 = vmatprep.subr.bf16.mxu0 0
      %2090 = vmatpush2.bf16.msra.mxu0 0
      %2091 = vmatprep.subr.bf16.mxu0 0
      %2092 = vmatpush2.bf16.msra.mxu0 0
      %2093 = vmatprep.subr.bf16.mxu0 0
      %2094 = vmatpush2.bf16.msra.mxu0 0
      %2095 = vmatprep.subr.bf16.mxu0 0
      %2096 = vmatpush2.bf16.msra.mxu0 0
      %2097 = vmatprep.subr.bf16.mxu0 0
      %2098 = vmatpush2.bf16.msra.mxu0 0
      %2099 = vmatprep.subr.bf16.mxu0 0
      %2100 = vmatpush2.bf16.msra.mxu0 0
      %2101 = vmatprep.subr.bf16.mxu0 0
      %2102 = vmatpush2.bf16.msra.mxu0 0
      %2103 = vmatprep.mubr.bf16.mxu0 0
      %2104 = vmatmul.mubr.bf16.gmra.mxu0 %v1981
      %v2105 = vpop.f32.mrf.mxu0
      %v2106 = vadd.f32 0.0, %v2105
      %v2107 = vpop.f32.mrf.mxu0
      %v2108 = vpop.f32.mrf.mxu0
      %v2109 = vadd.f32 0.0, %v2108
      %v2110 = vpop.f32.mrf.mxu0
      %2111 = vmatprep.mubr.bf16.mxu0 0
      %2112 = vmatmul.mubr.bf16.gmra.mxu0 %v1990
      %v2113 = vpop.f32.mrf.mxu0
      %v2114 = vadd.f32 0.0, %v2113
      %v2115 = vpop.f32.mrf.mxu0
      %v2116 = vpop.f32.mrf.mxu0
      %v2117 = vadd.f32 0.0, %v2116
      %v2118 = vpop.f32.mrf.mxu0
      %2119 = vmatprep.mubr.bf16.mxu0 0
      %2120 = vmatmul.mubr.bf16.gmra.mxu0 %v1999
      %v2121 = vpop.f32.mrf.mxu0
      %v2122 = vadd.f32 0.0, %v2121
      %v2123 = vpop.f32.mrf.mxu0
      %v2124 = vpop.f32.mrf.mxu0
      %v2125 = vadd.f32 0.0, %v2124
      %v2126 = vpop.f32.mrf.mxu0
      %2127 = vmatprep.mubr.bf16.mxu0 0
      %2128 = vmatmul.mubr.bf16.gmra.mxu0 %v2008
      %v2129 = vpop.f32.mrf.mxu0
      %v2130 = vadd.f32 0.0, %v2129
      %v2131 = vpop.f32.mrf.mxu0
      %v2132 = vpop.f32.mrf.mxu0
      %v2133 = vadd.f32 0.0, %v2132
      %v2134 = vpop.f32.mrf.mxu0
      %2135 = vmatprep.mubr.bf16.mxu0 0
      %2136 = vmatmul.mubr.bf16.gmra.mxu0 %v2017
      %v2137 = vpop.f32.mrf.mxu0
      %v2138 = vadd.f32 0.0, %v2137
      %v2139 = vpop.f32.mrf.mxu0
      %v2140 = vpop.f32.mrf.mxu0
      %v2141 = vadd.f32 0.0, %v2140
      %v2142 = vpop.f32.mrf.mxu0
      %2143 = vdwg.mxu0
      %v2144 = vadd.f32 %v1898, %v2106
      %v2145 = vadd.f32 %v1899, %v2109
      %v2146 = vadd.f32 %v1900, %v2114
      %v2147 = vadd.f32 %v1901, %v2117
      %v2148 = vadd.f32 %v1902, %v2122
      %v2149 = vadd.f32 %v1903, %v2125
      %v2150 = vadd.f32 %v1904, %v2130
      %v2151 = vadd.f32 %v1905, %v2133
      %v2152 = vadd.f32 %v1906, %v2138
      %v2153 = vadd.f32 %v1907, %v2141
      %2154 = vst [vmem:[#allocation2] sm:$0xff] %v2144
      %2155 = vst [vmem:[#allocation2 + $0x8] sm:$0xff] %v2145
      %2156 = vst [vmem:[#allocation2 + $0x10] sm:$0xff] %v2146
      %2157 = vst [vmem:[#allocation2 + $0x18] sm:$0xff] %v2147
      %2158 = vst [vmem:[#allocation2 + $0x20] sm:$0xff] %v2148
      %2159 = vst [vmem:[#allocation2 + $0x28] sm:$0xff] %v2149
      %2160 = vst [vmem:[#allocation2 + $0x30] sm:$0xff] %v2150
      %2161 = vst [vmem:[#allocation2 + $0x38] sm:$0xff] %v2151
      %2162 = vst [vmem:[#allocation2 + $0x40] sm:$0xff] %v2152
      %2163 = vst [vmem:[#allocation2 + $0x48] sm:$0xff] %v2153
      %v2164 = vld [vmem:[#allocation2] sm:$0xff]
      %v2165 = vld [vmem:[#allocation2 + $0x8] sm:$0xff]
      %v2166 = vld [vmem:[#allocation2 + $0x10] sm:$0xff]
      %v2167 = vld [vmem:[#allocation2 + $0x18] sm:$0xff]
      %v2168 = vld [vmem:[#allocation2 + $0x20] sm:$0xff]
      %v2169 = vld [vmem:[#allocation2 + $0x28] sm:$0xff]
      %v2170 = vld [vmem:[#allocation2 + $0x30] sm:$0xff]
      %v2171 = vld [vmem:[#allocation2 + $0x38] sm:$0xff]
      %v2172 = vld [vmem:[#allocation2 + $0x40] sm:$0xff]
      %v2173 = vld [vmem:[#allocation2 + $0x48] sm:$0xff]
      %v2174 = vld [vmem:[%s244 + $0x8] sm:$0x8]
      %v2175 = vld [vmem:[%s244 + $0xc] sm:$0xf]
      %v2176 = vld [vmem:[%s244 + $0x10] sm:$0xf]
      %v2177 = vld [vmem:[%s244 + $0x14] sm:$0xf]
      %v2178 = vld [vmem:[%s244 + $0x18] sm:$0xf]
      %v2179 = vld [vmem:[%s244 + $0x1c] sm:$0xf]
      %v2180 = vld [vmem:[%s244 + $0x20] sm:$0xf]
      %v2181 = vld [vmem:[%s244 + $0x24] sm:$0xf]
      %v2182 = vld [vmem:[%s244 + $0x28] sm:$0xf]
      %v2183 = vld [vmem:[%s244 + $0x2c] sm:$0xf]
      %v2184 = vld [vmem:[%s244 + $0x30] sm:$0x7]
      %s2185 = scalar_lea.vmem %s248, 512
      %v2186 = vld [vmem:[%s2185] sm:$0xf]
      %v2187 = vld [vmem:[%s2185 + $0x4] sm:$0xf]
      %v2188 = vld [vmem:[%s2185 + $0x8] sm:$0xf]
      %v2189 = vld [vmem:[%s2185 + $0xc] sm:$0xf]
      %v2190 = vld [vmem:[%s2185 + $0x10] sm:$0xf]
      %v2191 = vld [vmem:[%s2185 + $0x14] sm:$0xf]
      %v2192 = vld [vmem:[%s2185 + $0x18] sm:$0xf]
      %v2193 = vld [vmem:[%s2185 + $0x1c] sm:$0xf]
      %v2194 = vld [vmem:[%s2185 + $0x20] sm:$0xf]
      %v2195 = vld [vmem:[%s2185 + $0x24] sm:$0xf]
      %v2196 = vld [vmem:[%s2185 + $0x28] sm:$0xf]
      %v2197 = vld [vmem:[%s2185 + $0x2c] sm:$0xf]
      %v2198 = vld [vmem:[%s2185 + $0x30] sm:$0xf]
      %v2199 = vld [vmem:[%s2185 + $0x34] sm:$0xf]
      %v2200 = vld [vmem:[%s2185 + $0x38] sm:$0xf]
      %v2201 = vld [vmem:[%s2185 + $0x3c] sm:$0xf]
      %v2213 = vunpack.c.l.b16 %v2174
      %v2214 = vunpack.c.l.b16 %v2175
      %v2215 = vunpack.c.l.b16 %v2176
      %v2216 = vunpack.c.l.b16 %v2177
      %v2217 = vunpack.c.l.b16 %v2178
      %v2218 = vunpack.c.l.b16 %v2179
      %v2219 = vunpack.c.l.b16 %v2180
      %v2220 = vunpack.c.l.b16 %v2181
      %v2221 = vunpack.c.l.b16 %v2182
      %v2222 = vunpack.c.l.b16 %v2183
      %v2223 = vunpack.c.l.b16 %v2184
      %v2224 = vpack.c.b16 %v2214, %v2213
      %v2225 = vpack.c.b16 %v2216, %v2215
      %v2226 = vpack.c.b16 %v2218, %v2217
      %v2227 = vpack.c.b16 %v2220, %v2219
      %v2228 = vpack.c.b16 %v2222, %v2221
      %v2229 = vpack.c.b16 %v2223, %v2223
      %vm2230 = vcmask 1044480
      %v2231 = vrot.slane %v2224, 3
      %v2232 = vrot.slane %v2225, 3
      %v2233 = vsel %vm2230, %v2231, %v2232
      %v2234 = vrot.slane %v2226, 3
      %v2235 = vsel %vm2230, %v2232, %v2234
      %v2236 = vrot.slane %v2227, 3
      %v2237 = vsel %vm2230, %v2234, %v2236
      %v2238 = vrot.slane %v2228, 3
      %v2239 = vsel %vm2230, %v2236, %v2238
      %v2240 = vrot.slane %v2229, 3
      %v2241 = vsel %vm2230, %v2238, %v2240
      %v2263 = vunpack.c.l.b16 %v2186
      %v2264 = vunpack.c.l.b16 %v2187
      %v2265 = vunpack.c.l.b16 %v2188
      %v2266 = vunpack.c.l.b16 %v2189
      %v2267 = vunpack.c.l.b16 %v2190
      %v2268 = vunpack.c.l.b16 %v2191
      %v2269 = vunpack.c.l.b16 %v2192
      %v2270 = vunpack.c.l.b16 %v2193
      %v2271 = vunpack.c.l.b16 %v2194
      %v2272 = vunpack.c.l.b16 %v2195
      %v2273 = vunpack.c.l.b16 %v2196
      %v2274 = vunpack.c.l.b16 %v2197
      %v2275 = vunpack.c.l.b16 %v2198
      %v2276 = vunpack.c.l.b16 %v2199
      %v2277 = vunpack.c.l.b16 %v2200
      %v2278 = vunpack.c.l.b16 %v2201
      %v2279 = vpack.c.b16 %v2264, %v2263
      %v2280 = vpack.c.b16 %v2266, %v2265
      %v2281 = vpack.c.b16 %v2268, %v2267
      %v2282 = vpack.c.b16 %v2270, %v2269
      %v2283 = vpack.c.b16 %v2272, %v2271
      %v2284 = vpack.c.b16 %v2274, %v2273
      %v2285 = vpack.c.b16 %v2276, %v2275
      %v2286 = vpack.c.b16 %v2278, %v2277
      %2295 = vmatprep.subr.bf16.mxu0 0
      %2296 = vmatpush1.bf16.msra.mxu0 %v2286
      %2297 = vmatprep.subr.bf16.mxu0 0
      %2298 = vmatpush1.bf16.msra.mxu0 %v2285
      %2299 = vmatprep.subr.bf16.mxu0 0
      %2300 = vmatpush1.bf16.msra.mxu0 %v2284
      %2301 = vmatprep.subr.bf16.mxu0 0
      %2302 = vmatpush1.bf16.msra.mxu0 %v2283
      %2303 = vmatprep.subr.bf16.mxu0 0
      %2304 = vmatpush1.bf16.msra.mxu0 %v2282
      %2305 = vmatprep.subr.bf16.mxu0 0
      %2306 = vmatpush1.bf16.msra.mxu0 %v2281
      %2307 = vmatprep.subr.bf16.mxu0 0
      %2308 = vmatpush1.bf16.msra.mxu0 %v2280
      %2309 = vmatprep.subr.bf16.mxu0 0
      %2310 = vmatpush1.bf16.msra.mxu0 %v2279
      %2311 = vmatprep.subr.bf16.mxu0 0
      %2312 = vmatpush2.bf16.msra.mxu0 0
      %2313 = vmatprep.subr.bf16.mxu0 0
      %2314 = vmatpush2.bf16.msra.mxu0 0
      %2315 = vmatprep.subr.bf16.mxu0 0
      %2316 = vmatpush2.bf16.msra.mxu0 0
      %2317 = vmatprep.subr.bf16.mxu0 0
      %2318 = vmatpush2.bf16.msra.mxu0 0
      %2319 = vmatprep.subr.bf16.mxu0 0
      %2320 = vmatpush2.bf16.msra.mxu0 0
      %2321 = vmatprep.subr.bf16.mxu0 0
      %2322 = vmatpush2.bf16.msra.mxu0 0
      %2323 = vmatprep.subr.bf16.mxu0 0
      %2324 = vmatpush2.bf16.msra.mxu0 0
      %2325 = vmatprep.subr.bf16.mxu0 0
      %2326 = vmatpush2.bf16.msra.mxu0 0
      %2327 = vmatprep.mubr.bf16.mxu0 0
      %2328 = vmatmul.mubr.bf16.gmra.mxu0 %v2233
      %v2329 = vpop.f32.mrf.mxu0
      %v2330 = vadd.f32 0.0, %v2329
      %v2331 = vpop.f32.mrf.mxu0
      %v2332 = vpop.f32.mrf.mxu0
      %v2333 = vadd.f32 0.0, %v2332
      %v2334 = vpop.f32.mrf.mxu0
      %2335 = vmatprep.mubr.bf16.mxu0 0
      %2336 = vmatmul.mubr.bf16.gmra.mxu0 %v2235
      %v2337 = vpop.f32.mrf.mxu0
      %v2338 = vadd.f32 0.0, %v2337
      %v2339 = vpop.f32.mrf.mxu0
      %v2340 = vpop.f32.mrf.mxu0
      %v2341 = vadd.f32 0.0, %v2340
      %v2342 = vpop.f32.mrf.mxu0
      %2343 = vmatprep.mubr.bf16.mxu0 0
      %2344 = vmatmul.mubr.bf16.gmra.mxu0 %v2237
      %v2345 = vpop.f32.mrf.mxu0
      %v2346 = vadd.f32 0.0, %v2345
      %v2347 = vpop.f32.mrf.mxu0
      %v2348 = vpop.f32.mrf.mxu0
      %v2349 = vadd.f32 0.0, %v2348
      %v2350 = vpop.f32.mrf.mxu0
      %2351 = vmatprep.mubr.bf16.mxu0 0
      %2352 = vmatmul.mubr.bf16.gmra.mxu0 %v2239
      %v2353 = vpop.f32.mrf.mxu0
      %v2354 = vadd.f32 0.0, %v2353
      %v2355 = vpop.f32.mrf.mxu0
      %v2356 = vpop.f32.mrf.mxu0
      %v2357 = vadd.f32 0.0, %v2356
      %v2358 = vpop.f32.mrf.mxu0
      %2359 = vmatprep.mubr.bf16.mxu0 0
      %2360 = vmatmul.mubr.bf16.gmra.mxu0 %v2241
      %v2361 = vpop.f32.mrf.mxu0
      %v2362 = vadd.f32 0.0, %v2361
      %v2363 = vpop.f32.mrf.mxu0
      %v2364 = vpop.f32.mrf.mxu0
      %v2365 = vadd.f32 0.0, %v2364
      %v2366 = vpop.f32.mrf.mxu0
      %2367 = vdwg.mxu0
      %v2368 = vadd.f32 %v2164, %v2330
      %v2369 = vadd.f32 %v2165, %v2333
      %v2370 = vadd.f32 %v2166, %v2338
      %v2371 = vadd.f32 %v2167, %v2341
      %v2372 = vadd.f32 %v2168, %v2346
      %v2373 = vadd.f32 %v2169, %v2349
      %v2374 = vadd.f32 %v2170, %v2354
      %v2375 = vadd.f32 %v2171, %v2357
      %v2376 = vadd.f32 %v2172, %v2362
      %v2377 = vadd.f32 %v2173, %v2365
      %2378 = vst [vmem:[#allocation2] sm:$0xff] %v2368
      %2379 = vst [vmem:[#allocation2 + $0x8] sm:$0xff] %v2369
      %2380 = vst [vmem:[#allocation2 + $0x10] sm:$0xff] %v2370
      %2381 = vst [vmem:[#allocation2 + $0x18] sm:$0xff] %v2371
      %2382 = vst [vmem:[#allocation2 + $0x20] sm:$0xff] %v2372
      %2383 = vst [vmem:[#allocation2 + $0x28] sm:$0xff] %v2373
      %2384 = vst [vmem:[#allocation2 + $0x30] sm:$0xff] %v2374
      %2385 = vst [vmem:[#allocation2 + $0x38] sm:$0xff] %v2375
      %2386 = vst [vmem:[#allocation2 + $0x40] sm:$0xff] %v2376
      %2387 = vst [vmem:[#allocation2 + $0x48] sm:$0xff] %v2377
      %v2388 = vld [vmem:[#allocation2] sm:$0xff]
      %v2389 = vld [vmem:[#allocation2 + $0x8] sm:$0xff]
      %v2390 = vld [vmem:[#allocation2 + $0x10] sm:$0xff]
      %v2391 = vld [vmem:[#allocation2 + $0x18] sm:$0xff]
      %v2392 = vld [vmem:[#allocation2 + $0x20] sm:$0xff]
      %v2393 = vld [vmem:[#allocation2 + $0x28] sm:$0xff]
      %v2394 = vld [vmem:[#allocation2 + $0x30] sm:$0xff]
      %v2395 = vld [vmem:[#allocation2 + $0x38] sm:$0xff]
      %v2396 = vld [vmem:[#allocation2 + $0x40] sm:$0xff]
      %v2397 = vld [vmem:[#allocation2 + $0x48] sm:$0xff]
      %v2398 = vld [vmem:[%s251] sm:$0x1]
      %v2400 = vlaneseq
      %v2401 = vshrl.u32 %v2400, 7
      %v2402 = vsub.s32 0, %v2401
      %v2403 = vrot.slane %v2398, %v2402
      %v2405 = vmul.f32 %v2388, %v2403
      %v2406 = vmul.f32 %v2389, %v2403
      %v2407 = vmul.f32 %v2390, %v2403
      %v2408 = vmul.f32 %v2391, %v2403
      %v2409 = vmul.f32 %v2392, %v2403
      %v2410 = vmul.f32 %v2393, %v2403
      %v2411 = vmul.f32 %v2394, %v2403
      %v2412 = vmul.f32 %v2395, %v2403
      %v2413 = vmul.f32 %v2396, %v2403
      %v2414 = vmul.f32 %v2397, %v2403
      %v2415 = vld [vmem:[%s254] sm:$0x1]
      %v2417 = vlaneseq
      %v2418 = vshrl.u32 %v2417, 7
      %v2419 = vsub.s32 0, %v2418
      %v2420 = vrot.slane %v2415, %v2419
      %v2422 = vadd.f32 %v2405, %v2420
      %v2423 = vadd.f32 %v2406, %v2420
      %v2424 = vadd.f32 %v2407, %v2420
      %v2425 = vadd.f32 %v2408, %v2420
      %v2426 = vadd.f32 %v2409, %v2420
      %v2427 = vadd.f32 %v2410, %v2420
      %v2428 = vadd.f32 %v2411, %v2420
      %v2429 = vadd.f32 %v2412, %v2420
      %v2430 = vadd.f32 %v2413, %v2420
      %v2431 = vadd.f32 %v2414, %v2420
      %v2432 = vmax.f32 %v2422, 0.0
      %v2433 = vmax.f32 %v2423, 0.0
      %v2434 = vmax.f32 %v2424, 0.0
      %v2435 = vmax.f32 %v2425, 0.0
      %v2436 = vmax.f32 %v2426, 0.0
      %v2437 = vmax.f32 %v2427, 0.0
      %v2438 = vmax.f32 %v2428, 0.0
      %v2439 = vmax.f32 %v2429, 0.0
      %v2440 = vmax.f32 %v2430, 0.0
      %v2441 = vmax.f32 %v2431, 0.0
      %v2442 = vpack.c.bf16 %v2433, %v2432
      %v2443 = vpack.c.bf16 %v2435, %v2434
      %v2444 = vpack.c.bf16 %v2437, %v2436
      %v2445 = vpack.c.bf16 %v2439, %v2438
      %v2446 = vpack.c.bf16 %v2441, %v2440
      %v2452 = vunpack.c.l.b16 %v2442
      %v2453 = vunpack.c.h.b16 %v2442
      %v2454 = vunpack.c.l.b16 %v2443
      %v2455 = vunpack.c.h.b16 %v2443
      %v2456 = vunpack.c.l.b16 %v2444
      %v2457 = vunpack.c.h.b16 %v2444
      %v2458 = vunpack.c.l.b16 %v2445
      %v2459 = vunpack.c.h.b16 %v2445
      %v2460 = vunpack.c.l.b16 %v2446
      %v2461 = vunpack.c.h.b16 %v2446
      %v2462 = vpack.c.b16 %v2452, %v2452
      %v2463 = vpack.c.b16 %v2453, %v2453
      %v2464 = vpack.c.b16 %v2454, %v2454
      %v2465 = vpack.c.b16 %v2455, %v2455
      %v2466 = vpack.c.b16 %v2456, %v2456
      %v2467 = vpack.c.b16 %v2457, %v2457
      %v2468 = vpack.c.b16 %v2458, %v2458
      %v2469 = vpack.c.b16 %v2459, %v2459
      %v2470 = vpack.c.b16 %v2460, %v2460
      %v2471 = vpack.c.b16 %v2461, %v2461
      %2482 = vst [vmem:[%s262] sm:$0xf] %v2462
      %2483 = vst [vmem:[%s262 + $0x4] sm:$0xf] %v2463
      %2484 = vst [vmem:[%s262 + $0x8] sm:$0xf] %v2464
      %2485 = vst [vmem:[%s262 + $0xc] sm:$0xf] %v2465
      %2486 = vst [vmem:[%s262 + $0x10] sm:$0xf] %v2466
      %2487 = vst [vmem:[%s262 + $0x14] sm:$0xf] %v2467
      %2488 = vst [vmem:[%s262 + $0x18] sm:$0xf] %v2468
      %2489 = vst [vmem:[%s262 + $0x1c] sm:$0xf] %v2469
      %2490 = vst [vmem:[%s262 + $0x20] sm:$0xf] %v2470
      %2491 = vst [vmem:[%s262 + $0x24] sm:$0xf] %v2471
      %p2492 = scmp.lt.s32.totalorder %s19, 1
      %s2493 = scalar_select %p2492, %s19, 1
      %p2494 = scmp.lt.s32.totalorder %s20, 0
      %s2495 = scalar_select %p2494, %s20, 0
      %s2496 = smul.addr %s2493, 10
      %s2497 = sadd.s32 %s2495, %s2496
      %s2498 = smul.addr %s2497, 4
      %s2499 = scalar_lea.vmem %s4, %s2498
      // Predicated region
      $region37: #{_lambda_.19} parent=35 // pred_check
        %p2500 = pneg %p151
      $region38: #{_lambda_.19} parent=35 // pred_check_branch
        %2502 = sbr.rel (%p2500) target = $region40
      $region39: #{_lambda_.19} parent=35 // pred_region
        _
      $region40: #{_lambda_.19} parent=35 // pred_fallthru
        _
    $region36: #{_lambda_.19} parent=5 // pred_fallthru
      _
    %p2503 = scmp.le.s32.totalorder 2, %s10
    // Predicated region
    $region41: #{_lambda_.19} parent=5 // pred_check
      %p2504 = pneg %p2503
    $region42: #{_lambda_.19} parent=5 // pred_check_branch
      %2506 = sbr.rel (%p2504) target = $region44
    $region43: #{_lambda_.19} parent=5 // pred_region
      %s2507 = ssub.s32 %s10, 2
      // Predicated region
      $region45: #{_lambda_.19} parent=43 // pred_check
        %p2508 = pneg %p157
      $region46: #{_lambda_.19} parent=43 // pred_check_branch
        %2510 = sbr.rel (%p2508) target = $region48
      $region47: #{_lambda_.19} parent=43 // pred_region
        %p2511 = scmp.lt.s32.totalorder %s21, 1
        %s2512 = scalar_select %p2511, %s21, 1
        %p2513 = scmp.lt.s32.totalorder %s22, 0
        %s2514 = scalar_select %p2513, %s22, 0
        %s2515 = smul.addr %s2512, 10
        %s2516 = sadd.s32 %s2514, %s2515
        %s2517 = smul.addr %s2516, 4
        %s2518 = scalar_lea.vmem %s4, %s2517
      $region48: #{_lambda_.19} parent=43 // pred_fallthru
        _
    $region44: #{_lambda_.19} parent=5 // pred_fallthru
      _
  $region6: #{_lambda_.19} parent=0 // loop_footer
    %s14 = sadd.s32 1, %s10
  $region7: #{_lambda_.19} parent=0 // loop_footer_branch
    %9 = sbr.rel target = $region3
  $region8: #{_lambda_.19} parent=0 // loop_exit
    _

// kernel: _lambda_.24
$region0: #{_lambda_.24}
  #allocation0 [shape = 'u32[]', space=smem, size = 0x4, offset = 0x4, fixed_abs, tag = 'smem constant byte address 0x4 - core index']
  #allocation1 [shape = 'u32[144,128]{1,0:T(1,128)}', space=vmem, size = 0x12000, scoped, tag = 'internal scratch']
  #allocation2 [shape = 'f32[32,128]{1,0:T(8,128)}', space=vmem, size = 0x4000, scoped, tag = 'scratch operand']
  %s0 = inlined_call_operand.vmem [shape: bf16[32,128], index: 0, kind: input, shape index: {}]
  %s1 = inlined_call_operand.vmem [shape: bf16[128,128], index: 1, kind: input, shape index: {}]
  %s2 = inlined_call_operand.vmem [shape: f32[1,128], index: 2, kind: input, shape index: {}]
  %s3 = inlined_call_operand.vmem [shape: f32[1,128], index: 3, kind: input, shape index: {}]
  %s4 = inlined_call_operand.vmem [shape: bf16[32,128], index: 4, kind: output, shape index: {}]
  %s5 = sld [smem:[#allocation0]]
  $region34: #{_lambda_.24} parent=0
    _
  %s7 = ssub.s32 1, %s5
  %s8 = scalar_select 0, %s7, %s5
  // Predicated region
  $region2: #{_lambda_.24} parent=0 // pred_check
    _
  $region3: #{_lambda_.24} parent=0 // pred_check_branch
    %10 = sbr.rel (0) target = $region5
  $region4: #{_lambda_.24} parent=0 // pred_region
    _
  $region5: #{_lambda_.24} parent=0 // pred_fallthru
    _
  // Predicated region
  $region6: #{_lambda_.24} parent=0 // pred_check
    _
  $region7: #{_lambda_.24} parent=0 // pred_check_branch
    %12 = sbr.rel (0) target = $region9
  $region8: #{_lambda_.24} parent=0 // pred_region
    _
  $region9: #{_lambda_.24} parent=0 // pred_fallthru
    _
  // Predicated region
  $region10: #{_lambda_.24} parent=0 // pred_check
    _
  $region11: #{_lambda_.24} parent=0 // pred_check_branch
    %14 = sbr.rel (0) target = $region13
  $region12: #{_lambda_.24} parent=0 // pred_region
    _
  $region13: #{_lambda_.24} parent=0 // pred_fallthru
    _
  // Predicated region
  $region14: #{_lambda_.24} parent=0 // pred_check
    _
  $region15: #{_lambda_.24} parent=0 // pred_check_branch
    %16 = sbr.rel (0) target = $region17
  $region16: #{_lambda_.24} parent=0 // pred_region
    _
  $region17: #{_lambda_.24} parent=0 // pred_fallthru
    _
  %p18 = scmp.eq.s32.totalorder 0, 0
  // Predicated region
  $region18: #{_lambda_.24} parent=0 // pred_check
    %p19 = pneg %p18
  $region19: #{_lambda_.24} parent=0 // pred_check_branch
    %21 = sbr.rel (%p19) target = $region21
  $region20: #{_lambda_.24} parent=0 // pred_region
    %22 = vst [vmem:[#allocation2] sm:$0xff] 0.0
    %23 = vst [vmem:[#allocation2 + $0x8] sm:$0xff] 0.0
    %24 = vst [vmem:[#allocation2 + $0x10] sm:$0xff] 0.0
    %25 = vst [vmem:[#allocation2 + $0x18] sm:$0xff] 0.0
  $region21: #{_lambda_.24} parent=0 // pred_fallthru
    _
  %v26 = vld [vmem:[#allocation2] sm:$0xff]
  %v27 = vld [vmem:[#allocation2 + $0x8] sm:$0xff]
  %v28 = vld [vmem:[#allocation2 + $0x10] sm:$0xff]
  %v29 = vld [vmem:[#allocation2 + $0x18] sm:$0xff]
  %v30 = vld [vmem:[%s0] sm:$0xf]
  %v31 = vld [vmem:[%s0 + $0x4] sm:$0xf]
  %v32 = vld [vmem:[%s0 + $0x8] sm:$0xf]
  %v33 = vld [vmem:[%s0 + $0xc] sm:$0xf]
  %v34 = vld [vmem:[%s1] sm:$0xf]
  %v35 = vld [vmem:[%s1 + $0x4] sm:$0xf]
  %v36 = vld [vmem:[%s1 + $0x8] sm:$0xf]
  %v37 = vld [vmem:[%s1 + $0xc] sm:$0xf]
  %v38 = vld [vmem:[%s1 + $0x10] sm:$0xf]
  %v39 = vld [vmem:[%s1 + $0x14] sm:$0xf]
  %v40 = vld [vmem:[%s1 + $0x18] sm:$0xf]
  %v41 = vld [vmem:[%s1 + $0x1c] sm:$0xf]
  %v42 = vld [vmem:[%s1 + $0x20] sm:$0xf]
  %v43 = vld [vmem:[%s1 + $0x24] sm:$0xf]
  %v44 = vld [vmem:[%s1 + $0x28] sm:$0xf]
  %v45 = vld [vmem:[%s1 + $0x2c] sm:$0xf]
  %v46 = vld [vmem:[%s1 + $0x30] sm:$0xf]
  %v47 = vld [vmem:[%s1 + $0x34] sm:$0xf]
  %v48 = vld [vmem:[%s1 + $0x38] sm:$0xf]
  %v49 = vld [vmem:[%s1 + $0x3c] sm:$0xf]
  %v54 = vunpack.c.l.b16 %v30
  %v55 = vunpack.c.l.b16 %v31
  %v56 = vunpack.c.l.b16 %v32
  %v57 = vunpack.c.l.b16 %v33
  %v58 = vpack.c.b16 %v55, %v54
  %v59 = vpack.c.b16 %v57, %v56
  %v78 = vunpack.c.l.b16 %v34
  %v79 = vunpack.c.l.b16 %v35
  %v80 = vunpack.c.l.b16 %v36
  %v81 = vunpack.c.l.b16 %v37
  %v82 = vunpack.c.l.b16 %v38
  %v83 = vunpack.c.l.b16 %v39
  %v84 = vunpack.c.l.b16 %v40
  %v85 = vunpack.c.l.b16 %v41
  %v86 = vunpack.c.l.b16 %v42
  %v87 = vunpack.c.l.b16 %v43
  %v88 = vunpack.c.l.b16 %v44
  %v89 = vunpack.c.l.b16 %v45
  %v90 = vunpack.c.l.b16 %v46
  %v91 = vunpack.c.l.b16 %v47
  %v92 = vunpack.c.l.b16 %v48
  %v93 = vunpack.c.l.b16 %v49
  %v94 = vpack.c.b16 %v79, %v78
  %v95 = vpack.c.b16 %v81, %v80
  %v96 = vpack.c.b16 %v83, %v82
  %v97 = vpack.c.b16 %v85, %v84
  %v98 = vpack.c.b16 %v87, %v86
  %v99 = vpack.c.b16 %v89, %v88
  %v100 = vpack.c.b16 %v91, %v90
  %v101 = vpack.c.b16 %v93, %v92
  %110 = vmatprep.subr.bf16.mxu0 0
  %111 = vmatpush1.bf16.msra.mxu0 %v101
  %112 = vmatprep.subr.bf16.mxu0 0
  %113 = vmatpush1.bf16.msra.mxu0 %v100
  %114 = vmatprep.subr.bf16.mxu0 0
  %115 = vmatpush1.bf16.msra.mxu0 %v99
  %116 = vmatprep.subr.bf16.mxu0 0
  %117 = vmatpush1.bf16.msra.mxu0 %v98
  %118 = vmatprep.subr.bf16.mxu0 0
  %119 = vmatpush1.bf16.msra.mxu0 %v97
  %120 = vmatprep.subr.bf16.mxu0 0
  %121 = vmatpush1.bf16.msra.mxu0 %v96
  %122 = vmatprep.subr.bf16.mxu0 0
  %123 = vmatpush1.bf16.msra.mxu0 %v95
  %124 = vmatprep.subr.bf16.mxu0 0
  %125 = vmatpush1.bf16.msra.mxu0 %v94
  %126 = vmatprep.subr.bf16.mxu0 0
  %127 = vmatpush2.bf16.msra.mxu0 0
  %128 = vmatprep.subr.bf16.mxu0 0
  %129 = vmatpush2.bf16.msra.mxu0 0
  %130 = vmatprep.subr.bf16.mxu0 0
  %131 = vmatpush2.bf16.msra.mxu0 0
  %132 = vmatprep.subr.bf16.mxu0 0
  %133 = vmatpush2.bf16.msra.mxu0 0
  %134 = vmatprep.subr.bf16.mxu0 0
  %135 = vmatpush2.bf16.msra.mxu0 0
  %136 = vmatprep.subr.bf16.mxu0 0
  %137 = vmatpush2.bf16.msra.mxu0 0
  %138 = vmatprep.subr.bf16.mxu0 0
  %139 = vmatpush2.bf16.msra.mxu0 0
  %140 = vmatprep.subr.bf16.mxu0 0
  %141 = vmatpush2.bf16.msra.mxu0 0
  %142 = vmatprep.mubr.bf16.mxu0 0
  %143 = vmatmul.mubr.bf16.gmra.mxu0 %v58
  %v144 = vpop.f32.mrf.mxu0
  %v145 = vadd.f32 0.0, %v144
  %v146 = vpop.f32.mrf.mxu0
  %v147 = vpop.f32.mrf.mxu0
  %v148 = vadd.f32 0.0, %v147
  %v149 = vpop.f32.mrf.mxu0
  %150 = vmatprep.mubr.bf16.mxu0 0
  %151 = vmatmul.mubr.bf16.gmra.mxu0 %v59
  %v152 = vpop.f32.mrf.mxu0
  %v153 = vadd.f32 0.0, %v152
  %v154 = vpop.f32.mrf.mxu0
  %v155 = vpop.f32.mrf.mxu0
  %v156 = vadd.f32 0.0, %v155
  %v157 = vpop.f32.mrf.mxu0
  %158 = vdwg.mxu0
  %v159 = vadd.f32 %v26, %v145
  %v160 = vadd.f32 %v27, %v148
  %v161 = vadd.f32 %v28, %v153
  %v162 = vadd.f32 %v29, %v156
  %163 = vst [vmem:[#allocation2] sm:$0xff] %v159
  %164 = vst [vmem:[#allocation2 + $0x8] sm:$0xff] %v160
  %165 = vst [vmem:[#allocation2 + $0x10] sm:$0xff] %v161
  %166 = vst [vmem:[#allocation2 + $0x18] sm:$0xff] %v162
  // Predicated region
  $region22: #{_lambda_.24} parent=0 // pred_check
    %p167 = pneg %p18
  $region23: #{_lambda_.24} parent=0 // pred_check_branch
    %169 = sbr.rel (%p167) target = $region25
  $region24: #{_lambda_.24} parent=0 // pred_region
    %v170 = vld [vmem:[#allocation2] sm:$0xff]
    %v171 = vld [vmem:[#allocation2 + $0x8] sm:$0xff]
    %v172 = vld [vmem:[#allocation2 + $0x10] sm:$0xff]
    %v173 = vld [vmem:[#allocation2 + $0x18] sm:$0xff]
    %v174 = vld [vmem:[%s2] sm:$0x1]
    %v176 = vlaneseq
    %v177 = vshrl.u32 %v176, 7
    %v178 = vsub.s32 0, %v177
    %v179 = vrot.slane %v174, %v178
    %v181 = vmul.f32 %v170, %v179
    %v182 = vmul.f32 %v171, %v179
    %v183 = vmul.f32 %v172, %v179
    %v184 = vmul.f32 %v173, %v179
    %v185 = vld [vmem:[%s3] sm:$0x1]
    %v187 = vlaneseq
    %v188 = vshrl.u32 %v187, 7
    %v189 = vsub.s32 0, %v188
    %v190 = vrot.slane %v185, %v189
    %v192 = vadd.f32 %v181, %v190
    %v193 = vadd.f32 %v182, %v190
    %v194 = vadd.f32 %v183, %v190
    %v195 = vadd.f32 %v184, %v190
    %v196 = vpack.c.bf16 %v193, %v192
    %v197 = vpack.c.bf16 %v195, %v194
    %v200 = vunpack.c.l.b16 %v196
    %v201 = vunpack.c.h.b16 %v196
    %v202 = vunpack.c.l.b16 %v197
    %v203 = vunpack.c.h.b16 %v197
    %v204 = vpack.c.b16 %v200, %v200
    %v205 = vpack.c.b16 %v201, %v201
    %v206 = vpack.c.b16 %v202, %v202
    %v207 = vpack.c.b16 %v203, %v203
    %212 = vst [vmem:[%s4] sm:$0xf] %v204
    %213 = vst [vmem:[%s4 + $0x4] sm:$0xf] %v205
    %214 = vst [vmem:[%s4 + $0x8] sm:$0xf] %v206
    %215 = vst [vmem:[%s4 + $0xc] sm:$0xf] %v207
  $region25: #{_lambda_.24} parent=0 // pred_fallthru
    _
  // Predicated region
  $region26: #{_lambda_.24} parent=0 // pred_check
    _
  $region27: #{_lambda_.24} parent=0 // pred_check_branch
    %217 = sbr.rel (0) target = $region29
  $region28: #{_lambda_.24} parent=0 // pred_region
    _
  $region29: #{_lambda_.24} parent=0 // pred_fallthru
    _
  // Predicated region
  $region30: #{_lambda_.24} parent=0 // pred_check
    _
  $region31: #{_lambda_.24} parent=0 // pred_check_branch
    %219 = sbr.rel (0) target = $region33
  $region32: #{_lambda_.24} parent=0 // pred_region
    _
  $region33: #{_lambda_.24} parent=0 // pred_fallthru
    _

// kernel: _lambda_.25
$region0: #{_lambda_.25}
  #allocation0 [shape = 'u32[]', space=smem, size = 0x4, offset = 0x4, fixed_abs, tag = 'smem constant byte address 0x4 - core index']
  #allocation1 [shape = 'u32[144,128]{1,0:T(1,128)}', space=vmem, size = 0x12000, scoped, tag = 'internal scratch']
  #allocation2 [shape = 'f32[32,128]{1,0:T(8,128)}', space=vmem, size = 0x4000, scoped, tag = 'scratch operand']
  %s0 = inlined_call_operand.vmem [shape: bf16[32,128], index: 0, kind: input, shape index: {}]
  %s1 = inlined_call_operand.vmem [shape: bf16[128,128], index: 1, kind: input, shape index: {}]
  %s2 = inlined_call_operand.vmem [shape: f32[1,128], index: 2, kind: input, shape index: {}]
  %s3 = inlined_call_operand.vmem [shape: f32[1,128], index: 3, kind: input, shape index: {}]
  %s4 = inlined_call_operand.vmem [shape: bf16[32,1], index: 4, kind: input, shape index: {}]
  %s5 = inlined_call_operand.vmem [shape: bf16[32,128], index: 5, kind: input, shape index: {}]
  %s6 = inlined_call_operand.vmem [shape: bf16[32,128], index: 6, kind: output, shape index: {}]
  %s7 = sld [smem:[#allocation0]]
  $region42: #{_lambda_.25} parent=0
    _
  %s9 = ssub.s32 1, %s7
  %s10 = scalar_select 0, %s9, %s7
  // Predicated region
  $region2: #{_lambda_.25} parent=0 // pred_check
    _
  $region3: #{_lambda_.25} parent=0 // pred_check_branch
    %12 = sbr.rel (0) target = $region5
  $region4: #{_lambda_.25} parent=0 // pred_region
    _
  $region5: #{_lambda_.25} parent=0 // pred_fallthru
    _
  // Predicated region
  $region6: #{_lambda_.25} parent=0 // pred_check
    _
  $region7: #{_lambda_.25} parent=0 // pred_check_branch
    %14 = sbr.rel (0) target = $region9
  $region8: #{_lambda_.25} parent=0 // pred_region
    _
  $region9: #{_lambda_.25} parent=0 // pred_fallthru
    _
  // Predicated region
  $region10: #{_lambda_.25} parent=0 // pred_check
    _
  $region11: #{_lambda_.25} parent=0 // pred_check_branch
    %16 = sbr.rel (0) target = $region13
  $region12: #{_lambda_.25} parent=0 // pred_region
    _
  $region13: #{_lambda_.25} parent=0 // pred_fallthru
    _
  // Predicated region
  $region14: #{_lambda_.25} parent=0 // pred_check
    _
  $region15: #{_lambda_.25} parent=0 // pred_check_branch
    %18 = sbr.rel (0) target = $region17
  $region16: #{_lambda_.25} parent=0 // pred_region
    _
  $region17: #{_lambda_.25} parent=0 // pred_fallthru
    _
  // Predicated region
  $region18: #{_lambda_.25} parent=0 // pred_check
    _
  $region19: #{_lambda_.25} parent=0 // pred_check_branch
    %20 = sbr.rel (0) target = $region21
  $region20: #{_lambda_.25} parent=0 // pred_region
    _
  $region21: #{_lambda_.25} parent=0 // pred_fallthru
    _
  // Predicated region
  $region22: #{_lambda_.25} parent=0 // pred_check
    _
  $region23: #{_lambda_.25} parent=0 // pred_check_branch
    %22 = sbr.rel (0) target = $region25
  $region24: #{_lambda_.25} parent=0 // pred_region
    _
  $region25: #{_lambda_.25} parent=0 // pred_fallthru
    _
  %p24 = scmp.eq.s32.totalorder 0, 0
  // Predicated region
  $region26: #{_lambda_.25} parent=0 // pred_check
    %p25 = pneg %p24
  $region27: #{_lambda_.25} parent=0 // pred_check_branch
    %27 = sbr.rel (%p25) target = $region29
  $region28: #{_lambda_.25} parent=0 // pred_region
    %28 = vst [vmem:[#allocation2] sm:$0xff] 0.0
    %29 = vst [vmem:[#allocation2 + $0x8] sm:$0xff] 0.0
    %30 = vst [vmem:[#allocation2 + $0x10] sm:$0xff] 0.0
    %31 = vst [vmem:[#allocation2 + $0x18] sm:$0xff] 0.0
  $region29: #{_lambda_.25} parent=0 // pred_fallthru
    _
  %v32 = vld [vmem:[#allocation2] sm:$0xff]
  %v33 = vld [vmem:[#allocation2 + $0x8] sm:$0xff]
  %v34 = vld [vmem:[#allocation2 + $0x10] sm:$0xff]
  %v35 = vld [vmem:[#allocation2 + $0x18] sm:$0xff]
  %v36 = vld [vmem:[%s0] sm:$0xf]
  %v37 = vld [vmem:[%s0 + $0x4] sm:$0xf]
  %v38 = vld [vmem:[%s0 + $0x8] sm:$0xf]
  %v39 = vld [vmem:[%s0 + $0xc] sm:$0xf]
  %v40 = vld [vmem:[%s1] sm:$0xf]
  %v41 = vld [vmem:[%s1 + $0x4] sm:$0xf]
  %v42 = vld [vmem:[%s1 + $0x8] sm:$0xf]
  %v43 = vld [vmem:[%s1 + $0xc] sm:$0xf]
  %v44 = vld [vmem:[%s1 + $0x10] sm:$0xf]
  %v45 = vld [vmem:[%s1 + $0x14] sm:$0xf]
  %v46 = vld [vmem:[%s1 + $0x18] sm:$0xf]
  %v47 = vld [vmem:[%s1 + $0x1c] sm:$0xf]
  %v48 = vld [vmem:[%s1 + $0x20] sm:$0xf]
  %v49 = vld [vmem:[%s1 + $0x24] sm:$0xf]
  %v50 = vld [vmem:[%s1 + $0x28] sm:$0xf]
  %v51 = vld [vmem:[%s1 + $0x2c] sm:$0xf]
  %v52 = vld [vmem:[%s1 + $0x30] sm:$0xf]
  %v53 = vld [vmem:[%s1 + $0x34] sm:$0xf]
  %v54 = vld [vmem:[%s1 + $0x38] sm:$0xf]
  %v55 = vld [vmem:[%s1 + $0x3c] sm:$0xf]
  %v60 = vunpack.c.l.b16 %v36
  %v61 = vunpack.c.l.b16 %v37
  %v62 = vunpack.c.l.b16 %v38
  %v63 = vunpack.c.l.b16 %v39
  %v64 = vpack.c.b16 %v61, %v60
  %v65 = vpack.c.b16 %v63, %v62
  %v84 = vunpack.c.l.b16 %v40
  %v85 = vunpack.c.l.b16 %v41
  %v86 = vunpack.c.l.b16 %v42
  %v87 = vunpack.c.l.b16 %v43
  %v88 = vunpack.c.l.b16 %v44
  %v89 = vunpack.c.l.b16 %v45
  %v90 = vunpack.c.l.b16 %v46
  %v91 = vunpack.c.l.b16 %v47
  %v92 = vunpack.c.l.b16 %v48
  %v93 = vunpack.c.l.b16 %v49
  %v94 = vunpack.c.l.b16 %v50
  %v95 = vunpack.c.l.b16 %v51
  %v96 = vunpack.c.l.b16 %v52
  %v97 = vunpack.c.l.b16 %v53
  %v98 = vunpack.c.l.b16 %v54
  %v99 = vunpack.c.l.b16 %v55
  %v100 = vpack.c.b16 %v85, %v84
  %v101 = vpack.c.b16 %v87, %v86
  %v102 = vpack.c.b16 %v89, %v88
  %v103 = vpack.c.b16 %v91, %v90
  %v104 = vpack.c.b16 %v93, %v92
  %v105 = vpack.c.b16 %v95, %v94
  %v106 = vpack.c.b16 %v97, %v96
  %v107 = vpack.c.b16 %v99, %v98
  %116 = vmatprep.subr.bf16.mxu0 0
  %117 = vmatpush1.bf16.msra.mxu0 %v107
  %118 = vmatprep.subr.bf16.mxu0 0
  %119 = vmatpush1.bf16.msra.mxu0 %v106
  %120 = vmatprep.subr.bf16.mxu0 0
  %121 = vmatpush1.bf16.msra.mxu0 %v105
  %122 = vmatprep.subr.bf16.mxu0 0
  %123 = vmatpush1.bf16.msra.mxu0 %v104
  %124 = vmatprep.subr.bf16.mxu0 0
  %125 = vmatpush1.bf16.msra.mxu0 %v103
  %126 = vmatprep.subr.bf16.mxu0 0
  %127 = vmatpush1.bf16.msra.mxu0 %v102
  %128 = vmatprep.subr.bf16.mxu0 0
  %129 = vmatpush1.bf16.msra.mxu0 %v101
  %130 = vmatprep.subr.bf16.mxu0 0
  %131 = vmatpush1.bf16.msra.mxu0 %v100
  %132 = vmatprep.subr.bf16.mxu0 0
  %133 = vmatpush2.bf16.msra.mxu0 0
  %134 = vmatprep.subr.bf16.mxu0 0
  %135 = vmatpush2.bf16.msra.mxu0 0
  %136 = vmatprep.subr.bf16.mxu0 0
  %137 = vmatpush2.bf16.msra.mxu0 0
  %138 = vmatprep.subr.bf16.mxu0 0
  %139 = vmatpush2.bf16.msra.mxu0 0
  %140 = vmatprep.subr.bf16.mxu0 0
  %141 = vmatpush2.bf16.msra.mxu0 0
  %142 = vmatprep.subr.bf16.mxu0 0
  %143 = vmatpush2.bf16.msra.mxu0 0
  %144 = vmatprep.subr.bf16.mxu0 0
  %145 = vmatpush2.bf16.msra.mxu0 0
  %146 = vmatprep.subr.bf16.mxu0 0
  %147 = vmatpush2.bf16.msra.mxu0 0
  %148 = vmatprep.mubr.bf16.mxu0 0
  %149 = vmatmul.mubr.bf16.gmra.mxu0 %v64
  %v150 = vpop.f32.mrf.mxu0
  %v151 = vadd.f32 0.0, %v150
  %v152 = vpop.f32.mrf.mxu0
  %v153 = vpop.f32.mrf.mxu0
  %v154 = vadd.f32 0.0, %v153
  %v155 = vpop.f32.mrf.mxu0
  %156 = vmatprep.mubr.bf16.mxu0 0
  %157 = vmatmul.mubr.bf16.gmra.mxu0 %v65
  %v158 = vpop.f32.mrf.mxu0
  %v159 = vadd.f32 0.0, %v158
  %v160 = vpop.f32.mrf.mxu0
  %v161 = vpop.f32.mrf.mxu0
  %v162 = vadd.f32 0.0, %v161
  %v163 = vpop.f32.mrf.mxu0
  %164 = vdwg.mxu0
  %v165 = vadd.f32 %v32, %v151
  %v166 = vadd.f32 %v33, %v154
  %v167 = vadd.f32 %v34, %v159
  %v168 = vadd.f32 %v35, %v162
  %169 = vst [vmem:[#allocation2] sm:$0xff] %v165
  %170 = vst [vmem:[#allocation2 + $0x8] sm:$0xff] %v166
  %171 = vst [vmem:[#allocation2 + $0x10] sm:$0xff] %v167
  %172 = vst [vmem:[#allocation2 + $0x18] sm:$0xff] %v168
  // Predicated region
  $region30: #{_lambda_.25} parent=0 // pred_check
    %p173 = pneg %p24
  $region31: #{_lambda_.25} parent=0 // pred_check_branch
    %175 = sbr.rel (%p173) target = $region33
  $region32: #{_lambda_.25} parent=0 // pred_region
    %v176 = vld [vmem:[#allocation2] sm:$0xff]
    %v177 = vld [vmem:[#allocation2 + $0x8] sm:$0xff]
    %v178 = vld [vmem:[#allocation2 + $0x10] sm:$0xff]
    %v179 = vld [vmem:[#allocation2 + $0x18] sm:$0xff]
    %v180 = vld [vmem:[%s2] sm:$0x1]
    %v182 = vlaneseq
    %v183 = vshrl.u32 %v182, 7
    %v184 = vsub.s32 0, %v183
    %v185 = vrot.slane %v180, %v184
    %v187 = vmul.f32 %v176, %v185
    %v188 = vmul.f32 %v177, %v185
    %v189 = vmul.f32 %v178, %v185
    %v190 = vmul.f32 %v179, %v185
    %v191 = vld [vmem:[%s3] sm:$0x1]
    %v193 = vlaneseq
    %v194 = vshrl.u32 %v193, 7
    %v195 = vsub.s32 0, %v194
    %v196 = vrot.slane %v191, %v195
    %v198 = vadd.f32 %v187, %v196
    %v199 = vadd.f32 %v188, %v196
    %v200 = vadd.f32 %v189, %v196
    %v201 = vadd.f32 %v190, %v196
    %v202 = vld [vmem:[%s4] sm:$0xf]
    %v203 = vld [vmem:[%s4 + $0x4] sm:$0xf]
    %v204 = vld [vmem:[%s4 + $0x8] sm:$0xf]
    %v205 = vld [vmem:[%s4 + $0xc] sm:$0xf]
    %v206 = vunpack.c.l.bf16 %v202
    %v207 = vunpack.c.l.bf16 %v203
    %v208 = vunpack.c.l.bf16 %v204
    %v209 = vunpack.c.l.bf16 %v205
    %211 = vset.pattern.permute.xlu0 0
    %212 = vperm.xlu0 %211, %v206
    %v213 = vpop.permute.xlu0 %212
    %216 = vset.pattern.permute.xlu0 0
    %217 = vperm.xlu0 %216, %v207
    %v218 = vpop.permute.xlu0 %217
    %221 = vset.pattern.permute.xlu0 0
    %222 = vperm.xlu0 %221, %v208
    %v223 = vpop.permute.xlu0 %222
    %226 = vset.pattern.permute.xlu0 0
    %227 = vperm.xlu0 %226, %v209
    %v228 = vpop.permute.xlu0 %227
    %v230 = vmul.f32 %v198, %v213
    %v231 = vmul.f32 %v199, %v218
    %v232 = vmul.f32 %v200, %v223
    %v233 = vmul.f32 %v201, %v228
    %v234 = vld [vmem:[%s5] sm:$0xf]
    %v235 = vld [vmem:[%s5 + $0x4] sm:$0xf]
    %v236 = vld [vmem:[%s5 + $0x8] sm:$0xf]
    %v237 = vld [vmem:[%s5 + $0xc] sm:$0xf]
    %v238 = vunpack.c.l.bf16 %v234
    %v239 = vunpack.c.l.bf16 %v235
    %v240 = vunpack.c.l.bf16 %v236
    %v241 = vunpack.c.l.bf16 %v237
    %v242 = vadd.f32 %v230, %v238
    %v243 = vadd.f32 %v231, %v239
    %v244 = vadd.f32 %v232, %v240
    %v245 = vadd.f32 %v233, %v241
    %v246 = vmax.f32 %v242, 0.0
    %v247 = vmax.f32 %v243, 0.0
    %v248 = vmax.f32 %v244, 0.0
    %v249 = vmax.f32 %v245, 0.0
    %v250 = vpack.c.bf16 %v247, %v246
    %v251 = vpack.c.bf16 %v249, %v248
    %v254 = vunpack.c.l.b16 %v250
    %v255 = vunpack.c.h.b16 %v250
    %v256 = vunpack.c.l.b16 %v251
    %v257 = vunpack.c.h.b16 %v251
    %v258 = vpack.c.b16 %v254, %v254
    %v259 = vpack.c.b16 %v255, %v255
    %v260 = vpack.c.b16 %v256, %v256
    %v261 = vpack.c.b16 %v257, %v257
    %266 = vst [vmem:[%s6] sm:$0xf] %v258
    %267 = vst [vmem:[%s6 + $0x4] sm:$0xf] %v259
    %268 = vst [vmem:[%s6 + $0x8] sm:$0xf] %v260
    %269 = vst [vmem:[%s6 + $0xc] sm:$0xf] %v261
  $region33: #{_lambda_.25} parent=0 // pred_fallthru
    _
  // Predicated region
  $region34: #{_lambda_.25} parent=0 // pred_check
    _
  $region35: #{_lambda_.25} parent=0 // pred_check_branch
    %271 = sbr.rel (0) target = $region37
  $region36: #{_lambda_.25} parent=0 // pred_region
    _
  $region37: #{_lambda_.25} parent=0 // pred_fallthru
    _
  // Predicated region
  $region38: #{_lambda_.25} parent=0 // pred_check
    _
  $region39: #{_lambda_.25} parent=0 // pred_check_branch
    %273 = sbr.rel (0) target = $region41
  $region40: #{_lambda_.25} parent=0 // pred_region
    _
  $region41: #{_lambda_.25} parent=0 // pred_fallthru
    _

// kernel: _lambda_.23
$region0: #{_lambda_.23}
  #allocation0 [shape = 'u32[]', space=smem, size = 0x4, offset = 0x4, fixed_abs, tag = 'smem constant byte address 0x4 - core index']
  #allocation1 [shape = 'u32[144,128]{1,0:T(1,128)}', space=vmem, size = 0x12000, scoped, tag = 'internal scratch']
  #allocation2 [shape = 'f32[32,128]{1,0:T(8,128)}', space=vmem, size = 0x4000, scoped, tag = 'scratch operand']
  %s0 = inlined_call_operand.vmem [shape: bf16[32,1152], index: 0, kind: input, shape index: {}]
  %s1 = inlined_call_operand.vmem [shape: bf16[1152,128], index: 1, kind: input, shape index: {}]
  %s2 = inlined_call_operand.vmem [shape: f32[1,128], index: 2, kind: input, shape index: {}]
  %s3 = inlined_call_operand.vmem [shape: f32[1,128], index: 3, kind: input, shape index: {}]
  %s4 = inlined_call_operand.vmem [shape: bf16[32,128], index: 4, kind: output, shape index: {}]
  %s5 = sld [smem:[#allocation0]]
  $region34: #{_lambda_.23} parent=0
    _
  %s7 = ssub.s32 1, %s5
  %s8 = scalar_select 0, %s7, %s5
  // Predicated region
  $region2: #{_lambda_.23} parent=0 // pred_check
    _
  $region3: #{_lambda_.23} parent=0 // pred_check_branch
    %10 = sbr.rel (0) target = $region5
  $region4: #{_lambda_.23} parent=0 // pred_region
    _
  $region5: #{_lambda_.23} parent=0 // pred_fallthru
    _
  // Predicated region
  $region6: #{_lambda_.23} parent=0 // pred_check
    _
  $region7: #{_lambda_.23} parent=0 // pred_check_branch
    %12 = sbr.rel (0) target = $region9
  $region8: #{_lambda_.23} parent=0 // pred_region
    _
  $region9: #{_lambda_.23} parent=0 // pred_fallthru
    _
  // Predicated region
  $region10: #{_lambda_.23} parent=0 // pred_check
    _
  $region11: #{_lambda_.23} parent=0 // pred_check_branch
    %14 = sbr.rel (0) target = $region13
  $region12: #{_lambda_.23} parent=0 // pred_region
    _
  $region13: #{_lambda_.23} parent=0 // pred_fallthru
    _
  // Predicated region
  $region14: #{_lambda_.23} parent=0 // pred_check
    _
  $region15: #{_lambda_.23} parent=0 // pred_check_branch
    %16 = sbr.rel (0) target = $region17
  $region16: #{_lambda_.23} parent=0 // pred_region
    _
  $region17: #{_lambda_.23} parent=0 // pred_fallthru
    _
  %p18 = scmp.eq.s32.totalorder 0, 0
  // Predicated region
  $region18: #{_lambda_.23} parent=0 // pred_check
    %p19 = pneg %p18
  $region19: #{_lambda_.23} parent=0 // pred_check_branch
    %21 = sbr.rel (%p19) target = $region21
  $region20: #{_lambda_.23} parent=0 // pred_region
    %22 = vst [vmem:[#allocation2] sm:$0xff] 0.0
    %23 = vst [vmem:[#allocation2 + $0x8] sm:$0xff] 0.0
    %24 = vst [vmem:[#allocation2 + $0x10] sm:$0xff] 0.0
    %25 = vst [vmem:[#allocation2 + $0x18] sm:$0xff] 0.0
  $region21: #{_lambda_.23} parent=0 // pred_fallthru
    _
  %v26 = vld [vmem:[#allocation2] sm:$0xff]
  %v27 = vld [vmem:[#allocation2 + $0x8] sm:$0xff]
  %v28 = vld [vmem:[#allocation2 + $0x10] sm:$0xff]
  %v29 = vld [vmem:[#allocation2 + $0x18] sm:$0xff]
  %v30 = vld [vmem:[%s0] sm:$0xff]
  %v31 = vld [vmem:[%s0 + $0x8] sm:$0xff]
  %v32 = vld [vmem:[%s0 + $0x10] sm:$0xff]
  %v33 = vld [vmem:[%s0 + $0x18] sm:$0xff]
  %v34 = vld [vmem:[%s0 + $0x20] sm:$0xf]
  %v35 = vld [vmem:[%s0 + $0x24] sm:$0xff]
  %v36 = vld [vmem:[%s0 + $0x2c] sm:$0xff]
  %v37 = vld [vmem:[%s0 + $0x34] sm:$0xff]
  %v38 = vld [vmem:[%s0 + $0x3c] sm:$0xff]
  %v39 = vld [vmem:[%s0 + $0x44] sm:$0xf]
  %v40 = vld [vmem:[%s0 + $0x48] sm:$0xff]
  %v41 = vld [vmem:[%s0 + $0x50] sm:$0xff]
  %v42 = vld [vmem:[%s0 + $0x58] sm:$0xff]
  %v43 = vld [vmem:[%s0 + $0x60] sm:$0xff]
  %v44 = vld [vmem:[%s0 + $0x68] sm:$0xf]
  %v45 = vld [vmem:[%s0 + $0x6c] sm:$0xff]
  %v46 = vld [vmem:[%s0 + $0x74] sm:$0xff]
  %v47 = vld [vmem:[%s0 + $0x7c] sm:$0xff]
  %v48 = vld [vmem:[%s0 + $0x84] sm:$0xff]
  %v49 = vld [vmem:[%s0 + $0x8c] sm:$0xf]
  %v50 = vld [vmem:[%s1] sm:$0xf]
  %v51 = vld [vmem:[%s1 + $0x4] sm:$0xf]
  %v52 = vld [vmem:[%s1 + $0x8] sm:$0xf]
  %v53 = vld [vmem:[%s1 + $0xc] sm:$0xf]
  %v54 = vld [vmem:[%s1 + $0x10] sm:$0xf]
  %v55 = vld [vmem:[%s1 + $0x14] sm:$0xf]
  %v56 = vld [vmem:[%s1 + $0x18] sm:$0xf]
  %v57 = vld [vmem:[%s1 + $0x1c] sm:$0xf]
  %v58 = vld [vmem:[%s1 + $0x20] sm:$0xf]
  %v59 = vld [vmem:[%s1 + $0x24] sm:$0xf]
  %v60 = vld [vmem:[%s1 + $0x28] sm:$0xf]
  %v61 = vld [vmem:[%s1 + $0x2c] sm:$0xf]
  %v62 = vld [vmem:[%s1 + $0x30] sm:$0xf]
  %v63 = vld [vmem:[%s1 + $0x34] sm:$0xf]
  %v64 = vld [vmem:[%s1 + $0x38] sm:$0xf]
  %v65 = vld [vmem:[%s1 + $0x3c] sm:$0xf]
  %v66 = vld [vmem:[%s1 + $0x40] sm:$0xf]
  %v67 = vld [vmem:[%s1 + $0x44] sm:$0xf]
  %v68 = vld [vmem:[%s1 + $0x48] sm:$0xf]
  %v69 = vld [vmem:[%s1 + $0x4c] sm:$0xf]
  %v70 = vld [vmem:[%s1 + $0x50] sm:$0xf]
  %v71 = vld [vmem:[%s1 + $0x54] sm:$0xf]
  %v72 = vld [vmem:[%s1 + $0x58] sm:$0xf]
  %v73 = vld [vmem:[%s1 + $0x5c] sm:$0xf]
  %v74 = vld [vmem:[%s1 + $0x60] sm:$0xf]
  %v75 = vld [vmem:[%s1 + $0x64] sm:$0xf]
  %v76 = vld [vmem:[%s1 + $0x68] sm:$0xf]
  %v77 = vld [vmem:[%s1 + $0x6c] sm:$0xf]
  %v78 = vld [vmem:[%s1 + $0x70] sm:$0xf]
  %v79 = vld [vmem:[%s1 + $0x74] sm:$0xf]
  %v80 = vld [vmem:[%s1 + $0x78] sm:$0xf]
  %v81 = vld [vmem:[%s1 + $0x7c] sm:$0xf]
  %v82 = vld [vmem:[%s1 + $0x80] sm:$0xf]
  %v83 = vld [vmem:[%s1 + $0x84] sm:$0xf]
  %v84 = vld [vmem:[%s1 + $0x88] sm:$0xf]
  %v85 = vld [vmem:[%s1 + $0x8c] sm:$0xf]
  %v86 = vld [vmem:[%s1 + $0x90] sm:$0xf]
  %v87 = vld [vmem:[%s1 + $0x94] sm:$0xf]
  %v88 = vld [vmem:[%s1 + $0x98] sm:$0xf]
  %v89 = vld [vmem:[%s1 + $0x9c] sm:$0xf]
  %v90 = vld [vmem:[%s1 + $0xa0] sm:$0xf]
  %v91 = vld [vmem:[%s1 + $0xa4] sm:$0xf]
  %v92 = vld [vmem:[%s1 + $0xa8] sm:$0xf]
  %v93 = vld [vmem:[%s1 + $0xac] sm:$0xf]
  %v94 = vld [vmem:[%s1 + $0xb0] sm:$0xf]
  %v95 = vld [vmem:[%s1 + $0xb4] sm:$0xf]
  %v96 = vld [vmem:[%s1 + $0xb8] sm:$0xf]
  %v97 = vld [vmem:[%s1 + $0xbc] sm:$0xf]
  %v98 = vld [vmem:[%s1 + $0xc0] sm:$0xf]
  %v99 = vld [vmem:[%s1 + $0xc4] sm:$0xf]
  %v100 = vld [vmem:[%s1 + $0xc8] sm:$0xf]
  %v101 = vld [vmem:[%s1 + $0xcc] sm:$0xf]
  %v102 = vld [vmem:[%s1 + $0xd0] sm:$0xf]
  %v103 = vld [vmem:[%s1 + $0xd4] sm:$0xf]
  %v104 = vld [vmem:[%s1 + $0xd8] sm:$0xf]
  %v105 = vld [vmem:[%s1 + $0xdc] sm:$0xf]
  %v106 = vld [vmem:[%s1 + $0xe0] sm:$0xf]
  %v107 = vld [vmem:[%s1 + $0xe4] sm:$0xf]
  %v108 = vld [vmem:[%s1 + $0xe8] sm:$0xf]
  %v109 = vld [vmem:[%s1 + $0xec] sm:$0xf]
  %v110 = vld [vmem:[%s1 + $0xf0] sm:$0xf]
  %v111 = vld [vmem:[%s1 + $0xf4] sm:$0xf]
  %v112 = vld [vmem:[%s1 + $0xf8] sm:$0xf]
  %v113 = vld [vmem:[%s1 + $0xfc] sm:$0xf]
  %v114 = vld [vmem:[%s1 + $0x100] sm:$0xf]
  %v115 = vld [vmem:[%s1 + $0x104] sm:$0xf]
  %v116 = vld [vmem:[%s1 + $0x108] sm:$0xf]
  %v117 = vld [vmem:[%s1 + $0x10c] sm:$0xf]
  %v118 = vld [vmem:[%s1 + $0x110] sm:$0xf]
  %v119 = vld [vmem:[%s1 + $0x114] sm:$0xf]
  %v120 = vld [vmem:[%s1 + $0x118] sm:$0xf]
  %v121 = vld [vmem:[%s1 + $0x11c] sm:$0xf]
  %v122 = vld [vmem:[%s1 + $0x120] sm:$0xf]
  %v123 = vld [vmem:[%s1 + $0x124] sm:$0xf]
  %v124 = vld [vmem:[%s1 + $0x128] sm:$0xf]
  %v125 = vld [vmem:[%s1 + $0x12c] sm:$0xf]
  %v126 = vld [vmem:[%s1 + $0x130] sm:$0xf]
  %v127 = vld [vmem:[%s1 + $0x134] sm:$0xf]
  %v128 = vld [vmem:[%s1 + $0x138] sm:$0xf]
  %v129 = vld [vmem:[%s1 + $0x13c] sm:$0xf]
  %v130 = vld [vmem:[%s1 + $0x140] sm:$0xf]
  %v131 = vld [vmem:[%s1 + $0x144] sm:$0xf]
  %v132 = vld [vmem:[%s1 + $0x148] sm:$0xf]
  %v133 = vld [vmem:[%s1 + $0x14c] sm:$0xf]
  %v134 = vld [vmem:[%s1 + $0x150] sm:$0xf]
  %v135 = vld [vmem:[%s1 + $0x154] sm:$0xf]
  %v136 = vld [vmem:[%s1 + $0x158] sm:$0xf]
  %v137 = vld [vmem:[%s1 + $0x15c] sm:$0xf]
  %v138 = vld [vmem:[%s1 + $0x160] sm:$0xf]
  %v139 = vld [vmem:[%s1 + $0x164] sm:$0xf]
  %v140 = vld [vmem:[%s1 + $0x168] sm:$0xf]
  %v141 = vld [vmem:[%s1 + $0x16c] sm:$0xf]
  %v142 = vld [vmem:[%s1 + $0x170] sm:$0xf]
  %v143 = vld [vmem:[%s1 + $0x174] sm:$0xf]
  %v144 = vld [vmem:[%s1 + $0x178] sm:$0xf]
  %v145 = vld [vmem:[%s1 + $0x17c] sm:$0xf]
  %v146 = vld [vmem:[%s1 + $0x180] sm:$0xf]
  %v147 = vld [vmem:[%s1 + $0x184] sm:$0xf]
  %v148 = vld [vmem:[%s1 + $0x188] sm:$0xf]
  %v149 = vld [vmem:[%s1 + $0x18c] sm:$0xf]
  %v150 = vld [vmem:[%s1 + $0x190] sm:$0xf]
  %v151 = vld [vmem:[%s1 + $0x194] sm:$0xf]
  %v152 = vld [vmem:[%s1 + $0x198] sm:$0xf]
  %v153 = vld [vmem:[%s1 + $0x19c] sm:$0xf]
  %v154 = vld [vmem:[%s1 + $0x1a0] sm:$0xf]
  %v155 = vld [vmem:[%s1 + $0x1a4] sm:$0xf]
  %v156 = vld [vmem:[%s1 + $0x1a8] sm:$0xf]
  %v157 = vld [vmem:[%s1 + $0x1ac] sm:$0xf]
  %v158 = vld [vmem:[%s1 + $0x1b0] sm:$0xf]
  %v159 = vld [vmem:[%s1 + $0x1b4] sm:$0xf]
  %v160 = vld [vmem:[%s1 + $0x1b8] sm:$0xf]
  %v161 = vld [vmem:[%s1 + $0x1bc] sm:$0xf]
  %v162 = vld [vmem:[%s1 + $0x1c0] sm:$0xf]
  %v163 = vld [vmem:[%s1 + $0x1c4] sm:$0xf]
  %v164 = vld [vmem:[%s1 + $0x1c8] sm:$0xf]
  %v165 = vld [vmem:[%s1 + $0x1cc] sm:$0xf]
  %v166 = vld [vmem:[%s1 + $0x1d0] sm:$0xf]
  %v167 = vld [vmem:[%s1 + $0x1d4] sm:$0xf]
  %v168 = vld [vmem:[%s1 + $0x1d8] sm:$0xf]
  %v169 = vld [vmem:[%s1 + $0x1dc] sm:$0xf]
  %v170 = vld [vmem:[%s1 + $0x1e0] sm:$0xf]
  %v171 = vld [vmem:[%s1 + $0x1e4] sm:$0xf]
  %v172 = vld [vmem:[%s1 + $0x1e8] sm:$0xf]
  %v173 = vld [vmem:[%s1 + $0x1ec] sm:$0xf]
  %v174 = vld [vmem:[%s1 + $0x1f0] sm:$0xf]
  %v175 = vld [vmem:[%s1 + $0x1f4] sm:$0xf]
  %v176 = vld [vmem:[%s1 + $0x1f8] sm:$0xf]
  %v177 = vld [vmem:[%s1 + $0x1fc] sm:$0xf]
  %v178 = vld [vmem:[%s1 + $0x200] sm:$0xf]
  %v179 = vld [vmem:[%s1 + $0x204] sm:$0xf]
  %v180 = vld [vmem:[%s1 + $0x208] sm:$0xf]
  %v181 = vld [vmem:[%s1 + $0x20c] sm:$0xf]
  %v182 = vld [vmem:[%s1 + $0x210] sm:$0xf]
  %v183 = vld [vmem:[%s1 + $0x214] sm:$0xf]
  %v184 = vld [vmem:[%s1 + $0x218] sm:$0xf]
  %v185 = vld [vmem:[%s1 + $0x21c] sm:$0xf]
  %v186 = vld [vmem:[%s1 + $0x220] sm:$0xf]
  %v187 = vld [vmem:[%s1 + $0x224] sm:$0xf]
  %v188 = vld [vmem:[%s1 + $0x228] sm:$0xf]
  %v189 = vld [vmem:[%s1 + $0x22c] sm:$0xf]
  %v190 = vld [vmem:[%s1 + $0x230] sm:$0xf]
  %v191 = vld [vmem:[%s1 + $0x234] sm:$0xf]
  %v192 = vld [vmem:[%s1 + $0x238] sm:$0xf]
  %v193 = vld [vmem:[%s1 + $0x23c] sm:$0xf]
  %v214 = vunpack.c.l.b16 %v30
  %v215 = vunpack.c.h.b16 %v30
  %v216 = vunpack.c.l.b16 %v31
  %v217 = vunpack.c.h.b16 %v31
  %v218 = vunpack.c.l.b16 %v32
  %v219 = vunpack.c.h.b16 %v32
  %v220 = vunpack.c.l.b16 %v33
  %v221 = vunpack.c.h.b16 %v33
  %v222 = vunpack.c.l.b16 %v34
  %v223 = vunpack.c.l.b16 %v35
  %v224 = vunpack.c.h.b16 %v35
  %v225 = vunpack.c.l.b16 %v36
  %v226 = vunpack.c.h.b16 %v36
  %v227 = vunpack.c.l.b16 %v37
  %v228 = vunpack.c.h.b16 %v37
  %v229 = vunpack.c.l.b16 %v38
  %v230 = vunpack.c.h.b16 %v38
  %v231 = vunpack.c.l.b16 %v39
  %v232 = vunpack.c.l.b16 %v40
  %v233 = vunpack.c.h.b16 %v40
  %v234 = vunpack.c.l.b16 %v41
  %v235 = vunpack.c.h.b16 %v41
  %v236 = vunpack.c.l.b16 %v42
  %v237 = vunpack.c.h.b16 %v42
  %v238 = vunpack.c.l.b16 %v43
  %v239 = vunpack.c.h.b16 %v43
  %v240 = vunpack.c.l.b16 %v44
  %v241 = vunpack.c.l.b16 %v45
  %v242 = vunpack.c.h.b16 %v45
  %v243 = vunpack.c.l.b16 %v46
  %v244 = vunpack.c.h.b16 %v46
  %v245 = vunpack.c.l.b16 %v47
  %v246 = vunpack.c.h.b16 %v47
  %v247 = vunpack.c.l.b16 %v48
  %v248 = vunpack.c.h.b16 %v48
  %v249 = vunpack.c.l.b16 %v49
  %v250 = vpack.c.b16 %v223, %v214
  %v251 = vpack.c.b16 %v224, %v215
  %v252 = vpack.c.b16 %v225, %v216
  %v253 = vpack.c.b16 %v226, %v217
  %v254 = vpack.c.b16 %v227, %v218
  %v255 = vpack.c.b16 %v228, %v219
  %v256 = vpack.c.b16 %v229, %v220
  %v257 = vpack.c.b16 %v230, %v221
  %v258 = vpack.c.b16 %v231, %v222
  %v259 = vpack.c.b16 %v241, %v232
  %v260 = vpack.c.b16 %v242, %v233
  %v261 = vpack.c.b16 %v243, %v234
  %v262 = vpack.c.b16 %v244, %v235
  %v263 = vpack.c.b16 %v245, %v236
  %v264 = vpack.c.b16 %v246, %v237
  %v265 = vpack.c.b16 %v247, %v238
  %v266 = vpack.c.b16 %v248, %v239
  %v267 = vpack.c.b16 %v249, %v240
  %v430 = vunpack.c.l.b16 %v50
  %v431 = vunpack.c.l.b16 %v51
  %v432 = vunpack.c.l.b16 %v52
  %v433 = vunpack.c.l.b16 %v53
  %v434 = vunpack.c.l.b16 %v54
  %v435 = vunpack.c.l.b16 %v55
  %v436 = vunpack.c.l.b16 %v56
  %v437 = vunpack.c.l.b16 %v57
  %v438 = vunpack.c.l.b16 %v58
  %v439 = vunpack.c.l.b16 %v59
  %v440 = vunpack.c.l.b16 %v60
  %v441 = vunpack.c.l.b16 %v61
  %v442 = vunpack.c.l.b16 %v62
  %v443 = vunpack.c.l.b16 %v63
  %v444 = vunpack.c.l.b16 %v64
  %v445 = vunpack.c.l.b16 %v65
  %v446 = vunpack.c.l.b16 %v66
  %v447 = vunpack.c.l.b16 %v67
  %v448 = vunpack.c.l.b16 %v68
  %v449 = vunpack.c.l.b16 %v69
  %v450 = vunpack.c.l.b16 %v70
  %v451 = vunpack.c.l.b16 %v71
  %v452 = vunpack.c.l.b16 %v72
  %v453 = vunpack.c.l.b16 %v73
  %v454 = vunpack.c.l.b16 %v74
  %v455 = vunpack.c.l.b16 %v75
  %v456 = vunpack.c.l.b16 %v76
  %v457 = vunpack.c.l.b16 %v77
  %v458 = vunpack.c.l.b16 %v78
  %v459 = vunpack.c.l.b16 %v79
  %v460 = vunpack.c.l.b16 %v80
  %v461 = vunpack.c.l.b16 %v81
  %v462 = vunpack.c.l.b16 %v82
  %v463 = vunpack.c.l.b16 %v83
  %v464 = vunpack.c.l.b16 %v84
  %v465 = vunpack.c.l.b16 %v85
  %v466 = vunpack.c.l.b16 %v86
  %v467 = vunpack.c.l.b16 %v87
  %v468 = vunpack.c.l.b16 %v88
  %v469 = vunpack.c.l.b16 %v89
  %v470 = vunpack.c.l.b16 %v90
  %v471 = vunpack.c.l.b16 %v91
  %v472 = vunpack.c.l.b16 %v92
  %v473 = vunpack.c.l.b16 %v93
  %v474 = vunpack.c.l.b16 %v94
  %v475 = vunpack.c.l.b16 %v95
  %v476 = vunpack.c.l.b16 %v96
  %v477 = vunpack.c.l.b16 %v97
  %v478 = vunpack.c.l.b16 %v98
  %v479 = vunpack.c.l.b16 %v99
  %v480 = vunpack.c.l.b16 %v100
  %v481 = vunpack.c.l.b16 %v101
  %v482 = vunpack.c.l.b16 %v102
  %v483 = vunpack.c.l.b16 %v103
  %v484 = vunpack.c.l.b16 %v104
  %v485 = vunpack.c.l.b16 %v105
  %v486 = vunpack.c.l.b16 %v106
  %v487 = vunpack.c.l.b16 %v107
  %v488 = vunpack.c.l.b16 %v108
  %v489 = vunpack.c.l.b16 %v109
  %v490 = vunpack.c.l.b16 %v110
  %v491 = vunpack.c.l.b16 %v111
  %v492 = vunpack.c.l.b16 %v112
  %v493 = vunpack.c.l.b16 %v113
  %v494 = vunpack.c.l.b16 %v114
  %v495 = vunpack.c.l.b16 %v115
  %v496 = vunpack.c.l.b16 %v116
  %v497 = vunpack.c.l.b16 %v117
  %v498 = vunpack.c.l.b16 %v118
  %v499 = vunpack.c.l.b16 %v119
  %v500 = vunpack.c.l.b16 %v120
  %v501 = vunpack.c.l.b16 %v121
  %v502 = vunpack.c.l.b16 %v122
  %v503 = vunpack.c.l.b16 %v123
  %v504 = vunpack.c.l.b16 %v124
  %v505 = vunpack.c.l.b16 %v125
  %v506 = vunpack.c.l.b16 %v126
  %v507 = vunpack.c.l.b16 %v127
  %v508 = vunpack.c.l.b16 %v128
  %v509 = vunpack.c.l.b16 %v129
  %v510 = vunpack.c.l.b16 %v130
  %v511 = vunpack.c.l.b16 %v131
  %v512 = vunpack.c.l.b16 %v132
  %v513 = vunpack.c.l.b16 %v133
  %v514 = vunpack.c.l.b16 %v134
  %v515 = vunpack.c.l.b16 %v135
  %v516 = vunpack.c.l.b16 %v136
  %v517 = vunpack.c.l.b16 %v137
  %v518 = vunpack.c.l.b16 %v138
  %v519 = vunpack.c.l.b16 %v139
  %v520 = vunpack.c.l.b16 %v140
  %v521 = vunpack.c.l.b16 %v141
  %v522 = vunpack.c.l.b16 %v142
  %v523 = vunpack.c.l.b16 %v143
  %v524 = vunpack.c.l.b16 %v144
  %v525 = vunpack.c.l.b16 %v145
  %v526 = vunpack.c.l.b16 %v146
  %v527 = vunpack.c.l.b16 %v147
  %v528 = vunpack.c.l.b16 %v148
  %v529 = vunpack.c.l.b16 %v149
  %v530 = vunpack.c.l.b16 %v150
  %v531 = vunpack.c.l.b16 %v151
  %v532 = vunpack.c.l.b16 %v152
  %v533 = vunpack.c.l.b16 %v153
  %v534 = vunpack.c.l.b16 %v154
  %v535 = vunpack.c.l.b16 %v155
  %v536 = vunpack.c.l.b16 %v156
  %v537 = vunpack.c.l.b16 %v157
  %v538 = vunpack.c.l.b16 %v158
  %v539 = vunpack.c.l.b16 %v159
  %v540 = vunpack.c.l.b16 %v160
  %v541 = vunpack.c.l.b16 %v161
  %v542 = vunpack.c.l.b16 %v162
  %v543 = vunpack.c.l.b16 %v163
  %v544 = vunpack.c.l.b16 %v164
  %v545 = vunpack.c.l.b16 %v165
  %v546 = vunpack.c.l.b16 %v166
  %v547 = vunpack.c.l.b16 %v167
  %v548 = vunpack.c.l.b16 %v168
  %v549 = vunpack.c.l.b16 %v169
  %v550 = vunpack.c.l.b16 %v170
  %v551 = vunpack.c.l.b16 %v171
  %v552 = vunpack.c.l.b16 %v172
  %v553 = vunpack.c.l.b16 %v173
  %v554 = vunpack.c.l.b16 %v174
  %v555 = vunpack.c.l.b16 %v175
  %v556 = vunpack.c.l.b16 %v176
  %v557 = vunpack.c.l.b16 %v177
  %v558 = vunpack.c.l.b16 %v178
  %v559 = vunpack.c.l.b16 %v179
  %v560 = vunpack.c.l.b16 %v180
  %v561 = vunpack.c.l.b16 %v181
  %v562 = vunpack.c.l.b16 %v182
  %v563 = vunpack.c.l.b16 %v183
  %v564 = vunpack.c.l.b16 %v184
  %v565 = vunpack.c.l.b16 %v185
  %v566 = vunpack.c.l.b16 %v186
  %v567 = vunpack.c.l.b16 %v187
  %v568 = vunpack.c.l.b16 %v188
  %v569 = vunpack.c.l.b16 %v189
  %v570 = vunpack.c.l.b16 %v190
  %v571 = vunpack.c.l.b16 %v191
  %v572 = vunpack.c.l.b16 %v192
  %v573 = vunpack.c.l.b16 %v193
  %v574 = vpack.c.b16 %v431, %v430
  %v575 = vpack.c.b16 %v433, %v432
  %v576 = vpack.c.b16 %v435, %v434
  %v577 = vpack.c.b16 %v437, %v436
  %v578 = vpack.c.b16 %v439, %v438
  %v579 = vpack.c.b16 %v441, %v440
  %v580 = vpack.c.b16 %v443, %v442
  %v581 = vpack.c.b16 %v445, %v444
  %v582 = vpack.c.b16 %v447, %v446
  %v583 = vpack.c.b16 %v449, %v448
  %v584 = vpack.c.b16 %v451, %v450
  %v585 = vpack.c.b16 %v453, %v452
  %v586 = vpack.c.b16 %v455, %v454
  %v587 = vpack.c.b16 %v457, %v456
  %v588 = vpack.c.b16 %v459, %v458
  %v589 = vpack.c.b16 %v461, %v460
  %v590 = vpack.c.b16 %v463, %v462
  %v591 = vpack.c.b16 %v465, %v464
  %v592 = vpack.c.b16 %v467, %v466
  %v593 = vpack.c.b16 %v469, %v468
  %v594 = vpack.c.b16 %v471, %v470
  %v595 = vpack.c.b16 %v473, %v472
  %v596 = vpack.c.b16 %v475, %v474
  %v597 = vpack.c.b16 %v477, %v476
  %v598 = vpack.c.b16 %v479, %v478
  %v599 = vpack.c.b16 %v481, %v480
  %v600 = vpack.c.b16 %v483, %v482
  %v601 = vpack.c.b16 %v485, %v484
  %v602 = vpack.c.b16 %v487, %v486
  %v603 = vpack.c.b16 %v489, %v488
  %v604 = vpack.c.b16 %v491, %v490
  %v605 = vpack.c.b16 %v493, %v492
  %v606 = vpack.c.b16 %v495, %v494
  %v607 = vpack.c.b16 %v497, %v496
  %v608 = vpack.c.b16 %v499, %v498
  %v609 = vpack.c.b16 %v501, %v500
  %v610 = vpack.c.b16 %v503, %v502
  %v611 = vpack.c.b16 %v505, %v504
  %v612 = vpack.c.b16 %v507, %v506
  %v613 = vpack.c.b16 %v509, %v508
  %v614 = vpack.c.b16 %v511, %v510
  %v615 = vpack.c.b16 %v513, %v512
  %v616 = vpack.c.b16 %v515, %v514
  %v617 = vpack.c.b16 %v517, %v516
  %v618 = vpack.c.b16 %v519, %v518
  %v619 = vpack.c.b16 %v521, %v520
  %v620 = vpack.c.b16 %v523, %v522
  %v621 = vpack.c.b16 %v525, %v524
  %v622 = vpack.c.b16 %v527, %v526
  %v623 = vpack.c.b16 %v529, %v528
  %v624 = vpack.c.b16 %v531, %v530
  %v625 = vpack.c.b16 %v533, %v532
  %v626 = vpack.c.b16 %v535, %v534
  %v627 = vpack.c.b16 %v537, %v536
  %v628 = vpack.c.b16 %v539, %v538
  %v629 = vpack.c.b16 %v541, %v540
  %v630 = vpack.c.b16 %v543, %v542
  %v631 = vpack.c.b16 %v545, %v544
  %v632 = vpack.c.b16 %v547, %v546
  %v633 = vpack.c.b16 %v549, %v548
  %v634 = vpack.c.b16 %v551, %v550
  %v635 = vpack.c.b16 %v553, %v552
  %v636 = vpack.c.b16 %v555, %v554
  %v637 = vpack.c.b16 %v557, %v556
  %v638 = vpack.c.b16 %v559, %v558
  %v639 = vpack.c.b16 %v561, %v560
  %v640 = vpack.c.b16 %v563, %v562
  %v641 = vpack.c.b16 %v565, %v564
  %v642 = vpack.c.b16 %v567, %v566
  %v643 = vpack.c.b16 %v569, %v568
  %v644 = vpack.c.b16 %v571, %v570
  %v645 = vpack.c.b16 %v573, %v572
  %718 = vmatprep.subr.bf16.mxu0 0
  %719 = vmatpush1.bf16.msra.mxu0 %v581
  %720 = vmatprep.subr.bf16.mxu0 0
  %721 = vmatpush1.bf16.msra.mxu0 %v580
  %722 = vmatprep.subr.bf16.mxu0 0
  %723 = vmatpush1.bf16.msra.mxu0 %v579
  %724 = vmatprep.subr.bf16.mxu0 0
  %725 = vmatpush1.bf16.msra.mxu0 %v578
  %726 = vmatprep.subr.bf16.mxu0 0
  %727 = vmatpush1.bf16.msra.mxu0 %v577
  %728 = vmatprep.subr.bf16.mxu0 0
  %729 = vmatpush1.bf16.msra.mxu0 %v576
  %730 = vmatprep.subr.bf16.mxu0 0
  %731 = vmatpush1.bf16.msra.mxu0 %v575
  %732 = vmatprep.subr.bf16.mxu0 0
  %733 = vmatpush1.bf16.msra.mxu0 %v574
  %734 = vmatprep.subr.bf16.mxu0 0
  %735 = vmatpush2.bf16.msra.mxu0 %v589
  %736 = vmatprep.subr.bf16.mxu0 0
  %737 = vmatpush2.bf16.msra.mxu0 %v588
  %738 = vmatprep.subr.bf16.mxu0 0
  %739 = vmatpush2.bf16.msra.mxu0 %v587
  %740 = vmatprep.subr.bf16.mxu0 0
  %741 = vmatpush2.bf16.msra.mxu0 %v586
  %742 = vmatprep.subr.bf16.mxu0 0
  %743 = vmatpush2.bf16.msra.mxu0 %v585
  %744 = vmatprep.subr.bf16.mxu0 0
  %745 = vmatpush2.bf16.msra.mxu0 %v584
  %746 = vmatprep.subr.bf16.mxu0 0
  %747 = vmatpush2.bf16.msra.mxu0 %v583
  %748 = vmatprep.subr.bf16.mxu0 0
  %749 = vmatpush2.bf16.msra.mxu0 %v582
  %750 = vmatprep.mubr.bf16.mxu0 %v251
  %751 = vmatmul.mubr.bf16.gmra.mxu0 %v250
  %v752 = vpop.f32.mrf.mxu0
  %v753 = vadd.f32 0.0, %v752
  %v754 = vpop.f32.mrf.mxu0
  %v755 = vpop.f32.mrf.mxu0
  %v756 = vadd.f32 0.0, %v755
  %v757 = vpop.f32.mrf.mxu0
  %758 = vmatprep.mubr.bf16.mxu0 %v260
  %759 = vmatmul.mubr.bf16.gmra.mxu0 %v259
  %v760 = vpop.f32.mrf.mxu0
  %v761 = vadd.f32 0.0, %v760
  %v762 = vpop.f32.mrf.mxu0
  %v763 = vpop.f32.mrf.mxu0
  %v764 = vadd.f32 0.0, %v763
  %v765 = vpop.f32.mrf.mxu0
  %766 = vdwg.mxu0
  %767 = vmatprep.subr.bf16.mxu0 0
  %768 = vmatpush1.bf16.msra.mxu0 %v597
  %769 = vmatprep.subr.bf16.mxu0 0
  %770 = vmatpush1.bf16.msra.mxu0 %v596
  %771 = vmatprep.subr.bf16.mxu0 0
  %772 = vmatpush1.bf16.msra.mxu0 %v595
  %773 = vmatprep.subr.bf16.mxu0 0
  %774 = vmatpush1.bf16.msra.mxu0 %v594
  %775 = vmatprep.subr.bf16.mxu0 0
  %776 = vmatpush1.bf16.msra.mxu0 %v593
  %777 = vmatprep.subr.bf16.mxu0 0
  %778 = vmatpush1.bf16.msra.mxu0 %v592
  %779 = vmatprep.subr.bf16.mxu0 0
  %780 = vmatpush1.bf16.msra.mxu0 %v591
  %781 = vmatprep.subr.bf16.mxu0 0
  %782 = vmatpush1.bf16.msra.mxu0 %v590
  %783 = vmatprep.subr.bf16.mxu0 0
  %784 = vmatpush2.bf16.msra.mxu0 %v605
  %785 = vmatprep.subr.bf16.mxu0 0
  %786 = vmatpush2.bf16.msra.mxu0 %v604
  %787 = vmatprep.subr.bf16.mxu0 0
  %788 = vmatpush2.bf16.msra.mxu0 %v603
  %789 = vmatprep.subr.bf16.mxu0 0
  %790 = vmatpush2.bf16.msra.mxu0 %v602
  %791 = vmatprep.subr.bf16.mxu0 0
  %792 = vmatpush2.bf16.msra.mxu0 %v601
  %793 = vmatprep.subr.bf16.mxu0 0
  %794 = vmatpush2.bf16.msra.mxu0 %v600
  %795 = vmatprep.subr.bf16.mxu0 0
  %796 = vmatpush2.bf16.msra.mxu0 %v599
  %797 = vmatprep.subr.bf16.mxu0 0
  %798 = vmatpush2.bf16.msra.mxu0 %v598
  %799 = vmatprep.mubr.bf16.mxu0 %v253
  %800 = vmatmul.mubr.bf16.gmra.mxu0 %v252
  %v801 = vpop.f32.mrf.mxu0
  %v802 = vadd.f32 %v753, %v801
  %v803 = vpop.f32.mrf.mxu0
  %v804 = vpop.f32.mrf.mxu0
  %v805 = vadd.f32 %v756, %v804
  %v806 = vpop.f32.mrf.mxu0
  %807 = vmatprep.mubr.bf16.mxu0 %v262
  %808 = vmatmul.mubr.bf16.gmra.mxu0 %v261
  %v809 = vpop.f32.mrf.mxu0
  %v810 = vadd.f32 %v761, %v809
  %v811 = vpop.f32.mrf.mxu0
  %v812 = vpop.f32.mrf.mxu0
  %v813 = vadd.f32 %v764, %v812
  %v814 = vpop.f32.mrf.mxu0
  %815 = vdwg.mxu0
  %816 = vmatprep.subr.bf16.mxu0 0
  %817 = vmatpush1.bf16.msra.mxu0 %v613
  %818 = vmatprep.subr.bf16.mxu0 0
  %819 = vmatpush1.bf16.msra.mxu0 %v612
  %820 = vmatprep.subr.bf16.mxu0 0
  %821 = vmatpush1.bf16.msra.mxu0 %v611
  %822 = vmatprep.subr.bf16.mxu0 0
  %823 = vmatpush1.bf16.msra.mxu0 %v610
  %824 = vmatprep.subr.bf16.mxu0 0
  %825 = vmatpush1.bf16.msra.mxu0 %v609
  %826 = vmatprep.subr.bf16.mxu0 0
  %827 = vmatpush1.bf16.msra.mxu0 %v608
  %828 = vmatprep.subr.bf16.mxu0 0
  %829 = vmatpush1.bf16.msra.mxu0 %v607
  %830 = vmatprep.subr.bf16.mxu0 0
  %831 = vmatpush1.bf16.msra.mxu0 %v606
  %832 = vmatprep.subr.bf16.mxu0 0
  %833 = vmatpush2.bf16.msra.mxu0 %v621
  %834 = vmatprep.subr.bf16.mxu0 0
  %835 = vmatpush2.bf16.msra.mxu0 %v620
  %836 = vmatprep.subr.bf16.mxu0 0
  %837 = vmatpush2.bf16.msra.mxu0 %v619
  %838 = vmatprep.subr.bf16.mxu0 0
  %839 = vmatpush2.bf16.msra.mxu0 %v618
  %840 = vmatprep.subr.bf16.mxu0 0
  %841 = vmatpush2.bf16.msra.mxu0 %v617
  %842 = vmatprep.subr.bf16.mxu0 0
  %843 = vmatpush2.bf16.msra.mxu0 %v616
  %844 = vmatprep.subr.bf16.mxu0 0
  %845 = vmatpush2.bf16.msra.mxu0 %v615
  %846 = vmatprep.subr.bf16.mxu0 0
  %847 = vmatpush2.bf16.msra.mxu0 %v614
  %848 = vmatprep.mubr.bf16.mxu0 %v255
  %849 = vmatmul.mubr.bf16.gmra.mxu0 %v254
  %v850 = vpop.f32.mrf.mxu0
  %v851 = vadd.f32 %v802, %v850
  %v852 = vpop.f32.mrf.mxu0
  %v853 = vpop.f32.mrf.mxu0
  %v854 = vadd.f32 %v805, %v853
  %v855 = vpop.f32.mrf.mxu0
  %856 = vmatprep.mubr.bf16.mxu0 %v264
  %857 = vmatmul.mubr.bf16.gmra.mxu0 %v263
  %v858 = vpop.f32.mrf.mxu0
  %v859 = vadd.f32 %v810, %v858
  %v860 = vpop.f32.mrf.mxu0
  %v861 = vpop.f32.mrf.mxu0
  %v862 = vadd.f32 %v813, %v861
  %v863 = vpop.f32.mrf.mxu0
  %864 = vdwg.mxu0
  %865 = vmatprep.subr.bf16.mxu0 0
  %866 = vmatpush1.bf16.msra.mxu0 %v629
  %867 = vmatprep.subr.bf16.mxu0 0
  %868 = vmatpush1.bf16.msra.mxu0 %v628
  %869 = vmatprep.subr.bf16.mxu0 0
  %870 = vmatpush1.bf16.msra.mxu0 %v627
  %871 = vmatprep.subr.bf16.mxu0 0
  %872 = vmatpush1.bf16.msra.mxu0 %v626
  %873 = vmatprep.subr.bf16.mxu0 0
  %874 = vmatpush1.bf16.msra.mxu0 %v625
  %875 = vmatprep.subr.bf16.mxu0 0
  %876 = vmatpush1.bf16.msra.mxu0 %v624
  %877 = vmatprep.subr.bf16.mxu0 0
  %878 = vmatpush1.bf16.msra.mxu0 %v623
  %879 = vmatprep.subr.bf16.mxu0 0
  %880 = vmatpush1.bf16.msra.mxu0 %v622
  %881 = vmatprep.subr.bf16.mxu0 0
  %882 = vmatpush2.bf16.msra.mxu0 %v637
  %883 = vmatprep.subr.bf16.mxu0 0
  %884 = vmatpush2.bf16.msra.mxu0 %v636
  %885 = vmatprep.subr.bf16.mxu0 0
  %886 = vmatpush2.bf16.msra.mxu0 %v635
  %887 = vmatprep.subr.bf16.mxu0 0
  %888 = vmatpush2.bf16.msra.mxu0 %v634
  %889 = vmatprep.subr.bf16.mxu0 0
  %890 = vmatpush2.bf16.msra.mxu0 %v633
  %891 = vmatprep.subr.bf16.mxu0 0
  %892 = vmatpush2.bf16.msra.mxu0 %v632
  %893 = vmatprep.subr.bf16.mxu0 0
  %894 = vmatpush2.bf16.msra.mxu0 %v631
  %895 = vmatprep.subr.bf16.mxu0 0
  %896 = vmatpush2.bf16.msra.mxu0 %v630
  %897 = vmatprep.mubr.bf16.mxu0 %v257
  %898 = vmatmul.mubr.bf16.gmra.mxu0 %v256
  %v899 = vpop.f32.mrf.mxu0
  %v900 = vadd.f32 %v851, %v899
  %v901 = vpop.f32.mrf.mxu0
  %v902 = vpop.f32.mrf.mxu0
  %v903 = vadd.f32 %v854, %v902
  %v904 = vpop.f32.mrf.mxu0
  %905 = vmatprep.mubr.bf16.mxu0 %v266
  %906 = vmatmul.mubr.bf16.gmra.mxu0 %v265
  %v907 = vpop.f32.mrf.mxu0
  %v908 = vadd.f32 %v859, %v907
  %v909 = vpop.f32.mrf.mxu0
  %v910 = vpop.f32.mrf.mxu0
  %v911 = vadd.f32 %v862, %v910
  %v912 = vpop.f32.mrf.mxu0
  %913 = vdwg.mxu0
  %914 = vmatprep.subr.bf16.mxu0 0
  %915 = vmatpush1.bf16.msra.mxu0 %v645
  %916 = vmatprep.subr.bf16.mxu0 0
  %917 = vmatpush1.bf16.msra.mxu0 %v644
  %918 = vmatprep.subr.bf16.mxu0 0
  %919 = vmatpush1.bf16.msra.mxu0 %v643
  %920 = vmatprep.subr.bf16.mxu0 0
  %921 = vmatpush1.bf16.msra.mxu0 %v642
  %922 = vmatprep.subr.bf16.mxu0 0
  %923 = vmatpush1.bf16.msra.mxu0 %v641
  %924 = vmatprep.subr.bf16.mxu0 0
  %925 = vmatpush1.bf16.msra.mxu0 %v640
  %926 = vmatprep.subr.bf16.mxu0 0
  %927 = vmatpush1.bf16.msra.mxu0 %v639
  %928 = vmatprep.subr.bf16.mxu0 0
  %929 = vmatpush1.bf16.msra.mxu0 %v638
  %930 = vmatprep.subr.bf16.mxu0 0
  %931 = vmatpush2.bf16.msra.mxu0 0
  %932 = vmatprep.subr.bf16.mxu0 0
  %933 = vmatpush2.bf16.msra.mxu0 0
  %934 = vmatprep.subr.bf16.mxu0 0
  %935 = vmatpush2.bf16.msra.mxu0 0
  %936 = vmatprep.subr.bf16.mxu0 0
  %937 = vmatpush2.bf16.msra.mxu0 0
  %938 = vmatprep.subr.bf16.mxu0 0
  %939 = vmatpush2.bf16.msra.mxu0 0
  %940 = vmatprep.subr.bf16.mxu0 0
  %941 = vmatpush2.bf16.msra.mxu0 0
  %942 = vmatprep.subr.bf16.mxu0 0
  %943 = vmatpush2.bf16.msra.mxu0 0
  %944 = vmatprep.subr.bf16.mxu0 0
  %945 = vmatpush2.bf16.msra.mxu0 0
  %946 = vmatprep.mubr.bf16.mxu0 0
  %947 = vmatmul.mubr.bf16.gmra.mxu0 %v258
  %v948 = vpop.f32.mrf.mxu0
  %v949 = vadd.f32 %v900, %v948
  %v950 = vpop.f32.mrf.mxu0
  %v951 = vpop.f32.mrf.mxu0
  %v952 = vadd.f32 %v903, %v951
  %v953 = vpop.f32.mrf.mxu0
  %954 = vmatprep.mubr.bf16.mxu0 0
  %955 = vmatmul.mubr.bf16.gmra.mxu0 %v267
  %v956 = vpop.f32.mrf.mxu0
  %v957 = vadd.f32 %v908, %v956
  %v958 = vpop.f32.mrf.mxu0
  %v959 = vpop.f32.mrf.mxu0
  %v960 = vadd.f32 %v911, %v959
  %v961 = vpop.f32.mrf.mxu0
  %962 = vdwg.mxu0
  %v963 = vadd.f32 %v26, %v949
  %v964 = vadd.f32 %v27, %v952
  %v965 = vadd.f32 %v28, %v957
  %v966 = vadd.f32 %v29, %v960
  %967 = vst [vmem:[#allocation2] sm:$0xff] %v963
  %968 = vst [vmem:[#allocation2 + $0x8] sm:$0xff] %v964
  %969 = vst [vmem:[#allocation2 + $0x10] sm:$0xff] %v965
  %970 = vst [vmem:[#allocation2 + $0x18] sm:$0xff] %v966
  // Predicated region
  $region22: #{_lambda_.23} parent=0 // pred_check
    %p971 = pneg %p18
  $region23: #{_lambda_.23} parent=0 // pred_check_branch
    %973 = sbr.rel (%p971) target = $region25
  $region24: #{_lambda_.23} parent=0 // pred_region
    %v974 = vld [vmem:[#allocation2] sm:$0xff]
    %v975 = vld [vmem:[#allocation2 + $0x8] sm:$0xff]
    %v976 = vld [vmem:[#allocation2 + $0x10] sm:$0xff]
    %v977 = vld [vmem:[#allocation2 + $0x18] sm:$0xff]
    %v978 = vld [vmem:[%s2] sm:$0x1]
    %v980 = vlaneseq
    %v981 = vshrl.u32 %v980, 7
    %v982 = vsub.s32 0, %v981
    %v983 = vrot.slane %v978, %v982
    %v985 = vmul.f32 %v974, %v983
    %v986 = vmul.f32 %v975, %v983
    %v987 = vmul.f32 %v976, %v983
    %v988 = vmul.f32 %v977, %v983
    %v989 = vld [vmem:[%s3] sm:$0x1]
    %v991 = vlaneseq
    %v992 = vshrl.u32 %v991, 7
    %v993 = vsub.s32 0, %v992
    %v994 = vrot.slane %v989, %v993
    %v996 = vadd.f32 %v985, %v994
    %v997 = vadd.f32 %v986, %v994
    %v998 = vadd.f32 %v987, %v994
    %v999 = vadd.f32 %v988, %v994
    %v1000 = vmax.f32 %v996, 0.0
    %v1001 = vmax.f32 %v997, 0.0
    %v1002 = vmax.f32 %v998, 0.0
    %v1003 = vmax.f32 %v999, 0.0
    %v1004 = vpack.c.bf16 %v1001, %v1000
    %v1005 = vpack.c.bf16 %v1003, %v1002
    %v1008 = vunpack.c.l.b16 %v1004
    %v1009 = vunpack.c.h.b16 %v1004
    %v1010 = vunpack.c.l.b16 %v1005
    %v1011 = vunpack.c.h.b16 %v1005
    %v1012 = vpack.c.b16 %v1008, %v1008
    %v1013 = vpack.c.b16 %v1009, %v1009
    %v1014 = vpack.c.b16 %v1010, %v1010
    %v1015 = vpack.c.b16 %v1011, %v1011
    %1020 = vst [vmem:[%s4] sm:$0xf] %v1012
    %1021 = vst [vmem:[%s4 + $0x4] sm:$0xf] %v1013
    %1022 = vst [vmem:[%s4 + $0x8] sm:$0xf] %v1014
    %1023 = vst [vmem:[%s4 + $0xc] sm:$0xf] %v1015
  $region25: #{_lambda_.23} parent=0 // pred_fallthru
    _
  // Predicated region
  $region26: #{_lambda_.23} parent=0 // pred_check
    _
  $region27: #{_lambda_.23} parent=0 // pred_check_branch
    %1025 = sbr.rel (0) target = $region29
  $region28: #{_lambda_.23} parent=0 // pred_region
    _
  $region29: #{_lambda_.23} parent=0 // pred_fallthru
    _
  // Predicated region
  $region30: #{_lambda_.23} parent=0 // pred_check
    _
  $region31: #{_lambda_.23} parent=0 // pred_check_branch
    %1027 = sbr.rel (0) target = $region33
  $region32: #{_lambda_.23} parent=0 // pred_region
    _
  $region33: #{_lambda_.23} parent=0 // pred_fallthru
    _

// kernel: _lambda_.26
$region0: #{_lambda_.26}
  #allocation0 [shape = 'u32[]', space=smem, size = 0x4, offset = 0x4, fixed_abs, tag = 'smem constant byte address 0x4 - core index']
  #allocation1 [shape = 'u32[144,128]{1,0:T(1,128)}', space=vmem, size = 0x12000, scoped, tag = 'internal scratch']
  #allocation2 [shape = 'f32[32,128]{1,0:T(8,128)}', space=vmem, size = 0x4000, scoped, tag = 'scratch operand']
  %s0 = inlined_call_operand.vmem [shape: bf16[32,128], index: 0, kind: input, shape index: {}]
  %s1 = inlined_call_operand.vmem [shape: bf16[128,128], index: 1, kind: input, shape index: {}]
  %s2 = inlined_call_operand.vmem [shape: f32[1,128], index: 2, kind: input, shape index: {}]
  %s3 = inlined_call_operand.vmem [shape: f32[1,128], index: 3, kind: input, shape index: {}]
  %s4 = inlined_call_operand.vmem [shape: bf16[32,128], index: 4, kind: output, shape index: {}]
  %s5 = sld [smem:[#allocation0]]
  $region34: #{_lambda_.26} parent=0
    _
  %s7 = ssub.s32 1, %s5
  %s8 = scalar_select 0, %s7, %s5
  // Predicated region
  $region2: #{_lambda_.26} parent=0 // pred_check
    _
  $region3: #{_lambda_.26} parent=0 // pred_check_branch
    %10 = sbr.rel (0) target = $region5
  $region4: #{_lambda_.26} parent=0 // pred_region
    _
  $region5: #{_lambda_.26} parent=0 // pred_fallthru
    _
  // Predicated region
  $region6: #{_lambda_.26} parent=0 // pred_check
    _
  $region7: #{_lambda_.26} parent=0 // pred_check_branch
    %12 = sbr.rel (0) target = $region9
  $region8: #{_lambda_.26} parent=0 // pred_region
    _
  $region9: #{_lambda_.26} parent=0 // pred_fallthru
    _
  // Predicated region
  $region10: #{_lambda_.26} parent=0 // pred_check
    _
  $region11: #{_lambda_.26} parent=0 // pred_check_branch
    %14 = sbr.rel (0) target = $region13
  $region12: #{_lambda_.26} parent=0 // pred_region
    _
  $region13: #{_lambda_.26} parent=0 // pred_fallthru
    _
  // Predicated region
  $region14: #{_lambda_.26} parent=0 // pred_check
    _
  $region15: #{_lambda_.26} parent=0 // pred_check_branch
    %16 = sbr.rel (0) target = $region17
  $region16: #{_lambda_.26} parent=0 // pred_region
    _
  $region17: #{_lambda_.26} parent=0 // pred_fallthru
    _
  %p18 = scmp.eq.s32.totalorder 0, 0
  // Predicated region
  $region18: #{_lambda_.26} parent=0 // pred_check
    %p19 = pneg %p18
  $region19: #{_lambda_.26} parent=0 // pred_check_branch
    %21 = sbr.rel (%p19) target = $region21
  $region20: #{_lambda_.26} parent=0 // pred_region
    %22 = vst [vmem:[#allocation2] sm:$0xff] 0.0
    %23 = vst [vmem:[#allocation2 + $0x8] sm:$0xff] 0.0
    %24 = vst [vmem:[#allocation2 + $0x10] sm:$0xff] 0.0
    %25 = vst [vmem:[#allocation2 + $0x18] sm:$0xff] 0.0
  $region21: #{_lambda_.26} parent=0 // pred_fallthru
    _
  %v26 = vld [vmem:[#allocation2] sm:$0xff]
  %v27 = vld [vmem:[#allocation2 + $0x8] sm:$0xff]
  %v28 = vld [vmem:[#allocation2 + $0x10] sm:$0xff]
  %v29 = vld [vmem:[#allocation2 + $0x18] sm:$0xff]
  %v30 = vld [vmem:[%s0] sm:$0xf]
  %v31 = vld [vmem:[%s0 + $0x4] sm:$0xf]
  %v32 = vld [vmem:[%s0 + $0x8] sm:$0xf]
  %v33 = vld [vmem:[%s0 + $0xc] sm:$0xf]
  %v34 = vld [vmem:[%s1] sm:$0xf]
  %v35 = vld [vmem:[%s1 + $0x4] sm:$0xf]
  %v36 = vld [vmem:[%s1 + $0x8] sm:$0xf]
  %v37 = vld [vmem:[%s1 + $0xc] sm:$0xf]
  %v38 = vld [vmem:[%s1 + $0x10] sm:$0xf]
  %v39 = vld [vmem:[%s1 + $0x14] sm:$0xf]
  %v40 = vld [vmem:[%s1 + $0x18] sm:$0xf]
  %v41 = vld [vmem:[%s1 + $0x1c] sm:$0xf]
  %v42 = vld [vmem:[%s1 + $0x20] sm:$0xf]
  %v43 = vld [vmem:[%s1 + $0x24] sm:$0xf]
  %v44 = vld [vmem:[%s1 + $0x28] sm:$0xf]
  %v45 = vld [vmem:[%s1 + $0x2c] sm:$0xf]
  %v46 = vld [vmem:[%s1 + $0x30] sm:$0xf]
  %v47 = vld [vmem:[%s1 + $0x34] sm:$0xf]
  %v48 = vld [vmem:[%s1 + $0x38] sm:$0xf]
  %v49 = vld [vmem:[%s1 + $0x3c] sm:$0xf]
  %v54 = vunpack.c.l.b16 %v30
  %v55 = vunpack.c.l.b16 %v31
  %v56 = vunpack.c.l.b16 %v32
  %v57 = vunpack.c.l.b16 %v33
  %v58 = vpack.c.b16 %v55, %v54
  %v59 = vpack.c.b16 %v57, %v56
  %v78 = vunpack.c.l.b16 %v34
  %v79 = vunpack.c.l.b16 %v35
  %v80 = vunpack.c.l.b16 %v36
  %v81 = vunpack.c.l.b16 %v37
  %v82 = vunpack.c.l.b16 %v38
  %v83 = vunpack.c.l.b16 %v39
  %v84 = vunpack.c.l.b16 %v40
  %v85 = vunpack.c.l.b16 %v41
  %v86 = vunpack.c.l.b16 %v42
  %v87 = vunpack.c.l.b16 %v43
  %v88 = vunpack.c.l.b16 %v44
  %v89 = vunpack.c.l.b16 %v45
  %v90 = vunpack.c.l.b16 %v46
  %v91 = vunpack.c.l.b16 %v47
  %v92 = vunpack.c.l.b16 %v48
  %v93 = vunpack.c.l.b16 %v49
  %v94 = vpack.c.b16 %v79, %v78
  %v95 = vpack.c.b16 %v81, %v80
  %v96 = vpack.c.b16 %v83, %v82
  %v97 = vpack.c.b16 %v85, %v84
  %v98 = vpack.c.b16 %v87, %v86
  %v99 = vpack.c.b16 %v89, %v88
  %v100 = vpack.c.b16 %v91, %v90
  %v101 = vpack.c.b16 %v93, %v92
  %110 = vmatprep.subr.bf16.mxu0 0
  %111 = vmatpush1.bf16.msra.mxu0 %v101
  %112 = vmatprep.subr.bf16.mxu0 0
  %113 = vmatpush1.bf16.msra.mxu0 %v100
  %114 = vmatprep.subr.bf16.mxu0 0
  %115 = vmatpush1.bf16.msra.mxu0 %v99
  %116 = vmatprep.subr.bf16.mxu0 0
  %117 = vmatpush1.bf16.msra.mxu0 %v98
  %118 = vmatprep.subr.bf16.mxu0 0
  %119 = vmatpush1.bf16.msra.mxu0 %v97
  %120 = vmatprep.subr.bf16.mxu0 0
  %121 = vmatpush1.bf16.msra.mxu0 %v96
  %122 = vmatprep.subr.bf16.mxu0 0
  %123 = vmatpush1.bf16.msra.mxu0 %v95
  %124 = vmatprep.subr.bf16.mxu0 0
  %125 = vmatpush1.bf16.msra.mxu0 %v94
  %126 = vmatprep.subr.bf16.mxu0 0
  %127 = vmatpush2.bf16.msra.mxu0 0
  %128 = vmatprep.subr.bf16.mxu0 0
  %129 = vmatpush2.bf16.msra.mxu0 0
  %130 = vmatprep.subr.bf16.mxu0 0
  %131 = vmatpush2.bf16.msra.mxu0 0
  %132 = vmatprep.subr.bf16.mxu0 0
  %133 = vmatpush2.bf16.msra.mxu0 0
  %134 = vmatprep.subr.bf16.mxu0 0
  %135 = vmatpush2.bf16.msra.mxu0 0
  %136 = vmatprep.subr.bf16.mxu0 0
  %137 = vmatpush2.bf16.msra.mxu0 0
  %138 = vmatprep.subr.bf16.mxu0 0
  %139 = vmatpush2.bf16.msra.mxu0 0
  %140 = vmatprep.subr.bf16.mxu0 0
  %141 = vmatpush2.bf16.msra.mxu0 0
  %142 = vmatprep.mubr.bf16.mxu0 0
  %143 = vmatmul.mubr.bf16.gmra.mxu0 %v58
  %v144 = vpop.f32.mrf.mxu0
  %v145 = vadd.f32 0.0, %v144
  %v146 = vpop.f32.mrf.mxu0
  %v147 = vpop.f32.mrf.mxu0
  %v148 = vadd.f32 0.0, %v147
  %v149 = vpop.f32.mrf.mxu0
  %150 = vmatprep.mubr.bf16.mxu0 0
  %151 = vmatmul.mubr.bf16.gmra.mxu0 %v59
  %v152 = vpop.f32.mrf.mxu0
  %v153 = vadd.f32 0.0, %v152
  %v154 = vpop.f32.mrf.mxu0
  %v155 = vpop.f32.mrf.mxu0
  %v156 = vadd.f32 0.0, %v155
  %v157 = vpop.f32.mrf.mxu0
  %158 = vdwg.mxu0
  %v159 = vadd.f32 %v26, %v145
  %v160 = vadd.f32 %v27, %v148
  %v161 = vadd.f32 %v28, %v153
  %v162 = vadd.f32 %v29, %v156
  %163 = vst [vmem:[#allocation2] sm:$0xff] %v159
  %164 = vst [vmem:[#allocation2 + $0x8] sm:$0xff] %v160
  %165 = vst [vmem:[#allocation2 + $0x10] sm:$0xff] %v161
  %166 = vst [vmem:[#allocation2 + $0x18] sm:$0xff] %v162
  // Predicated region
  $region22: #{_lambda_.26} parent=0 // pred_check
    %p167 = pneg %p18
  $region23: #{_lambda_.26} parent=0 // pred_check_branch
    %169 = sbr.rel (%p167) target = $region25
  $region24: #{_lambda_.26} parent=0 // pred_region
    %v170 = vld [vmem:[#allocation2] sm:$0xff]
    %v171 = vld [vmem:[#allocation2 + $0x8] sm:$0xff]
    %v172 = vld [vmem:[#allocation2 + $0x10] sm:$0xff]
    %v173 = vld [vmem:[#allocation2 + $0x18] sm:$0xff]
    %v174 = vld [vmem:[%s2] sm:$0x1]
    %v176 = vlaneseq
    %v177 = vshrl.u32 %v176, 7
    %v178 = vsub.s32 0, %v177
    %v179 = vrot.slane %v174, %v178
    %v181 = vmul.f32 %v170, %v179
    %v182 = vmul.f32 %v171, %v179
    %v183 = vmul.f32 %v172, %v179
    %v184 = vmul.f32 %v173, %v179
    %v185 = vld [vmem:[%s3] sm:$0x1]
    %v187 = vlaneseq
    %v188 = vshrl.u32 %v187, 7
    %v189 = vsub.s32 0, %v188
    %v190 = vrot.slane %v185, %v189
    %v192 = vadd.f32 %v181, %v190
    %v193 = vadd.f32 %v182, %v190
    %v194 = vadd.f32 %v183, %v190
    %v195 = vadd.f32 %v184, %v190
    %v196 = vmax.f32 %v192, 0.0
    %v197 = vmax.f32 %v193, 0.0
    %v198 = vmax.f32 %v194, 0.0
    %v199 = vmax.f32 %v195, 0.0
    %v200 = vpack.c.bf16 %v197, %v196
    %v201 = vpack.c.bf16 %v199, %v198
    %v204 = vunpack.c.l.b16 %v200
    %v205 = vunpack.c.h.b16 %v200
    %v206 = vunpack.c.l.b16 %v201
    %v207 = vunpack.c.h.b16 %v201
    %v208 = vpack.c.b16 %v204, %v204
    %v209 = vpack.c.b16 %v205, %v205
    %v210 = vpack.c.b16 %v206, %v206
    %v211 = vpack.c.b16 %v207, %v207
    %216 = vst [vmem:[%s4] sm:$0xf] %v208
    %217 = vst [vmem:[%s4 + $0x4] sm:$0xf] %v209
    %218 = vst [vmem:[%s4 + $0x8] sm:$0xf] %v210
    %219 = vst [vmem:[%s4 + $0xc] sm:$0xf] %v211
  $region25: #{_lambda_.26} parent=0 // pred_fallthru
    _
  // Predicated region
  $region26: #{_lambda_.26} parent=0 // pred_check
    _
  $region27: #{_lambda_.26} parent=0 // pred_check_branch
    %221 = sbr.rel (0) target = $region29
  $region28: #{_lambda_.26} parent=0 // pred_region
    _
  $region29: #{_lambda_.26} parent=0 // pred_fallthru
    _
  // Predicated region
  $region30: #{_lambda_.26} parent=0 // pred_check
    _
  $region31: #{_lambda_.26} parent=0 // pred_check_branch
    %223 = sbr.rel (0) target = $region33
  $region32: #{_lambda_.26} parent=0 // pred_region
    _
  $region33: #{_lambda_.26} parent=0 // pred_fallthru
    _

// kernel: _lambda_.28
$region0: #{_lambda_.28}
  #allocation0 [shape = 'u32[]', space=smem, size = 0x4, offset = 0x4, fixed_abs, tag = 'smem constant byte address 0x4 - core index']
  #allocation1 [shape = 'u32[144,128]{1,0:T(1,128)}', space=vmem, size = 0x12000, scoped, tag = 'internal scratch']
  #allocation2 [shape = 'f32[16,256]{1,0:T(8,128)}', space=vmem, size = 0x4000, scoped, tag = 'scratch operand']
  %s0 = inlined_call_operand.vmem [shape: bf16[16,128], index: 0, kind: input, shape index: {}]
  %s1 = inlined_call_operand.vmem [shape: bf16[128,256], index: 1, kind: input, shape index: {}]
  %s2 = inlined_call_operand.vmem [shape: f32[1,256], index: 2, kind: input, shape index: {}]
  %s3 = inlined_call_operand.vmem [shape: f32[1,256], index: 3, kind: input, shape index: {}]
  %s4 = inlined_call_operand.vmem [shape: bf16[16,256], index: 4, kind: output, shape index: {}]
  %s5 = sld [smem:[#allocation0]]
  $region34: #{_lambda_.28} parent=0
    _
  %s7 = ssub.s32 1, %s5
  %s8 = scalar_select 0, %s7, %s5
  // Predicated region
  $region2: #{_lambda_.28} parent=0 // pred_check
    _
  $region3: #{_lambda_.28} parent=0 // pred_check_branch
    %10 = sbr.rel (0) target = $region5
  $region4: #{_lambda_.28} parent=0 // pred_region
    _
  $region5: #{_lambda_.28} parent=0 // pred_fallthru
    _
  // Predicated region
  $region6: #{_lambda_.28} parent=0 // pred_check
    _
  $region7: #{_lambda_.28} parent=0 // pred_check_branch
    %12 = sbr.rel (0) target = $region9
  $region8: #{_lambda_.28} parent=0 // pred_region
    _
  $region9: #{_lambda_.28} parent=0 // pred_fallthru
    _
  // Predicated region
  $region10: #{_lambda_.28} parent=0 // pred_check
    _
  $region11: #{_lambda_.28} parent=0 // pred_check_branch
    %14 = sbr.rel (0) target = $region13
  $region12: #{_lambda_.28} parent=0 // pred_region
    _
  $region13: #{_lambda_.28} parent=0 // pred_fallthru
    _
  // Predicated region
  $region14: #{_lambda_.28} parent=0 // pred_check
    _
  $region15: #{_lambda_.28} parent=0 // pred_check_branch
    %16 = sbr.rel (0) target = $region17
  $region16: #{_lambda_.28} parent=0 // pred_region
    _
  $region17: #{_lambda_.28} parent=0 // pred_fallthru
    _
  %p18 = scmp.eq.s32.totalorder 0, 0
  // Predicated region
  $region18: #{_lambda_.28} parent=0 // pred_check
    %p19 = pneg %p18
  $region19: #{_lambda_.28} parent=0 // pred_check_branch
    %21 = sbr.rel (%p19) target = $region21
  $region20: #{_lambda_.28} parent=0 // pred_region
    %22 = vst [vmem:[#allocation2] sm:$0xff] 0.0
    %23 = vst [vmem:[#allocation2 + $0x8] sm:$0xff] 0.0
    %24 = vst [vmem:[#allocation2 + $0x10] sm:$0xff] 0.0
    %25 = vst [vmem:[#allocation2 + $0x18] sm:$0xff] 0.0
  $region21: #{_lambda_.28} parent=0 // pred_fallthru
    _
  %v26 = vld [vmem:[#allocation2] sm:$0xff]
  %v27 = vld [vmem:[#allocation2 + $0x8] sm:$0xff]
  %v28 = vld [vmem:[#allocation2 + $0x10] sm:$0xff]
  %v29 = vld [vmem:[#allocation2 + $0x18] sm:$0xff]
  %v30 = vld [vmem:[%s0] sm:$0xf]
  %v31 = vld [vmem:[%s0 + $0x4] sm:$0xf]
  %v32 = vld [vmem:[%s1] sm:$0xff]
  %v33 = vld [vmem:[%s1 + $0x8] sm:$0xff]
  %v34 = vld [vmem:[%s1 + $0x10] sm:$0xff]
  %v35 = vld [vmem:[%s1 + $0x18] sm:$0xff]
  %v36 = vld [vmem:[%s1 + $0x20] sm:$0xff]
  %v37 = vld [vmem:[%s1 + $0x28] sm:$0xff]
  %v38 = vld [vmem:[%s1 + $0x30] sm:$0xff]
  %v39 = vld [vmem:[%s1 + $0x38] sm:$0xff]
  %v40 = vld [vmem:[%s1 + $0x40] sm:$0xff]
  %v41 = vld [vmem:[%s1 + $0x48] sm:$0xff]
  %v42 = vld [vmem:[%s1 + $0x50] sm:$0xff]
  %v43 = vld [vmem:[%s1 + $0x58] sm:$0xff]
  %v44 = vld [vmem:[%s1 + $0x60] sm:$0xff]
  %v45 = vld [vmem:[%s1 + $0x68] sm:$0xff]
  %v46 = vld [vmem:[%s1 + $0x70] sm:$0xff]
  %v47 = vld [vmem:[%s1 + $0x78] sm:$0xff]
  %v50 = vunpack.c.l.b16 %v30
  %v51 = vunpack.c.l.b16 %v31
  %v52 = vpack.c.b16 %v51, %v50
  %v70 = vunpack.c.l.b16 %v32
  %v71 = vunpack.c.h.b16 %v32
  %v72 = vunpack.c.l.b16 %v33
  %v73 = vunpack.c.h.b16 %v33
  %v74 = vunpack.c.l.b16 %v34
  %v75 = vunpack.c.h.b16 %v34
  %v76 = vunpack.c.l.b16 %v35
  %v77 = vunpack.c.h.b16 %v35
  %v78 = vunpack.c.l.b16 %v36
  %v79 = vunpack.c.h.b16 %v36
  %v80 = vunpack.c.l.b16 %v37
  %v81 = vunpack.c.h.b16 %v37
  %v82 = vunpack.c.l.b16 %v38
  %v83 = vunpack.c.h.b16 %v38
  %v84 = vunpack.c.l.b16 %v39
  %v85 = vunpack.c.h.b16 %v39
  %v86 = vunpack.c.l.b16 %v40
  %v87 = vunpack.c.h.b16 %v40
  %v88 = vunpack.c.l.b16 %v41
  %v89 = vunpack.c.h.b16 %v41
  %v90 = vunpack.c.l.b16 %v42
  %v91 = vunpack.c.h.b16 %v42
  %v92 = vunpack.c.l.b16 %v43
  %v93 = vunpack.c.h.b16 %v43
  %v94 = vunpack.c.l.b16 %v44
  %v95 = vunpack.c.h.b16 %v44
  %v96 = vunpack.c.l.b16 %v45
  %v97 = vunpack.c.h.b16 %v45
  %v98 = vunpack.c.l.b16 %v46
  %v99 = vunpack.c.h.b16 %v46
  %v100 = vunpack.c.l.b16 %v47
  %v101 = vunpack.c.h.b16 %v47
  %v102 = vpack.c.b16 %v72, %v70
  %v103 = vpack.c.b16 %v73, %v71
  %v104 = vpack.c.b16 %v76, %v74
  %v105 = vpack.c.b16 %v77, %v75
  %v106 = vpack.c.b16 %v80, %v78
  %v107 = vpack.c.b16 %v81, %v79
  %v108 = vpack.c.b16 %v84, %v82
  %v109 = vpack.c.b16 %v85, %v83
  %v110 = vpack.c.b16 %v88, %v86
  %v111 = vpack.c.b16 %v89, %v87
  %v112 = vpack.c.b16 %v92, %v90
  %v113 = vpack.c.b16 %v93, %v91
  %v114 = vpack.c.b16 %v96, %v94
  %v115 = vpack.c.b16 %v97, %v95
  %v116 = vpack.c.b16 %v100, %v98
  %v117 = vpack.c.b16 %v101, %v99
  %134 = vmatprep.subr.bf16.mxu0 %v117
  %135 = vmatpush1.bf16.msra.mxu0 %v116
  %136 = vmatprep.subr.bf16.mxu0 %v115
  %137 = vmatpush1.bf16.msra.mxu0 %v114
  %138 = vmatprep.subr.bf16.mxu0 %v113
  %139 = vmatpush1.bf16.msra.mxu0 %v112
  %140 = vmatprep.subr.bf16.mxu0 %v111
  %141 = vmatpush1.bf16.msra.mxu0 %v110
  %142 = vmatprep.subr.bf16.mxu0 %v109
  %143 = vmatpush1.bf16.msra.mxu0 %v108
  %144 = vmatprep.subr.bf16.mxu0 %v107
  %145 = vmatpush1.bf16.msra.mxu0 %v106
  %146 = vmatprep.subr.bf16.mxu0 %v105
  %147 = vmatpush1.bf16.msra.mxu0 %v104
  %148 = vmatprep.subr.bf16.mxu0 %v103
  %149 = vmatpush1.bf16.msra.mxu0 %v102
  %150 = vmatprep.subr.bf16.mxu0 0
  %151 = vmatpush2.bf16.msra.mxu0 0
  %152 = vmatprep.subr.bf16.mxu0 0
  %153 = vmatpush2.bf16.msra.mxu0 0
  %154 = vmatprep.subr.bf16.mxu0 0
  %155 = vmatpush2.bf16.msra.mxu0 0
  %156 = vmatprep.subr.bf16.mxu0 0
  %157 = vmatpush2.bf16.msra.mxu0 0
  %158 = vmatprep.subr.bf16.mxu0 0
  %159 = vmatpush2.bf16.msra.mxu0 0
  %160 = vmatprep.subr.bf16.mxu0 0
  %161 = vmatpush2.bf16.msra.mxu0 0
  %162 = vmatprep.subr.bf16.mxu0 0
  %163 = vmatpush2.bf16.msra.mxu0 0
  %164 = vmatprep.subr.bf16.mxu0 0
  %165 = vmatpush2.bf16.msra.mxu0 0
  %166 = vmatprep.mubr.bf16.mxu0 0
  %167 = vmatmul.mubr.bf16.gmra.mxu0 %v52
  %v168 = vpop.f32.mrf.mxu0
  %v169 = vadd.f32 0.0, %v168
  %v170 = vpop.f32.mrf.mxu0
  %v171 = vadd.f32 0.0, %v170
  %v172 = vpop.f32.mrf.mxu0
  %v173 = vadd.f32 0.0, %v172
  %v174 = vpop.f32.mrf.mxu0
  %v175 = vadd.f32 0.0, %v174
  %176 = vdwg.mxu0
  %v177 = vadd.f32 %v26, %v169
  %v178 = vadd.f32 %v27, %v171
  %v179 = vadd.f32 %v28, %v173
  %v180 = vadd.f32 %v29, %v175
  %181 = vst [vmem:[#allocation2] sm:$0xff] %v177
  %182 = vst [vmem:[#allocation2 + $0x8] sm:$0xff] %v178
  %183 = vst [vmem:[#allocation2 + $0x10] sm:$0xff] %v179
  %184 = vst [vmem:[#allocation2 + $0x18] sm:$0xff] %v180
  // Predicated region
  $region22: #{_lambda_.28} parent=0 // pred_check
    %p185 = pneg %p18
  $region23: #{_lambda_.28} parent=0 // pred_check_branch
    %187 = sbr.rel (%p185) target = $region25
  $region24: #{_lambda_.28} parent=0 // pred_region
    %v188 = vld [vmem:[#allocation2] sm:$0xff]
    %v189 = vld [vmem:[#allocation2 + $0x8] sm:$0xff]
    %v190 = vld [vmem:[#allocation2 + $0x10] sm:$0xff]
    %v191 = vld [vmem:[#allocation2 + $0x18] sm:$0xff]
    %v192 = vld [vmem:[%s2] sm:$0x3]
    %v194 = vlaneseq
    %v195 = vshrl.u32 %v194, 7
    %v196 = vsub.s32 0, %v195
    %v197 = vrot.slane %v192, %v196
    %v198 = vlaneseq
    %v199 = vshrl.u32 %v198, 7
    %v200 = vsub.s32 1, %v199
    %v201 = vrot.slane %v192, %v200
    %v204 = vmul.f32 %v188, %v197
    %v205 = vmul.f32 %v189, %v201
    %v206 = vmul.f32 %v190, %v197
    %v207 = vmul.f32 %v191, %v201
    %v208 = vld [vmem:[%s3] sm:$0x3]
    %v210 = vlaneseq
    %v211 = vshrl.u32 %v210, 7
    %v212 = vsub.s32 0, %v211
    %v213 = vrot.slane %v208, %v212
    %v214 = vlaneseq
    %v215 = vshrl.u32 %v214, 7
    %v216 = vsub.s32 1, %v215
    %v217 = vrot.slane %v208, %v216
    %v220 = vadd.f32 %v204, %v213
    %v221 = vadd.f32 %v205, %v217
    %v222 = vadd.f32 %v206, %v213
    %v223 = vadd.f32 %v207, %v217
    %v224 = vpack.c.bf16 %v222, %v220
    %v225 = vpack.c.bf16 %v223, %v221
    %v228 = vunpack.c.l.b16 %v224
    %v229 = vunpack.c.l.b16 %v225
    %v230 = vunpack.c.h.b16 %v224
    %v231 = vunpack.c.h.b16 %v225
    %v232 = vpack.c.b16 %v229, %v228
    %v233 = vpack.c.b16 %v231, %v230
    %236 = vst [vmem:[%s4] sm:$0xff] %v232
    %237 = vst [vmem:[%s4 + $0x8] sm:$0xff] %v233
  $region25: #{_lambda_.28} parent=0 // pred_fallthru
    _
  // Predicated region
  $region26: #{_lambda_.28} parent=0 // pred_check
    _
  $region27: #{_lambda_.28} parent=0 // pred_check_branch
    %239 = sbr.rel (0) target = $region29
  $region28: #{_lambda_.28} parent=0 // pred_region
    _
  $region29: #{_lambda_.28} parent=0 // pred_fallthru
    _
  // Predicated region
  $region30: #{_lambda_.28} parent=0 // pred_check
    _
  $region31: #{_lambda_.28} parent=0 // pred_check_branch
    %241 = sbr.rel (0) target = $region33
  $region32: #{_lambda_.28} parent=0 // pred_region
    _
  $region33: #{_lambda_.28} parent=0 // pred_fallthru
    _

// kernel: _lambda_.27
$region0: #{_lambda_.27}
  #allocation0 [shape = 'u32[]', space=smem, size = 0x4, offset = 0x4, fixed_abs, tag = 'smem constant byte address 0x4 - core index']
  #allocation1 [shape = 'u32[144,128]{1,0:T(1,128)}', space=vmem, size = 0x12000, scoped, tag = 'internal scratch']
  #allocation2 [shape = 'f32[16,128]{1,0:T(8,128)}', space=vmem, size = 0x2000, scoped, tag = 'scratch operand']
  %s0 = inlined_call_operand.vmem [shape: bf16[16,1152], index: 0, kind: input, shape index: {}]
  %s1 = inlined_call_operand.vmem [shape: bf16[1152,128], index: 1, kind: input, shape index: {}]
  %s2 = inlined_call_operand.vmem [shape: f32[1,128], index: 2, kind: input, shape index: {}]
  %s3 = inlined_call_operand.vmem [shape: f32[1,128], index: 3, kind: input, shape index: {}]
  %s4 = inlined_call_operand.vmem [shape: bf16[16,128], index: 4, kind: output, shape index: {}]
  %s5 = sld [smem:[#allocation0]]
  $region34: #{_lambda_.27} parent=0
    _
  %s7 = ssub.s32 1, %s5
  %s8 = scalar_select 0, %s7, %s5
  // Predicated region
  $region2: #{_lambda_.27} parent=0 // pred_check
    _
  $region3: #{_lambda_.27} parent=0 // pred_check_branch
    %10 = sbr.rel (0) target = $region5
  $region4: #{_lambda_.27} parent=0 // pred_region
    _
  $region5: #{_lambda_.27} parent=0 // pred_fallthru
    _
  // Predicated region
  $region6: #{_lambda_.27} parent=0 // pred_check
    _
  $region7: #{_lambda_.27} parent=0 // pred_check_branch
    %12 = sbr.rel (0) target = $region9
  $region8: #{_lambda_.27} parent=0 // pred_region
    _
  $region9: #{_lambda_.27} parent=0 // pred_fallthru
    _
  // Predicated region
  $region10: #{_lambda_.27} parent=0 // pred_check
    _
  $region11: #{_lambda_.27} parent=0 // pred_check_branch
    %14 = sbr.rel (0) target = $region13
  $region12: #{_lambda_.27} parent=0 // pred_region
    _
  $region13: #{_lambda_.27} parent=0 // pred_fallthru
    _
  // Predicated region
  $region14: #{_lambda_.27} parent=0 // pred_check
    _
  $region15: #{_lambda_.27} parent=0 // pred_check_branch
    %16 = sbr.rel (0) target = $region17
  $region16: #{_lambda_.27} parent=0 // pred_region
    _
  $region17: #{_lambda_.27} parent=0 // pred_fallthru
    _
  %p18 = scmp.eq.s32.totalorder 0, 0
  // Predicated region
  $region18: #{_lambda_.27} parent=0 // pred_check
    %p19 = pneg %p18
  $region19: #{_lambda_.27} parent=0 // pred_check_branch
    %21 = sbr.rel (%p19) target = $region21
  $region20: #{_lambda_.27} parent=0 // pred_region
    %22 = vst [vmem:[#allocation2] sm:$0xff] 0.0
    %23 = vst [vmem:[#allocation2 + $0x8] sm:$0xff] 0.0
  $region21: #{_lambda_.27} parent=0 // pred_fallthru
    _
  %v24 = vld [vmem:[#allocation2] sm:$0xff]
  %v25 = vld [vmem:[#allocation2 + $0x8] sm:$0xff]
  %v26 = vld [vmem:[%s0] sm:$0xff]
  %v27 = vld [vmem:[%s0 + $0x8] sm:$0xff]
  %v28 = vld [vmem:[%s0 + $0x10] sm:$0xff]
  %v29 = vld [vmem:[%s0 + $0x18] sm:$0xff]
  %v30 = vld [vmem:[%s0 + $0x20] sm:$0xf]
  %v31 = vld [vmem:[%s0 + $0x24] sm:$0xff]
  %v32 = vld [vmem:[%s0 + $0x2c] sm:$0xff]
  %v33 = vld [vmem:[%s0 + $0x34] sm:$0xff]
  %v34 = vld [vmem:[%s0 + $0x3c] sm:$0xff]
  %v35 = vld [vmem:[%s0 + $0x44] sm:$0xf]
  %v36 = vld [vmem:[%s1] sm:$0xf]
  %v37 = vld [vmem:[%s1 + $0x4] sm:$0xf]
  %v38 = vld [vmem:[%s1 + $0x8] sm:$0xf]
  %v39 = vld [vmem:[%s1 + $0xc] sm:$0xf]
  %v40 = vld [vmem:[%s1 + $0x10] sm:$0xf]
  %v41 = vld [vmem:[%s1 + $0x14] sm:$0xf]
  %v42 = vld [vmem:[%s1 + $0x18] sm:$0xf]
  %v43 = vld [vmem:[%s1 + $0x1c] sm:$0xf]
  %v44 = vld [vmem:[%s1 + $0x20] sm:$0xf]
  %v45 = vld [vmem:[%s1 + $0x24] sm:$0xf]
  %v46 = vld [vmem:[%s1 + $0x28] sm:$0xf]
  %v47 = vld [vmem:[%s1 + $0x2c] sm:$0xf]
  %v48 = vld [vmem:[%s1 + $0x30] sm:$0xf]
  %v49 = vld [vmem:[%s1 + $0x34] sm:$0xf]
  %v50 = vld [vmem:[%s1 + $0x38] sm:$0xf]
  %v51 = vld [vmem:[%s1 + $0x3c] sm:$0xf]
  %v52 = vld [vmem:[%s1 + $0x40] sm:$0xf]
  %v53 = vld [vmem:[%s1 + $0x44] sm:$0xf]
  %v54 = vld [vmem:[%s1 + $0x48] sm:$0xf]
  %v55 = vld [vmem:[%s1 + $0x4c] sm:$0xf]
  %v56 = vld [vmem:[%s1 + $0x50] sm:$0xf]
  %v57 = vld [vmem:[%s1 + $0x54] sm:$0xf]
  %v58 = vld [vmem:[%s1 + $0x58] sm:$0xf]
  %v59 = vld [vmem:[%s1 + $0x5c] sm:$0xf]
  %v60 = vld [vmem:[%s1 + $0x60] sm:$0xf]
  %v61 = vld [vmem:[%s1 + $0x64] sm:$0xf]
  %v62 = vld [vmem:[%s1 + $0x68] sm:$0xf]
  %v63 = vld [vmem:[%s1 + $0x6c] sm:$0xf]
  %v64 = vld [vmem:[%s1 + $0x70] sm:$0xf]
  %v65 = vld [vmem:[%s1 + $0x74] sm:$0xf]
  %v66 = vld [vmem:[%s1 + $0x78] sm:$0xf]
  %v67 = vld [vmem:[%s1 + $0x7c] sm:$0xf]
  %v68 = vld [vmem:[%s1 + $0x80] sm:$0xf]
  %v69 = vld [vmem:[%s1 + $0x84] sm:$0xf]
  %v70 = vld [vmem:[%s1 + $0x88] sm:$0xf]
  %v71 = vld [vmem:[%s1 + $0x8c] sm:$0xf]
  %v72 = vld [vmem:[%s1 + $0x90] sm:$0xf]
  %v73 = vld [vmem:[%s1 + $0x94] sm:$0xf]
  %v74 = vld [vmem:[%s1 + $0x98] sm:$0xf]
  %v75 = vld [vmem:[%s1 + $0x9c] sm:$0xf]
  %v76 = vld [vmem:[%s1 + $0xa0] sm:$0xf]
  %v77 = vld [vmem:[%s1 + $0xa4] sm:$0xf]
  %v78 = vld [vmem:[%s1 + $0xa8] sm:$0xf]
  %v79 = vld [vmem:[%s1 + $0xac] sm:$0xf]
  %v80 = vld [vmem:[%s1 + $0xb0] sm:$0xf]
  %v81 = vld [vmem:[%s1 + $0xb4] sm:$0xf]
  %v82 = vld [vmem:[%s1 + $0xb8] sm:$0xf]
  %v83 = vld [vmem:[%s1 + $0xbc] sm:$0xf]
  %v84 = vld [vmem:[%s1 + $0xc0] sm:$0xf]
  %v85 = vld [vmem:[%s1 + $0xc4] sm:$0xf]
  %v86 = vld [vmem:[%s1 + $0xc8] sm:$0xf]
  %v87 = vld [vmem:[%s1 + $0xcc] sm:$0xf]
  %v88 = vld [vmem:[%s1 + $0xd0] sm:$0xf]
  %v89 = vld [vmem:[%s1 + $0xd4] sm:$0xf]
  %v90 = vld [vmem:[%s1 + $0xd8] sm:$0xf]
  %v91 = vld [vmem:[%s1 + $0xdc] sm:$0xf]
  %v92 = vld [vmem:[%s1 + $0xe0] sm:$0xf]
  %v93 = vld [vmem:[%s1 + $0xe4] sm:$0xf]
  %v94 = vld [vmem:[%s1 + $0xe8] sm:$0xf]
  %v95 = vld [vmem:[%s1 + $0xec] sm:$0xf]
  %v96 = vld [vmem:[%s1 + $0xf0] sm:$0xf]
  %v97 = vld [vmem:[%s1 + $0xf4] sm:$0xf]
  %v98 = vld [vmem:[%s1 + $0xf8] sm:$0xf]
  %v99 = vld [vmem:[%s1 + $0xfc] sm:$0xf]
  %v100 = vld [vmem:[%s1 + $0x100] sm:$0xf]
  %v101 = vld [vmem:[%s1 + $0x104] sm:$0xf]
  %v102 = vld [vmem:[%s1 + $0x108] sm:$0xf]
  %v103 = vld [vmem:[%s1 + $0x10c] sm:$0xf]
  %v104 = vld [vmem:[%s1 + $0x110] sm:$0xf]
  %v105 = vld [vmem:[%s1 + $0x114] sm:$0xf]
  %v106 = vld [vmem:[%s1 + $0x118] sm:$0xf]
  %v107 = vld [vmem:[%s1 + $0x11c] sm:$0xf]
  %v108 = vld [vmem:[%s1 + $0x120] sm:$0xf]
  %v109 = vld [vmem:[%s1 + $0x124] sm:$0xf]
  %v110 = vld [vmem:[%s1 + $0x128] sm:$0xf]
  %v111 = vld [vmem:[%s1 + $0x12c] sm:$0xf]
  %v112 = vld [vmem:[%s1 + $0x130] sm:$0xf]
  %v113 = vld [vmem:[%s1 + $0x134] sm:$0xf]
  %v114 = vld [vmem:[%s1 + $0x138] sm:$0xf]
  %v115 = vld [vmem:[%s1 + $0x13c] sm:$0xf]
  %v116 = vld [vmem:[%s1 + $0x140] sm:$0xf]
  %v117 = vld [vmem:[%s1 + $0x144] sm:$0xf]
  %v118 = vld [vmem:[%s1 + $0x148] sm:$0xf]
  %v119 = vld [vmem:[%s1 + $0x14c] sm:$0xf]
  %v120 = vld [vmem:[%s1 + $0x150] sm:$0xf]
  %v121 = vld [vmem:[%s1 + $0x154] sm:$0xf]
  %v122 = vld [vmem:[%s1 + $0x158] sm:$0xf]
  %v123 = vld [vmem:[%s1 + $0x15c] sm:$0xf]
  %v124 = vld [vmem:[%s1 + $0x160] sm:$0xf]
  %v125 = vld [vmem:[%s1 + $0x164] sm:$0xf]
  %v126 = vld [vmem:[%s1 + $0x168] sm:$0xf]
  %v127 = vld [vmem:[%s1 + $0x16c] sm:$0xf]
  %v128 = vld [vmem:[%s1 + $0x170] sm:$0xf]
  %v129 = vld [vmem:[%s1 + $0x174] sm:$0xf]
  %v130 = vld [vmem:[%s1 + $0x178] sm:$0xf]
  %v131 = vld [vmem:[%s1 + $0x17c] sm:$0xf]
  %v132 = vld [vmem:[%s1 + $0x180] sm:$0xf]
  %v133 = vld [vmem:[%s1 + $0x184] sm:$0xf]
  %v134 = vld [vmem:[%s1 + $0x188] sm:$0xf]
  %v135 = vld [vmem:[%s1 + $0x18c] sm:$0xf]
  %v136 = vld [vmem:[%s1 + $0x190] sm:$0xf]
  %v137 = vld [vmem:[%s1 + $0x194] sm:$0xf]
  %v138 = vld [vmem:[%s1 + $0x198] sm:$0xf]
  %v139 = vld [vmem:[%s1 + $0x19c] sm:$0xf]
  %v140 = vld [vmem:[%s1 + $0x1a0] sm:$0xf]
  %v141 = vld [vmem:[%s1 + $0x1a4] sm:$0xf]
  %v142 = vld [vmem:[%s1 + $0x1a8] sm:$0xf]
  %v143 = vld [vmem:[%s1 + $0x1ac] sm:$0xf]
  %v144 = vld [vmem:[%s1 + $0x1b0] sm:$0xf]
  %v145 = vld [vmem:[%s1 + $0x1b4] sm:$0xf]
  %v146 = vld [vmem:[%s1 + $0x1b8] sm:$0xf]
  %v147 = vld [vmem:[%s1 + $0x1bc] sm:$0xf]
  %v148 = vld [vmem:[%s1 + $0x1c0] sm:$0xf]
  %v149 = vld [vmem:[%s1 + $0x1c4] sm:$0xf]
  %v150 = vld [vmem:[%s1 + $0x1c8] sm:$0xf]
  %v151 = vld [vmem:[%s1 + $0x1cc] sm:$0xf]
  %v152 = vld [vmem:[%s1 + $0x1d0] sm:$0xf]
  %v153 = vld [vmem:[%s1 + $0x1d4] sm:$0xf]
  %v154 = vld [vmem:[%s1 + $0x1d8] sm:$0xf]
  %v155 = vld [vmem:[%s1 + $0x1dc] sm:$0xf]
  %v156 = vld [vmem:[%s1 + $0x1e0] sm:$0xf]
  %v157 = vld [vmem:[%s1 + $0x1e4] sm:$0xf]
  %v158 = vld [vmem:[%s1 + $0x1e8] sm:$0xf]
  %v159 = vld [vmem:[%s1 + $0x1ec] sm:$0xf]
  %v160 = vld [vmem:[%s1 + $0x1f0] sm:$0xf]
  %v161 = vld [vmem:[%s1 + $0x1f4] sm:$0xf]
  %v162 = vld [vmem:[%s1 + $0x1f8] sm:$0xf]
  %v163 = vld [vmem:[%s1 + $0x1fc] sm:$0xf]
  %v164 = vld [vmem:[%s1 + $0x200] sm:$0xf]
  %v165 = vld [vmem:[%s1 + $0x204] sm:$0xf]
  %v166 = vld [vmem:[%s1 + $0x208] sm:$0xf]
  %v167 = vld [vmem:[%s1 + $0x20c] sm:$0xf]
  %v168 = vld [vmem:[%s1 + $0x210] sm:$0xf]
  %v169 = vld [vmem:[%s1 + $0x214] sm:$0xf]
  %v170 = vld [vmem:[%s1 + $0x218] sm:$0xf]
  %v171 = vld [vmem:[%s1 + $0x21c] sm:$0xf]
  %v172 = vld [vmem:[%s1 + $0x220] sm:$0xf]
  %v173 = vld [vmem:[%s1 + $0x224] sm:$0xf]
  %v174 = vld [vmem:[%s1 + $0x228] sm:$0xf]
  %v175 = vld [vmem:[%s1 + $0x22c] sm:$0xf]
  %v176 = vld [vmem:[%s1 + $0x230] sm:$0xf]
  %v177 = vld [vmem:[%s1 + $0x234] sm:$0xf]
  %v178 = vld [vmem:[%s1 + $0x238] sm:$0xf]
  %v179 = vld [vmem:[%s1 + $0x23c] sm:$0xf]
  %v190 = vunpack.c.l.b16 %v26
  %v191 = vunpack.c.h.b16 %v26
  %v192 = vunpack.c.l.b16 %v27
  %v193 = vunpack.c.h.b16 %v27
  %v194 = vunpack.c.l.b16 %v28
  %v195 = vunpack.c.h.b16 %v28
  %v196 = vunpack.c.l.b16 %v29
  %v197 = vunpack.c.h.b16 %v29
  %v198 = vunpack.c.l.b16 %v30
  %v199 = vunpack.c.l.b16 %v31
  %v200 = vunpack.c.h.b16 %v31
  %v201 = vunpack.c.l.b16 %v32
  %v202 = vunpack.c.h.b16 %v32
  %v203 = vunpack.c.l.b16 %v33
  %v204 = vunpack.c.h.b16 %v33
  %v205 = vunpack.c.l.b16 %v34
  %v206 = vunpack.c.h.b16 %v34
  %v207 = vunpack.c.l.b16 %v35
  %v208 = vpack.c.b16 %v199, %v190
  %v209 = vpack.c.b16 %v200, %v191
  %v210 = vpack.c.b16 %v201, %v192
  %v211 = vpack.c.b16 %v202, %v193
  %v212 = vpack.c.b16 %v203, %v194
  %v213 = vpack.c.b16 %v204, %v195
  %v214 = vpack.c.b16 %v205, %v196
  %v215 = vpack.c.b16 %v206, %v197
  %v216 = vpack.c.b16 %v207, %v198
  %v370 = vunpack.c.l.b16 %v36
  %v371 = vunpack.c.l.b16 %v37
  %v372 = vunpack.c.l.b16 %v38
  %v373 = vunpack.c.l.b16 %v39
  %v374 = vunpack.c.l.b16 %v40
  %v375 = vunpack.c.l.b16 %v41
  %v376 = vunpack.c.l.b16 %v42
  %v377 = vunpack.c.l.b16 %v43
  %v378 = vunpack.c.l.b16 %v44
  %v379 = vunpack.c.l.b16 %v45
  %v380 = vunpack.c.l.b16 %v46
  %v381 = vunpack.c.l.b16 %v47
  %v382 = vunpack.c.l.b16 %v48
  %v383 = vunpack.c.l.b16 %v49
  %v384 = vunpack.c.l.b16 %v50
  %v385 = vunpack.c.l.b16 %v51
  %v386 = vunpack.c.l.b16 %v52
  %v387 = vunpack.c.l.b16 %v53
  %v388 = vunpack.c.l.b16 %v54
  %v389 = vunpack.c.l.b16 %v55
  %v390 = vunpack.c.l.b16 %v56
  %v391 = vunpack.c.l.b16 %v57
  %v392 = vunpack.c.l.b16 %v58
  %v393 = vunpack.c.l.b16 %v59
  %v394 = vunpack.c.l.b16 %v60
  %v395 = vunpack.c.l.b16 %v61
  %v396 = vunpack.c.l.b16 %v62
  %v397 = vunpack.c.l.b16 %v63
  %v398 = vunpack.c.l.b16 %v64
  %v399 = vunpack.c.l.b16 %v65
  %v400 = vunpack.c.l.b16 %v66
  %v401 = vunpack.c.l.b16 %v67
  %v402 = vunpack.c.l.b16 %v68
  %v403 = vunpack.c.l.b16 %v69
  %v404 = vunpack.c.l.b16 %v70
  %v405 = vunpack.c.l.b16 %v71
  %v406 = vunpack.c.l.b16 %v72
  %v407 = vunpack.c.l.b16 %v73
  %v408 = vunpack.c.l.b16 %v74
  %v409 = vunpack.c.l.b16 %v75
  %v410 = vunpack.c.l.b16 %v76
  %v411 = vunpack.c.l.b16 %v77
  %v412 = vunpack.c.l.b16 %v78
  %v413 = vunpack.c.l.b16 %v79
  %v414 = vunpack.c.l.b16 %v80
  %v415 = vunpack.c.l.b16 %v81
  %v416 = vunpack.c.l.b16 %v82
  %v417 = vunpack.c.l.b16 %v83
  %v418 = vunpack.c.l.b16 %v84
  %v419 = vunpack.c.l.b16 %v85
  %v420 = vunpack.c.l.b16 %v86
  %v421 = vunpack.c.l.b16 %v87
  %v422 = vunpack.c.l.b16 %v88
  %v423 = vunpack.c.l.b16 %v89
  %v424 = vunpack.c.l.b16 %v90
  %v425 = vunpack.c.l.b16 %v91
  %v426 = vunpack.c.l.b16 %v92
  %v427 = vunpack.c.l.b16 %v93
  %v428 = vunpack.c.l.b16 %v94
  %v429 = vunpack.c.l.b16 %v95
  %v430 = vunpack.c.l.b16 %v96
  %v431 = vunpack.c.l.b16 %v97
  %v432 = vunpack.c.l.b16 %v98
  %v433 = vunpack.c.l.b16 %v99
  %v434 = vunpack.c.l.b16 %v100
  %v435 = vunpack.c.l.b16 %v101
  %v436 = vunpack.c.l.b16 %v102
  %v437 = vunpack.c.l.b16 %v103
  %v438 = vunpack.c.l.b16 %v104
  %v439 = vunpack.c.l.b16 %v105
  %v440 = vunpack.c.l.b16 %v106
  %v441 = vunpack.c.l.b16 %v107
  %v442 = vunpack.c.l.b16 %v108
  %v443 = vunpack.c.l.b16 %v109
  %v444 = vunpack.c.l.b16 %v110
  %v445 = vunpack.c.l.b16 %v111
  %v446 = vunpack.c.l.b16 %v112
  %v447 = vunpack.c.l.b16 %v113
  %v448 = vunpack.c.l.b16 %v114
  %v449 = vunpack.c.l.b16 %v115
  %v450 = vunpack.c.l.b16 %v116
  %v451 = vunpack.c.l.b16 %v117
  %v452 = vunpack.c.l.b16 %v118
  %v453 = vunpack.c.l.b16 %v119
  %v454 = vunpack.c.l.b16 %v120
  %v455 = vunpack.c.l.b16 %v121
  %v456 = vunpack.c.l.b16 %v122
  %v457 = vunpack.c.l.b16 %v123
  %v458 = vunpack.c.l.b16 %v124
  %v459 = vunpack.c.l.b16 %v125
  %v460 = vunpack.c.l.b16 %v126
  %v461 = vunpack.c.l.b16 %v127
  %v462 = vunpack.c.l.b16 %v128
  %v463 = vunpack.c.l.b16 %v129
  %v464 = vunpack.c.l.b16 %v130
  %v465 = vunpack.c.l.b16 %v131
  %v466 = vunpack.c.l.b16 %v132
  %v467 = vunpack.c.l.b16 %v133
  %v468 = vunpack.c.l.b16 %v134
  %v469 = vunpack.c.l.b16 %v135
  %v470 = vunpack.c.l.b16 %v136
  %v471 = vunpack.c.l.b16 %v137
  %v472 = vunpack.c.l.b16 %v138
  %v473 = vunpack.c.l.b16 %v139
  %v474 = vunpack.c.l.b16 %v140
  %v475 = vunpack.c.l.b16 %v141
  %v476 = vunpack.c.l.b16 %v142
  %v477 = vunpack.c.l.b16 %v143
  %v478 = vunpack.c.l.b16 %v144
  %v479 = vunpack.c.l.b16 %v145
  %v480 = vunpack.c.l.b16 %v146
  %v481 = vunpack.c.l.b16 %v147
  %v482 = vunpack.c.l.b16 %v148
  %v483 = vunpack.c.l.b16 %v149
  %v484 = vunpack.c.l.b16 %v150
  %v485 = vunpack.c.l.b16 %v151
  %v486 = vunpack.c.l.b16 %v152
  %v487 = vunpack.c.l.b16 %v153
  %v488 = vunpack.c.l.b16 %v154
  %v489 = vunpack.c.l.b16 %v155
  %v490 = vunpack.c.l.b16 %v156
  %v491 = vunpack.c.l.b16 %v157
  %v492 = vunpack.c.l.b16 %v158
  %v493 = vunpack.c.l.b16 %v159
  %v494 = vunpack.c.l.b16 %v160
  %v495 = vunpack.c.l.b16 %v161
  %v496 = vunpack.c.l.b16 %v162
  %v497 = vunpack.c.l.b16 %v163
  %v498 = vunpack.c.l.b16 %v164
  %v499 = vunpack.c.l.b16 %v165
  %v500 = vunpack.c.l.b16 %v166
  %v501 = vunpack.c.l.b16 %v167
  %v502 = vunpack.c.l.b16 %v168
  %v503 = vunpack.c.l.b16 %v169
  %v504 = vunpack.c.l.b16 %v170
  %v505 = vunpack.c.l.b16 %v171
  %v506 = vunpack.c.l.b16 %v172
  %v507 = vunpack.c.l.b16 %v173
  %v508 = vunpack.c.l.b16 %v174
  %v509 = vunpack.c.l.b16 %v175
  %v510 = vunpack.c.l.b16 %v176
  %v511 = vunpack.c.l.b16 %v177
  %v512 = vunpack.c.l.b16 %v178
  %v513 = vunpack.c.l.b16 %v179
  %v514 = vpack.c.b16 %v371, %v370
  %v515 = vpack.c.b16 %v373, %v372
  %v516 = vpack.c.b16 %v375, %v374
  %v517 = vpack.c.b16 %v377, %v376
  %v518 = vpack.c.b16 %v379, %v378
  %v519 = vpack.c.b16 %v381, %v380
  %v520 = vpack.c.b16 %v383, %v382
  %v521 = vpack.c.b16 %v385, %v384
  %v522 = vpack.c.b16 %v387, %v386
  %v523 = vpack.c.b16 %v389, %v388
  %v524 = vpack.c.b16 %v391, %v390
  %v525 = vpack.c.b16 %v393, %v392
  %v526 = vpack.c.b16 %v395, %v394
  %v527 = vpack.c.b16 %v397, %v396
  %v528 = vpack.c.b16 %v399, %v398
  %v529 = vpack.c.b16 %v401, %v400
  %v530 = vpack.c.b16 %v403, %v402
  %v531 = vpack.c.b16 %v405, %v404
  %v532 = vpack.c.b16 %v407, %v406
  %v533 = vpack.c.b16 %v409, %v408
  %v534 = vpack.c.b16 %v411, %v410
  %v535 = vpack.c.b16 %v413, %v412
  %v536 = vpack.c.b16 %v415, %v414
  %v537 = vpack.c.b16 %v417, %v416
  %v538 = vpack.c.b16 %v419, %v418
  %v539 = vpack.c.b16 %v421, %v420
  %v540 = vpack.c.b16 %v423, %v422
  %v541 = vpack.c.b16 %v425, %v424
  %v542 = vpack.c.b16 %v427, %v426
  %v543 = vpack.c.b16 %v429, %v428
  %v544 = vpack.c.b16 %v431, %v430
  %v545 = vpack.c.b16 %v433, %v432
  %v546 = vpack.c.b16 %v435, %v434
  %v547 = vpack.c.b16 %v437, %v436
  %v548 = vpack.c.b16 %v439, %v438
  %v549 = vpack.c.b16 %v441, %v440
  %v550 = vpack.c.b16 %v443, %v442
  %v551 = vpack.c.b16 %v445, %v444
  %v552 = vpack.c.b16 %v447, %v446
  %v553 = vpack.c.b16 %v449, %v448
  %v554 = vpack.c.b16 %v451, %v450
  %v555 = vpack.c.b16 %v453, %v452
  %v556 = vpack.c.b16 %v455, %v454
  %v557 = vpack.c.b16 %v457, %v456
  %v558 = vpack.c.b16 %v459, %v458
  %v559 = vpack.c.b16 %v461, %v460
  %v560 = vpack.c.b16 %v463, %v462
  %v561 = vpack.c.b16 %v465, %v464
  %v562 = vpack.c.b16 %v467, %v466
  %v563 = vpack.c.b16 %v469, %v468
  %v564 = vpack.c.b16 %v471, %v470
  %v565 = vpack.c.b16 %v473, %v472
  %v566 = vpack.c.b16 %v475, %v474
  %v567 = vpack.c.b16 %v477, %v476
  %v568 = vpack.c.b16 %v479, %v478
  %v569 = vpack.c.b16 %v481, %v480
  %v570 = vpack.c.b16 %v483, %v482
  %v571 = vpack.c.b16 %v485, %v484
  %v572 = vpack.c.b16 %v487, %v486
  %v573 = vpack.c.b16 %v489, %v488
  %v574 = vpack.c.b16 %v491, %v490
  %v575 = vpack.c.b16 %v493, %v492
  %v576 = vpack.c.b16 %v495, %v494
  %v577 = vpack.c.b16 %v497, %v496
  %v578 = vpack.c.b16 %v499, %v498
  %v579 = vpack.c.b16 %v501, %v500
  %v580 = vpack.c.b16 %v503, %v502
  %v581 = vpack.c.b16 %v505, %v504
  %v582 = vpack.c.b16 %v507, %v506
  %v583 = vpack.c.b16 %v509, %v508
  %v584 = vpack.c.b16 %v511, %v510
  %v585 = vpack.c.b16 %v513, %v512
  %658 = vmatprep.subr.bf16.mxu0 0
  %659 = vmatpush1.bf16.msra.mxu0 %v521
  %660 = vmatprep.subr.bf16.mxu0 0
  %661 = vmatpush1.bf16.msra.mxu0 %v520
  %662 = vmatprep.subr.bf16.mxu0 0
  %663 = vmatpush1.bf16.msra.mxu0 %v519
  %664 = vmatprep.subr.bf16.mxu0 0
  %665 = vmatpush1.bf16.msra.mxu0 %v518
  %666 = vmatprep.subr.bf16.mxu0 0
  %667 = vmatpush1.bf16.msra.mxu0 %v517
  %668 = vmatprep.subr.bf16.mxu0 0
  %669 = vmatpush1.bf16.msra.mxu0 %v516
  %670 = vmatprep.subr.bf16.mxu0 0
  %671 = vmatpush1.bf16.msra.mxu0 %v515
  %672 = vmatprep.subr.bf16.mxu0 0
  %673 = vmatpush1.bf16.msra.mxu0 %v514
  %674 = vmatprep.subr.bf16.mxu0 0
  %675 = vmatpush2.bf16.msra.mxu0 %v529
  %676 = vmatprep.subr.bf16.mxu0 0
  %677 = vmatpush2.bf16.msra.mxu0 %v528
  %678 = vmatprep.subr.bf16.mxu0 0
  %679 = vmatpush2.bf16.msra.mxu0 %v527
  %680 = vmatprep.subr.bf16.mxu0 0
  %681 = vmatpush2.bf16.msra.mxu0 %v526
  %682 = vmatprep.subr.bf16.mxu0 0
  %683 = vmatpush2.bf16.msra.mxu0 %v525
  %684 = vmatprep.subr.bf16.mxu0 0
  %685 = vmatpush2.bf16.msra.mxu0 %v524
  %686 = vmatprep.subr.bf16.mxu0 0
  %687 = vmatpush2.bf16.msra.mxu0 %v523
  %688 = vmatprep.subr.bf16.mxu0 0
  %689 = vmatpush2.bf16.msra.mxu0 %v522
  %690 = vmatprep.mubr.bf16.mxu0 %v209
  %691 = vmatmul.mubr.bf16.gmra.mxu0 %v208
  %v692 = vpop.f32.mrf.mxu0
  %v693 = vadd.f32 0.0, %v692
  %v694 = vpop.f32.mrf.mxu0
  %v695 = vpop.f32.mrf.mxu0
  %v696 = vadd.f32 0.0, %v695
  %v697 = vpop.f32.mrf.mxu0
  %698 = vdwg.mxu0
  %699 = vmatprep.subr.bf16.mxu0 0
  %700 = vmatpush1.bf16.msra.mxu0 %v537
  %701 = vmatprep.subr.bf16.mxu0 0
  %702 = vmatpush1.bf16.msra.mxu0 %v536
  %703 = vmatprep.subr.bf16.mxu0 0
  %704 = vmatpush1.bf16.msra.mxu0 %v535
  %705 = vmatprep.subr.bf16.mxu0 0
  %706 = vmatpush1.bf16.msra.mxu0 %v534
  %707 = vmatprep.subr.bf16.mxu0 0
  %708 = vmatpush1.bf16.msra.mxu0 %v533
  %709 = vmatprep.subr.bf16.mxu0 0
  %710 = vmatpush1.bf16.msra.mxu0 %v532
  %711 = vmatprep.subr.bf16.mxu0 0
  %712 = vmatpush1.bf16.msra.mxu0 %v531
  %713 = vmatprep.subr.bf16.mxu0 0
  %714 = vmatpush1.bf16.msra.mxu0 %v530
  %715 = vmatprep.subr.bf16.mxu0 0
  %716 = vmatpush2.bf16.msra.mxu0 %v545
  %717 = vmatprep.subr.bf16.mxu0 0
  %718 = vmatpush2.bf16.msra.mxu0 %v544
  %719 = vmatprep.subr.bf16.mxu0 0
  %720 = vmatpush2.bf16.msra.mxu0 %v543
  %721 = vmatprep.subr.bf16.mxu0 0
  %722 = vmatpush2.bf16.msra.mxu0 %v542
  %723 = vmatprep.subr.bf16.mxu0 0
  %724 = vmatpush2.bf16.msra.mxu0 %v541
  %725 = vmatprep.subr.bf16.mxu0 0
  %726 = vmatpush2.bf16.msra.mxu0 %v540
  %727 = vmatprep.subr.bf16.mxu0 0
  %728 = vmatpush2.bf16.msra.mxu0 %v539
  %729 = vmatprep.subr.bf16.mxu0 0
  %730 = vmatpush2.bf16.msra.mxu0 %v538
  %731 = vmatprep.mubr.bf16.mxu0 %v211
  %732 = vmatmul.mubr.bf16.gmra.mxu0 %v210
  %v733 = vpop.f32.mrf.mxu0
  %v734 = vadd.f32 %v693, %v733
  %v735 = vpop.f32.mrf.mxu0
  %v736 = vpop.f32.mrf.mxu0
  %v737 = vadd.f32 %v696, %v736
  %v738 = vpop.f32.mrf.mxu0
  %739 = vdwg.mxu0
  %740 = vmatprep.subr.bf16.mxu0 0
  %741 = vmatpush1.bf16.msra.mxu0 %v553
  %742 = vmatprep.subr.bf16.mxu0 0
  %743 = vmatpush1.bf16.msra.mxu0 %v552
  %744 = vmatprep.subr.bf16.mxu0 0
  %745 = vmatpush1.bf16.msra.mxu0 %v551
  %746 = vmatprep.subr.bf16.mxu0 0
  %747 = vmatpush1.bf16.msra.mxu0 %v550
  %748 = vmatprep.subr.bf16.mxu0 0
  %749 = vmatpush1.bf16.msra.mxu0 %v549
  %750 = vmatprep.subr.bf16.mxu0 0
  %751 = vmatpush1.bf16.msra.mxu0 %v548
  %752 = vmatprep.subr.bf16.mxu0 0
  %753 = vmatpush1.bf16.msra.mxu0 %v547
  %754 = vmatprep.subr.bf16.mxu0 0
  %755 = vmatpush1.bf16.msra.mxu0 %v546
  %756 = vmatprep.subr.bf16.mxu0 0
  %757 = vmatpush2.bf16.msra.mxu0 %v561
  %758 = vmatprep.subr.bf16.mxu0 0
  %759 = vmatpush2.bf16.msra.mxu0 %v560
  %760 = vmatprep.subr.bf16.mxu0 0
  %761 = vmatpush2.bf16.msra.mxu0 %v559
  %762 = vmatprep.subr.bf16.mxu0 0
  %763 = vmatpush2.bf16.msra.mxu0 %v558
  %764 = vmatprep.subr.bf16.mxu0 0
  %765 = vmatpush2.bf16.msra.mxu0 %v557
  %766 = vmatprep.subr.bf16.mxu0 0
  %767 = vmatpush2.bf16.msra.mxu0 %v556
  %768 = vmatprep.subr.bf16.mxu0 0
  %769 = vmatpush2.bf16.msra.mxu0 %v555
  %770 = vmatprep.subr.bf16.mxu0 0
  %771 = vmatpush2.bf16.msra.mxu0 %v554
  %772 = vmatprep.mubr.bf16.mxu0 %v213
  %773 = vmatmul.mubr.bf16.gmra.mxu0 %v212
  %v774 = vpop.f32.mrf.mxu0
  %v775 = vadd.f32 %v734, %v774
  %v776 = vpop.f32.mrf.mxu0
  %v777 = vpop.f32.mrf.mxu0
  %v778 = vadd.f32 %v737, %v777
  %v779 = vpop.f32.mrf.mxu0
  %780 = vdwg.mxu0
  %781 = vmatprep.subr.bf16.mxu0 0
  %782 = vmatpush1.bf16.msra.mxu0 %v569
  %783 = vmatprep.subr.bf16.mxu0 0
  %784 = vmatpush1.bf16.msra.mxu0 %v568
  %785 = vmatprep.subr.bf16.mxu0 0
  %786 = vmatpush1.bf16.msra.mxu0 %v567
  %787 = vmatprep.subr.bf16.mxu0 0
  %788 = vmatpush1.bf16.msra.mxu0 %v566
  %789 = vmatprep.subr.bf16.mxu0 0
  %790 = vmatpush1.bf16.msra.mxu0 %v565
  %791 = vmatprep.subr.bf16.mxu0 0
  %792 = vmatpush1.bf16.msra.mxu0 %v564
  %793 = vmatprep.subr.bf16.mxu0 0
  %794 = vmatpush1.bf16.msra.mxu0 %v563
  %795 = vmatprep.subr.bf16.mxu0 0
  %796 = vmatpush1.bf16.msra.mxu0 %v562
  %797 = vmatprep.subr.bf16.mxu0 0
  %798 = vmatpush2.bf16.msra.mxu0 %v577
  %799 = vmatprep.subr.bf16.mxu0 0
  %800 = vmatpush2.bf16.msra.mxu0 %v576
  %801 = vmatprep.subr.bf16.mxu0 0
  %802 = vmatpush2.bf16.msra.mxu0 %v575
  %803 = vmatprep.subr.bf16.mxu0 0
  %804 = vmatpush2.bf16.msra.mxu0 %v574
  %805 = vmatprep.subr.bf16.mxu0 0
  %806 = vmatpush2.bf16.msra.mxu0 %v573
  %807 = vmatprep.subr.bf16.mxu0 0
  %808 = vmatpush2.bf16.msra.mxu0 %v572
  %809 = vmatprep.subr.bf16.mxu0 0
  %810 = vmatpush2.bf16.msra.mxu0 %v571
  %811 = vmatprep.subr.bf16.mxu0 0
  %812 = vmatpush2.bf16.msra.mxu0 %v570
  %813 = vmatprep.mubr.bf16.mxu0 %v215
  %814 = vmatmul.mubr.bf16.gmra.mxu0 %v214
  %v815 = vpop.f32.mrf.mxu0
  %v816 = vadd.f32 %v775, %v815
  %v817 = vpop.f32.mrf.mxu0
  %v818 = vpop.f32.mrf.mxu0
  %v819 = vadd.f32 %v778, %v818
  %v820 = vpop.f32.mrf.mxu0
  %821 = vdwg.mxu0
  %822 = vmatprep.subr.bf16.mxu0 0
  %823 = vmatpush1.bf16.msra.mxu0 %v585
  %824 = vmatprep.subr.bf16.mxu0 0
  %825 = vmatpush1.bf16.msra.mxu0 %v584
  %826 = vmatprep.subr.bf16.mxu0 0
  %827 = vmatpush1.bf16.msra.mxu0 %v583
  %828 = vmatprep.subr.bf16.mxu0 0
  %829 = vmatpush1.bf16.msra.mxu0 %v582
  %830 = vmatprep.subr.bf16.mxu0 0
  %831 = vmatpush1.bf16.msra.mxu0 %v581
  %832 = vmatprep.subr.bf16.mxu0 0
  %833 = vmatpush1.bf16.msra.mxu0 %v580
  %834 = vmatprep.subr.bf16.mxu0 0
  %835 = vmatpush1.bf16.msra.mxu0 %v579
  %836 = vmatprep.subr.bf16.mxu0 0
  %837 = vmatpush1.bf16.msra.mxu0 %v578
  %838 = vmatprep.subr.bf16.mxu0 0
  %839 = vmatpush2.bf16.msra.mxu0 0
  %840 = vmatprep.subr.bf16.mxu0 0
  %841 = vmatpush2.bf16.msra.mxu0 0
  %842 = vmatprep.subr.bf16.mxu0 0
  %843 = vmatpush2.bf16.msra.mxu0 0
  %844 = vmatprep.subr.bf16.mxu0 0
  %845 = vmatpush2.bf16.msra.mxu0 0
  %846 = vmatprep.subr.bf16.mxu0 0
  %847 = vmatpush2.bf16.msra.mxu0 0
  %848 = vmatprep.subr.bf16.mxu0 0
  %849 = vmatpush2.bf16.msra.mxu0 0
  %850 = vmatprep.subr.bf16.mxu0 0
  %851 = vmatpush2.bf16.msra.mxu0 0
  %852 = vmatprep.subr.bf16.mxu0 0
  %853 = vmatpush2.bf16.msra.mxu0 0
  %854 = vmatprep.mubr.bf16.mxu0 0
  %855 = vmatmul.mubr.bf16.gmra.mxu0 %v216
  %v856 = vpop.f32.mrf.mxu0
  %v857 = vadd.f32 %v816, %v856
  %v858 = vpop.f32.mrf.mxu0
  %v859 = vpop.f32.mrf.mxu0
  %v860 = vadd.f32 %v819, %v859
  %v861 = vpop.f32.mrf.mxu0
  %862 = vdwg.mxu0
  %v863 = vadd.f32 %v24, %v857
  %v864 = vadd.f32 %v25, %v860
  %865 = vst [vmem:[#allocation2] sm:$0xff] %v863
  %866 = vst [vmem:[#allocation2 + $0x8] sm:$0xff] %v864
  // Predicated region
  $region22: #{_lambda_.27} parent=0 // pred_check
    %p867 = pneg %p18
  $region23: #{_lambda_.27} parent=0 // pred_check_branch
    %869 = sbr.rel (%p867) target = $region25
  $region24: #{_lambda_.27} parent=0 // pred_region
    %v870 = vld [vmem:[#allocation2] sm:$0xff]
    %v871 = vld [vmem:[#allocation2 + $0x8] sm:$0xff]
    %v872 = vld [vmem:[%s2] sm:$0x1]
    %v874 = vlaneseq
    %v875 = vshrl.u32 %v874, 7
    %v876 = vsub.s32 0, %v875
    %v877 = vrot.slane %v872, %v876
    %v879 = vmul.f32 %v870, %v877
    %v880 = vmul.f32 %v871, %v877
    %v881 = vld [vmem:[%s3] sm:$0x1]
    %v883 = vlaneseq
    %v884 = vshrl.u32 %v883, 7
    %v885 = vsub.s32 0, %v884
    %v886 = vrot.slane %v881, %v885
    %v888 = vadd.f32 %v879, %v886
    %v889 = vadd.f32 %v880, %v886
    %v890 = vmax.f32 %v888, 0.0
    %v891 = vmax.f32 %v889, 0.0
    %v892 = vpack.c.bf16 %v891, %v890
    %v894 = vunpack.c.l.b16 %v892
    %v895 = vunpack.c.h.b16 %v892
    %v896 = vpack.c.b16 %v894, %v894
    %v897 = vpack.c.b16 %v895, %v895
    %900 = vst [vmem:[%s4] sm:$0xf] %v896
    %901 = vst [vmem:[%s4 + $0x4] sm:$0xf] %v897
  $region25: #{_lambda_.27} parent=0 // pred_fallthru
    _
  // Predicated region
  $region26: #{_lambda_.27} parent=0 // pred_check
    _
  $region27: #{_lambda_.27} parent=0 // pred_check_branch
    %903 = sbr.rel (0) target = $region29
  $region28: #{_lambda_.27} parent=0 // pred_region
    _
  $region29: #{_lambda_.27} parent=0 // pred_fallthru
    _
  // Predicated region
  $region30: #{_lambda_.27} parent=0 // pred_check
    _
  $region31: #{_lambda_.27} parent=0 // pred_check_branch
    %905 = sbr.rel (0) target = $region33
  $region32: #{_lambda_.27} parent=0 // pred_region
    _
  $region33: #{_lambda_.27} parent=0 // pred_fallthru
    _

// kernel: _lambda_.29
$region0: #{_lambda_.29}
  #allocation0 [shape = 'u32[]', space=smem, size = 0x4, offset = 0x4, fixed_abs, tag = 'smem constant byte address 0x4 - core index']
  #allocation1 [shape = 'u32[144,128]{1,0:T(1,128)}', space=vmem, size = 0x12000, scoped, tag = 'internal scratch']
  #allocation2 [shape = 'f32[16,256]{1,0:T(8,128)}', space=vmem, size = 0x4000, scoped, tag = 'scratch operand']
  %s0 = inlined_call_operand.vmem [shape: bf16[16,128], index: 0, kind: input, shape index: {}]
  %s1 = inlined_call_operand.vmem [shape: bf16[128,256], index: 1, kind: input, shape index: {}]
  %s2 = inlined_call_operand.vmem [shape: f32[1,256], index: 2, kind: input, shape index: {}]
  %s3 = inlined_call_operand.vmem [shape: f32[1,256], index: 3, kind: input, shape index: {}]
  %s4 = inlined_call_operand.vmem [shape: bf16[16,1], index: 4, kind: input, shape index: {}]
  %s5 = inlined_call_operand.vmem [shape: bf16[16,256], index: 5, kind: input, shape index: {}]
  %s6 = inlined_call_operand.vmem [shape: bf16[16,256], index: 6, kind: output, shape index: {}]
  %s7 = sld [smem:[#allocation0]]
  $region42: #{_lambda_.29} parent=0
    _
  %s9 = ssub.s32 1, %s7
  %s10 = scalar_select 0, %s9, %s7
  // Predicated region
  $region2: #{_lambda_.29} parent=0 // pred_check
    _
  $region3: #{_lambda_.29} parent=0 // pred_check_branch
    %12 = sbr.rel (0) target = $region5
  $region4: #{_lambda_.29} parent=0 // pred_region
    _
  $region5: #{_lambda_.29} parent=0 // pred_fallthru
    _
  // Predicated region
  $region6: #{_lambda_.29} parent=0 // pred_check
    _
  $region7: #{_lambda_.29} parent=0 // pred_check_branch
    %14 = sbr.rel (0) target = $region9
  $region8: #{_lambda_.29} parent=0 // pred_region
    _
  $region9: #{_lambda_.29} parent=0 // pred_fallthru
    _
  // Predicated region
  $region10: #{_lambda_.29} parent=0 // pred_check
    _
  $region11: #{_lambda_.29} parent=0 // pred_check_branch
    %16 = sbr.rel (0) target = $region13
  $region12: #{_lambda_.29} parent=0 // pred_region
    _
  $region13: #{_lambda_.29} parent=0 // pred_fallthru
    _
  // Predicated region
  $region14: #{_lambda_.29} parent=0 // pred_check
    _
  $region15: #{_lambda_.29} parent=0 // pred_check_branch
    %18 = sbr.rel (0) target = $region17
  $region16: #{_lambda_.29} parent=0 // pred_region
    _
  $region17: #{_lambda_.29} parent=0 // pred_fallthru
    _
  // Predicated region
  $region18: #{_lambda_.29} parent=0 // pred_check
    _
  $region19: #{_lambda_.29} parent=0 // pred_check_branch
    %20 = sbr.rel (0) target = $region21
  $region20: #{_lambda_.29} parent=0 // pred_region
    _
  $region21: #{_lambda_.29} parent=0 // pred_fallthru
    _
  // Predicated region
  $region22: #{_lambda_.29} parent=0 // pred_check
    _
  $region23: #{_lambda_.29} parent=0 // pred_check_branch
    %22 = sbr.rel (0) target = $region25
  $region24: #{_lambda_.29} parent=0 // pred_region
    _
  $region25: #{_lambda_.29} parent=0 // pred_fallthru
    _
  %p24 = scmp.eq.s32.totalorder 0, 0
  // Predicated region
  $region26: #{_lambda_.29} parent=0 // pred_check
    %p25 = pneg %p24
  $region27: #{_lambda_.29} parent=0 // pred_check_branch
    %27 = sbr.rel (%p25) target = $region29
  $region28: #{_lambda_.29} parent=0 // pred_region
    %28 = vst [vmem:[#allocation2] sm:$0xff] 0.0
    %29 = vst [vmem:[#allocation2 + $0x8] sm:$0xff] 0.0
    %30 = vst [vmem:[#allocation2 + $0x10] sm:$0xff] 0.0
    %31 = vst [vmem:[#allocation2 + $0x18] sm:$0xff] 0.0
  $region29: #{_lambda_.29} parent=0 // pred_fallthru
    _
  %v32 = vld [vmem:[#allocation2] sm:$0xff]
  %v33 = vld [vmem:[#allocation2 + $0x8] sm:$0xff]
  %v34 = vld [vmem:[#allocation2 + $0x10] sm:$0xff]
  %v35 = vld [vmem:[#allocation2 + $0x18] sm:$0xff]
  %v36 = vld [vmem:[%s0] sm:$0xf]
  %v37 = vld [vmem:[%s0 + $0x4] sm:$0xf]
  %v38 = vld [vmem:[%s1] sm:$0xff]
  %v39 = vld [vmem:[%s1 + $0x8] sm:$0xff]
  %v40 = vld [vmem:[%s1 + $0x10] sm:$0xff]
  %v41 = vld [vmem:[%s1 + $0x18] sm:$0xff]
  %v42 = vld [vmem:[%s1 + $0x20] sm:$0xff]
  %v43 = vld [vmem:[%s1 + $0x28] sm:$0xff]
  %v44 = vld [vmem:[%s1 + $0x30] sm:$0xff]
  %v45 = vld [vmem:[%s1 + $0x38] sm:$0xff]
  %v46 = vld [vmem:[%s1 + $0x40] sm:$0xff]
  %v47 = vld [vmem:[%s1 + $0x48] sm:$0xff]
  %v48 = vld [vmem:[%s1 + $0x50] sm:$0xff]
  %v49 = vld [vmem:[%s1 + $0x58] sm:$0xff]
  %v50 = vld [vmem:[%s1 + $0x60] sm:$0xff]
  %v51 = vld [vmem:[%s1 + $0x68] sm:$0xff]
  %v52 = vld [vmem:[%s1 + $0x70] sm:$0xff]
  %v53 = vld [vmem:[%s1 + $0x78] sm:$0xff]
  %v56 = vunpack.c.l.b16 %v36
  %v57 = vunpack.c.l.b16 %v37
  %v58 = vpack.c.b16 %v57, %v56
  %v76 = vunpack.c.l.b16 %v38
  %v77 = vunpack.c.h.b16 %v38
  %v78 = vunpack.c.l.b16 %v39
  %v79 = vunpack.c.h.b16 %v39
  %v80 = vunpack.c.l.b16 %v40
  %v81 = vunpack.c.h.b16 %v40
  %v82 = vunpack.c.l.b16 %v41
  %v83 = vunpack.c.h.b16 %v41
  %v84 = vunpack.c.l.b16 %v42
  %v85 = vunpack.c.h.b16 %v42
  %v86 = vunpack.c.l.b16 %v43
  %v87 = vunpack.c.h.b16 %v43
  %v88 = vunpack.c.l.b16 %v44
  %v89 = vunpack.c.h.b16 %v44
  %v90 = vunpack.c.l.b16 %v45
  %v91 = vunpack.c.h.b16 %v45
  %v92 = vunpack.c.l.b16 %v46
  %v93 = vunpack.c.h.b16 %v46
  %v94 = vunpack.c.l.b16 %v47
  %v95 = vunpack.c.h.b16 %v47
  %v96 = vunpack.c.l.b16 %v48
  %v97 = vunpack.c.h.b16 %v48
  %v98 = vunpack.c.l.b16 %v49
  %v99 = vunpack.c.h.b16 %v49
  %v100 = vunpack.c.l.b16 %v50
  %v101 = vunpack.c.h.b16 %v50
  %v102 = vunpack.c.l.b16 %v51
  %v103 = vunpack.c.h.b16 %v51
  %v104 = vunpack.c.l.b16 %v52
  %v105 = vunpack.c.h.b16 %v52
  %v106 = vunpack.c.l.b16 %v53
  %v107 = vunpack.c.h.b16 %v53
  %v108 = vpack.c.b16 %v78, %v76
  %v109 = vpack.c.b16 %v79, %v77
  %v110 = vpack.c.b16 %v82, %v80
  %v111 = vpack.c.b16 %v83, %v81
  %v112 = vpack.c.b16 %v86, %v84
  %v113 = vpack.c.b16 %v87, %v85
  %v114 = vpack.c.b16 %v90, %v88
  %v115 = vpack.c.b16 %v91, %v89
  %v116 = vpack.c.b16 %v94, %v92
  %v117 = vpack.c.b16 %v95, %v93
  %v118 = vpack.c.b16 %v98, %v96
  %v119 = vpack.c.b16 %v99, %v97
  %v120 = vpack.c.b16 %v102, %v100
  %v121 = vpack.c.b16 %v103, %v101
  %v122 = vpack.c.b16 %v106, %v104
  %v123 = vpack.c.b16 %v107, %v105
  %140 = vmatprep.subr.bf16.mxu0 %v123
  %141 = vmatpush1.bf16.msra.mxu0 %v122
  %142 = vmatprep.subr.bf16.mxu0 %v121
  %143 = vmatpush1.bf16.msra.mxu0 %v120
  %144 = vmatprep.subr.bf16.mxu0 %v119
  %145 = vmatpush1.bf16.msra.mxu0 %v118
  %146 = vmatprep.subr.bf16.mxu0 %v117
  %147 = vmatpush1.bf16.msra.mxu0 %v116
  %148 = vmatprep.subr.bf16.mxu0 %v115
  %149 = vmatpush1.bf16.msra.mxu0 %v114
  %150 = vmatprep.subr.bf16.mxu0 %v113
  %151 = vmatpush1.bf16.msra.mxu0 %v112
  %152 = vmatprep.subr.bf16.mxu0 %v111
  %153 = vmatpush1.bf16.msra.mxu0 %v110
  %154 = vmatprep.subr.bf16.mxu0 %v109
  %155 = vmatpush1.bf16.msra.mxu0 %v108
  %156 = vmatprep.subr.bf16.mxu0 0
  %157 = vmatpush2.bf16.msra.mxu0 0
  %158 = vmatprep.subr.bf16.mxu0 0
  %159 = vmatpush2.bf16.msra.mxu0 0
  %160 = vmatprep.subr.bf16.mxu0 0
  %161 = vmatpush2.bf16.msra.mxu0 0
  %162 = vmatprep.subr.bf16.mxu0 0
  %163 = vmatpush2.bf16.msra.mxu0 0
  %164 = vmatprep.subr.bf16.mxu0 0
  %165 = vmatpush2.bf16.msra.mxu0 0
  %166 = vmatprep.subr.bf16.mxu0 0
  %167 = vmatpush2.bf16.msra.mxu0 0
  %168 = vmatprep.subr.bf16.mxu0 0
  %169 = vmatpush2.bf16.msra.mxu0 0
  %170 = vmatprep.subr.bf16.mxu0 0
  %171 = vmatpush2.bf16.msra.mxu0 0
  %172 = vmatprep.mubr.bf16.mxu0 0
  %173 = vmatmul.mubr.bf16.gmra.mxu0 %v58
  %v174 = vpop.f32.mrf.mxu0
  %v175 = vadd.f32 0.0, %v174
  %v176 = vpop.f32.mrf.mxu0
  %v177 = vadd.f32 0.0, %v176
  %v178 = vpop.f32.mrf.mxu0
  %v179 = vadd.f32 0.0, %v178
  %v180 = vpop.f32.mrf.mxu0
  %v181 = vadd.f32 0.0, %v180
  %182 = vdwg.mxu0
  %v183 = vadd.f32 %v32, %v175
  %v184 = vadd.f32 %v33, %v177
  %v185 = vadd.f32 %v34, %v179
  %v186 = vadd.f32 %v35, %v181
  %187 = vst [vmem:[#allocation2] sm:$0xff] %v183
  %188 = vst [vmem:[#allocation2 + $0x8] sm:$0xff] %v184
  %189 = vst [vmem:[#allocation2 + $0x10] sm:$0xff] %v185
  %190 = vst [vmem:[#allocation2 + $0x18] sm:$0xff] %v186
  // Predicated region
  $region30: #{_lambda_.29} parent=0 // pred_check
    %p191 = pneg %p24
  $region31: #{_lambda_.29} parent=0 // pred_check_branch
    %193 = sbr.rel (%p191) target = $region33
  $region32: #{_lambda_.29} parent=0 // pred_region
    %v194 = vld [vmem:[#allocation2] sm:$0xff]
    %v195 = vld [vmem:[#allocation2 + $0x8] sm:$0xff]
    %v196 = vld [vmem:[#allocation2 + $0x10] sm:$0xff]
    %v197 = vld [vmem:[#allocation2 + $0x18] sm:$0xff]
    %v198 = vld [vmem:[%s2] sm:$0x3]
    %v200 = vlaneseq
    %v201 = vshrl.u32 %v200, 7
    %v202 = vsub.s32 0, %v201
    %v203 = vrot.slane %v198, %v202
    %v204 = vlaneseq
    %v205 = vshrl.u32 %v204, 7
    %v206 = vsub.s32 1, %v205
    %v207 = vrot.slane %v198, %v206
    %v210 = vmul.f32 %v194, %v203
    %v211 = vmul.f32 %v195, %v207
    %v212 = vmul.f32 %v196, %v203
    %v213 = vmul.f32 %v197, %v207
    %v214 = vld [vmem:[%s3] sm:$0x3]
    %v216 = vlaneseq
    %v217 = vshrl.u32 %v216, 7
    %v218 = vsub.s32 0, %v217
    %v219 = vrot.slane %v214, %v218
    %v220 = vlaneseq
    %v221 = vshrl.u32 %v220, 7
    %v222 = vsub.s32 1, %v221
    %v223 = vrot.slane %v214, %v222
    %v226 = vadd.f32 %v210, %v219
    %v227 = vadd.f32 %v211, %v223
    %v228 = vadd.f32 %v212, %v219
    %v229 = vadd.f32 %v213, %v223
    %v230 = vld [vmem:[%s4] sm:$0xf]
    %v231 = vld [vmem:[%s4 + $0x4] sm:$0xf]
    %v232 = vunpack.c.l.bf16 %v230
    %v233 = vunpack.c.l.bf16 %v231
    %235 = vset.pattern.permute.xlu0 0
    %236 = vperm.xlu0 %235, %v232
    %v237 = vpop.permute.xlu0 %236
    %240 = vset.pattern.permute.xlu0 0
    %241 = vperm.xlu0 %240, %v233
    %v242 = vpop.permute.xlu0 %241
    %v244 = vmul.f32 %v226, %v237
    %v245 = vmul.f32 %v227, %v237
    %v246 = vmul.f32 %v228, %v242
    %v247 = vmul.f32 %v229, %v242
    %v248 = vld [vmem:[%s5] sm:$0xff]
    %v249 = vld [vmem:[%s5 + $0x8] sm:$0xff]
    %v250 = vunpack.c.l.bf16 %v248
    %v251 = vunpack.c.h.bf16 %v248
    %v252 = vunpack.c.l.bf16 %v249
    %v253 = vunpack.c.h.bf16 %v249
    %v254 = vadd.f32 %v244, %v250
    %v255 = vadd.f32 %v245, %v251
    %v256 = vadd.f32 %v246, %v252
    %v257 = vadd.f32 %v247, %v253
    %v258 = vmax.f32 %v254, 0.0
    %v259 = vmax.f32 %v255, 0.0
    %v260 = vmax.f32 %v256, 0.0
    %v261 = vmax.f32 %v257, 0.0
    %v262 = vpack.c.bf16 %v260, %v258
    %v263 = vpack.c.bf16 %v261, %v259
    %v266 = vunpack.c.l.b16 %v262
    %v267 = vunpack.c.l.b16 %v263
    %v268 = vunpack.c.h.b16 %v262
    %v269 = vunpack.c.h.b16 %v263
    %v270 = vpack.c.b16 %v267, %v266
    %v271 = vpack.c.b16 %v269, %v268
    %274 = vst [vmem:[%s6] sm:$0xff] %v270
    %275 = vst [vmem:[%s6 + $0x8] sm:$0xff] %v271
  $region33: #{_lambda_.29} parent=0 // pred_fallthru
    _
  // Predicated region
  $region34: #{_lambda_.29} parent=0 // pred_check
    _
  $region35: #{_lambda_.29} parent=0 // pred_check_branch
    %277 = sbr.rel (0) target = $region37
  $region36: #{_lambda_.29} parent=0 // pred_region
    _
  $region37: #{_lambda_.29} parent=0 // pred_fallthru
    _
  // Predicated region
  $region38: #{_lambda_.29} parent=0 // pred_check
    _
  $region39: #{_lambda_.29} parent=0 // pred_check_branch
    %279 = sbr.rel (0) target = $region41
  $region40: #{_lambda_.29} parent=0 // pred_region
    _
  $region41: #{_lambda_.29} parent=0 // pred_fallthru
    _

// kernel: _lambda_.30
$region0: #{_lambda_.30}
  #allocation0 [shape = 'u32[]', space=smem, size = 0x4, offset = 0x4, fixed_abs, tag = 'smem constant byte address 0x4 - core index']
  #allocation1 [shape = 'u32[144,128]{1,0:T(1,128)}', space=vmem, size = 0x12000, scoped, tag = 'internal scratch']
  #allocation2 [shape = 'f32[16,128]{1,0:T(8,128)}', space=vmem, size = 0x2000, scoped, tag = 'scratch operand']
  %s0 = inlined_call_operand.vmem [shape: bf16[16,256], index: 0, kind: input, shape index: {}]
  %s1 = inlined_call_operand.vmem [shape: bf16[256,128], index: 1, kind: input, shape index: {}]
  %s2 = inlined_call_operand.vmem [shape: f32[1,128], index: 2, kind: input, shape index: {}]
  %s3 = inlined_call_operand.vmem [shape: f32[1,128], index: 3, kind: input, shape index: {}]
  %s4 = inlined_call_operand.vmem [shape: bf16[16,128], index: 4, kind: output, shape index: {}]
  %s5 = sld [smem:[#allocation0]]
  $region34: #{_lambda_.30} parent=0
    _
  %s7 = ssub.s32 1, %s5
  %s8 = scalar_select 0, %s7, %s5
  // Predicated region
  $region2: #{_lambda_.30} parent=0 // pred_check
    _
  $region3: #{_lambda_.30} parent=0 // pred_check_branch
    %10 = sbr.rel (0) target = $region5
  $region4: #{_lambda_.30} parent=0 // pred_region
    _
  $region5: #{_lambda_.30} parent=0 // pred_fallthru
    _
  // Predicated region
  $region6: #{_lambda_.30} parent=0 // pred_check
    _
  $region7: #{_lambda_.30} parent=0 // pred_check_branch
    %12 = sbr.rel (0) target = $region9
  $region8: #{_lambda_.30} parent=0 // pred_region
    _
  $region9: #{_lambda_.30} parent=0 // pred_fallthru
    _
  // Predicated region
  $region10: #{_lambda_.30} parent=0 // pred_check
    _
  $region11: #{_lambda_.30} parent=0 // pred_check_branch
    %14 = sbr.rel (0) target = $region13
  $region12: #{_lambda_.30} parent=0 // pred_region
    _
  $region13: #{_lambda_.30} parent=0 // pred_fallthru
    _
  // Predicated region
  $region14: #{_lambda_.30} parent=0 // pred_check
    _
  $region15: #{_lambda_.30} parent=0 // pred_check_branch
    %16 = sbr.rel (0) target = $region17
  $region16: #{_lambda_.30} parent=0 // pred_region
    _
  $region17: #{_lambda_.30} parent=0 // pred_fallthru
    _
  %p18 = scmp.eq.s32.totalorder 0, 0
  // Predicated region
  $region18: #{_lambda_.30} parent=0 // pred_check
    %p19 = pneg %p18
  $region19: #{_lambda_.30} parent=0 // pred_check_branch
    %21 = sbr.rel (%p19) target = $region21
  $region20: #{_lambda_.30} parent=0 // pred_region
    %22 = vst [vmem:[#allocation2] sm:$0xff] 0.0
    %23 = vst [vmem:[#allocation2 + $0x8] sm:$0xff] 0.0
  $region21: #{_lambda_.30} parent=0 // pred_fallthru
    _
  %v24 = vld [vmem:[#allocation2] sm:$0xff]
  %v25 = vld [vmem:[#allocation2 + $0x8] sm:$0xff]
  %v26 = vld [vmem:[%s0] sm:$0xff]
  %v27 = vld [vmem:[%s0 + $0x8] sm:$0xff]
  %v28 = vld [vmem:[%s1] sm:$0xf]
  %v29 = vld [vmem:[%s1 + $0x4] sm:$0xf]
  %v30 = vld [vmem:[%s1 + $0x8] sm:$0xf]
  %v31 = vld [vmem:[%s1 + $0xc] sm:$0xf]
  %v32 = vld [vmem:[%s1 + $0x10] sm:$0xf]
  %v33 = vld [vmem:[%s1 + $0x14] sm:$0xf]
  %v34 = vld [vmem:[%s1 + $0x18] sm:$0xf]
  %v35 = vld [vmem:[%s1 + $0x1c] sm:$0xf]
  %v36 = vld [vmem:[%s1 + $0x20] sm:$0xf]
  %v37 = vld [vmem:[%s1 + $0x24] sm:$0xf]
  %v38 = vld [vmem:[%s1 + $0x28] sm:$0xf]
  %v39 = vld [vmem:[%s1 + $0x2c] sm:$0xf]
  %v40 = vld [vmem:[%s1 + $0x30] sm:$0xf]
  %v41 = vld [vmem:[%s1 + $0x34] sm:$0xf]
  %v42 = vld [vmem:[%s1 + $0x38] sm:$0xf]
  %v43 = vld [vmem:[%s1 + $0x3c] sm:$0xf]
  %v44 = vld [vmem:[%s1 + $0x40] sm:$0xf]
  %v45 = vld [vmem:[%s1 + $0x44] sm:$0xf]
  %v46 = vld [vmem:[%s1 + $0x48] sm:$0xf]
  %v47 = vld [vmem:[%s1 + $0x4c] sm:$0xf]
  %v48 = vld [vmem:[%s1 + $0x50] sm:$0xf]
  %v49 = vld [vmem:[%s1 + $0x54] sm:$0xf]
  %v50 = vld [vmem:[%s1 + $0x58] sm:$0xf]
  %v51 = vld [vmem:[%s1 + $0x5c] sm:$0xf]
  %v52 = vld [vmem:[%s1 + $0x60] sm:$0xf]
  %v53 = vld [vmem:[%s1 + $0x64] sm:$0xf]
  %v54 = vld [vmem:[%s1 + $0x68] sm:$0xf]
  %v55 = vld [vmem:[%s1 + $0x6c] sm:$0xf]
  %v56 = vld [vmem:[%s1 + $0x70] sm:$0xf]
  %v57 = vld [vmem:[%s1 + $0x74] sm:$0xf]
  %v58 = vld [vmem:[%s1 + $0x78] sm:$0xf]
  %v59 = vld [vmem:[%s1 + $0x7c] sm:$0xf]
  %v62 = vunpack.c.l.b16 %v26
  %v63 = vunpack.c.h.b16 %v26
  %v64 = vunpack.c.l.b16 %v27
  %v65 = vunpack.c.h.b16 %v27
  %v66 = vpack.c.b16 %v64, %v62
  %v67 = vpack.c.b16 %v65, %v63
  %v102 = vunpack.c.l.b16 %v28
  %v103 = vunpack.c.l.b16 %v29
  %v104 = vunpack.c.l.b16 %v30
  %v105 = vunpack.c.l.b16 %v31
  %v106 = vunpack.c.l.b16 %v32
  %v107 = vunpack.c.l.b16 %v33
  %v108 = vunpack.c.l.b16 %v34
  %v109 = vunpack.c.l.b16 %v35
  %v110 = vunpack.c.l.b16 %v36
  %v111 = vunpack.c.l.b16 %v37
  %v112 = vunpack.c.l.b16 %v38
  %v113 = vunpack.c.l.b16 %v39
  %v114 = vunpack.c.l.b16 %v40
  %v115 = vunpack.c.l.b16 %v41
  %v116 = vunpack.c.l.b16 %v42
  %v117 = vunpack.c.l.b16 %v43
  %v118 = vunpack.c.l.b16 %v44
  %v119 = vunpack.c.l.b16 %v45
  %v120 = vunpack.c.l.b16 %v46
  %v121 = vunpack.c.l.b16 %v47
  %v122 = vunpack.c.l.b16 %v48
  %v123 = vunpack.c.l.b16 %v49
  %v124 = vunpack.c.l.b16 %v50
  %v125 = vunpack.c.l.b16 %v51
  %v126 = vunpack.c.l.b16 %v52
  %v127 = vunpack.c.l.b16 %v53
  %v128 = vunpack.c.l.b16 %v54
  %v129 = vunpack.c.l.b16 %v55
  %v130 = vunpack.c.l.b16 %v56
  %v131 = vunpack.c.l.b16 %v57
  %v132 = vunpack.c.l.b16 %v58
  %v133 = vunpack.c.l.b16 %v59
  %v134 = vpack.c.b16 %v103, %v102
  %v135 = vpack.c.b16 %v105, %v104
  %v136 = vpack.c.b16 %v107, %v106
  %v137 = vpack.c.b16 %v109, %v108
  %v138 = vpack.c.b16 %v111, %v110
  %v139 = vpack.c.b16 %v113, %v112
  %v140 = vpack.c.b16 %v115, %v114
  %v141 = vpack.c.b16 %v117, %v116
  %v142 = vpack.c.b16 %v119, %v118
  %v143 = vpack.c.b16 %v121, %v120
  %v144 = vpack.c.b16 %v123, %v122
  %v145 = vpack.c.b16 %v125, %v124
  %v146 = vpack.c.b16 %v127, %v126
  %v147 = vpack.c.b16 %v129, %v128
  %v148 = vpack.c.b16 %v131, %v130
  %v149 = vpack.c.b16 %v133, %v132
  %166 = vmatprep.subr.bf16.mxu0 0
  %167 = vmatpush1.bf16.msra.mxu0 %v141
  %168 = vmatprep.subr.bf16.mxu0 0
  %169 = vmatpush1.bf16.msra.mxu0 %v140
  %170 = vmatprep.subr.bf16.mxu0 0
  %171 = vmatpush1.bf16.msra.mxu0 %v139
  %172 = vmatprep.subr.bf16.mxu0 0
  %173 = vmatpush1.bf16.msra.mxu0 %v138
  %174 = vmatprep.subr.bf16.mxu0 0
  %175 = vmatpush1.bf16.msra.mxu0 %v137
  %176 = vmatprep.subr.bf16.mxu0 0
  %177 = vmatpush1.bf16.msra.mxu0 %v136
  %178 = vmatprep.subr.bf16.mxu0 0
  %179 = vmatpush1.bf16.msra.mxu0 %v135
  %180 = vmatprep.subr.bf16.mxu0 0
  %181 = vmatpush1.bf16.msra.mxu0 %v134
  %182 = vmatprep.subr.bf16.mxu0 0
  %183 = vmatpush2.bf16.msra.mxu0 %v149
  %184 = vmatprep.subr.bf16.mxu0 0
  %185 = vmatpush2.bf16.msra.mxu0 %v148
  %186 = vmatprep.subr.bf16.mxu0 0
  %187 = vmatpush2.bf16.msra.mxu0 %v147
  %188 = vmatprep.subr.bf16.mxu0 0
  %189 = vmatpush2.bf16.msra.mxu0 %v146
  %190 = vmatprep.subr.bf16.mxu0 0
  %191 = vmatpush2.bf16.msra.mxu0 %v145
  %192 = vmatprep.subr.bf16.mxu0 0
  %193 = vmatpush2.bf16.msra.mxu0 %v144
  %194 = vmatprep.subr.bf16.mxu0 0
  %195 = vmatpush2.bf16.msra.mxu0 %v143
  %196 = vmatprep.subr.bf16.mxu0 0
  %197 = vmatpush2.bf16.msra.mxu0 %v142
  %198 = vmatprep.mubr.bf16.mxu0 %v67
  %199 = vmatmul.mubr.bf16.gmra.mxu0 %v66
  %v200 = vpop.f32.mrf.mxu0
  %v201 = vadd.f32 0.0, %v200
  %v202 = vpop.f32.mrf.mxu0
  %v203 = vpop.f32.mrf.mxu0
  %v204 = vadd.f32 0.0, %v203
  %v205 = vpop.f32.mrf.mxu0
  %206 = vdwg.mxu0
  %v207 = vadd.f32 %v24, %v201
  %v208 = vadd.f32 %v25, %v204
  %209 = vst [vmem:[#allocation2] sm:$0xff] %v207
  %210 = vst [vmem:[#allocation2 + $0x8] sm:$0xff] %v208
  // Predicated region
  $region22: #{_lambda_.30} parent=0 // pred_check
    %p211 = pneg %p18
  $region23: #{_lambda_.30} parent=0 // pred_check_branch
    %213 = sbr.rel (%p211) target = $region25
  $region24: #{_lambda_.30} parent=0 // pred_region
    %v214 = vld [vmem:[#allocation2] sm:$0xff]
    %v215 = vld [vmem:[#allocation2 + $0x8] sm:$0xff]
    %v216 = vld [vmem:[%s2] sm:$0x1]
    %v218 = vlaneseq
    %v219 = vshrl.u32 %v218, 7
    %v220 = vsub.s32 0, %v219
    %v221 = vrot.slane %v216, %v220
    %v223 = vmul.f32 %v214, %v221
    %v224 = vmul.f32 %v215, %v221
    %v225 = vld [vmem:[%s3] sm:$0x1]
    %v227 = vlaneseq
    %v228 = vshrl.u32 %v227, 7
    %v229 = vsub.s32 0, %v228
    %v230 = vrot.slane %v225, %v229
    %v232 = vadd.f32 %v223, %v230
    %v233 = vadd.f32 %v224, %v230
    %v234 = vmax.f32 %v232, 0.0
    %v235 = vmax.f32 %v233, 0.0
    %v236 = vpack.c.bf16 %v235, %v234
    %v238 = vunpack.c.l.b16 %v236
    %v239 = vunpack.c.h.b16 %v236
    %v240 = vpack.c.b16 %v238, %v238
    %v241 = vpack.c.b16 %v239, %v239
    %244 = vst [vmem:[%s4] sm:$0xf] %v240
    %245 = vst [vmem:[%s4 + $0x4] sm:$0xf] %v241
  $region25: #{_lambda_.30} parent=0 // pred_fallthru
    _
  // Predicated region
  $region26: #{_lambda_.30} parent=0 // pred_check
    _
  $region27: #{_lambda_.30} parent=0 // pred_check_branch
    %247 = sbr.rel (0) target = $region29
  $region28: #{_lambda_.30} parent=0 // pred_region
    _
  $region29: #{_lambda_.30} parent=0 // pred_fallthru
    _
  // Predicated region
  $region30: #{_lambda_.30} parent=0 // pred_check
    _
  $region31: #{_lambda_.30} parent=0 // pred_check_branch
    %249 = sbr.rel (0) target = $region33
  $region32: #{_lambda_.30} parent=0 // pred_region
    _
  $region33: #{_lambda_.30} parent=0 // pred_fallthru
    _

// kernel: _lambda_.32
$region0: #{_lambda_.32}
  #allocation0 [shape = 'u32[]', space=smem, size = 0x4, offset = 0x4, fixed_abs, tag = 'smem constant byte address 0x4 - core index']
  #allocation1 [shape = 'u32[144,128]{1,0:T(1,128)}', space=vmem, size = 0x12000, scoped, tag = 'internal scratch']
  #allocation2 [shape = 'f32[16,512]{1,0:T(8,128)}', space=vmem, size = 0x8000, scoped, tag = 'scratch operand']
  %s0 = inlined_call_operand.vmem [shape: bf16[16,256], index: 0, kind: input, shape index: {}]
  %s1 = inlined_call_operand.vmem [shape: bf16[256,512], index: 1, kind: input, shape index: {}]
  %s2 = inlined_call_operand.vmem [shape: f32[1,512], index: 2, kind: input, shape index: {}]
  %s3 = inlined_call_operand.vmem [shape: f32[1,512], index: 3, kind: input, shape index: {}]
  %s4 = inlined_call_operand.vmem [shape: bf16[16,512], index: 4, kind: output, shape index: {}]
  %s5 = sld [smem:[#allocation0]]
  $region34: #{_lambda_.32} parent=0
    _
  %s7 = ssub.s32 1, %s5
  %s8 = scalar_select 0, %s7, %s5
  // Predicated region
  $region2: #{_lambda_.32} parent=0 // pred_check
    _
  $region3: #{_lambda_.32} parent=0 // pred_check_branch
    %10 = sbr.rel (0) target = $region5
  $region4: #{_lambda_.32} parent=0 // pred_region
    _
  $region5: #{_lambda_.32} parent=0 // pred_fallthru
    _
  // Predicated region
  $region6: #{_lambda_.32} parent=0 // pred_check
    _
  $region7: #{_lambda_.32} parent=0 // pred_check_branch
    %12 = sbr.rel (0) target = $region9
  $region8: #{_lambda_.32} parent=0 // pred_region
    _
  $region9: #{_lambda_.32} parent=0 // pred_fallthru
    _
  // Predicated region
  $region10: #{_lambda_.32} parent=0 // pred_check
    _
  $region11: #{_lambda_.32} parent=0 // pred_check_branch
    %14 = sbr.rel (0) target = $region13
  $region12: #{_lambda_.32} parent=0 // pred_region
    _
  $region13: #{_lambda_.32} parent=0 // pred_fallthru
    _
  // Predicated region
  $region14: #{_lambda_.32} parent=0 // pred_check
    _
  $region15: #{_lambda_.32} parent=0 // pred_check_branch
    %16 = sbr.rel (0) target = $region17
  $region16: #{_lambda_.32} parent=0 // pred_region
    _
  $region17: #{_lambda_.32} parent=0 // pred_fallthru
    _
  %p17 = scmp.eq.s32.totalorder 0, 0
  // Predicated region
  $region18: #{_lambda_.32} parent=0 // pred_check
    %p18 = pneg %p17
  $region19: #{_lambda_.32} parent=0 // pred_check_branch
    %20 = sbr.rel (%p18) target = $region21
  $region20: #{_lambda_.32} parent=0 // pred_region
    %21 = vst [vmem:[#allocation2] sm:$0xff] 0.0
    %22 = vst [vmem:[#allocation2 + $0x8] sm:$0xff] 0.0
    %23 = vst [vmem:[#allocation2 + $0x10] sm:$0xff] 0.0
    %24 = vst [vmem:[#allocation2 + $0x18] sm:$0xff] 0.0
    %25 = vst [vmem:[#allocation2 + $0x20] sm:$0xff] 0.0
    %26 = vst [vmem:[#allocation2 + $0x28] sm:$0xff] 0.0
    %27 = vst [vmem:[#allocation2 + $0x30] sm:$0xff] 0.0
    %28 = vst [vmem:[#allocation2 + $0x38] sm:$0xff] 0.0
  $region21: #{_lambda_.32} parent=0 // pred_fallthru
    _
  %v29 = vld [vmem:[#allocation2] sm:$0xff]
  %v30 = vld [vmem:[#allocation2 + $0x8] sm:$0xff]
  %v31 = vld [vmem:[#allocation2 + $0x10] sm:$0xff]
  %v32 = vld [vmem:[#allocation2 + $0x18] sm:$0xff]
  %v33 = vld [vmem:[#allocation2 + $0x20] sm:$0xff]
  %v34 = vld [vmem:[#allocation2 + $0x28] sm:$0xff]
  %v35 = vld [vmem:[#allocation2 + $0x30] sm:$0xff]
  %v36 = vld [vmem:[#allocation2 + $0x38] sm:$0xff]
  %v37 = vld [vmem:[%s0] sm:$0xff]
  %v38 = vld [vmem:[%s0 + $0x8] sm:$0xff]
  %v39 = vld [vmem:[%s1] sm:$0xff]
  %v40 = vld [vmem:[%s1 + $0x8] sm:$0xff]
  %v41 = vld [vmem:[%s1 + $0x10] sm:$0xff]
  %v42 = vld [vmem:[%s1 + $0x18] sm:$0xff]
  %v43 = vld [vmem:[%s1 + $0x20] sm:$0xff]
  %v44 = vld [vmem:[%s1 + $0x28] sm:$0xff]
  %v45 = vld [vmem:[%s1 + $0x30] sm:$0xff]
  %v46 = vld [vmem:[%s1 + $0x38] sm:$0xff]
  %v47 = vld [vmem:[%s1 + $0x40] sm:$0xff]
  %v48 = vld [vmem:[%s1 + $0x48] sm:$0xff]
  %v49 = vld [vmem:[%s1 + $0x50] sm:$0xff]
  %v50 = vld [vmem:[%s1 + $0x58] sm:$0xff]
  %v51 = vld [vmem:[%s1 + $0x60] sm:$0xff]
  %v52 = vld [vmem:[%s1 + $0x68] sm:$0xff]
  %v53 = vld [vmem:[%s1 + $0x70] sm:$0xff]
  %v54 = vld [vmem:[%s1 + $0x78] sm:$0xff]
  %v55 = vld [vmem:[%s1 + $0x80] sm:$0xff]
  %v56 = vld [vmem:[%s1 + $0x88] sm:$0xff]
  %v57 = vld [vmem:[%s1 + $0x90] sm:$0xff]
  %v58 = vld [vmem:[%s1 + $0x98] sm:$0xff]
  %v59 = vld [vmem:[%s1 + $0xa0] sm:$0xff]
  %v60 = vld [vmem:[%s1 + $0xa8] sm:$0xff]
  %v61 = vld [vmem:[%s1 + $0xb0] sm:$0xff]
  %v62 = vld [vmem:[%s1 + $0xb8] sm:$0xff]
  %v63 = vld [vmem:[%s1 + $0xc0] sm:$0xff]
  %v64 = vld [vmem:[%s1 + $0xc8] sm:$0xff]
  %v65 = vld [vmem:[%s1 + $0xd0] sm:$0xff]
  %v66 = vld [vmem:[%s1 + $0xd8] sm:$0xff]
  %v67 = vld [vmem:[%s1 + $0xe0] sm:$0xff]
  %v68 = vld [vmem:[%s1 + $0xe8] sm:$0xff]
  %v69 = vld [vmem:[%s1 + $0xf0] sm:$0xff]
  %v70 = vld [vmem:[%s1 + $0xf8] sm:$0xff]
  %v71 = vld [vmem:[%s1 + $0x100] sm:$0xff]
  %v72 = vld [vmem:[%s1 + $0x108] sm:$0xff]
  %v73 = vld [vmem:[%s1 + $0x110] sm:$0xff]
  %v74 = vld [vmem:[%s1 + $0x118] sm:$0xff]
  %v75 = vld [vmem:[%s1 + $0x120] sm:$0xff]
  %v76 = vld [vmem:[%s1 + $0x128] sm:$0xff]
  %v77 = vld [vmem:[%s1 + $0x130] sm:$0xff]
  %v78 = vld [vmem:[%s1 + $0x138] sm:$0xff]
  %v79 = vld [vmem:[%s1 + $0x140] sm:$0xff]
  %v80 = vld [vmem:[%s1 + $0x148] sm:$0xff]
  %v81 = vld [vmem:[%s1 + $0x150] sm:$0xff]
  %v82 = vld [vmem:[%s1 + $0x158] sm:$0xff]
  %v83 = vld [vmem:[%s1 + $0x160] sm:$0xff]
  %v84 = vld [vmem:[%s1 + $0x168] sm:$0xff]
  %v85 = vld [vmem:[%s1 + $0x170] sm:$0xff]
  %v86 = vld [vmem:[%s1 + $0x178] sm:$0xff]
  %v87 = vld [vmem:[%s1 + $0x180] sm:$0xff]
  %v88 = vld [vmem:[%s1 + $0x188] sm:$0xff]
  %v89 = vld [vmem:[%s1 + $0x190] sm:$0xff]
  %v90 = vld [vmem:[%s1 + $0x198] sm:$0xff]
  %v91 = vld [vmem:[%s1 + $0x1a0] sm:$0xff]
  %v92 = vld [vmem:[%s1 + $0x1a8] sm:$0xff]
  %v93 = vld [vmem:[%s1 + $0x1b0] sm:$0xff]
  %v94 = vld [vmem:[%s1 + $0x1b8] sm:$0xff]
  %v95 = vld [vmem:[%s1 + $0x1c0] sm:$0xff]
  %v96 = vld [vmem:[%s1 + $0x1c8] sm:$0xff]
  %v97 = vld [vmem:[%s1 + $0x1d0] sm:$0xff]
  %v98 = vld [vmem:[%s1 + $0x1d8] sm:$0xff]
  %v99 = vld [vmem:[%s1 + $0x1e0] sm:$0xff]
  %v100 = vld [vmem:[%s1 + $0x1e8] sm:$0xff]
  %v101 = vld [vmem:[%s1 + $0x1f0] sm:$0xff]
  %v102 = vld [vmem:[%s1 + $0x1f8] sm:$0xff]
  %v105 = vunpack.c.l.b16 %v37
  %v106 = vunpack.c.h.b16 %v37
  %v107 = vunpack.c.l.b16 %v38
  %v108 = vunpack.c.h.b16 %v38
  %v109 = vpack.c.b16 %v107, %v105
  %v110 = vpack.c.b16 %v108, %v106
  %v177 = vunpack.c.l.b16 %v39
  %v178 = vunpack.c.h.b16 %v39
  %v179 = vunpack.c.l.b16 %v40
  %v180 = vunpack.c.h.b16 %v40
  %v181 = vunpack.c.l.b16 %v41
  %v182 = vunpack.c.h.b16 %v41
  %v183 = vunpack.c.l.b16 %v42
  %v184 = vunpack.c.h.b16 %v42
  %v185 = vunpack.c.l.b16 %v43
  %v186 = vunpack.c.h.b16 %v43
  %v187 = vunpack.c.l.b16 %v44
  %v188 = vunpack.c.h.b16 %v44
  %v189 = vunpack.c.l.b16 %v45
  %v190 = vunpack.c.h.b16 %v45
  %v191 = vunpack.c.l.b16 %v46
  %v192 = vunpack.c.h.b16 %v46
  %v193 = vunpack.c.l.b16 %v47
  %v194 = vunpack.c.h.b16 %v47
  %v195 = vunpack.c.l.b16 %v48
  %v196 = vunpack.c.h.b16 %v48
  %v197 = vunpack.c.l.b16 %v49
  %v198 = vunpack.c.h.b16 %v49
  %v199 = vunpack.c.l.b16 %v50
  %v200 = vunpack.c.h.b16 %v50
  %v201 = vunpack.c.l.b16 %v51
  %v202 = vunpack.c.h.b16 %v51
  %v203 = vunpack.c.l.b16 %v52
  %v204 = vunpack.c.h.b16 %v52
  %v205 = vunpack.c.l.b16 %v53
  %v206 = vunpack.c.h.b16 %v53
  %v207 = vunpack.c.l.b16 %v54
  %v208 = vunpack.c.h.b16 %v54
  %v209 = vunpack.c.l.b16 %v55
  %v210 = vunpack.c.h.b16 %v55
  %v211 = vunpack.c.l.b16 %v56
  %v212 = vunpack.c.h.b16 %v56
  %v213 = vunpack.c.l.b16 %v57
  %v214 = vunpack.c.h.b16 %v57
  %v215 = vunpack.c.l.b16 %v58
  %v216 = vunpack.c.h.b16 %v58
  %v217 = vunpack.c.l.b16 %v59
  %v218 = vunpack.c.h.b16 %v59
  %v219 = vunpack.c.l.b16 %v60
  %v220 = vunpack.c.h.b16 %v60
  %v221 = vunpack.c.l.b16 %v61
  %v222 = vunpack.c.h.b16 %v61
  %v223 = vunpack.c.l.b16 %v62
  %v224 = vunpack.c.h.b16 %v62
  %v225 = vunpack.c.l.b16 %v63
  %v226 = vunpack.c.h.b16 %v63
  %v227 = vunpack.c.l.b16 %v64
  %v228 = vunpack.c.h.b16 %v64
  %v229 = vunpack.c.l.b16 %v65
  %v230 = vunpack.c.h.b16 %v65
  %v231 = vunpack.c.l.b16 %v66
  %v232 = vunpack.c.h.b16 %v66
  %v233 = vunpack.c.l.b16 %v67
  %v234 = vunpack.c.h.b16 %v67
  %v235 = vunpack.c.l.b16 %v68
  %v236 = vunpack.c.h.b16 %v68
  %v237 = vunpack.c.l.b16 %v69
  %v238 = vunpack.c.h.b16 %v69
  %v239 = vunpack.c.l.b16 %v70
  %v240 = vunpack.c.h.b16 %v70
  %v241 = vunpack.c.l.b16 %v71
  %v242 = vunpack.c.h.b16 %v71
  %v243 = vunpack.c.l.b16 %v72
  %v244 = vunpack.c.h.b16 %v72
  %v245 = vunpack.c.l.b16 %v73
  %v246 = vunpack.c.h.b16 %v73
  %v247 = vunpack.c.l.b16 %v74
  %v248 = vunpack.c.h.b16 %v74
  %v249 = vunpack.c.l.b16 %v75
  %v250 = vunpack.c.h.b16 %v75
  %v251 = vunpack.c.l.b16 %v76
  %v252 = vunpack.c.h.b16 %v76
  %v253 = vunpack.c.l.b16 %v77
  %v254 = vunpack.c.h.b16 %v77
  %v255 = vunpack.c.l.b16 %v78
  %v256 = vunpack.c.h.b16 %v78
  %v257 = vunpack.c.l.b16 %v79
  %v258 = vunpack.c.h.b16 %v79
  %v259 = vunpack.c.l.b16 %v80
  %v260 = vunpack.c.h.b16 %v80
  %v261 = vunpack.c.l.b16 %v81
  %v262 = vunpack.c.h.b16 %v81
  %v263 = vunpack.c.l.b16 %v82
  %v264 = vunpack.c.h.b16 %v82
  %v265 = vunpack.c.l.b16 %v83
  %v266 = vunpack.c.h.b16 %v83
  %v267 = vunpack.c.l.b16 %v84
  %v268 = vunpack.c.h.b16 %v84
  %v269 = vunpack.c.l.b16 %v85
  %v270 = vunpack.c.h.b16 %v85
  %v271 = vunpack.c.l.b16 %v86
  %v272 = vunpack.c.h.b16 %v86
  %v273 = vunpack.c.l.b16 %v87
  %v274 = vunpack.c.h.b16 %v87
  %v275 = vunpack.c.l.b16 %v88
  %v276 = vunpack.c.h.b16 %v88
  %v277 = vunpack.c.l.b16 %v89
  %v278 = vunpack.c.h.b16 %v89
  %v279 = vunpack.c.l.b16 %v90
  %v280 = vunpack.c.h.b16 %v90
  %v281 = vunpack.c.l.b16 %v91
  %v282 = vunpack.c.h.b16 %v91
  %v283 = vunpack.c.l.b16 %v92
  %v284 = vunpack.c.h.b16 %v92
  %v285 = vunpack.c.l.b16 %v93
  %v286 = vunpack.c.h.b16 %v93
  %v287 = vunpack.c.l.b16 %v94
  %v288 = vunpack.c.h.b16 %v94
  %v289 = vunpack.c.l.b16 %v95
  %v290 = vunpack.c.h.b16 %v95
  %v291 = vunpack.c.l.b16 %v96
  %v292 = vunpack.c.h.b16 %v96
  %v293 = vunpack.c.l.b16 %v97
  %v294 = vunpack.c.h.b16 %v97
  %v295 = vunpack.c.l.b16 %v98
  %v296 = vunpack.c.h.b16 %v98
  %v297 = vunpack.c.l.b16 %v99
  %v298 = vunpack.c.h.b16 %v99
  %v299 = vunpack.c.l.b16 %v100
  %v300 = vunpack.c.h.b16 %v100
  %v301 = vunpack.c.l.b16 %v101
  %v302 = vunpack.c.h.b16 %v101
  %v303 = vunpack.c.l.b16 %v102
  %v304 = vunpack.c.h.b16 %v102
  %v305 = vpack.c.b16 %v181, %v177
  %v306 = vpack.c.b16 %v182, %v178
  %v307 = vpack.c.b16 %v183, %v179
  %v308 = vpack.c.b16 %v184, %v180
  %v309 = vpack.c.b16 %v189, %v185
  %v310 = vpack.c.b16 %v190, %v186
  %v311 = vpack.c.b16 %v191, %v187
  %v312 = vpack.c.b16 %v192, %v188
  %v313 = vpack.c.b16 %v197, %v193
  %v314 = vpack.c.b16 %v198, %v194
  %v315 = vpack.c.b16 %v199, %v195
  %v316 = vpack.c.b16 %v200, %v196
  %v317 = vpack.c.b16 %v205, %v201
  %v318 = vpack.c.b16 %v206, %v202
  %v319 = vpack.c.b16 %v207, %v203
  %v320 = vpack.c.b16 %v208, %v204
  %v321 = vpack.c.b16 %v213, %v209
  %v322 = vpack.c.b16 %v214, %v210
  %v323 = vpack.c.b16 %v215, %v211
  %v324 = vpack.c.b16 %v216, %v212
  %v325 = vpack.c.b16 %v221, %v217
  %v326 = vpack.c.b16 %v222, %v218
  %v327 = vpack.c.b16 %v223, %v219
  %v328 = vpack.c.b16 %v224, %v220
  %v329 = vpack.c.b16 %v229, %v225
  %v330 = vpack.c.b16 %v230, %v226
  %v331 = vpack.c.b16 %v231, %v227
  %v332 = vpack.c.b16 %v232, %v228
  %v333 = vpack.c.b16 %v237, %v233
  %v334 = vpack.c.b16 %v238, %v234
  %v335 = vpack.c.b16 %v239, %v235
  %v336 = vpack.c.b16 %v240, %v236
  %v337 = vpack.c.b16 %v245, %v241
  %v338 = vpack.c.b16 %v246, %v242
  %v339 = vpack.c.b16 %v247, %v243
  %v340 = vpack.c.b16 %v248, %v244
  %v341 = vpack.c.b16 %v253, %v249
  %v342 = vpack.c.b16 %v254, %v250
  %v343 = vpack.c.b16 %v255, %v251
  %v344 = vpack.c.b16 %v256, %v252
  %v345 = vpack.c.b16 %v261, %v257
  %v346 = vpack.c.b16 %v262, %v258
  %v347 = vpack.c.b16 %v263, %v259
  %v348 = vpack.c.b16 %v264, %v260
  %v349 = vpack.c.b16 %v269, %v265
  %v350 = vpack.c.b16 %v270, %v266
  %v351 = vpack.c.b16 %v271, %v267
  %v352 = vpack.c.b16 %v272, %v268
  %v353 = vpack.c.b16 %v277, %v273
  %v354 = vpack.c.b16 %v278, %v274
  %v355 = vpack.c.b16 %v279, %v275
  %v356 = vpack.c.b16 %v280, %v276
  %v357 = vpack.c.b16 %v285, %v281
  %v358 = vpack.c.b16 %v286, %v282
  %v359 = vpack.c.b16 %v287, %v283
  %v360 = vpack.c.b16 %v288, %v284
  %v361 = vpack.c.b16 %v293, %v289
  %v362 = vpack.c.b16 %v294, %v290
  %v363 = vpack.c.b16 %v295, %v291
  %v364 = vpack.c.b16 %v296, %v292
  %v365 = vpack.c.b16 %v301, %v297
  %v366 = vpack.c.b16 %v302, %v298
  %v367 = vpack.c.b16 %v303, %v299
  %v368 = vpack.c.b16 %v304, %v300
  %433 = vmatprep.subr.bf16.mxu0 %v334
  %434 = vmatpush1.bf16.msra.mxu0 %v333
  %435 = vmatprep.subr.bf16.mxu0 %v330
  %436 = vmatpush1.bf16.msra.mxu0 %v329
  %437 = vmatprep.subr.bf16.mxu0 %v326
  %438 = vmatpush1.bf16.msra.mxu0 %v325
  %439 = vmatprep.subr.bf16.mxu0 %v322
  %440 = vmatpush1.bf16.msra.mxu0 %v321
  %441 = vmatprep.subr.bf16.mxu0 %v318
  %442 = vmatpush1.bf16.msra.mxu0 %v317
  %443 = vmatprep.subr.bf16.mxu0 %v314
  %444 = vmatpush1.bf16.msra.mxu0 %v313
  %445 = vmatprep.subr.bf16.mxu0 %v310
  %446 = vmatpush1.bf16.msra.mxu0 %v309
  %447 = vmatprep.subr.bf16.mxu0 %v306
  %448 = vmatpush1.bf16.msra.mxu0 %v305
  %449 = vmatprep.subr.bf16.mxu0 %v366
  %450 = vmatpush2.bf16.msra.mxu0 %v365
  %451 = vmatprep.subr.bf16.mxu0 %v362
  %452 = vmatpush2.bf16.msra.mxu0 %v361
  %453 = vmatprep.subr.bf16.mxu0 %v358
  %454 = vmatpush2.bf16.msra.mxu0 %v357
  %455 = vmatprep.subr.bf16.mxu0 %v354
  %456 = vmatpush2.bf16.msra.mxu0 %v353
  %457 = vmatprep.subr.bf16.mxu0 %v350
  %458 = vmatpush2.bf16.msra.mxu0 %v349
  %459 = vmatprep.subr.bf16.mxu0 %v346
  %460 = vmatpush2.bf16.msra.mxu0 %v345
  %461 = vmatprep.subr.bf16.mxu0 %v342
  %462 = vmatpush2.bf16.msra.mxu0 %v341
  %463 = vmatprep.subr.bf16.mxu0 %v338
  %464 = vmatpush2.bf16.msra.mxu0 %v337
  %465 = vmatprep.mubr.bf16.mxu0 %v110
  %466 = vmatmul.mubr.bf16.gmra.mxu0 %v109
  %v467 = vpop.f32.mrf.mxu0
  %v468 = vadd.f32 0.0, %v467
  %v469 = vpop.f32.mrf.mxu0
  %v470 = vadd.f32 0.0, %v469
  %v471 = vpop.f32.mrf.mxu0
  %v472 = vadd.f32 0.0, %v471
  %v473 = vpop.f32.mrf.mxu0
  %v474 = vadd.f32 0.0, %v473
  %475 = vdwg.mxu0
  %476 = vmatprep.subr.bf16.mxu0 %v336
  %477 = vmatpush1.bf16.msra.mxu0 %v335
  %478 = vmatprep.subr.bf16.mxu0 %v332
  %479 = vmatpush1.bf16.msra.mxu0 %v331
  %480 = vmatprep.subr.bf16.mxu0 %v328
  %481 = vmatpush1.bf16.msra.mxu0 %v327
  %482 = vmatprep.subr.bf16.mxu0 %v324
  %483 = vmatpush1.bf16.msra.mxu0 %v323
  %484 = vmatprep.subr.bf16.mxu0 %v320
  %485 = vmatpush1.bf16.msra.mxu0 %v319
  %486 = vmatprep.subr.bf16.mxu0 %v316
  %487 = vmatpush1.bf16.msra.mxu0 %v315
  %488 = vmatprep.subr.bf16.mxu0 %v312
  %489 = vmatpush1.bf16.msra.mxu0 %v311
  %490 = vmatprep.subr.bf16.mxu0 %v308
  %491 = vmatpush1.bf16.msra.mxu0 %v307
  %492 = vmatprep.subr.bf16.mxu0 %v368
  %493 = vmatpush2.bf16.msra.mxu0 %v367
  %494 = vmatprep.subr.bf16.mxu0 %v364
  %495 = vmatpush2.bf16.msra.mxu0 %v363
  %496 = vmatprep.subr.bf16.mxu0 %v360
  %497 = vmatpush2.bf16.msra.mxu0 %v359
  %498 = vmatprep.subr.bf16.mxu0 %v356
  %499 = vmatpush2.bf16.msra.mxu0 %v355
  %500 = vmatprep.subr.bf16.mxu0 %v352
  %501 = vmatpush2.bf16.msra.mxu0 %v351
  %502 = vmatprep.subr.bf16.mxu0 %v348
  %503 = vmatpush2.bf16.msra.mxu0 %v347
  %504 = vmatprep.subr.bf16.mxu0 %v344
  %505 = vmatpush2.bf16.msra.mxu0 %v343
  %506 = vmatprep.subr.bf16.mxu0 %v340
  %507 = vmatpush2.bf16.msra.mxu0 %v339
  %508 = vmatprep.mubr.bf16.mxu0 %v110
  %509 = vmatmul.mubr.bf16.gmra.mxu0 %v109
  %v510 = vpop.f32.mrf.mxu0
  %v511 = vadd.f32 0.0, %v510
  %v512 = vpop.f32.mrf.mxu0
  %v513 = vadd.f32 0.0, %v512
  %v514 = vpop.f32.mrf.mxu0
  %v515 = vadd.f32 0.0, %v514
  %v516 = vpop.f32.mrf.mxu0
  %v517 = vadd.f32 0.0, %v516
  %518 = vdwg.mxu0
  %v519 = vadd.f32 %v29, %v468
  %v520 = vadd.f32 %v30, %v470
  %v521 = vadd.f32 %v31, %v511
  %v522 = vadd.f32 %v32, %v513
  %v523 = vadd.f32 %v33, %v472
  %v524 = vadd.f32 %v34, %v474
  %v525 = vadd.f32 %v35, %v515
  %v526 = vadd.f32 %v36, %v517
  %527 = vst [vmem:[#allocation2] sm:$0xff] %v519
  %528 = vst [vmem:[#allocation2 + $0x8] sm:$0xff] %v520
  %529 = vst [vmem:[#allocation2 + $0x10] sm:$0xff] %v521
  %530 = vst [vmem:[#allocation2 + $0x18] sm:$0xff] %v522
  %531 = vst [vmem:[#allocation2 + $0x20] sm:$0xff] %v523
  %532 = vst [vmem:[#allocation2 + $0x28] sm:$0xff] %v524
  %533 = vst [vmem:[#allocation2 + $0x30] sm:$0xff] %v525
  %534 = vst [vmem:[#allocation2 + $0x38] sm:$0xff] %v526
  // Predicated region
  $region22: #{_lambda_.32} parent=0 // pred_check
    %p535 = pneg %p17
  $region23: #{_lambda_.32} parent=0 // pred_check_branch
    %537 = sbr.rel (%p535) target = $region25
  $region24: #{_lambda_.32} parent=0 // pred_region
    %v538 = vld [vmem:[#allocation2] sm:$0xff]
    %v539 = vld [vmem:[#allocation2 + $0x8] sm:$0xff]
    %v540 = vld [vmem:[#allocation2 + $0x10] sm:$0xff]
    %v541 = vld [vmem:[#allocation2 + $0x18] sm:$0xff]
    %v542 = vld [vmem:[#allocation2 + $0x20] sm:$0xff]
    %v543 = vld [vmem:[#allocation2 + $0x28] sm:$0xff]
    %v544 = vld [vmem:[#allocation2 + $0x30] sm:$0xff]
    %v545 = vld [vmem:[#allocation2 + $0x38] sm:$0xff]
    %v546 = vld [vmem:[%s2] sm:$0xf]
    %v548 = vlaneseq
    %v549 = vshrl.u32 %v548, 7
    %v550 = vsub.s32 0, %v549
    %v551 = vrot.slane %v546, %v550
    %v552 = vlaneseq
    %v553 = vshrl.u32 %v552, 7
    %v554 = vsub.s32 1, %v553
    %v555 = vrot.slane %v546, %v554
    %v556 = vlaneseq
    %v557 = vshrl.u32 %v556, 7
    %v558 = vsub.s32 2, %v557
    %v559 = vrot.slane %v546, %v558
    %v560 = vlaneseq
    %v561 = vshrl.u32 %v560, 7
    %v562 = vsub.s32 3, %v561
    %v563 = vrot.slane %v546, %v562
    %v568 = vmul.f32 %v538, %v551
    %v569 = vmul.f32 %v539, %v555
    %v570 = vmul.f32 %v540, %v559
    %v571 = vmul.f32 %v541, %v563
    %v572 = vmul.f32 %v542, %v551
    %v573 = vmul.f32 %v543, %v555
    %v574 = vmul.f32 %v544, %v559
    %v575 = vmul.f32 %v545, %v563
    %v576 = vld [vmem:[%s3] sm:$0xf]
    %v578 = vlaneseq
    %v579 = vshrl.u32 %v578, 7
    %v580 = vsub.s32 0, %v579
    %v581 = vrot.slane %v576, %v580
    %v582 = vlaneseq
    %v583 = vshrl.u32 %v582, 7
    %v584 = vsub.s32 1, %v583
    %v585 = vrot.slane %v576, %v584
    %v586 = vlaneseq
    %v587 = vshrl.u32 %v586, 7
    %v588 = vsub.s32 2, %v587
    %v589 = vrot.slane %v576, %v588
    %v590 = vlaneseq
    %v591 = vshrl.u32 %v590, 7
    %v592 = vsub.s32 3, %v591
    %v593 = vrot.slane %v576, %v592
    %v598 = vadd.f32 %v568, %v581
    %v599 = vadd.f32 %v569, %v585
    %v600 = vadd.f32 %v570, %v589
    %v601 = vadd.f32 %v571, %v593
    %v602 = vadd.f32 %v572, %v581
    %v603 = vadd.f32 %v573, %v585
    %v604 = vadd.f32 %v574, %v589
    %v605 = vadd.f32 %v575, %v593
    %v606 = vpack.c.bf16 %v602, %v598
    %v607 = vpack.c.bf16 %v603, %v599
    %v608 = vpack.c.bf16 %v604, %v600
    %v609 = vpack.c.bf16 %v605, %v601
    %v614 = vunpack.c.l.b16 %v606
    %v615 = vunpack.c.l.b16 %v607
    %v616 = vunpack.c.l.b16 %v608
    %v617 = vunpack.c.l.b16 %v609
    %v618 = vunpack.c.h.b16 %v606
    %v619 = vunpack.c.h.b16 %v607
    %v620 = vunpack.c.h.b16 %v608
    %v621 = vunpack.c.h.b16 %v609
    %v622 = vpack.c.b16 %v615, %v614
    %v623 = vpack.c.b16 %v617, %v616
    %v624 = vpack.c.b16 %v619, %v618
    %v625 = vpack.c.b16 %v621, %v620
    %630 = vst [vmem:[%s4] sm:$0xff] %v622
    %631 = vst [vmem:[%s4 + $0x8] sm:$0xff] %v623
    %632 = vst [vmem:[%s4 + $0x10] sm:$0xff] %v624
    %633 = vst [vmem:[%s4 + $0x18] sm:$0xff] %v625
  $region25: #{_lambda_.32} parent=0 // pred_fallthru
    _
  // Predicated region
  $region26: #{_lambda_.32} parent=0 // pred_check
    _
  $region27: #{_lambda_.32} parent=0 // pred_check_branch
    %635 = sbr.rel (0) target = $region29
  $region28: #{_lambda_.32} parent=0 // pred_region
    _
  $region29: #{_lambda_.32} parent=0 // pred_fallthru
    _
  // Predicated region
  $region30: #{_lambda_.32} parent=0 // pred_check
    _
  $region31: #{_lambda_.32} parent=0 // pred_check_branch
    %637 = sbr.rel (0) target = $region33
  $region32: #{_lambda_.32} parent=0 // pred_region
    _
  $region33: #{_lambda_.32} parent=0 // pred_fallthru
    _

// kernel: _lambda_.33
$region0: #{_lambda_.33}
  #allocation0 [shape = 'u32[]', space=smem, size = 0x4, offset = 0x4, fixed_abs, tag = 'smem constant byte address 0x4 - core index']
  #allocation1 [shape = 'u32[144,128]{1,0:T(1,128)}', space=vmem, size = 0x12000, scoped, tag = 'internal scratch']
  #allocation2 [shape = 'f32[16,512]{1,0:T(8,128)}', space=vmem, size = 0x8000, scoped, tag = 'scratch operand']
  %s0 = inlined_call_operand.vmem [shape: bf16[16,128], index: 0, kind: input, shape index: {}]
  %s1 = inlined_call_operand.vmem [shape: bf16[128,512], index: 1, kind: input, shape index: {}]
  %s2 = inlined_call_operand.vmem [shape: f32[1,512], index: 2, kind: input, shape index: {}]
  %s3 = inlined_call_operand.vmem [shape: f32[1,512], index: 3, kind: input, shape index: {}]
  %s4 = inlined_call_operand.vmem [shape: bf16[16,1], index: 4, kind: input, shape index: {}]
  %s5 = inlined_call_operand.vmem [shape: bf16[16,512], index: 5, kind: input, shape index: {}]
  %s6 = inlined_call_operand.vmem [shape: bf16[16,512], index: 6, kind: output, shape index: {}]
  %s7 = sld [smem:[#allocation0]]
  $region42: #{_lambda_.33} parent=0
    _
  %s9 = ssub.s32 1, %s7
  %s10 = scalar_select 0, %s9, %s7
  // Predicated region
  $region2: #{_lambda_.33} parent=0 // pred_check
    _
  $region3: #{_lambda_.33} parent=0 // pred_check_branch
    %12 = sbr.rel (0) target = $region5
  $region4: #{_lambda_.33} parent=0 // pred_region
    _
  $region5: #{_lambda_.33} parent=0 // pred_fallthru
    _
  // Predicated region
  $region6: #{_lambda_.33} parent=0 // pred_check
    _
  $region7: #{_lambda_.33} parent=0 // pred_check_branch
    %14 = sbr.rel (0) target = $region9
  $region8: #{_lambda_.33} parent=0 // pred_region
    _
  $region9: #{_lambda_.33} parent=0 // pred_fallthru
    _
  // Predicated region
  $region10: #{_lambda_.33} parent=0 // pred_check
    _
  $region11: #{_lambda_.33} parent=0 // pred_check_branch
    %16 = sbr.rel (0) target = $region13
  $region12: #{_lambda_.33} parent=0 // pred_region
    _
  $region13: #{_lambda_.33} parent=0 // pred_fallthru
    _
  // Predicated region
  $region14: #{_lambda_.33} parent=0 // pred_check
    _
  $region15: #{_lambda_.33} parent=0 // pred_check_branch
    %18 = sbr.rel (0) target = $region17
  $region16: #{_lambda_.33} parent=0 // pred_region
    _
  $region17: #{_lambda_.33} parent=0 // pred_fallthru
    _
  // Predicated region
  $region18: #{_lambda_.33} parent=0 // pred_check
    _
  $region19: #{_lambda_.33} parent=0 // pred_check_branch
    %20 = sbr.rel (0) target = $region21
  $region20: #{_lambda_.33} parent=0 // pred_region
    _
  $region21: #{_lambda_.33} parent=0 // pred_fallthru
    _
  // Predicated region
  $region22: #{_lambda_.33} parent=0 // pred_check
    _
  $region23: #{_lambda_.33} parent=0 // pred_check_branch
    %22 = sbr.rel (0) target = $region25
  $region24: #{_lambda_.33} parent=0 // pred_region
    _
  $region25: #{_lambda_.33} parent=0 // pred_fallthru
    _
  %p24 = scmp.eq.s32.totalorder 0, 0
  // Predicated region
  $region26: #{_lambda_.33} parent=0 // pred_check
    %p25 = pneg %p24
  $region27: #{_lambda_.33} parent=0 // pred_check_branch
    %27 = sbr.rel (%p25) target = $region29
  $region28: #{_lambda_.33} parent=0 // pred_region
    %28 = vst [vmem:[#allocation2] sm:$0xff] 0.0
    %29 = vst [vmem:[#allocation2 + $0x8] sm:$0xff] 0.0
    %30 = vst [vmem:[#allocation2 + $0x10] sm:$0xff] 0.0
    %31 = vst [vmem:[#allocation2 + $0x18] sm:$0xff] 0.0
    %32 = vst [vmem:[#allocation2 + $0x20] sm:$0xff] 0.0
    %33 = vst [vmem:[#allocation2 + $0x28] sm:$0xff] 0.0
    %34 = vst [vmem:[#allocation2 + $0x30] sm:$0xff] 0.0
    %35 = vst [vmem:[#allocation2 + $0x38] sm:$0xff] 0.0
  $region29: #{_lambda_.33} parent=0 // pred_fallthru
    _
  %v36 = vld [vmem:[#allocation2] sm:$0xff]
  %v37 = vld [vmem:[#allocation2 + $0x8] sm:$0xff]
  %v38 = vld [vmem:[#allocation2 + $0x10] sm:$0xff]
  %v39 = vld [vmem:[#allocation2 + $0x18] sm:$0xff]
  %v40 = vld [vmem:[#allocation2 + $0x20] sm:$0xff]
  %v41 = vld [vmem:[#allocation2 + $0x28] sm:$0xff]
  %v42 = vld [vmem:[#allocation2 + $0x30] sm:$0xff]
  %v43 = vld [vmem:[#allocation2 + $0x38] sm:$0xff]
  %v44 = vld [vmem:[%s0] sm:$0xf]
  %v45 = vld [vmem:[%s0 + $0x4] sm:$0xf]
  %v46 = vld [vmem:[%s1] sm:$0xff]
  %v47 = vld [vmem:[%s1 + $0x8] sm:$0xff]
  %v48 = vld [vmem:[%s1 + $0x10] sm:$0xff]
  %v49 = vld [vmem:[%s1 + $0x18] sm:$0xff]
  %v50 = vld [vmem:[%s1 + $0x20] sm:$0xff]
  %v51 = vld [vmem:[%s1 + $0x28] sm:$0xff]
  %v52 = vld [vmem:[%s1 + $0x30] sm:$0xff]
  %v53 = vld [vmem:[%s1 + $0x38] sm:$0xff]
  %v54 = vld [vmem:[%s1 + $0x40] sm:$0xff]
  %v55 = vld [vmem:[%s1 + $0x48] sm:$0xff]
  %v56 = vld [vmem:[%s1 + $0x50] sm:$0xff]
  %v57 = vld [vmem:[%s1 + $0x58] sm:$0xff]
  %v58 = vld [vmem:[%s1 + $0x60] sm:$0xff]
  %v59 = vld [vmem:[%s1 + $0x68] sm:$0xff]
  %v60 = vld [vmem:[%s1 + $0x70] sm:$0xff]
  %v61 = vld [vmem:[%s1 + $0x78] sm:$0xff]
  %v62 = vld [vmem:[%s1 + $0x80] sm:$0xff]
  %v63 = vld [vmem:[%s1 + $0x88] sm:$0xff]
  %v64 = vld [vmem:[%s1 + $0x90] sm:$0xff]
  %v65 = vld [vmem:[%s1 + $0x98] sm:$0xff]
  %v66 = vld [vmem:[%s1 + $0xa0] sm:$0xff]
  %v67 = vld [vmem:[%s1 + $0xa8] sm:$0xff]
  %v68 = vld [vmem:[%s1 + $0xb0] sm:$0xff]
  %v69 = vld [vmem:[%s1 + $0xb8] sm:$0xff]
  %v70 = vld [vmem:[%s1 + $0xc0] sm:$0xff]
  %v71 = vld [vmem:[%s1 + $0xc8] sm:$0xff]
  %v72 = vld [vmem:[%s1 + $0xd0] sm:$0xff]
  %v73 = vld [vmem:[%s1 + $0xd8] sm:$0xff]
  %v74 = vld [vmem:[%s1 + $0xe0] sm:$0xff]
  %v75 = vld [vmem:[%s1 + $0xe8] sm:$0xff]
  %v76 = vld [vmem:[%s1 + $0xf0] sm:$0xff]
  %v77 = vld [vmem:[%s1 + $0xf8] sm:$0xff]
  %v80 = vunpack.c.l.b16 %v44
  %v81 = vunpack.c.l.b16 %v45
  %v82 = vpack.c.b16 %v81, %v80
  %v116 = vunpack.c.l.b16 %v46
  %v117 = vunpack.c.h.b16 %v46
  %v118 = vunpack.c.l.b16 %v47
  %v119 = vunpack.c.h.b16 %v47
  %v120 = vunpack.c.l.b16 %v48
  %v121 = vunpack.c.h.b16 %v48
  %v122 = vunpack.c.l.b16 %v49
  %v123 = vunpack.c.h.b16 %v49
  %v124 = vunpack.c.l.b16 %v50
  %v125 = vunpack.c.h.b16 %v50
  %v126 = vunpack.c.l.b16 %v51
  %v127 = vunpack.c.h.b16 %v51
  %v128 = vunpack.c.l.b16 %v52
  %v129 = vunpack.c.h.b16 %v52
  %v130 = vunpack.c.l.b16 %v53
  %v131 = vunpack.c.h.b16 %v53
  %v132 = vunpack.c.l.b16 %v54
  %v133 = vunpack.c.h.b16 %v54
  %v134 = vunpack.c.l.b16 %v55
  %v135 = vunpack.c.h.b16 %v55
  %v136 = vunpack.c.l.b16 %v56
  %v137 = vunpack.c.h.b16 %v56
  %v138 = vunpack.c.l.b16 %v57
  %v139 = vunpack.c.h.b16 %v57
  %v140 = vunpack.c.l.b16 %v58
  %v141 = vunpack.c.h.b16 %v58
  %v142 = vunpack.c.l.b16 %v59
  %v143 = vunpack.c.h.b16 %v59
  %v144 = vunpack.c.l.b16 %v60
  %v145 = vunpack.c.h.b16 %v60
  %v146 = vunpack.c.l.b16 %v61
  %v147 = vunpack.c.h.b16 %v61
  %v148 = vunpack.c.l.b16 %v62
  %v149 = vunpack.c.h.b16 %v62
  %v150 = vunpack.c.l.b16 %v63
  %v151 = vunpack.c.h.b16 %v63
  %v152 = vunpack.c.l.b16 %v64
  %v153 = vunpack.c.h.b16 %v64
  %v154 = vunpack.c.l.b16 %v65
  %v155 = vunpack.c.h.b16 %v65
  %v156 = vunpack.c.l.b16 %v66
  %v157 = vunpack.c.h.b16 %v66
  %v158 = vunpack.c.l.b16 %v67
  %v159 = vunpack.c.h.b16 %v67
  %v160 = vunpack.c.l.b16 %v68
  %v161 = vunpack.c.h.b16 %v68
  %v162 = vunpack.c.l.b16 %v69
  %v163 = vunpack.c.h.b16 %v69
  %v164 = vunpack.c.l.b16 %v70
  %v165 = vunpack.c.h.b16 %v70
  %v166 = vunpack.c.l.b16 %v71
  %v167 = vunpack.c.h.b16 %v71
  %v168 = vunpack.c.l.b16 %v72
  %v169 = vunpack.c.h.b16 %v72
  %v170 = vunpack.c.l.b16 %v73
  %v171 = vunpack.c.h.b16 %v73
  %v172 = vunpack.c.l.b16 %v74
  %v173 = vunpack.c.h.b16 %v74
  %v174 = vunpack.c.l.b16 %v75
  %v175 = vunpack.c.h.b16 %v75
  %v176 = vunpack.c.l.b16 %v76
  %v177 = vunpack.c.h.b16 %v76
  %v178 = vunpack.c.l.b16 %v77
  %v179 = vunpack.c.h.b16 %v77
  %v180 = vpack.c.b16 %v120, %v116
  %v181 = vpack.c.b16 %v121, %v117
  %v182 = vpack.c.b16 %v122, %v118
  %v183 = vpack.c.b16 %v123, %v119
  %v184 = vpack.c.b16 %v128, %v124
  %v185 = vpack.c.b16 %v129, %v125
  %v186 = vpack.c.b16 %v130, %v126
  %v187 = vpack.c.b16 %v131, %v127
  %v188 = vpack.c.b16 %v136, %v132
  %v189 = vpack.c.b16 %v137, %v133
  %v190 = vpack.c.b16 %v138, %v134
  %v191 = vpack.c.b16 %v139, %v135
  %v192 = vpack.c.b16 %v144, %v140
  %v193 = vpack.c.b16 %v145, %v141
  %v194 = vpack.c.b16 %v146, %v142
  %v195 = vpack.c.b16 %v147, %v143
  %v196 = vpack.c.b16 %v152, %v148
  %v197 = vpack.c.b16 %v153, %v149
  %v198 = vpack.c.b16 %v154, %v150
  %v199 = vpack.c.b16 %v155, %v151
  %v200 = vpack.c.b16 %v160, %v156
  %v201 = vpack.c.b16 %v161, %v157
  %v202 = vpack.c.b16 %v162, %v158
  %v203 = vpack.c.b16 %v163, %v159
  %v204 = vpack.c.b16 %v168, %v164
  %v205 = vpack.c.b16 %v169, %v165
  %v206 = vpack.c.b16 %v170, %v166
  %v207 = vpack.c.b16 %v171, %v167
  %v208 = vpack.c.b16 %v176, %v172
  %v209 = vpack.c.b16 %v177, %v173
  %v210 = vpack.c.b16 %v178, %v174
  %v211 = vpack.c.b16 %v179, %v175
  %244 = vmatprep.subr.bf16.mxu0 %v209
  %245 = vmatpush1.bf16.msra.mxu0 %v208
  %246 = vmatprep.subr.bf16.mxu0 %v205
  %247 = vmatpush1.bf16.msra.mxu0 %v204
  %248 = vmatprep.subr.bf16.mxu0 %v201
  %249 = vmatpush1.bf16.msra.mxu0 %v200
  %250 = vmatprep.subr.bf16.mxu0 %v197
  %251 = vmatpush1.bf16.msra.mxu0 %v196
  %252 = vmatprep.subr.bf16.mxu0 %v193
  %253 = vmatpush1.bf16.msra.mxu0 %v192
  %254 = vmatprep.subr.bf16.mxu0 %v189
  %255 = vmatpush1.bf16.msra.mxu0 %v188
  %256 = vmatprep.subr.bf16.mxu0 %v185
  %257 = vmatpush1.bf16.msra.mxu0 %v184
  %258 = vmatprep.subr.bf16.mxu0 %v181
  %259 = vmatpush1.bf16.msra.mxu0 %v180
  %260 = vmatprep.subr.bf16.mxu0 0
  %261 = vmatpush2.bf16.msra.mxu0 0
  %262 = vmatprep.subr.bf16.mxu0 0
  %263 = vmatpush2.bf16.msra.mxu0 0
  %264 = vmatprep.subr.bf16.mxu0 0
  %265 = vmatpush2.bf16.msra.mxu0 0
  %266 = vmatprep.subr.bf16.mxu0 0
  %267 = vmatpush2.bf16.msra.mxu0 0
  %268 = vmatprep.subr.bf16.mxu0 0
  %269 = vmatpush2.bf16.msra.mxu0 0
  %270 = vmatprep.subr.bf16.mxu0 0
  %271 = vmatpush2.bf16.msra.mxu0 0
  %272 = vmatprep.subr.bf16.mxu0 0
  %273 = vmatpush2.bf16.msra.mxu0 0
  %274 = vmatprep.subr.bf16.mxu0 0
  %275 = vmatpush2.bf16.msra.mxu0 0
  %276 = vmatprep.mubr.bf16.mxu0 0
  %277 = vmatmul.mubr.bf16.gmra.mxu0 %v82
  %v278 = vpop.f32.mrf.mxu0
  %v279 = vadd.f32 0.0, %v278
  %v280 = vpop.f32.mrf.mxu0
  %v281 = vadd.f32 0.0, %v280
  %v282 = vpop.f32.mrf.mxu0
  %v283 = vadd.f32 0.0, %v282
  %v284 = vpop.f32.mrf.mxu0
  %v285 = vadd.f32 0.0, %v284
  %286 = vdwg.mxu0
  %287 = vmatprep.subr.bf16.mxu0 %v211
  %288 = vmatpush1.bf16.msra.mxu0 %v210
  %289 = vmatprep.subr.bf16.mxu0 %v207
  %290 = vmatpush1.bf16.msra.mxu0 %v206
  %291 = vmatprep.subr.bf16.mxu0 %v203
  %292 = vmatpush1.bf16.msra.mxu0 %v202
  %293 = vmatprep.subr.bf16.mxu0 %v199
  %294 = vmatpush1.bf16.msra.mxu0 %v198
  %295 = vmatprep.subr.bf16.mxu0 %v195
  %296 = vmatpush1.bf16.msra.mxu0 %v194
  %297 = vmatprep.subr.bf16.mxu0 %v191
  %298 = vmatpush1.bf16.msra.mxu0 %v190
  %299 = vmatprep.subr.bf16.mxu0 %v187
  %300 = vmatpush1.bf16.msra.mxu0 %v186
  %301 = vmatprep.subr.bf16.mxu0 %v183
  %302 = vmatpush1.bf16.msra.mxu0 %v182
  %303 = vmatprep.subr.bf16.mxu0 0
  %304 = vmatpush2.bf16.msra.mxu0 0
  %305 = vmatprep.subr.bf16.mxu0 0
  %306 = vmatpush2.bf16.msra.mxu0 0
  %307 = vmatprep.subr.bf16.mxu0 0
  %308 = vmatpush2.bf16.msra.mxu0 0
  %309 = vmatprep.subr.bf16.mxu0 0
  %310 = vmatpush2.bf16.msra.mxu0 0
  %311 = vmatprep.subr.bf16.mxu0 0
  %312 = vmatpush2.bf16.msra.mxu0 0
  %313 = vmatprep.subr.bf16.mxu0 0
  %314 = vmatpush2.bf16.msra.mxu0 0
  %315 = vmatprep.subr.bf16.mxu0 0
  %316 = vmatpush2.bf16.msra.mxu0 0
  %317 = vmatprep.subr.bf16.mxu0 0
  %318 = vmatpush2.bf16.msra.mxu0 0
  %319 = vmatprep.mubr.bf16.mxu0 0
  %320 = vmatmul.mubr.bf16.gmra.mxu0 %v82
  %v321 = vpop.f32.mrf.mxu0
  %v322 = vadd.f32 0.0, %v321
  %v323 = vpop.f32.mrf.mxu0
  %v324 = vadd.f32 0.0, %v323
  %v325 = vpop.f32.mrf.mxu0
  %v326 = vadd.f32 0.0, %v325
  %v327 = vpop.f32.mrf.mxu0
  %v328 = vadd.f32 0.0, %v327
  %329 = vdwg.mxu0
  %v330 = vadd.f32 %v36, %v279
  %v331 = vadd.f32 %v37, %v281
  %v332 = vadd.f32 %v38, %v322
  %v333 = vadd.f32 %v39, %v324
  %v334 = vadd.f32 %v40, %v283
  %v335 = vadd.f32 %v41, %v285
  %v336 = vadd.f32 %v42, %v326
  %v337 = vadd.f32 %v43, %v328
  %338 = vst [vmem:[#allocation2] sm:$0xff] %v330
  %339 = vst [vmem:[#allocation2 + $0x8] sm:$0xff] %v331
  %340 = vst [vmem:[#allocation2 + $0x10] sm:$0xff] %v332
  %341 = vst [vmem:[#allocation2 + $0x18] sm:$0xff] %v333
  %342 = vst [vmem:[#allocation2 + $0x20] sm:$0xff] %v334
  %343 = vst [vmem:[#allocation2 + $0x28] sm:$0xff] %v335
  %344 = vst [vmem:[#allocation2 + $0x30] sm:$0xff] %v336
  %345 = vst [vmem:[#allocation2 + $0x38] sm:$0xff] %v337
  // Predicated region
  $region30: #{_lambda_.33} parent=0 // pred_check
    %p346 = pneg %p24
  $region31: #{_lambda_.33} parent=0 // pred_check_branch
    %348 = sbr.rel (%p346) target = $region33
  $region32: #{_lambda_.33} parent=0 // pred_region
    %v349 = vld [vmem:[#allocation2] sm:$0xff]
    %v350 = vld [vmem:[#allocation2 + $0x8] sm:$0xff]
    %v351 = vld [vmem:[#allocation2 + $0x10] sm:$0xff]
    %v352 = vld [vmem:[#allocation2 + $0x18] sm:$0xff]
    %v353 = vld [vmem:[#allocation2 + $0x20] sm:$0xff]
    %v354 = vld [vmem:[#allocation2 + $0x28] sm:$0xff]
    %v355 = vld [vmem:[#allocation2 + $0x30] sm:$0xff]
    %v356 = vld [vmem:[#allocation2 + $0x38] sm:$0xff]
    %v357 = vld [vmem:[%s2] sm:$0xf]
    %v359 = vlaneseq
    %v360 = vshrl.u32 %v359, 7
    %v361 = vsub.s32 0, %v360
    %v362 = vrot.slane %v357, %v361
    %v363 = vlaneseq
    %v364 = vshrl.u32 %v363, 7
    %v365 = vsub.s32 1, %v364
    %v366 = vrot.slane %v357, %v365
    %v367 = vlaneseq
    %v368 = vshrl.u32 %v367, 7
    %v369 = vsub.s32 2, %v368
    %v370 = vrot.slane %v357, %v369
    %v371 = vlaneseq
    %v372 = vshrl.u32 %v371, 7
    %v373 = vsub.s32 3, %v372
    %v374 = vrot.slane %v357, %v373
    %v379 = vmul.f32 %v349, %v362
    %v380 = vmul.f32 %v350, %v366
    %v381 = vmul.f32 %v351, %v370
    %v382 = vmul.f32 %v352, %v374
    %v383 = vmul.f32 %v353, %v362
    %v384 = vmul.f32 %v354, %v366
    %v385 = vmul.f32 %v355, %v370
    %v386 = vmul.f32 %v356, %v374
    %v387 = vld [vmem:[%s3] sm:$0xf]
    %v389 = vlaneseq
    %v390 = vshrl.u32 %v389, 7
    %v391 = vsub.s32 0, %v390
    %v392 = vrot.slane %v387, %v391
    %v393 = vlaneseq
    %v394 = vshrl.u32 %v393, 7
    %v395 = vsub.s32 1, %v394
    %v396 = vrot.slane %v387, %v395
    %v397 = vlaneseq
    %v398 = vshrl.u32 %v397, 7
    %v399 = vsub.s32 2, %v398
    %v400 = vrot.slane %v387, %v399
    %v401 = vlaneseq
    %v402 = vshrl.u32 %v401, 7
    %v403 = vsub.s32 3, %v402
    %v404 = vrot.slane %v387, %v403
    %v409 = vadd.f32 %v379, %v392
    %v410 = vadd.f32 %v380, %v396
    %v411 = vadd.f32 %v381, %v400
    %v412 = vadd.f32 %v382, %v404
    %v413 = vadd.f32 %v383, %v392
    %v414 = vadd.f32 %v384, %v396
    %v415 = vadd.f32 %v385, %v400
    %v416 = vadd.f32 %v386, %v404
    %v417 = vld [vmem:[%s4] sm:$0xf]
    %v418 = vld [vmem:[%s4 + $0x4] sm:$0xf]
    %v419 = vunpack.c.l.bf16 %v417
    %v420 = vunpack.c.l.bf16 %v418
    %422 = vset.pattern.permute.xlu0 0
    %423 = vperm.xlu0 %422, %v419
    %v424 = vpop.permute.xlu0 %423
    %427 = vset.pattern.permute.xlu0 0
    %428 = vperm.xlu0 %427, %v420
    %v429 = vpop.permute.xlu0 %428
    %v431 = vmul.f32 %v409, %v424
    %v432 = vmul.f32 %v410, %v424
    %v433 = vmul.f32 %v411, %v424
    %v434 = vmul.f32 %v412, %v424
    %v435 = vmul.f32 %v413, %v429
    %v436 = vmul.f32 %v414, %v429
    %v437 = vmul.f32 %v415, %v429
    %v438 = vmul.f32 %v416, %v429
    %v439 = vld [vmem:[%s5] sm:$0xff]
    %v440 = vld [vmem:[%s5 + $0x8] sm:$0xff]
    %v441 = vld [vmem:[%s5 + $0x10] sm:$0xff]
    %v442 = vld [vmem:[%s5 + $0x18] sm:$0xff]
    %v443 = vunpack.c.l.bf16 %v439
    %v444 = vunpack.c.h.bf16 %v439
    %v445 = vunpack.c.l.bf16 %v440
    %v446 = vunpack.c.h.bf16 %v440
    %v447 = vunpack.c.l.bf16 %v441
    %v448 = vunpack.c.h.bf16 %v441
    %v449 = vunpack.c.l.bf16 %v442
    %v450 = vunpack.c.h.bf16 %v442
    %v451 = vadd.f32 %v431, %v443
    %v452 = vadd.f32 %v432, %v444
    %v453 = vadd.f32 %v433, %v445
    %v454 = vadd.f32 %v434, %v446
    %v455 = vadd.f32 %v435, %v447
    %v456 = vadd.f32 %v436, %v448
    %v457 = vadd.f32 %v437, %v449
    %v458 = vadd.f32 %v438, %v450
    %v459 = vmax.f32 %v451, 0.0
    %v460 = vmax.f32 %v452, 0.0
    %v461 = vmax.f32 %v453, 0.0
    %v462 = vmax.f32 %v454, 0.0
    %v463 = vmax.f32 %v455, 0.0
    %v464 = vmax.f32 %v456, 0.0
    %v465 = vmax.f32 %v457, 0.0
    %v466 = vmax.f32 %v458, 0.0
    %v467 = vpack.c.bf16 %v463, %v459
    %v468 = vpack.c.bf16 %v464, %v460
    %v469 = vpack.c.bf16 %v465, %v461
    %v470 = vpack.c.bf16 %v466, %v462
    %v475 = vunpack.c.l.b16 %v467
    %v476 = vunpack.c.l.b16 %v468
    %v477 = vunpack.c.l.b16 %v469
    %v478 = vunpack.c.l.b16 %v470
    %v479 = vunpack.c.h.b16 %v467
    %v480 = vunpack.c.h.b16 %v468
    %v481 = vunpack.c.h.b16 %v469
    %v482 = vunpack.c.h.b16 %v470
    %v483 = vpack.c.b16 %v476, %v475
    %v484 = vpack.c.b16 %v478, %v477
    %v485 = vpack.c.b16 %v480, %v479
    %v486 = vpack.c.b16 %v482, %v481
    %491 = vst [vmem:[%s6] sm:$0xff] %v483
    %492 = vst [vmem:[%s6 + $0x8] sm:$0xff] %v484
    %493 = vst [vmem:[%s6 + $0x10] sm:$0xff] %v485
    %494 = vst [vmem:[%s6 + $0x18] sm:$0xff] %v486
  $region33: #{_lambda_.33} parent=0 // pred_fallthru
    _
  // Predicated region
  $region34: #{_lambda_.33} parent=0 // pred_check
    _
  $region35: #{_lambda_.33} parent=0 // pred_check_branch
    %496 = sbr.rel (0) target = $region37
  $region36: #{_lambda_.33} parent=0 // pred_region
    _
  $region37: #{_lambda_.33} parent=0 // pred_fallthru
    _
  // Predicated region
  $region38: #{_lambda_.33} parent=0 // pred_check
    _
  $region39: #{_lambda_.33} parent=0 // pred_check_branch
    %498 = sbr.rel (0) target = $region41
  $region40: #{_lambda_.33} parent=0 // pred_region
    _
  $region41: #{_lambda_.33} parent=0 // pred_fallthru
    _

</llo_original>
